<compile_context>
chip_gen: v7x
topology: tpu7x:2x2x1
jax: 0.10.0
libtpu: 0.0.40
codegen_flags: <defaults>
</compile_context>

<pallas_src>
import jax
import jax.numpy as jnp
from jax.experimental import pallas as pl
from jax.experimental.pallas import tpu as pltpu


# ---------------------------------------------------------------------------
# Kernel 1: fused conv1 -> ReLU -> pool -> conv2 -> ReLU -> pool (one image/step)
# ---------------------------------------------------------------------------
def _conv_tower_kernel(x_ref, w1_ref, b1_ref, w2_ref, b2_ref, o_ref,
                       p1e_ref, p1o_ref):
    """Per grid step (one image):
      x_ref : (1, 4, 8, 96)  input rows split by residue mod 4; 96 = 32*3 (W*C, NHWC)
      w1_ref: (5, 2, 96, 84) banded conv1 weights [row tap di, output-col parity]
      b1_ref: (1, 84)        conv1 bias tiled over the 14 pooled output columns
      w2_ref: (5, 2, 84, 80) banded conv2 weights
      b2_ref: (1, 80)        conv2 bias tiled over the 5 pooled output columns
      o_ref : (1, 5, 80)     pooled conv2 output, rows = h, cols = w*16 + c
      p1e_ref/p1o_ref: (7, 84) VMEM scratch: pooled conv1 output, even/odd rows
    """
    # ---- conv1 + bias + ReLU + 2x2 maxpool --------------------------------
    # Conv1 output row oh = 4*j + r.  Pooling pairs rows (4k,4k+1) -> even
    # pooled rows, (4k+2,4k+3) -> odd pooled rows; output columns are paired
    # via the even/odd-column banded weight matrices.  All static, no strides.
    for half, p1_ref in ((0, p1e_ref), (1, p1o_ref)):
        m = None
        for r in (2 * half, 2 * half + 1):           # conv-row residue mod 4
            for wp in (0, 1):                        # conv-column parity
                acc = None
                for di in range(5):                  # kernel row tap
                    q, s = (r + di) % 4, (r + di) // 4
                    xs = x_ref[0, q, pl.ds(s, 7), :]               # (7, 96)
                    d = jnp.dot(xs, w1_ref[di, wp],
                                preferred_element_type=jnp.float32)  # (7, 84)
                    acc = d if acc is None else acc + d
                m = acc if m is None else jnp.maximum(m, acc)
        p1_ref[...] = jnp.maximum(m + b1_ref[...], 0.0)            # (7, 84)

    # ---- conv2 + bias + ReLU + 2x2 maxpool --------------------------------
    m2 = None
    for rp in (0, 1):                                # conv2 output-row parity
        for wp in (0, 1):                            # conv2 output-col parity
            acc = None
            for di in range(5):
                qq, ss = (rp + di) % 2, (rp + di) // 2
                src = p1e_ref if qq == 0 else p1o_ref
                d = jnp.dot(src[pl.ds(ss, 5), :], w2_ref[di, wp],
                            preferred_element_type=jnp.float32)     # (5, 80)
                acc = d if acc is None else acc + d
            m2 = acc if m2 is None else jnp.maximum(m2, acc)
    o_ref[0] = jnp.maximum(m2 + b2_ref[...], 0.0)                  # (5, 80)


# ---------------------------------------------------------------------------
# Kernel 2: fused fc1 + fc2 + fc3 + log_softmax
# ---------------------------------------------------------------------------
def _fc_stack_kernel(x_ref, w1_ref, b1_ref, w2_ref, b2_ref, w3_ref, b3_ref,
                     o_ref):
    h = jnp.dot(x_ref[...], w1_ref[...],
                preferred_element_type=jnp.float32) + b1_ref[...]
    h = jnp.maximum(h, 0.0)
    h = jnp.dot(h, w2_ref[...],
                preferred_element_type=jnp.float32) + b2_ref[...]
    h = jnp.maximum(h, 0.0)
    z = jnp.dot(h, w3_ref[...],
                preferred_element_type=jnp.float32) + b3_ref[...]
    z = z - jnp.max(z, axis=-1, keepdims=True)
    lse = jnp.log(jnp.sum(jnp.exp(z), axis=-1, keepdims=True))
    o_ref[...] = (z - lse).astype(o_ref.dtype)


# ---------------------------------------------------------------------------
# JAX-side weight preparation (tiny, one pass over the parameters)
# ---------------------------------------------------------------------------
def _banded_conv_weights(w, w_in):
    """(OC, IC, KH, KW) torch conv weight -> (KH, 2, W_in*IC, (OW//2)*OC).
    result[di, p, wi*IC+ic, pw*OC+oc] = w[oc, ic, di, wi-(2*pw+p)] (0 if out of band).
    """
    oc_n, ic_n, kh, kw = w.shape
    ow = w_in - kw + 1
    wi = jnp.arange(w_in)[:, None]
    owi = jnp.arange(ow)[None, :]
    dj = wi - owi                                           # (W_in, OW)
    valid = ((dj >= 0) & (dj < kw)).astype(w.dtype)
    dj_c = jnp.clip(dj, 0, kw - 1)
    wt = jnp.transpose(w, (2, 3, 1, 0))                     # (KH, KW, IC, OC)
    g = wt[:, dj_c] * valid[None, :, :, None, None]         # (KH, W_in, OW, IC, OC)
    g = jnp.transpose(g, (0, 1, 3, 2, 4))                   # (KH, W_in, IC, OW, OC)
    g = g.reshape(kh, w_in * ic_n, ow, oc_n)
    even = g[:, :, 0::2, :].reshape(kh, w_in * ic_n, (ow // 2) * oc_n)
    odd = g[:, :, 1::2, :].reshape(kh, w_in * ic_n, (ow // 2) * oc_n)
    return jnp.stack([even, odd], axis=1)                   # (KH, 2, ., .)


# ---------------------------------------------------------------------------
# Pallas wrappers
# ---------------------------------------------------------------------------
def conv_tower_pallas(x_nchw, w1, b1, w2, b2):
    bsz = x_nchw.shape[0]
    # NCHW -> NHWC -> (B, 32, 96) -> row residue-mod-4 layout (B, 4, 8, 96).
    x = jnp.transpose(x_nchw, (0, 2, 3, 1)).reshape(bsz, 32, 96)
    x = x.reshape(bsz, 8, 4, 96).transpose(0, 2, 1, 3)

    w1b = _banded_conv_weights(w1, 32)          # (5, 2, 96, 84)
    w2b = _banded_conv_weights(w2, 14)          # (5, 2, 84, 80)
    b1r = jnp.tile(b1, 14).reshape(1, 84)
    b2r = jnp.tile(b2, 5).reshape(1, 80)

    out = pl.pallas_call(
        _conv_tower_kernel,
        out_shape=jax.ShapeDtypeStruct((bsz, 5, 80), x.dtype),
        grid=(bsz,),
        in_specs=[
            pl.BlockSpec((1, 4, 8, 96), lambda b: (b, 0, 0, 0)),
            pl.BlockSpec((5, 2, 96, 84), lambda b: (0, 0, 0, 0)),
            pl.BlockSpec((1, 84), lambda b: (0, 0)),
            pl.BlockSpec((5, 2, 84, 80), lambda b: (0, 0, 0, 0)),
            pl.BlockSpec((1, 80), lambda b: (0, 0)),
        ],
        out_specs=pl.BlockSpec((1, 5, 80), lambda b: (b, 0, 0)),
        scratch_shapes=[pltpu.VMEM((7, 84), jnp.float32),
                        pltpu.VMEM((7, 84), jnp.float32)],
        compiler_params=pltpu.CompilerParams(
            dimension_semantics=("parallel",)),
    )(x, w1b, b1r, w2b, b2r)
    return out.reshape(bsz, 400)        # flattened as (h, w, c)


def _pick_row_tile(m, target=256):
    """Largest row tile <= target dividing m (multiple of 8), else m."""
    if m <= target:
        return m
    for t in range(target - target % 8, 7, -8):
        if m % t == 0:
            return t
    return m  # TODO(synk): cdiv grid + masked remainder tile for awkward batch sizes.


def fc_stack_pallas(x, w1, b1, w2, b2, w3, b3):
    m, k = x.shape
    n1, n2, n3 = w1.shape[1], w2.shape[1], w3.shape[1]
    tm = _pick_row_tile(m)
    return pl.pallas_call(
        _fc_stack_kernel,
        out_shape=jax.ShapeDtypeStruct((m, n3), x.dtype),
        grid=(m // tm,),
        in_specs=[
            pl.BlockSpec((tm, k), lambda i: (i, 0)),
            pl.BlockSpec((k, n1), lambda i: (0, 0)),
            pl.BlockSpec((1, n1), lambda i: (0, 0)),
            pl.BlockSpec((n1, n2), lambda i: (0, 0)),
            pl.BlockSpec((1, n2), lambda i: (0, 0)),
            pl.BlockSpec((n2, n3), lambda i: (0, 0)),
            pl.BlockSpec((1, n3), lambda i: (0, 0)),
        ],
        out_specs=pl.BlockSpec((tm, n3), lambda i: (i, 0)),
        compiler_params=pltpu.CompilerParams(
            dimension_semantics=("parallel",)),
    )(x, w1, b1.reshape(1, n1), w2, b2.reshape(1, n2), w3, b3.reshape(1, n3))


# ---------------------------------------------------------------------------
# Model
# ---------------------------------------------------------------------------
def cnn_cifar10_forward(params, x_nchw):
    x = conv_tower_pallas(x_nchw, params["conv1_w"], params["conv1_b"],
                          params["conv2_w"], params["conv2_b"])        # (B, 400) in (h,w,c)
    # Absorb torch's NCHW flatten order (c*25 + h*5 + w) into fc1's columns.
    fc1_w = params["fc1_w"].reshape(120, 16, 5, 5).transpose(0, 2, 3, 1)
    fc1_w = fc1_w.reshape(120, 400)
    return fc_stack_pallas(x, fc1_w.T, params["fc1_b"],
                           params["fc2_w"].T, params["fc2_b"],
                           params["fc3_w"].T, params["fc3_b"])         # (B, 10)


def init_params(key):
    """Deterministic PyTorch-default-style uniform init (bound = 1/sqrt(fan_in))."""
    def u(k, shape, fan_in):
        bound = 1.0 / (fan_in ** 0.5)
        return jax.random.uniform(k, shape, jnp.float32, -bound, bound)

    ks = jax.random.split(key, 10)
    return {
        "conv1_w": u(ks[0], (6, 3, 5, 5), 3 * 25),
        "conv1_b": u(ks[1], (6,), 3 * 25),
        "conv2_w": u(ks[2], (16, 6, 5, 5), 6 * 25),
        "conv2_b": u(ks[3], (16,), 6 * 25),
        "fc1_w": u(ks[4], (120, 400), 400),
        "fc1_b": u(ks[5], (120,), 400),
        "fc2_w": u(ks[6], (84, 120), 120),
        "fc2_b": u(ks[7], (84,), 120),
        "fc3_w": u(ks[8], (10, 84), 84),
        "fc3_b": u(ks[9], (10,), 84),
    }


def _reference_forward(params, x_nchw):
    """Pure-JAX reference (same math as the PyTorch module)."""
    x = jnp.transpose(x_nchw, (0, 2, 3, 1))

    def conv(y, w, b):
        y = jax.lax.conv_general_dilated(
            y, jnp.transpose(w, (2, 3, 1, 0)), (1, 1), "VALID",
            dimension_numbers=("NHWC", "HWIO", "NHWC"))
        return jax.nn.relu(y + b)

    def pool(y):
        return jax.lax.reduce_window(y, -jnp.inf, jax.lax.max,
                                     (1, 2, 2, 1), (1, 2, 2, 1), "VALID")

    x = pool(conv(x, params["conv1_w"], params["conv1_b"]))
    x = pool(conv(x, params["conv2_w"], params["conv2_b"]))
    x = jnp.transpose(x, (0, 3, 1, 2)).reshape(x.shape[0], -1)
    x = jax.nn.relu(x @ params["fc1_w"].T + params["fc1_b"])
    x = jax.nn.relu(x @ params["fc2_w"].T + params["fc2_b"])
    x = x @ params["fc3_w"].T + params["fc3_b"]
    return jax.nn.log_softmax(x, axis=-1)


if __name__ == "__main__":
    key = jax.random.PRNGKey(0)
    pkey, xkey = jax.random.split(key)
    params = init_params(pkey)
    # CIFAR-10 geometry is fixed by the module (view(-1, 16*5*5) requires 32x32 input).
    x = jax.random.normal(xkey, (2, 3, 32, 32), jnp.float32)

    fwd = jax.jit(cnn_cifar10_forward)
    out = jax.block_until_ready(fwd(params, x))
    assert out.shape == (2, 10), out.shape

    ref = jax.block_until_ready(jax.jit(_reference_forward)(params, x))
    max_err = float(jnp.max(jnp.abs(out - ref)))
    assert max_err < 1e-3, f"max abs error vs reference: {max_err}"
    row_sums = jnp.exp(out).sum(axis=1)
    assert bool(jnp.all(jnp.abs(row_sums - 1.0) < 1e-4)), row_sums
    print("KERNEL_OK")
</pallas_src>

<mosaic_0001>
module attributes {stable_mosaic.version = 11 : i64} {
  func.func @_conv_tower_kernel(%arg0: i32, %arg1: memref<1x4x8x96xf32, #tpu.memory_space<vmem>>, %arg2: memref<5x2x96x84xf32, #tpu.memory_space<vmem>>, %arg3: memref<1x84xf32, #tpu.memory_space<vmem>>, %arg4: memref<5x2x84x80xf32, #tpu.memory_space<vmem>>, %arg5: memref<1x80xf32, #tpu.memory_space<vmem>>, %arg6: memref<1x5x80xf32, #tpu.memory_space<vmem>>, %arg7: memref<7x84xf32, #tpu.memory_space<vmem>>, %arg8: memref<7x84xf32, #tpu.memory_space<vmem>>) attributes {dimension_semantics = [#tpu.dimension_semantics<parallel>], iteration_bounds = array<i64: 2>, scalar_prefetch = 0 : i64, scratch_operands = 2 : i64, tpu.core_type = #tpu.core_type<tc>, window_params = [{transform_indices = @transform_0, window_bounds = array<i64: 1, 4, 8, 96>}, {pipeline_mode = #tpu.pipeline_mode<synchronous>, transform_indices = @transform_1, window_bounds = array<i64: 5, 2, 96, 84>}, {pipeline_mode = #tpu.pipeline_mode<synchronous>, transform_indices = @transform_2, window_bounds = array<i64: 1, 84>}, {pipeline_mode = #tpu.pipeline_mode<synchronous>, transform_indices = @transform_3, window_bounds = array<i64: 5, 2, 84, 80>}, {pipeline_mode = #tpu.pipeline_mode<synchronous>, transform_indices = @transform_4, window_bounds = array<i64: 1, 80>}, {transform_indices = @transform_5, window_bounds = array<i64: 1, 5, 80>}]} {
    %c0 = arith.constant 0 : index
    %c0_0 = arith.constant 0 : index
    %c0_1 = arith.constant 0 : index
    %c0_2 = arith.constant 0 : index
    %0 = vector.load %arg1[%c0, %c0_0, %c0_1, %c0_2] : memref<1x4x8x96xf32, #tpu.memory_space<vmem>>, vector<1x1x7x96xf32>
    %1 = vector.shape_cast %0 : vector<1x1x7x96xf32> to vector<7x96xf32>
    %c0_3 = arith.constant 0 : index
    %c0_4 = arith.constant 0 : index
    %c0_5 = arith.constant 0 : index
    %c0_6 = arith.constant 0 : index
    %2 = vector.load %arg2[%c0_3, %c0_4, %c0_5, %c0_6] : memref<5x2x96x84xf32, #tpu.memory_space<vmem>>, vector<1x1x96x84xf32>
    %3 = vector.shape_cast %2 : vector<1x1x96x84xf32> to vector<96x84xf32>
    %cst = arith.constant dense<0.000000e+00> : vector<7x84xf32>
    %4 = tpu.matmul %1, %3, %cst {dimension_numbers = #tpu.dot_dimension_numbers<[1], [0], [0], [1], [0, 0, 1, 1], [], []>} : vector<7x96xf32>, vector<96x84xf32>, vector<7x84xf32> -> vector<7x84xf32>
    %c0_7 = arith.constant 0 : index
    %c1 = arith.constant 1 : index
    %c0_8 = arith.constant 0 : index
    %c0_9 = arith.constant 0 : index
    %5 = vector.load %arg1[%c0_7, %c1, %c0_8, %c0_9] : memref<1x4x8x96xf32, #tpu.memory_space<vmem>>, vector<1x1x7x96xf32>
    %6 = vector.shape_cast %5 : vector<1x1x7x96xf32> to vector<7x96xf32>
    %c1_10 = arith.constant 1 : index
    %c0_11 = arith.constant 0 : index
    %c0_12 = arith.constant 0 : index
    %c0_13 = arith.constant 0 : index
    %7 = vector.load %arg2[%c1_10, %c0_11, %c0_12, %c0_13] : memref<5x2x96x84xf32, #tpu.memory_space<vmem>>, vector<1x1x96x84xf32>
    %8 = vector.shape_cast %7 : vector<1x1x96x84xf32> to vector<96x84xf32>
    %cst_14 = arith.constant dense<0.000000e+00> : vector<7x84xf32>
    %9 = tpu.matmul %6, %8, %cst_14 {dimension_numbers = #tpu.dot_dimension_numbers<[1], [0], [0], [1], [0, 0, 1, 1], [], []>} : vector<7x96xf32>, vector<96x84xf32>, vector<7x84xf32> -> vector<7x84xf32>
    %10 = arith.addf %4, %9 : vector<7x84xf32>
    %c0_15 = arith.constant 0 : index
    %c2 = arith.constant 2 : index
    %c0_16 = arith.constant 0 : index
    %c0_17 = arith.constant 0 : index
    %11 = vector.load %arg1[%c0_15, %c2, %c0_16, %c0_17] : memref<1x4x8x96xf32, #tpu.memory_space<vmem>>, vector<1x1x7x96xf32>
    %12 = vector.shape_cast %11 : vector<1x1x7x96xf32> to vector<7x96xf32>
    %c2_18 = arith.constant 2 : index
    %c0_19 = arith.constant 0 : index
    %c0_20 = arith.constant 0 : index
    %c0_21 = arith.constant 0 : index
    %13 = vector.load %arg2[%c2_18, %c0_19, %c0_20, %c0_21] : memref<5x2x96x84xf32, #tpu.memory_space<vmem>>, vector<1x1x96x84xf32>
    %14 = vector.shape_cast %13 : vector<1x1x96x84xf32> to vector<96x84xf32>
    %cst_22 = arith.constant dense<0.000000e+00> : vector<7x84xf32>
    %15 = tpu.matmul %12, %14, %cst_22 {dimension_numbers = #tpu.dot_dimension_numbers<[1], [0], [0], [1], [0, 0, 1, 1], [], []>} : vector<7x96xf32>, vector<96x84xf32>, vector<7x84xf32> -> vector<7x84xf32>
    %16 = arith.addf %10, %15 : vector<7x84xf32>
    %c0_23 = arith.constant 0 : index
    %c3 = arith.constant 3 : index
    %c0_24 = arith.constant 0 : index
    %c0_25 = arith.constant 0 : index
    %17 = vector.load %arg1[%c0_23, %c3, %c0_24, %c0_25] : memref<1x4x8x96xf32, #tpu.memory_space<vmem>>, vector<1x1x7x96xf32>
    %18 = vector.shape_cast %17 : vector<1x1x7x96xf32> to vector<7x96xf32>
    %c3_26 = arith.constant 3 : index
    %c0_27 = arith.constant 0 : index
    %c0_28 = arith.constant 0 : index
    %c0_29 = arith.constant 0 : index
    %19 = vector.load %arg2[%c3_26, %c0_27, %c0_28, %c0_29] : memref<5x2x96x84xf32, #tpu.memory_space<vmem>>, vector<1x1x96x84xf32>
    %20 = vector.shape_cast %19 : vector<1x1x96x84xf32> to vector<96x84xf32>
    %cst_30 = arith.constant dense<0.000000e+00> : vector<7x84xf32>
    %21 = tpu.matmul %18, %20, %cst_30 {dimension_numbers = #tpu.dot_dimension_numbers<[1], [0], [0], [1], [0, 0, 1, 1], [], []>} : vector<7x96xf32>, vector<96x84xf32>, vector<7x84xf32> -> vector<7x84xf32>
    %22 = arith.addf %16, %21 : vector<7x84xf32>
    %c0_31 = arith.constant 0 : index
    %c0_32 = arith.constant 0 : index
    %c1_33 = arith.constant 1 : index
    %c0_34 = arith.constant 0 : index
    %23 = vector.load %arg1[%c0_31, %c0_32, %c1_33, %c0_34] : memref<1x4x8x96xf32, #tpu.memory_space<vmem>>, vector<1x1x7x96xf32>
    %24 = vector.shape_cast %23 : vector<1x1x7x96xf32> to vector<7x96xf32>
    %c4 = arith.constant 4 : index
    %c0_35 = arith.constant 0 : index
    %c0_36 = arith.constant 0 : index
    %c0_37 = arith.constant 0 : index
    %25 = vector.load %arg2[%c4, %c0_35, %c0_36, %c0_37] : memref<5x2x96x84xf32, #tpu.memory_space<vmem>>, vector<1x1x96x84xf32>
    %26 = vector.shape_cast %25 : vector<1x1x96x84xf32> to vector<96x84xf32>
    %cst_38 = arith.constant dense<0.000000e+00> : vector<7x84xf32>
    %27 = tpu.matmul %24, %26, %cst_38 {dimension_numbers = #tpu.dot_dimension_numbers<[1], [0], [0], [1], [0, 0, 1, 1], [], []>} : vector<7x96xf32>, vector<96x84xf32>, vector<7x84xf32> -> vector<7x84xf32>
    %28 = arith.addf %22, %27 : vector<7x84xf32>
    %c0_39 = arith.constant 0 : index
    %c0_40 = arith.constant 0 : index
    %c0_41 = arith.constant 0 : index
    %c0_42 = arith.constant 0 : index
    %29 = vector.load %arg1[%c0_39, %c0_40, %c0_41, %c0_42] : memref<1x4x8x96xf32, #tpu.memory_space<vmem>>, vector<1x1x7x96xf32>
    %30 = vector.shape_cast %29 : vector<1x1x7x96xf32> to vector<7x96xf32>
    %c0_43 = arith.constant 0 : index
    %c1_44 = arith.constant 1 : index
    %c0_45 = arith.constant 0 : index
    %c0_46 = arith.constant 0 : index
    %31 = vector.load %arg2[%c0_43, %c1_44, %c0_45, %c0_46] : memref<5x2x96x84xf32, #tpu.memory_space<vmem>>, vector<1x1x96x84xf32>
    %32 = vector.shape_cast %31 : vector<1x1x96x84xf32> to vector<96x84xf32>
    %cst_47 = arith.constant dense<0.000000e+00> : vector<7x84xf32>
    %33 = tpu.matmul %30, %32, %cst_47 {dimension_numbers = #tpu.dot_dimension_numbers<[1], [0], [0], [1], [0, 0, 1, 1], [], []>} : vector<7x96xf32>, vector<96x84xf32>, vector<7x84xf32> -> vector<7x84xf32>
    %c0_48 = arith.constant 0 : index
    %c1_49 = arith.constant 1 : index
    %c0_50 = arith.constant 0 : index
    %c0_51 = arith.constant 0 : index
    %34 = vector.load %arg1[%c0_48, %c1_49, %c0_50, %c0_51] : memref<1x4x8x96xf32, #tpu.memory_space<vmem>>, vector<1x1x7x96xf32>
    %35 = vector.shape_cast %34 : vector<1x1x7x96xf32> to vector<7x96xf32>
    %c1_52 = arith.constant 1 : index
    %c1_53 = arith.constant 1 : index
    %c0_54 = arith.constant 0 : index
    %c0_55 = arith.constant 0 : index
    %36 = vector.load %arg2[%c1_52, %c1_53, %c0_54, %c0_55] : memref<5x2x96x84xf32, #tpu.memory_space<vmem>>, vector<1x1x96x84xf32>
    %37 = vector.shape_cast %36 : vector<1x1x96x84xf32> to vector<96x84xf32>
    %cst_56 = arith.constant dense<0.000000e+00> : vector<7x84xf32>
    %38 = tpu.matmul %35, %37, %cst_56 {dimension_numbers = #tpu.dot_dimension_numbers<[1], [0], [0], [1], [0, 0, 1, 1], [], []>} : vector<7x96xf32>, vector<96x84xf32>, vector<7x84xf32> -> vector<7x84xf32>
    %39 = arith.addf %33, %38 : vector<7x84xf32>
    %c0_57 = arith.constant 0 : index
    %c2_58 = arith.constant 2 : index
    %c0_59 = arith.constant 0 : index
    %c0_60 = arith.constant 0 : index
    %40 = vector.load %arg1[%c0_57, %c2_58, %c0_59, %c0_60] : memref<1x4x8x96xf32, #tpu.memory_space<vmem>>, vector<1x1x7x96xf32>
    %41 = vector.shape_cast %40 : vector<1x1x7x96xf32> to vector<7x96xf32>
    %c2_61 = arith.constant 2 : index
    %c1_62 = arith.constant 1 : index
    %c0_63 = arith.constant 0 : index
    %c0_64 = arith.constant 0 : index
    %42 = vector.load %arg2[%c2_61, %c1_62, %c0_63, %c0_64] : memref<5x2x96x84xf32, #tpu.memory_space<vmem>>, vector<1x1x96x84xf32>
    %43 = vector.shape_cast %42 : vector<1x1x96x84xf32> to vector<96x84xf32>
    %cst_65 = arith.constant dense<0.000000e+00> : vector<7x84xf32>
    %44 = tpu.matmul %41, %43, %cst_65 {dimension_numbers = #tpu.dot_dimension_numbers<[1], [0], [0], [1], [0, 0, 1, 1], [], []>} : vector<7x96xf32>, vector<96x84xf32>, vector<7x84xf32> -> vector<7x84xf32>
    %45 = arith.addf %39, %44 : vector<7x84xf32>
    %c0_66 = arith.constant 0 : index
    %c3_67 = arith.constant 3 : index
    %c0_68 = arith.constant 0 : index
    %c0_69 = arith.constant 0 : index
    %46 = vector.load %arg1[%c0_66, %c3_67, %c0_68, %c0_69] : memref<1x4x8x96xf32, #tpu.memory_space<vmem>>, vector<1x1x7x96xf32>
    %47 = vector.shape_cast %46 : vector<1x1x7x96xf32> to vector<7x96xf32>
    %c3_70 = arith.constant 3 : index
    %c1_71 = arith.constant 1 : index
    %c0_72 = arith.constant 0 : index
    %c0_73 = arith.constant 0 : index
    %48 = vector.load %arg2[%c3_70, %c1_71, %c0_72, %c0_73] : memref<5x2x96x84xf32, #tpu.memory_space<vmem>>, vector<1x1x96x84xf32>
    %49 = vector.shape_cast %48 : vector<1x1x96x84xf32> to vector<96x84xf32>
    %cst_74 = arith.constant dense<0.000000e+00> : vector<7x84xf32>
    %50 = tpu.matmul %47, %49, %cst_74 {dimension_numbers = #tpu.dot_dimension_numbers<[1], [0], [0], [1], [0, 0, 1, 1], [], []>} : vector<7x96xf32>, vector<96x84xf32>, vector<7x84xf32> -> vector<7x84xf32>
    %51 = arith.addf %45, %50 : vector<7x84xf32>
    %c0_75 = arith.constant 0 : index
    %c0_76 = arith.constant 0 : index
    %c1_77 = arith.constant 1 : index
    %c0_78 = arith.constant 0 : index
    %52 = vector.load %arg1[%c0_75, %c0_76, %c1_77, %c0_78] : memref<1x4x8x96xf32, #tpu.memory_space<vmem>>, vector<1x1x7x96xf32>
    %53 = vector.shape_cast %52 : vector<1x1x7x96xf32> to vector<7x96xf32>
    %c4_79 = arith.constant 4 : index
    %c1_80 = arith.constant 1 : index
    %c0_81 = arith.constant 0 : index
    %c0_82 = arith.constant 0 : index
    %54 = vector.load %arg2[%c4_79, %c1_80, %c0_81, %c0_82] : memref<5x2x96x84xf32, #tpu.memory_space<vmem>>, vector<1x1x96x84xf32>
    %55 = vector.shape_cast %54 : vector<1x1x96x84xf32> to vector<96x84xf32>
    %cst_83 = arith.constant dense<0.000000e+00> : vector<7x84xf32>
    %56 = tpu.matmul %53, %55, %cst_83 {dimension_numbers = #tpu.dot_dimension_numbers<[1], [0], [0], [1], [0, 0, 1, 1], [], []>} : vector<7x96xf32>, vector<96x84xf32>, vector<7x84xf32> -> vector<7x84xf32>
    %57 = arith.addf %51, %56 : vector<7x84xf32>
    %58 = arith.maximumf %28, %57 : vector<7x84xf32>
    %c0_84 = arith.constant 0 : index
    %c1_85 = arith.constant 1 : index
    %c0_86 = arith.constant 0 : index
    %c0_87 = arith.constant 0 : index
    %59 = vector.load %arg1[%c0_84, %c1_85, %c0_86, %c0_87] : memref<1x4x8x96xf32, #tpu.memory_space<vmem>>, vector<1x1x7x96xf32>
    %60 = vector.shape_cast %59 : vector<1x1x7x96xf32> to vector<7x96xf32>
    %c0_88 = arith.constant 0 : index
    %c0_89 = arith.constant 0 : index
    %c0_90 = arith.constant 0 : index
    %c0_91 = arith.constant 0 : index
    %61 = vector.load %arg2[%c0_88, %c0_89, %c0_90, %c0_91] : memref<5x2x96x84xf32, #tpu.memory_space<vmem>>, vector<1x1x96x84xf32>
    %62 = vector.shape_cast %61 : vector<1x1x96x84xf32> to vector<96x84xf32>
    %cst_92 = arith.constant dense<0.000000e+00> : vector<7x84xf32>
    %63 = tpu.matmul %60, %62, %cst_92 {dimension_numbers = #tpu.dot_dimension_numbers<[1], [0], [0], [1], [0, 0, 1, 1], [], []>} : vector<7x96xf32>, vector<96x84xf32>, vector<7x84xf32> -> vector<7x84xf32>
    %c0_93 = arith.constant 0 : index
    %c2_94 = arith.constant 2 : index
    %c0_95 = arith.constant 0 : index
    %c0_96 = arith.constant 0 : index
    %64 = vector.load %arg1[%c0_93, %c2_94, %c0_95, %c0_96] : memref<1x4x8x96xf32, #tpu.memory_space<vmem>>, vector<1x1x7x96xf32>
    %65 = vector.shape_cast %64 : vector<1x1x7x96xf32> to vector<7x96xf32>
    %c1_97 = arith.constant 1 : index
    %c0_98 = arith.constant 0 : index
    %c0_99 = arith.constant 0 : index
    %c0_100 = arith.constant 0 : index
    %66 = vector.load %arg2[%c1_97, %c0_98, %c0_99, %c0_100] : memref<5x2x96x84xf32, #tpu.memory_space<vmem>>, vector<1x1x96x84xf32>
    %67 = vector.shape_cast %66 : vector<1x1x96x84xf32> to vector<96x84xf32>
    %cst_101 = arith.constant dense<0.000000e+00> : vector<7x84xf32>
    %68 = tpu.matmul %65, %67, %cst_101 {dimension_numbers = #tpu.dot_dimension_numbers<[1], [0], [0], [1], [0, 0, 1, 1], [], []>} : vector<7x96xf32>, vector<96x84xf32>, vector<7x84xf32> -> vector<7x84xf32>
    %69 = arith.addf %63, %68 : vector<7x84xf32>
    %c0_102 = arith.constant 0 : index
    %c3_103 = arith.constant 3 : index
    %c0_104 = arith.constant 0 : index
    %c0_105 = arith.constant 0 : index
    %70 = vector.load %arg1[%c0_102, %c3_103, %c0_104, %c0_105] : memref<1x4x8x96xf32, #tpu.memory_space<vmem>>, vector<1x1x7x96xf32>
    %71 = vector.shape_cast %70 : vector<1x1x7x96xf32> to vector<7x96xf32>
    %c2_106 = arith.constant 2 : index
    %c0_107 = arith.constant 0 : index
    %c0_108 = arith.constant 0 : index
    %c0_109 = arith.constant 0 : index
    %72 = vector.load %arg2[%c2_106, %c0_107, %c0_108, %c0_109] : memref<5x2x96x84xf32, #tpu.memory_space<vmem>>, vector<1x1x96x84xf32>
    %73 = vector.shape_cast %72 : vector<1x1x96x84xf32> to vector<96x84xf32>
    %cst_110 = arith.constant dense<0.000000e+00> : vector<7x84xf32>
    %74 = tpu.matmul %71, %73, %cst_110 {dimension_numbers = #tpu.dot_dimension_numbers<[1], [0], [0], [1], [0, 0, 1, 1], [], []>} : vector<7x96xf32>, vector<96x84xf32>, vector<7x84xf32> -> vector<7x84xf32>
    %75 = arith.addf %69, %74 : vector<7x84xf32>
    %c0_111 = arith.constant 0 : index
    %c0_112 = arith.constant 0 : index
    %c1_113 = arith.constant 1 : index
    %c0_114 = arith.constant 0 : index
    %76 = vector.load %arg1[%c0_111, %c0_112, %c1_113, %c0_114] : memref<1x4x8x96xf32, #tpu.memory_space<vmem>>, vector<1x1x7x96xf32>
    %77 = vector.shape_cast %76 : vector<1x1x7x96xf32> to vector<7x96xf32>
    %c3_115 = arith.constant 3 : index
    %c0_116 = arith.constant 0 : index
    %c0_117 = arith.constant 0 : index
    %c0_118 = arith.constant 0 : index
    %78 = vector.load %arg2[%c3_115, %c0_116, %c0_117, %c0_118] : memref<5x2x96x84xf32, #tpu.memory_space<vmem>>, vector<1x1x96x84xf32>
    %79 = vector.shape_cast %78 : vector<1x1x96x84xf32> to vector<96x84xf32>
    %cst_119 = arith.constant dense<0.000000e+00> : vector<7x84xf32>
    %80 = tpu.matmul %77, %79, %cst_119 {dimension_numbers = #tpu.dot_dimension_numbers<[1], [0], [0], [1], [0, 0, 1, 1], [], []>} : vector<7x96xf32>, vector<96x84xf32>, vector<7x84xf32> -> vector<7x84xf32>
    %81 = arith.addf %75, %80 : vector<7x84xf32>
    %c0_120 = arith.constant 0 : index
    %c1_121 = arith.constant 1 : index
    %c1_122 = arith.constant 1 : index
    %c0_123 = arith.constant 0 : index
    %82 = vector.load %arg1[%c0_120, %c1_121, %c1_122, %c0_123] : memref<1x4x8x96xf32, #tpu.memory_space<vmem>>, vector<1x1x7x96xf32>
    %83 = vector.shape_cast %82 : vector<1x1x7x96xf32> to vector<7x96xf32>
    %c4_124 = arith.constant 4 : index
    %c0_125 = arith.constant 0 : index
    %c0_126 = arith.constant 0 : index
    %c0_127 = arith.constant 0 : index
    %84 = vector.load %arg2[%c4_124, %c0_125, %c0_126, %c0_127] : memref<5x2x96x84xf32, #tpu.memory_space<vmem>>, vector<1x1x96x84xf32>
    %85 = vector.shape_cast %84 : vector<1x1x96x84xf32> to vector<96x84xf32>
    %cst_128 = arith.constant dense<0.000000e+00> : vector<7x84xf32>
    %86 = tpu.matmul %83, %85, %cst_128 {dimension_numbers = #tpu.dot_dimension_numbers<[1], [0], [0], [1], [0, 0, 1, 1], [], []>} : vector<7x96xf32>, vector<96x84xf32>, vector<7x84xf32> -> vector<7x84xf32>
    %87 = arith.addf %81, %86 : vector<7x84xf32>
    %88 = arith.maximumf %58, %87 : vector<7x84xf32>
    %c0_129 = arith.constant 0 : index
    %c1_130 = arith.constant 1 : index
    %c0_131 = arith.constant 0 : index
    %c0_132 = arith.constant 0 : index
    %89 = vector.load %arg1[%c0_129, %c1_130, %c0_131, %c0_132] : memref<1x4x8x96xf32, #tpu.memory_space<vmem>>, vector<1x1x7x96xf32>
    %90 = vector.shape_cast %89 : vector<1x1x7x96xf32> to vector<7x96xf32>
    %c0_133 = arith.constant 0 : index
    %c1_134 = arith.constant 1 : index
    %c0_135 = arith.constant 0 : index
    %c0_136 = arith.constant 0 : index
    %91 = vector.load %arg2[%c0_133, %c1_134, %c0_135, %c0_136] : memref<5x2x96x84xf32, #tpu.memory_space<vmem>>, vector<1x1x96x84xf32>
    %92 = vector.shape_cast %91 : vector<1x1x96x84xf32> to vector<96x84xf32>
    %cst_137 = arith.constant dense<0.000000e+00> : vector<7x84xf32>
    %93 = tpu.matmul %90, %92, %cst_137 {dimension_numbers = #tpu.dot_dimension_numbers<[1], [0], [0], [1], [0, 0, 1, 1], [], []>} : vector<7x96xf32>, vector<96x84xf32>, vector<7x84xf32> -> vector<7x84xf32>
    %c0_138 = arith.constant 0 : index
    %c2_139 = arith.constant 2 : index
    %c0_140 = arith.constant 0 : index
    %c0_141 = arith.constant 0 : index
    %94 = vector.load %arg1[%c0_138, %c2_139, %c0_140, %c0_141] : memref<1x4x8x96xf32, #tpu.memory_space<vmem>>, vector<1x1x7x96xf32>
    %95 = vector.shape_cast %94 : vector<1x1x7x96xf32> to vector<7x96xf32>
    %c1_142 = arith.constant 1 : index
    %c1_143 = arith.constant 1 : index
    %c0_144 = arith.constant 0 : index
    %c0_145 = arith.constant 0 : index
    %96 = vector.load %arg2[%c1_142, %c1_143, %c0_144, %c0_145] : memref<5x2x96x84xf32, #tpu.memory_space<vmem>>, vector<1x1x96x84xf32>
    %97 = vector.shape_cast %96 : vector<1x1x96x84xf32> to vector<96x84xf32>
    %cst_146 = arith.constant dense<0.000000e+00> : vector<7x84xf32>
    %98 = tpu.matmul %95, %97, %cst_146 {dimension_numbers = #tpu.dot_dimension_numbers<[1], [0], [0], [1], [0, 0, 1, 1], [], []>} : vector<7x96xf32>, vector<96x84xf32>, vector<7x84xf32> -> vector<7x84xf32>
    %99 = arith.addf %93, %98 : vector<7x84xf32>
    %c0_147 = arith.constant 0 : index
    %c3_148 = arith.constant 3 : index
    %c0_149 = arith.constant 0 : index
    %c0_150 = arith.constant 0 : index
    %100 = vector.load %arg1[%c0_147, %c3_148, %c0_149, %c0_150] : memref<1x4x8x96xf32, #tpu.memory_space<vmem>>, vector<1x1x7x96xf32>
    %101 = vector.shape_cast %100 : vector<1x1x7x96xf32> to vector<7x96xf32>
    %c2_151 = arith.constant 2 : index
    %c1_152 = arith.constant 1 : index
    %c0_153 = arith.constant 0 : index
    %c0_154 = arith.constant 0 : index
    %102 = vector.load %arg2[%c2_151, %c1_152, %c0_153, %c0_154] : memref<5x2x96x84xf32, #tpu.memory_space<vmem>>, vector<1x1x96x84xf32>
    %103 = vector.shape_cast %102 : vector<1x1x96x84xf32> to vector<96x84xf32>
    %cst_155 = arith.constant dense<0.000000e+00> : vector<7x84xf32>
    %104 = tpu.matmul %101, %103, %cst_155 {dimension_numbers = #tpu.dot_dimension_numbers<[1], [0], [0], [1], [0, 0, 1, 1], [], []>} : vector<7x96xf32>, vector<96x84xf32>, vector<7x84xf32> -> vector<7x84xf32>
    %105 = arith.addf %99, %104 : vector<7x84xf32>
    %c0_156 = arith.constant 0 : index
    %c0_157 = arith.constant 0 : index
    %c1_158 = arith.constant 1 : index
    %c0_159 = arith.constant 0 : index
    %106 = vector.load %arg1[%c0_156, %c0_157, %c1_158, %c0_159] : memref<1x4x8x96xf32, #tpu.memory_space<vmem>>, vector<1x1x7x96xf32>
    %107 = vector.shape_cast %106 : vector<1x1x7x96xf32> to vector<7x96xf32>
    %c3_160 = arith.constant 3 : index
    %c1_161 = arith.constant 1 : index
    %c0_162 = arith.constant 0 : index
    %c0_163 = arith.constant 0 : index
    %108 = vector.load %arg2[%c3_160, %c1_161, %c0_162, %c0_163] : memref<5x2x96x84xf32, #tpu.memory_space<vmem>>, vector<1x1x96x84xf32>
    %109 = vector.shape_cast %108 : vector<1x1x96x84xf32> to vector<96x84xf32>
    %cst_164 = arith.constant dense<0.000000e+00> : vector<7x84xf32>
    %110 = tpu.matmul %107, %109, %cst_164 {dimension_numbers = #tpu.dot_dimension_numbers<[1], [0], [0], [1], [0, 0, 1, 1], [], []>} : vector<7x96xf32>, vector<96x84xf32>, vector<7x84xf32> -> vector<7x84xf32>
    %111 = arith.addf %105, %110 : vector<7x84xf32>
    %c0_165 = arith.constant 0 : index
    %c1_166 = arith.constant 1 : index
    %c1_167 = arith.constant 1 : index
    %c0_168 = arith.constant 0 : index
    %112 = vector.load %arg1[%c0_165, %c1_166, %c1_167, %c0_168] : memref<1x4x8x96xf32, #tpu.memory_space<vmem>>, vector<1x1x7x96xf32>
    %113 = vector.shape_cast %112 : vector<1x1x7x96xf32> to vector<7x96xf32>
    %c4_169 = arith.constant 4 : index
    %c1_170 = arith.constant 1 : index
    %c0_171 = arith.constant 0 : index
    %c0_172 = arith.constant 0 : index
    %114 = vector.load %arg2[%c4_169, %c1_170, %c0_171, %c0_172] : memref<5x2x96x84xf32, #tpu.memory_space<vmem>>, vector<1x1x96x84xf32>
    %115 = vector.shape_cast %114 : vector<1x1x96x84xf32> to vector<96x84xf32>
    %cst_173 = arith.constant dense<0.000000e+00> : vector<7x84xf32>
    %116 = tpu.matmul %113, %115, %cst_173 {dimension_numbers = #tpu.dot_dimension_numbers<[1], [0], [0], [1], [0, 0, 1, 1], [], []>} : vector<7x96xf32>, vector<96x84xf32>, vector<7x84xf32> -> vector<7x84xf32>
    %117 = arith.addf %111, %116 : vector<7x84xf32>
    %118 = arith.maximumf %88, %117 : vector<7x84xf32>
    %c0_174 = arith.constant 0 : index
    %c0_175 = arith.constant 0 : index
    %119 = vector.load %arg3[%c0_174, %c0_175] : memref<1x84xf32, #tpu.memory_space<vmem>>, vector<1x84xf32>
    %120 = vector.broadcast %119 : vector<1x84xf32> to vector<7x84xf32>
    %121 = arith.addf %118, %120 : vector<7x84xf32>
    %cst_176 = arith.constant 0.000000e+00 : f32
    %122 = vector.broadcast %cst_176 : f32 to vector<7x84xf32>
    %123 = arith.maximumf %121, %122 : vector<7x84xf32>
    %c0_177 = arith.constant 0 : index
    %c0_178 = arith.constant 0 : index
    %124 = vector.load %arg7[%c0_177, %c0_178] : memref<7x84xf32, #tpu.memory_space<vmem>>, vector<7x84xf32>
    tpu.vector_store %arg7[%c0_177, %c0_178], %123 {strides = array<i32>} : memref<7x84xf32, #tpu.memory_space<vmem>>, vector<7x84xf32>,
    %c0_179 = arith.constant 0 : index
    %c2_180 = arith.constant 2 : index
    %c0_181 = arith.constant 0 : index
    %c0_182 = arith.constant 0 : index
    %125 = vector.load %arg1[%c0_179, %c2_180, %c0_181, %c0_182] : memref<1x4x8x96xf32, #tpu.memory_space<vmem>>, vector<1x1x7x96xf32>
    %126 = vector.shape_cast %125 : vector<1x1x7x96xf32> to vector<7x96xf32>
    %c0_183 = arith.constant 0 : index
    %c0_184 = arith.constant 0 : index
    %c0_185 = arith.constant 0 : index
    %c0_186 = arith.constant 0 : index
    %127 = vector.load %arg2[%c0_183, %c0_184, %c0_185, %c0_186] : memref<5x2x96x84xf32, #tpu.memory_space<vmem>>, vector<1x1x96x84xf32>
    %128 = vector.shape_cast %127 : vector<1x1x96x84xf32> to vector<96x84xf32>
    %cst_187 = arith.constant dense<0.000000e+00> : vector<7x84xf32>
    %129 = tpu.matmul %126, %128, %cst_187 {dimension_numbers = #tpu.dot_dimension_numbers<[1], [0], [0], [1], [0, 0, 1, 1], [], []>} : vector<7x96xf32>, vector<96x84xf32>, vector<7x84xf32> -> vector<7x84xf32>
    %c0_188 = arith.constant 0 : index
    %c3_189 = arith.constant 3 : index
    %c0_190 = arith.constant 0 : index
    %c0_191 = arith.constant 0 : index
    %130 = vector.load %arg1[%c0_188, %c3_189, %c0_190, %c0_191] : memref<1x4x8x96xf32, #tpu.memory_space<vmem>>, vector<1x1x7x96xf32>
    %131 = vector.shape_cast %130 : vector<1x1x7x96xf32> to vector<7x96xf32>
    %c1_192 = arith.constant 1 : index
    %c0_193 = arith.constant 0 : index
    %c0_194 = arith.constant 0 : index
    %c0_195 = arith.constant 0 : index
    %132 = vector.load %arg2[%c1_192, %c0_193, %c0_194, %c0_195] : memref<5x2x96x84xf32, #tpu.memory_space<vmem>>, vector<1x1x96x84xf32>
    %133 = vector.shape_cast %132 : vector<1x1x96x84xf32> to vector<96x84xf32>
    %cst_196 = arith.constant dense<0.000000e+00> : vector<7x84xf32>
    %134 = tpu.matmul %131, %133, %cst_196 {dimension_numbers = #tpu.dot_dimension_numbers<[1], [0], [0], [1], [0, 0, 1, 1], [], []>} : vector<7x96xf32>, vector<96x84xf32>, vector<7x84xf32> -> vector<7x84xf32>
    %135 = arith.addf %129, %134 : vector<7x84xf32>
    %c0_197 = arith.constant 0 : index
    %c0_198 = arith.constant 0 : index
    %c1_199 = arith.constant 1 : index
    %c0_200 = arith.constant 0 : index
    %136 = vector.load %arg1[%c0_197, %c0_198, %c1_199, %c0_200] : memref<1x4x8x96xf32, #tpu.memory_space<vmem>>, vector<1x1x7x96xf32>
    %137 = vector.shape_cast %136 : vector<1x1x7x96xf32> to vector<7x96xf32>
    %c2_201 = arith.constant 2 : index
    %c0_202 = arith.constant 0 : index
    %c0_203 = arith.constant 0 : index
    %c0_204 = arith.constant 0 : index
    %138 = vector.load %arg2[%c2_201, %c0_202, %c0_203, %c0_204] : memref<5x2x96x84xf32, #tpu.memory_space<vmem>>, vector<1x1x96x84xf32>
    %139 = vector.shape_cast %138 : vector<1x1x96x84xf32> to vector<96x84xf32>
    %cst_205 = arith.constant dense<0.000000e+00> : vector<7x84xf32>
    %140 = tpu.matmul %137, %139, %cst_205 {dimension_numbers = #tpu.dot_dimension_numbers<[1], [0], [0], [1], [0, 0, 1, 1], [], []>} : vector<7x96xf32>, vector<96x84xf32>, vector<7x84xf32> -> vector<7x84xf32>
    %141 = arith.addf %135, %140 : vector<7x84xf32>
    %c0_206 = arith.constant 0 : index
    %c1_207 = arith.constant 1 : index
    %c1_208 = arith.constant 1 : index
    %c0_209 = arith.constant 0 : index
    %142 = vector.load %arg1[%c0_206, %c1_207, %c1_208, %c0_209] : memref<1x4x8x96xf32, #tpu.memory_space<vmem>>, vector<1x1x7x96xf32>
    %143 = vector.shape_cast %142 : vector<1x1x7x96xf32> to vector<7x96xf32>
    %c3_210 = arith.constant 3 : index
    %c0_211 = arith.constant 0 : index
    %c0_212 = arith.constant 0 : index
    %c0_213 = arith.constant 0 : index
    %144 = vector.load %arg2[%c3_210, %c0_211, %c0_212, %c0_213] : memref<5x2x96x84xf32, #tpu.memory_space<vmem>>, vector<1x1x96x84xf32>
    %145 = vector.shape_cast %144 : vector<1x1x96x84xf32> to vector<96x84xf32>
    %cst_214 = arith.constant dense<0.000000e+00> : vector<7x84xf32>
    %146 = tpu.matmul %143, %145, %cst_214 {dimension_numbers = #tpu.dot_dimension_numbers<[1], [0], [0], [1], [0, 0, 1, 1], [], []>} : vector<7x96xf32>, vector<96x84xf32>, vector<7x84xf32> -> vector<7x84xf32>
    %147 = arith.addf %141, %146 : vector<7x84xf32>
    %c0_215 = arith.constant 0 : index
    %c2_216 = arith.constant 2 : index
    %c1_217 = arith.constant 1 : index
    %c0_218 = arith.constant 0 : index
    %148 = vector.load %arg1[%c0_215, %c2_216, %c1_217, %c0_218] : memref<1x4x8x96xf32, #tpu.memory_space<vmem>>, vector<1x1x7x96xf32>
    %149 = vector.shape_cast %148 : vector<1x1x7x96xf32> to vector<7x96xf32>
    %c4_219 = arith.constant 4 : index
    %c0_220 = arith.constant 0 : index
    %c0_221 = arith.constant 0 : index
    %c0_222 = arith.constant 0 : index
    %150 = vector.load %arg2[%c4_219, %c0_220, %c0_221, %c0_222] : memref<5x2x96x84xf32, #tpu.memory_space<vmem>>, vector<1x1x96x84xf32>
    %151 = vector.shape_cast %150 : vector<1x1x96x84xf32> to vector<96x84xf32>
    %cst_223 = arith.constant dense<0.000000e+00> : vector<7x84xf32>
    %152 = tpu.matmul %149, %151, %cst_223 {dimension_numbers = #tpu.dot_dimension_numbers<[1], [0], [0], [1], [0, 0, 1, 1], [], []>} : vector<7x96xf32>, vector<96x84xf32>, vector<7x84xf32> -> vector<7x84xf32>
    %153 = arith.addf %147, %152 : vector<7x84xf32>
    %c0_224 = arith.constant 0 : index
    %c2_225 = arith.constant 2 : index
    %c0_226 = arith.constant 0 : index
    %c0_227 = arith.constant 0 : index
    %154 = vector.load %arg1[%c0_224, %c2_225, %c0_226, %c0_227] : memref<1x4x8x96xf32, #tpu.memory_space<vmem>>, vector<1x1x7x96xf32>
    %155 = vector.shape_cast %154 : vector<1x1x7x96xf32> to vector<7x96xf32>
    %c0_228 = arith.constant 0 : index
    %c1_229 = arith.constant 1 : index
    %c0_230 = arith.constant 0 : index
    %c0_231 = arith.constant 0 : index
    %156 = vector.load %arg2[%c0_228, %c1_229, %c0_230, %c0_231] : memref<5x2x96x84xf32, #tpu.memory_space<vmem>>, vector<1x1x96x84xf32>
    %157 = vector.shape_cast %156 : vector<1x1x96x84xf32> to vector<96x84xf32>
    %cst_232 = arith.constant dense<0.000000e+00> : vector<7x84xf32>
    %158 = tpu.matmul %155, %157, %cst_232 {dimension_numbers = #tpu.dot_dimension_numbers<[1], [0], [0], [1], [0, 0, 1, 1], [], []>} : vector<7x96xf32>, vector<96x84xf32>, vector<7x84xf32> -> vector<7x84xf32>
    %c0_233 = arith.constant 0 : index
    %c3_234 = arith.constant 3 : index
    %c0_235 = arith.constant 0 : index
    %c0_236 = arith.constant 0 : index
    %159 = vector.load %arg1[%c0_233, %c3_234, %c0_235, %c0_236] : memref<1x4x8x96xf32, #tpu.memory_space<vmem>>, vector<1x1x7x96xf32>
    %160 = vector.shape_cast %159 : vector<1x1x7x96xf32> to vector<7x96xf32>
    %c1_237 = arith.constant 1 : index
    %c1_238 = arith.constant 1 : index
    %c0_239 = arith.constant 0 : index
    %c0_240 = arith.constant 0 : index
    %161 = vector.load %arg2[%c1_237, %c1_238, %c0_239, %c0_240] : memref<5x2x96x84xf32, #tpu.memory_space<vmem>>, vector<1x1x96x84xf32>
    %162 = vector.shape_cast %161 : vector<1x1x96x84xf32> to vector<96x84xf32>
    %cst_241 = arith.constant dense<0.000000e+00> : vector<7x84xf32>
    %163 = tpu.matmul %160, %162, %cst_241 {dimension_numbers = #tpu.dot_dimension_numbers<[1], [0], [0], [1], [0, 0, 1, 1], [], []>} : vector<7x96xf32>, vector<96x84xf32>, vector<7x84xf32> -> vector<7x84xf32>
    %164 = arith.addf %158, %163 : vector<7x84xf32>
    %c0_242 = arith.constant 0 : index
    %c0_243 = arith.constant 0 : index
    %c1_244 = arith.constant 1 : index
    %c0_245 = arith.constant 0 : index
    %165 = vector.load %arg1[%c0_242, %c0_243, %c1_244, %c0_245] : memref<1x4x8x96xf32, #tpu.memory_space<vmem>>, vector<1x1x7x96xf32>
    %166 = vector.shape_cast %165 : vector<1x1x7x96xf32> to vector<7x96xf32>
    %c2_246 = arith.constant 2 : index
    %c1_247 = arith.constant 1 : index
    %c0_248 = arith.constant 0 : index
    %c0_249 = arith.constant 0 : index
    %167 = vector.load %arg2[%c2_246, %c1_247, %c0_248, %c0_249] : memref<5x2x96x84xf32, #tpu.memory_space<vmem>>, vector<1x1x96x84xf32>
    %168 = vector.shape_cast %167 : vector<1x1x96x84xf32> to vector<96x84xf32>
    %cst_250 = arith.constant dense<0.000000e+00> : vector<7x84xf32>
    %169 = tpu.matmul %166, %168, %cst_250 {dimension_numbers = #tpu.dot_dimension_numbers<[1], [0], [0], [1], [0, 0, 1, 1], [], []>} : vector<7x96xf32>, vector<96x84xf32>, vector<7x84xf32> -> vector<7x84xf32>
    %170 = arith.addf %164, %169 : vector<7x84xf32>
    %c0_251 = arith.constant 0 : index
    %c1_252 = arith.constant 1 : index
    %c1_253 = arith.constant 1 : index
    %c0_254 = arith.constant 0 : index
    %171 = vector.load %arg1[%c0_251, %c1_252, %c1_253, %c0_254] : memref<1x4x8x96xf32, #tpu.memory_space<vmem>>, vector<1x1x7x96xf32>
    %172 = vector.shape_cast %171 : vector<1x1x7x96xf32> to vector<7x96xf32>
    %c3_255 = arith.constant 3 : index
    %c1_256 = arith.constant 1 : index
    %c0_257 = arith.constant 0 : index
    %c0_258 = arith.constant 0 : index
    %173 = vector.load %arg2[%c3_255, %c1_256, %c0_257, %c0_258] : memref<5x2x96x84xf32, #tpu.memory_space<vmem>>, vector<1x1x96x84xf32>
    %174 = vector.shape_cast %173 : vector<1x1x96x84xf32> to vector<96x84xf32>
    %cst_259 = arith.constant dense<0.000000e+00> : vector<7x84xf32>
    %175 = tpu.matmul %172, %174, %cst_259 {dimension_numbers = #tpu.dot_dimension_numbers<[1], [0], [0], [1], [0, 0, 1, 1], [], []>} : vector<7x96xf32>, vector<96x84xf32>, vector<7x84xf32> -> vector<7x84xf32>
    %176 = arith.addf %170, %175 : vector<7x84xf32>
    %c0_260 = arith.constant 0 : index
    %c2_261 = arith.constant 2 : index
    %c1_262 = arith.constant 1 : index
    %c0_263 = arith.constant 0 : index
    %177 = vector.load %arg1[%c0_260, %c2_261, %c1_262, %c0_263] : memref<1x4x8x96xf32, #tpu.memory_space<vmem>>, vector<1x1x7x96xf32>
    %178 = vector.shape_cast %177 : vector<1x1x7x96xf32> to vector<7x96xf32>
    %c4_264 = arith.constant 4 : index
    %c1_265 = arith.constant 1 : index
    %c0_266 = arith.constant 0 : index
    %c0_267 = arith.constant 0 : index
    %179 = vector.load %arg2[%c4_264, %c1_265, %c0_266, %c0_267] : memref<5x2x96x84xf32, #tpu.memory_space<vmem>>, vector<1x1x96x84xf32>
    %180 = vector.shape_cast %179 : vector<1x1x96x84xf32> to vector<96x84xf32>
    %cst_268 = arith.constant dense<0.000000e+00> : vector<7x84xf32>
    %181 = tpu.matmul %178, %180, %cst_268 {dimension_numbers = #tpu.dot_dimension_numbers<[1], [0], [0], [1], [0, 0, 1, 1], [], []>} : vector<7x96xf32>, vector<96x84xf32>, vector<7x84xf32> -> vector<7x84xf32>
    %182 = arith.addf %176, %181 : vector<7x84xf32>
    %183 = arith.maximumf %153, %182 : vector<7x84xf32>
    %c0_269 = arith.constant 0 : index
    %c3_270 = arith.constant 3 : index
    %c0_271 = arith.constant 0 : index
    %c0_272 = arith.constant 0 : index
    %184 = vector.load %arg1[%c0_269, %c3_270, %c0_271, %c0_272] : memref<1x4x8x96xf32, #tpu.memory_space<vmem>>, vector<1x1x7x96xf32>
    %185 = vector.shape_cast %184 : vector<1x1x7x96xf32> to vector<7x96xf32>
    %c0_273 = arith.constant 0 : index
    %c0_274 = arith.constant 0 : index
    %c0_275 = arith.constant 0 : index
    %c0_276 = arith.constant 0 : index
    %186 = vector.load %arg2[%c0_273, %c0_274, %c0_275, %c0_276] : memref<5x2x96x84xf32, #tpu.memory_space<vmem>>, vector<1x1x96x84xf32>
    %187 = vector.shape_cast %186 : vector<1x1x96x84xf32> to vector<96x84xf32>
    %cst_277 = arith.constant dense<0.000000e+00> : vector<7x84xf32>
    %188 = tpu.matmul %185, %187, %cst_277 {dimension_numbers = #tpu.dot_dimension_numbers<[1], [0], [0], [1], [0, 0, 1, 1], [], []>} : vector<7x96xf32>, vector<96x84xf32>, vector<7x84xf32> -> vector<7x84xf32>
    %c0_278 = arith.constant 0 : index
    %c0_279 = arith.constant 0 : index
    %c1_280 = arith.constant 1 : index
    %c0_281 = arith.constant 0 : index
    %189 = vector.load %arg1[%c0_278, %c0_279, %c1_280, %c0_281] : memref<1x4x8x96xf32, #tpu.memory_space<vmem>>, vector<1x1x7x96xf32>
    %190 = vector.shape_cast %189 : vector<1x1x7x96xf32> to vector<7x96xf32>
    %c1_282 = arith.constant 1 : index
    %c0_283 = arith.constant 0 : index
    %c0_284 = arith.constant 0 : index
    %c0_285 = arith.constant 0 : index
    %191 = vector.load %arg2[%c1_282, %c0_283, %c0_284, %c0_285] : memref<5x2x96x84xf32, #tpu.memory_space<vmem>>, vector<1x1x96x84xf32>
    %192 = vector.shape_cast %191 : vector<1x1x96x84xf32> to vector<96x84xf32>
    %cst_286 = arith.constant dense<0.000000e+00> : vector<7x84xf32>
    %193 = tpu.matmul %190, %192, %cst_286 {dimension_numbers = #tpu.dot_dimension_numbers<[1], [0], [0], [1], [0, 0, 1, 1], [], []>} : vector<7x96xf32>, vector<96x84xf32>, vector<7x84xf32> -> vector<7x84xf32>
    %194 = arith.addf %188, %193 : vector<7x84xf32>
    %c0_287 = arith.constant 0 : index
    %c1_288 = arith.constant 1 : index
    %c1_289 = arith.constant 1 : index
    %c0_290 = arith.constant 0 : index
    %195 = vector.load %arg1[%c0_287, %c1_288, %c1_289, %c0_290] : memref<1x4x8x96xf32, #tpu.memory_space<vmem>>, vector<1x1x7x96xf32>
    %196 = vector.shape_cast %195 : vector<1x1x7x96xf32> to vector<7x96xf32>
    %c2_291 = arith.constant 2 : index
    %c0_292 = arith.constant 0 : index
    %c0_293 = arith.constant 0 : index
    %c0_294 = arith.constant 0 : index
    %197 = vector.load %arg2[%c2_291, %c0_292, %c0_293, %c0_294] : memref<5x2x96x84xf32, #tpu.memory_space<vmem>>, vector<1x1x96x84xf32>
    %198 = vector.shape_cast %197 : vector<1x1x96x84xf32> to vector<96x84xf32>
    %cst_295 = arith.constant dense<0.000000e+00> : vector<7x84xf32>
    %199 = tpu.matmul %196, %198, %cst_295 {dimension_numbers = #tpu.dot_dimension_numbers<[1], [0], [0], [1], [0, 0, 1, 1], [], []>} : vector<7x96xf32>, vector<96x84xf32>, vector<7x84xf32> -> vector<7x84xf32>
    %200 = arith.addf %194, %199 : vector<7x84xf32>
    %c0_296 = arith.constant 0 : index
    %c2_297 = arith.constant 2 : index
    %c1_298 = arith.constant 1 : index
    %c0_299 = arith.constant 0 : index
    %201 = vector.load %arg1[%c0_296, %c2_297, %c1_298, %c0_299] : memref<1x4x8x96xf32, #tpu.memory_space<vmem>>, vector<1x1x7x96xf32>
    %202 = vector.shape_cast %201 : vector<1x1x7x96xf32> to vector<7x96xf32>
    %c3_300 = arith.constant 3 : index
    %c0_301 = arith.constant 0 : index
    %c0_302 = arith.constant 0 : index
    %c0_303 = arith.constant 0 : index
    %203 = vector.load %arg2[%c3_300, %c0_301, %c0_302, %c0_303] : memref<5x2x96x84xf32, #tpu.memory_space<vmem>>, vector<1x1x96x84xf32>
    %204 = vector.shape_cast %203 : vector<1x1x96x84xf32> to vector<96x84xf32>
    %cst_304 = arith.constant dense<0.000000e+00> : vector<7x84xf32>
    %205 = tpu.matmul %202, %204, %cst_304 {dimension_numbers = #tpu.dot_dimension_numbers<[1], [0], [0], [1], [0, 0, 1, 1], [], []>} : vector<7x96xf32>, vector<96x84xf32>, vector<7x84xf32> -> vector<7x84xf32>
    %206 = arith.addf %200, %205 : vector<7x84xf32>
    %c0_305 = arith.constant 0 : index
    %c3_306 = arith.constant 3 : index
    %c1_307 = arith.constant 1 : index
    %c0_308 = arith.constant 0 : index
    %207 = vector.load %arg1[%c0_305, %c3_306, %c1_307, %c0_308] : memref<1x4x8x96xf32, #tpu.memory_space<vmem>>, vector<1x1x7x96xf32>
    %208 = vector.shape_cast %207 : vector<1x1x7x96xf32> to vector<7x96xf32>
    %c4_309 = arith.constant 4 : index
    %c0_310 = arith.constant 0 : index
    %c0_311 = arith.constant 0 : index
    %c0_312 = arith.constant 0 : index
    %209 = vector.load %arg2[%c4_309, %c0_310, %c0_311, %c0_312] : memref<5x2x96x84xf32, #tpu.memory_space<vmem>>, vector<1x1x96x84xf32>
    %210 = vector.shape_cast %209 : vector<1x1x96x84xf32> to vector<96x84xf32>
    %cst_313 = arith.constant dense<0.000000e+00> : vector<7x84xf32>
    %211 = tpu.matmul %208, %210, %cst_313 {dimension_numbers = #tpu.dot_dimension_numbers<[1], [0], [0], [1], [0, 0, 1, 1], [], []>} : vector<7x96xf32>, vector<96x84xf32>, vector<7x84xf32> -> vector<7x84xf32>
    %212 = arith.addf %206, %211 : vector<7x84xf32>
    %213 = arith.maximumf %183, %212 : vector<7x84xf32>
    %c0_314 = arith.constant 0 : index
    %c3_315 = arith.constant 3 : index
    %c0_316 = arith.constant 0 : index
    %c0_317 = arith.constant 0 : index
    %214 = vector.load %arg1[%c0_314, %c3_315, %c0_316, %c0_317] : memref<1x4x8x96xf32, #tpu.memory_space<vmem>>, vector<1x1x7x96xf32>
    %215 = vector.shape_cast %214 : vector<1x1x7x96xf32> to vector<7x96xf32>
    %c0_318 = arith.constant 0 : index
    %c1_319 = arith.constant 1 : index
    %c0_320 = arith.constant 0 : index
    %c0_321 = arith.constant 0 : index
    %216 = vector.load %arg2[%c0_318, %c1_319, %c0_320, %c0_321] : memref<5x2x96x84xf32, #tpu.memory_space<vmem>>, vector<1x1x96x84xf32>
    %217 = vector.shape_cast %216 : vector<1x1x96x84xf32> to vector<96x84xf32>
    %cst_322 = arith.constant dense<0.000000e+00> : vector<7x84xf32>
    %218 = tpu.matmul %215, %217, %cst_322 {dimension_numbers = #tpu.dot_dimension_numbers<[1], [0], [0], [1], [0, 0, 1, 1], [], []>} : vector<7x96xf32>, vector<96x84xf32>, vector<7x84xf32> -> vector<7x84xf32>
    %c0_323 = arith.constant 0 : index
    %c0_324 = arith.constant 0 : index
    %c1_325 = arith.constant 1 : index
    %c0_326 = arith.constant 0 : index
    %219 = vector.load %arg1[%c0_323, %c0_324, %c1_325, %c0_326] : memref<1x4x8x96xf32, #tpu.memory_space<vmem>>, vector<1x1x7x96xf32>
    %220 = vector.shape_cast %219 : vector<1x1x7x96xf32> to vector<7x96xf32>
    %c1_327 = arith.constant 1 : index
    %c1_328 = arith.constant 1 : index
    %c0_329 = arith.constant 0 : index
    %c0_330 = arith.constant 0 : index
    %221 = vector.load %arg2[%c1_327, %c1_328, %c0_329, %c0_330] : memref<5x2x96x84xf32, #tpu.memory_space<vmem>>, vector<1x1x96x84xf32>
    %222 = vector.shape_cast %221 : vector<1x1x96x84xf32> to vector<96x84xf32>
    %cst_331 = arith.constant dense<0.000000e+00> : vector<7x84xf32>
    %223 = tpu.matmul %220, %222, %cst_331 {dimension_numbers = #tpu.dot_dimension_numbers<[1], [0], [0], [1], [0, 0, 1, 1], [], []>} : vector<7x96xf32>, vector<96x84xf32>, vector<7x84xf32> -> vector<7x84xf32>
    %224 = arith.addf %218, %223 : vector<7x84xf32>
    %c0_332 = arith.constant 0 : index
    %c1_333 = arith.constant 1 : index
    %c1_334 = arith.constant 1 : index
    %c0_335 = arith.constant 0 : index
    %225 = vector.load %arg1[%c0_332, %c1_333, %c1_334, %c0_335] : memref<1x4x8x96xf32, #tpu.memory_space<vmem>>, vector<1x1x7x96xf32>
    %226 = vector.shape_cast %225 : vector<1x1x7x96xf32> to vector<7x96xf32>
    %c2_336 = arith.constant 2 : index
    %c1_337 = arith.constant 1 : index
    %c0_338 = arith.constant 0 : index
    %c0_339 = arith.constant 0 : index
    %227 = vector.load %arg2[%c2_336, %c1_337, %c0_338, %c0_339] : memref<5x2x96x84xf32, #tpu.memory_space<vmem>>, vector<1x1x96x84xf32>
    %228 = vector.shape_cast %227 : vector<1x1x96x84xf32> to vector<96x84xf32>
    %cst_340 = arith.constant dense<0.000000e+00> : vector<7x84xf32>
    %229 = tpu.matmul %226, %228, %cst_340 {dimension_numbers = #tpu.dot_dimension_numbers<[1], [0], [0], [1], [0, 0, 1, 1], [], []>} : vector<7x96xf32>, vector<96x84xf32>, vector<7x84xf32> -> vector<7x84xf32>
    %230 = arith.addf %224, %229 : vector<7x84xf32>
    %c0_341 = arith.constant 0 : index
    %c2_342 = arith.constant 2 : index
    %c1_343 = arith.constant 1 : index
    %c0_344 = arith.constant 0 : index
    %231 = vector.load %arg1[%c0_341, %c2_342, %c1_343, %c0_344] : memref<1x4x8x96xf32, #tpu.memory_space<vmem>>, vector<1x1x7x96xf32>
    %232 = vector.shape_cast %231 : vector<1x1x7x96xf32> to vector<7x96xf32>
    %c3_345 = arith.constant 3 : index
    %c1_346 = arith.constant 1 : index
    %c0_347 = arith.constant 0 : index
    %c0_348 = arith.constant 0 : index
    %233 = vector.load %arg2[%c3_345, %c1_346, %c0_347, %c0_348] : memref<5x2x96x84xf32, #tpu.memory_space<vmem>>, vector<1x1x96x84xf32>
    %234 = vector.shape_cast %233 : vector<1x1x96x84xf32> to vector<96x84xf32>
    %cst_349 = arith.constant dense<0.000000e+00> : vector<7x84xf32>
    %235 = tpu.matmul %232, %234, %cst_349 {dimension_numbers = #tpu.dot_dimension_numbers<[1], [0], [0], [1], [0, 0, 1, 1], [], []>} : vector<7x96xf32>, vector<96x84xf32>, vector<7x84xf32> -> vector<7x84xf32>
    %236 = arith.addf %230, %235 : vector<7x84xf32>
    %c0_350 = arith.constant 0 : index
    %c3_351 = arith.constant 3 : index
    %c1_352 = arith.constant 1 : index
    %c0_353 = arith.constant 0 : index
    %237 = vector.load %arg1[%c0_350, %c3_351, %c1_352, %c0_353] : memref<1x4x8x96xf32, #tpu.memory_space<vmem>>, vector<1x1x7x96xf32>
    %238 = vector.shape_cast %237 : vector<1x1x7x96xf32> to vector<7x96xf32>
    %c4_354 = arith.constant 4 : index
    %c1_355 = arith.constant 1 : index
    %c0_356 = arith.constant 0 : index
    %c0_357 = arith.constant 0 : index
    %239 = vector.load %arg2[%c4_354, %c1_355, %c0_356, %c0_357] : memref<5x2x96x84xf32, #tpu.memory_space<vmem>>, vector<1x1x96x84xf32>
    %240 = vector.shape_cast %239 : vector<1x1x96x84xf32> to vector<96x84xf32>
    %cst_358 = arith.constant dense<0.000000e+00> : vector<7x84xf32>
    %241 = tpu.matmul %238, %240, %cst_358 {dimension_numbers = #tpu.dot_dimension_numbers<[1], [0], [0], [1], [0, 0, 1, 1], [], []>} : vector<7x96xf32>, vector<96x84xf32>, vector<7x84xf32> -> vector<7x84xf32>
    %242 = arith.addf %236, %241 : vector<7x84xf32>
    %243 = arith.maximumf %213, %242 : vector<7x84xf32>
    %c0_359 = arith.constant 0 : index
    %c0_360 = arith.constant 0 : index
    %244 = vector.load %arg3[%c0_359, %c0_360] : memref<1x84xf32, #tpu.memory_space<vmem>>, vector<1x84xf32>
    %245 = vector.broadcast %244 : vector<1x84xf32> to vector<7x84xf32>
    %246 = arith.addf %243, %245 : vector<7x84xf32>
    %cst_361 = arith.constant 0.000000e+00 : f32
    %247 = vector.broadcast %cst_361 : f32 to vector<7x84xf32>
    %248 = arith.maximumf %246, %247 : vector<7x84xf32>
    %c0_362 = arith.constant 0 : index
    %c0_363 = arith.constant 0 : index
    %249 = vector.load %arg8[%c0_362, %c0_363] : memref<7x84xf32, #tpu.memory_space<vmem>>, vector<7x84xf32>
    tpu.vector_store %arg8[%c0_362, %c0_363], %248 {strides = array<i32>} : memref<7x84xf32, #tpu.memory_space<vmem>>, vector<7x84xf32>,
    %c0_364 = arith.constant 0 : index
    %c0_365 = arith.constant 0 : index
    %250 = vector.load %arg7[%c0_364, %c0_365] : memref<7x84xf32, #tpu.memory_space<vmem>>, vector<5x84xf32>
    %c0_366 = arith.constant 0 : index
    %c0_367 = arith.constant 0 : index
    %c0_368 = arith.constant 0 : index
    %c0_369 = arith.constant 0 : index
    %251 = vector.load %arg4[%c0_366, %c0_367, %c0_368, %c0_369] : memref<5x2x84x80xf32, #tpu.memory_space<vmem>>, vector<1x1x84x80xf32>
    %252 = vector.shape_cast %251 : vector<1x1x84x80xf32> to vector<84x80xf32>
    %cst_370 = arith.constant dense<0.000000e+00> : vector<5x80xf32>
    %253 = tpu.matmul %250, %252, %cst_370 {dimension_numbers = #tpu.dot_dimension_numbers<[1], [0], [0], [1], [0, 0, 1, 1], [], []>} : vector<5x84xf32>, vector<84x80xf32>, vector<5x80xf32> -> vector<5x80xf32>
    %c0_371 = arith.constant 0 : index
    %c0_372 = arith.constant 0 : index
    %254 = vector.load %arg8[%c0_371, %c0_372] : memref<7x84xf32, #tpu.memory_space<vmem>>, vector<5x84xf32>
    %c1_373 = arith.constant 1 : index
    %c0_374 = arith.constant 0 : index
    %c0_375 = arith.constant 0 : index
    %c0_376 = arith.constant 0 : index
    %255 = vector.load %arg4[%c1_373, %c0_374, %c0_375, %c0_376] : memref<5x2x84x80xf32, #tpu.memory_space<vmem>>, vector<1x1x84x80xf32>
    %256 = vector.shape_cast %255 : vector<1x1x84x80xf32> to vector<84x80xf32>
    %cst_377 = arith.constant dense<0.000000e+00> : vector<5x80xf32>
    %257 = tpu.matmul %254, %256, %cst_377 {dimension_numbers = #tpu.dot_dimension_numbers<[1], [0], [0], [1], [0, 0, 1, 1], [], []>} : vector<5x84xf32>, vector<84x80xf32>, vector<5x80xf32> -> vector<5x80xf32>
    %258 = arith.addf %253, %257 : vector<5x80xf32>
    %c1_378 = arith.constant 1 : index
    %c0_379 = arith.constant 0 : index
    %259 = vector.load %arg7[%c1_378, %c0_379] : memref<7x84xf32, #tpu.memory_space<vmem>>, vector<5x84xf32>
    %c2_380 = arith.constant 2 : index
    %c0_381 = arith.constant 0 : index
    %c0_382 = arith.constant 0 : index
    %c0_383 = arith.constant 0 : index
    %260 = vector.load %arg4[%c2_380, %c0_381, %c0_382, %c0_383] : memref<5x2x84x80xf32, #tpu.memory_space<vmem>>, vector<1x1x84x80xf32>
    %261 = vector.shape_cast %260 : vector<1x1x84x80xf32> to vector<84x80xf32>
    %cst_384 = arith.constant dense<0.000000e+00> : vector<5x80xf32>
    %262 = tpu.matmul %259, %261, %cst_384 {dimension_numbers = #tpu.dot_dimension_numbers<[1], [0], [0], [1], [0, 0, 1, 1], [], []>} : vector<5x84xf32>, vector<84x80xf32>, vector<5x80xf32> -> vector<5x80xf32>
    %263 = arith.addf %258, %262 : vector<5x80xf32>
    %c1_385 = arith.constant 1 : index
    %c0_386 = arith.constant 0 : index
    %264 = vector.load %arg8[%c1_385, %c0_386] : memref<7x84xf32, #tpu.memory_space<vmem>>, vector<5x84xf32>
    %c3_387 = arith.constant 3 : index
    %c0_388 = arith.constant 0 : index
    %c0_389 = arith.constant 0 : index
    %c0_390 = arith.constant 0 : index
    %265 = vector.load %arg4[%c3_387, %c0_388, %c0_389, %c0_390] : memref<5x2x84x80xf32, #tpu.memory_space<vmem>>, vector<1x1x84x80xf32>
    %266 = vector.shape_cast %265 : vector<1x1x84x80xf32> to vector<84x80xf32>
    %cst_391 = arith.constant dense<0.000000e+00> : vector<5x80xf32>
    %267 = tpu.matmul %264, %266, %cst_391 {dimension_numbers = #tpu.dot_dimension_numbers<[1], [0], [0], [1], [0, 0, 1, 1], [], []>} : vector<5x84xf32>, vector<84x80xf32>, vector<5x80xf32> -> vector<5x80xf32>
    %268 = arith.addf %263, %267 : vector<5x80xf32>
    %c2_392 = arith.constant 2 : index
    %c0_393 = arith.constant 0 : index
    %269 = vector.load %arg7[%c2_392, %c0_393] : memref<7x84xf32, #tpu.memory_space<vmem>>, vector<5x84xf32>
    %c4_394 = arith.constant 4 : index
    %c0_395 = arith.constant 0 : index
    %c0_396 = arith.constant 0 : index
    %c0_397 = arith.constant 0 : index
    %270 = vector.load %arg4[%c4_394, %c0_395, %c0_396, %c0_397] : memref<5x2x84x80xf32, #tpu.memory_space<vmem>>, vector<1x1x84x80xf32>
    %271 = vector.shape_cast %270 : vector<1x1x84x80xf32> to vector<84x80xf32>
    %cst_398 = arith.constant dense<0.000000e+00> : vector<5x80xf32>
    %272 = tpu.matmul %269, %271, %cst_398 {dimension_numbers = #tpu.dot_dimension_numbers<[1], [0], [0], [1], [0, 0, 1, 1], [], []>} : vector<5x84xf32>, vector<84x80xf32>, vector<5x80xf32> -> vector<5x80xf32>
    %273 = arith.addf %268, %272 : vector<5x80xf32>
    %c0_399 = arith.constant 0 : index
    %c0_400 = arith.constant 0 : index
    %274 = vector.load %arg7[%c0_399, %c0_400] : memref<7x84xf32, #tpu.memory_space<vmem>>, vector<5x84xf32>
    %c0_401 = arith.constant 0 : index
    %c1_402 = arith.constant 1 : index
    %c0_403 = arith.constant 0 : index
    %c0_404 = arith.constant 0 : index
    %275 = vector.load %arg4[%c0_401, %c1_402, %c0_403, %c0_404] : memref<5x2x84x80xf32, #tpu.memory_space<vmem>>, vector<1x1x84x80xf32>
    %276 = vector.shape_cast %275 : vector<1x1x84x80xf32> to vector<84x80xf32>
    %cst_405 = arith.constant dense<0.000000e+00> : vector<5x80xf32>
    %277 = tpu.matmul %274, %276, %cst_405 {dimension_numbers = #tpu.dot_dimension_numbers<[1], [0], [0], [1], [0, 0, 1, 1], [], []>} : vector<5x84xf32>, vector<84x80xf32>, vector<5x80xf32> -> vector<5x80xf32>
    %c0_406 = arith.constant 0 : index
    %c0_407 = arith.constant 0 : index
    %278 = vector.load %arg8[%c0_406, %c0_407] : memref<7x84xf32, #tpu.memory_space<vmem>>, vector<5x84xf32>
    %c1_408 = arith.constant 1 : index
    %c1_409 = arith.constant 1 : index
    %c0_410 = arith.constant 0 : index
    %c0_411 = arith.constant 0 : index
    %279 = vector.load %arg4[%c1_408, %c1_409, %c0_410, %c0_411] : memref<5x2x84x80xf32, #tpu.memory_space<vmem>>, vector<1x1x84x80xf32>
    %280 = vector.shape_cast %279 : vector<1x1x84x80xf32> to vector<84x80xf32>
    %cst_412 = arith.constant dense<0.000000e+00> : vector<5x80xf32>
    %281 = tpu.matmul %278, %280, %cst_412 {dimension_numbers = #tpu.dot_dimension_numbers<[1], [0], [0], [1], [0, 0, 1, 1], [], []>} : vector<5x84xf32>, vector<84x80xf32>, vector<5x80xf32> -> vector<5x80xf32>
    %282 = arith.addf %277, %281 : vector<5x80xf32>
    %c1_413 = arith.constant 1 : index
    %c0_414 = arith.constant 0 : index
    %283 = vector.load %arg7[%c1_413, %c0_414] : memref<7x84xf32, #tpu.memory_space<vmem>>, vector<5x84xf32>
    %c2_415 = arith.constant 2 : index
    %c1_416 = arith.constant 1 : index
    %c0_417 = arith.constant 0 : index
    %c0_418 = arith.constant 0 : index
    %284 = vector.load %arg4[%c2_415, %c1_416, %c0_417, %c0_418] : memref<5x2x84x80xf32, #tpu.memory_space<vmem>>, vector<1x1x84x80xf32>
    %285 = vector.shape_cast %284 : vector<1x1x84x80xf32> to vector<84x80xf32>
    %cst_419 = arith.constant dense<0.000000e+00> : vector<5x80xf32>
    %286 = tpu.matmul %283, %285, %cst_419 {dimension_numbers = #tpu.dot_dimension_numbers<[1], [0], [0], [1], [0, 0, 1, 1], [], []>} : vector<5x84xf32>, vector<84x80xf32>, vector<5x80xf32> -> vector<5x80xf32>
    %287 = arith.addf %282, %286 : vector<5x80xf32>
    %c1_420 = arith.constant 1 : index
    %c0_421 = arith.constant 0 : index
    %288 = vector.load %arg8[%c1_420, %c0_421] : memref<7x84xf32, #tpu.memory_space<vmem>>, vector<5x84xf32>
    %c3_422 = arith.constant 3 : index
    %c1_423 = arith.constant 1 : index
    %c0_424 = arith.constant 0 : index
    %c0_425 = arith.constant 0 : index
    %289 = vector.load %arg4[%c3_422, %c1_423, %c0_424, %c0_425] : memref<5x2x84x80xf32, #tpu.memory_space<vmem>>, vector<1x1x84x80xf32>
    %290 = vector.shape_cast %289 : vector<1x1x84x80xf32> to vector<84x80xf32>
    %cst_426 = arith.constant dense<0.000000e+00> : vector<5x80xf32>
    %291 = tpu.matmul %288, %290, %cst_426 {dimension_numbers = #tpu.dot_dimension_numbers<[1], [0], [0], [1], [0, 0, 1, 1], [], []>} : vector<5x84xf32>, vector<84x80xf32>, vector<5x80xf32> -> vector<5x80xf32>
    %292 = arith.addf %287, %291 : vector<5x80xf32>
    %c2_427 = arith.constant 2 : index
    %c0_428 = arith.constant 0 : index
    %293 = vector.load %arg7[%c2_427, %c0_428] : memref<7x84xf32, #tpu.memory_space<vmem>>, vector<5x84xf32>
    %c4_429 = arith.constant 4 : index
    %c1_430 = arith.constant 1 : index
    %c0_431 = arith.constant 0 : index
    %c0_432 = arith.constant 0 : index
    %294 = vector.load %arg4[%c4_429, %c1_430, %c0_431, %c0_432] : memref<5x2x84x80xf32, #tpu.memory_space<vmem>>, vector<1x1x84x80xf32>
    %295 = vector.shape_cast %294 : vector<1x1x84x80xf32> to vector<84x80xf32>
    %cst_433 = arith.constant dense<0.000000e+00> : vector<5x80xf32>
    %296 = tpu.matmul %293, %295, %cst_433 {dimension_numbers = #tpu.dot_dimension_numbers<[1], [0], [0], [1], [0, 0, 1, 1], [], []>} : vector<5x84xf32>, vector<84x80xf32>, vector<5x80xf32> -> vector<5x80xf32>
    %297 = arith.addf %292, %296 : vector<5x80xf32>
    %298 = arith.maximumf %273, %297 : vector<5x80xf32>
    %c0_434 = arith.constant 0 : index
    %c0_435 = arith.constant 0 : index
    %299 = vector.load %arg8[%c0_434, %c0_435] : memref<7x84xf32, #tpu.memory_space<vmem>>, vector<5x84xf32>
    %c0_436 = arith.constant 0 : index
    %c0_437 = arith.constant 0 : index
    %c0_438 = arith.constant 0 : index
    %c0_439 = arith.constant 0 : index
    %300 = vector.load %arg4[%c0_436, %c0_437, %c0_438, %c0_439] : memref<5x2x84x80xf32, #tpu.memory_space<vmem>>, vector<1x1x84x80xf32>
    %301 = vector.shape_cast %300 : vector<1x1x84x80xf32> to vector<84x80xf32>
    %cst_440 = arith.constant dense<0.000000e+00> : vector<5x80xf32>
    %302 = tpu.matmul %299, %301, %cst_440 {dimension_numbers = #tpu.dot_dimension_numbers<[1], [0], [0], [1], [0, 0, 1, 1], [], []>} : vector<5x84xf32>, vector<84x80xf32>, vector<5x80xf32> -> vector<5x80xf32>
    %c1_441 = arith.constant 1 : index
    %c0_442 = arith.constant 0 : index
    %303 = vector.load %arg7[%c1_441, %c0_442] : memref<7x84xf32, #tpu.memory_space<vmem>>, vector<5x84xf32>
    %c1_443 = arith.constant 1 : index
    %c0_444 = arith.constant 0 : index
    %c0_445 = arith.constant 0 : index
    %c0_446 = arith.constant 0 : index
    %304 = vector.load %arg4[%c1_443, %c0_444, %c0_445, %c0_446] : memref<5x2x84x80xf32, #tpu.memory_space<vmem>>, vector<1x1x84x80xf32>
    %305 = vector.shape_cast %304 : vector<1x1x84x80xf32> to vector<84x80xf32>
    %cst_447 = arith.constant dense<0.000000e+00> : vector<5x80xf32>
    %306 = tpu.matmul %303, %305, %cst_447 {dimension_numbers = #tpu.dot_dimension_numbers<[1], [0], [0], [1], [0, 0, 1, 1], [], []>} : vector<5x84xf32>, vector<84x80xf32>, vector<5x80xf32> -> vector<5x80xf32>
    %307 = arith.addf %302, %306 : vector<5x80xf32>
    %c1_448 = arith.constant 1 : index
    %c0_449 = arith.constant 0 : index
    %308 = vector.load %arg8[%c1_448, %c0_449] : memref<7x84xf32, #tpu.memory_space<vmem>>, vector<5x84xf32>
    %c2_450 = arith.constant 2 : index
    %c0_451 = arith.constant 0 : index
    %c0_452 = arith.constant 0 : index
    %c0_453 = arith.constant 0 : index
    %309 = vector.load %arg4[%c2_450, %c0_451, %c0_452, %c0_453] : memref<5x2x84x80xf32, #tpu.memory_space<vmem>>, vector<1x1x84x80xf32>
    %310 = vector.shape_cast %309 : vector<1x1x84x80xf32> to vector<84x80xf32>
    %cst_454 = arith.constant dense<0.000000e+00> : vector<5x80xf32>
    %311 = tpu.matmul %308, %310, %cst_454 {dimension_numbers = #tpu.dot_dimension_numbers<[1], [0], [0], [1], [0, 0, 1, 1], [], []>} : vector<5x84xf32>, vector<84x80xf32>, vector<5x80xf32> -> vector<5x80xf32>
    %312 = arith.addf %307, %311 : vector<5x80xf32>
    %c2_455 = arith.constant 2 : index
    %c0_456 = arith.constant 0 : index
    %313 = vector.load %arg7[%c2_455, %c0_456] : memref<7x84xf32, #tpu.memory_space<vmem>>, vector<5x84xf32>
    %c3_457 = arith.constant 3 : index
    %c0_458 = arith.constant 0 : index
    %c0_459 = arith.constant 0 : index
    %c0_460 = arith.constant 0 : index
    %314 = vector.load %arg4[%c3_457, %c0_458, %c0_459, %c0_460] : memref<5x2x84x80xf32, #tpu.memory_space<vmem>>, vector<1x1x84x80xf32>
    %315 = vector.shape_cast %314 : vector<1x1x84x80xf32> to vector<84x80xf32>
    %cst_461 = arith.constant dense<0.000000e+00> : vector<5x80xf32>
    %316 = tpu.matmul %313, %315, %cst_461 {dimension_numbers = #tpu.dot_dimension_numbers<[1], [0], [0], [1], [0, 0, 1, 1], [], []>} : vector<5x84xf32>, vector<84x80xf32>, vector<5x80xf32> -> vector<5x80xf32>
    %317 = arith.addf %312, %316 : vector<5x80xf32>
    %c2_462 = arith.constant 2 : index
    %c0_463 = arith.constant 0 : index
    %318 = vector.load %arg8[%c2_462, %c0_463] : memref<7x84xf32, #tpu.memory_space<vmem>>, vector<5x84xf32>
    %c4_464 = arith.constant 4 : index
    %c0_465 = arith.constant 0 : index
    %c0_466 = arith.constant 0 : index
    %c0_467 = arith.constant 0 : index
    %319 = vector.load %arg4[%c4_464, %c0_465, %c0_466, %c0_467] : memref<5x2x84x80xf32, #tpu.memory_space<vmem>>, vector<1x1x84x80xf32>
    %320 = vector.shape_cast %319 : vector<1x1x84x80xf32> to vector<84x80xf32>
    %cst_468 = arith.constant dense<0.000000e+00> : vector<5x80xf32>
    %321 = tpu.matmul %318, %320, %cst_468 {dimension_numbers = #tpu.dot_dimension_numbers<[1], [0], [0], [1], [0, 0, 1, 1], [], []>} : vector<5x84xf32>, vector<84x80xf32>, vector<5x80xf32> -> vector<5x80xf32>
    %322 = arith.addf %317, %321 : vector<5x80xf32>
    %323 = arith.maximumf %298, %322 : vector<5x80xf32>
    %c0_469 = arith.constant 0 : index
    %c0_470 = arith.constant 0 : index
    %324 = vector.load %arg8[%c0_469, %c0_470] : memref<7x84xf32, #tpu.memory_space<vmem>>, vector<5x84xf32>
    %c0_471 = arith.constant 0 : index
    %c1_472 = arith.constant 1 : index
    %c0_473 = arith.constant 0 : index
    %c0_474 = arith.constant 0 : index
    %325 = vector.load %arg4[%c0_471, %c1_472, %c0_473, %c0_474] : memref<5x2x84x80xf32, #tpu.memory_space<vmem>>, vector<1x1x84x80xf32>
    %326 = vector.shape_cast %325 : vector<1x1x84x80xf32> to vector<84x80xf32>
    %cst_475 = arith.constant dense<0.000000e+00> : vector<5x80xf32>
    %327 = tpu.matmul %324, %326, %cst_475 {dimension_numbers = #tpu.dot_dimension_numbers<[1], [0], [0], [1], [0, 0, 1, 1], [], []>} : vector<5x84xf32>, vector<84x80xf32>, vector<5x80xf32> -> vector<5x80xf32>
    %c1_476 = arith.constant 1 : index
    %c0_477 = arith.constant 0 : index
    %328 = vector.load %arg7[%c1_476, %c0_477] : memref<7x84xf32, #tpu.memory_space<vmem>>, vector<5x84xf32>
    %c1_478 = arith.constant 1 : index
    %c1_479 = arith.constant 1 : index
    %c0_480 = arith.constant 0 : index
    %c0_481 = arith.constant 0 : index
    %329 = vector.load %arg4[%c1_478, %c1_479, %c0_480, %c0_481] : memref<5x2x84x80xf32, #tpu.memory_space<vmem>>, vector<1x1x84x80xf32>
    %330 = vector.shape_cast %329 : vector<1x1x84x80xf32> to vector<84x80xf32>
    %cst_482 = arith.constant dense<0.000000e+00> : vector<5x80xf32>
    %331 = tpu.matmul %328, %330, %cst_482 {dimension_numbers = #tpu.dot_dimension_numbers<[1], [0], [0], [1], [0, 0, 1, 1], [], []>} : vector<5x84xf32>, vector<84x80xf32>, vector<5x80xf32> -> vector<5x80xf32>
    %332 = arith.addf %327, %331 : vector<5x80xf32>
    %c1_483 = arith.constant 1 : index
    %c0_484 = arith.constant 0 : index
    %333 = vector.load %arg8[%c1_483, %c0_484] : memref<7x84xf32, #tpu.memory_space<vmem>>, vector<5x84xf32>
    %c2_485 = arith.constant 2 : index
    %c1_486 = arith.constant 1 : index
    %c0_487 = arith.constant 0 : index
    %c0_488 = arith.constant 0 : index
    %334 = vector.load %arg4[%c2_485, %c1_486, %c0_487, %c0_488] : memref<5x2x84x80xf32, #tpu.memory_space<vmem>>, vector<1x1x84x80xf32>
    %335 = vector.shape_cast %334 : vector<1x1x84x80xf32> to vector<84x80xf32>
    %cst_489 = arith.constant dense<0.000000e+00> : vector<5x80xf32>
    %336 = tpu.matmul %333, %335, %cst_489 {dimension_numbers = #tpu.dot_dimension_numbers<[1], [0], [0], [1], [0, 0, 1, 1], [], []>} : vector<5x84xf32>, vector<84x80xf32>, vector<5x80xf32> -> vector<5x80xf32>
    %337 = arith.addf %332, %336 : vector<5x80xf32>
    %c2_490 = arith.constant 2 : index
    %c0_491 = arith.constant 0 : index
    %338 = vector.load %arg7[%c2_490, %c0_491] : memref<7x84xf32, #tpu.memory_space<vmem>>, vector<5x84xf32>
    %c3_492 = arith.constant 3 : index
    %c1_493 = arith.constant 1 : index
    %c0_494 = arith.constant 0 : index
    %c0_495 = arith.constant 0 : index
    %339 = vector.load %arg4[%c3_492, %c1_493, %c0_494, %c0_495] : memref<5x2x84x80xf32, #tpu.memory_space<vmem>>, vector<1x1x84x80xf32>
    %340 = vector.shape_cast %339 : vector<1x1x84x80xf32> to vector<84x80xf32>
    %cst_496 = arith.constant dense<0.000000e+00> : vector<5x80xf32>
    %341 = tpu.matmul %338, %340, %cst_496 {dimension_numbers = #tpu.dot_dimension_numbers<[1], [0], [0], [1], [0, 0, 1, 1], [], []>} : vector<5x84xf32>, vector<84x80xf32>, vector<5x80xf32> -> vector<5x80xf32>
    %342 = arith.addf %337, %341 : vector<5x80xf32>
    %c2_497 = arith.constant 2 : index
    %c0_498 = arith.constant 0 : index
    %343 = vector.load %arg8[%c2_497, %c0_498] : memref<7x84xf32, #tpu.memory_space<vmem>>, vector<5x84xf32>
    %c4_499 = arith.constant 4 : index
    %c1_500 = arith.constant 1 : index
    %c0_501 = arith.constant 0 : index
    %c0_502 = arith.constant 0 : index
    %344 = vector.load %arg4[%c4_499, %c1_500, %c0_501, %c0_502] : memref<5x2x84x80xf32, #tpu.memory_space<vmem>>, vector<1x1x84x80xf32>
    %345 = vector.shape_cast %344 : vector<1x1x84x80xf32> to vector<84x80xf32>
    %cst_503 = arith.constant dense<0.000000e+00> : vector<5x80xf32>
    %346 = tpu.matmul %343, %345, %cst_503 {dimension_numbers = #tpu.dot_dimension_numbers<[1], [0], [0], [1], [0, 0, 1, 1], [], []>} : vector<5x84xf32>, vector<84x80xf32>, vector<5x80xf32> -> vector<5x80xf32>
    %347 = arith.addf %342, %346 : vector<5x80xf32>
    %348 = arith.maximumf %323, %347 : vector<5x80xf32>
    %c0_504 = arith.constant 0 : index
    %c0_505 = arith.constant 0 : index
    %349 = vector.load %arg5[%c0_504, %c0_505] : memref<1x80xf32, #tpu.memory_space<vmem>>, vector<1x80xf32>
    %350 = vector.broadcast %349 : vector<1x80xf32> to vector<5x80xf32>
    %351 = arith.addf %348, %350 : vector<5x80xf32>
    %cst_506 = arith.constant 0.000000e+00 : f32
    %352 = vector.broadcast %cst_506 : f32 to vector<5x80xf32>
    %353 = arith.maximumf %351, %352 : vector<5x80xf32>
    %c0_507 = arith.constant 0 : index
    %c0_508 = arith.constant 0 : index
    %c0_509 = arith.constant 0 : index
    %354 = vector.load %arg6[%c0_507, %c0_508, %c0_509] : memref<1x5x80xf32, #tpu.memory_space<vmem>>, vector<1x5x80xf32>
    %355 = vector.shape_cast %354 : vector<1x5x80xf32> to vector<5x80xf32>
    %356 = vector.shape_cast %353 : vector<5x80xf32> to vector<1x5x80xf32>
    tpu.vector_store %arg6[%c0_507, %c0_508, %c0_509], %356 {strides = array<i32>} : memref<1x5x80xf32, #tpu.memory_space<vmem>>, vector<1x5x80xf32>,
    return
  }
  func.func @transform_0(%arg0: i32) -> (i32, i32, i32, i32) {
    %c0_i32 = arith.constant 0 : i32
    %c0_i32_0 = arith.constant 0 : i32
    %c0_i32_1 = arith.constant 0 : i32
    %c0_i32_2 = arith.constant 0 : i32
    return %arg0, %c0_i32, %c0_i32_0, %c0_i32_1 : i32, i32, i32, i32
  }
  func.func @transform_1(%arg0: i32) -> (i32, i32, i32, i32) {
    %c0_i32 = arith.constant 0 : i32
    %c0_i32_0 = arith.constant 0 : i32
    %c0_i32_1 = arith.constant 0 : i32
    %c0_i32_2 = arith.constant 0 : i32
    %c0_i32_3 = arith.constant 0 : i32
    return %c0_i32, %c0_i32_0, %c0_i32_1, %c0_i32_2 : i32, i32, i32, i32
  }
  func.func @transform_2(%arg0: i32) -> (i32, i32) {
    %c0_i32 = arith.constant 0 : i32
    %c0_i32_0 = arith.constant 0 : i32
    %c0_i32_1 = arith.constant 0 : i32
    return %c0_i32, %c0_i32_0 : i32, i32
  }
  func.func @transform_3(%arg0: i32) -> (i32, i32, i32, i32) {
    %c0_i32 = arith.constant 0 : i32
    %c0_i32_0 = arith.constant 0 : i32
    %c0_i32_1 = arith.constant 0 : i32
    %c0_i32_2 = arith.constant 0 : i32
    %c0_i32_3 = arith.constant 0 : i32
    return %c0_i32, %c0_i32_0, %c0_i32_1, %c0_i32_2 : i32, i32, i32, i32
  }
  func.func @transform_4(%arg0: i32) -> (i32, i32) {
    %c0_i32 = arith.constant 0 : i32
    %c0_i32_0 = arith.constant 0 : i32
    %c0_i32_1 = arith.constant 0 : i32
    return %c0_i32, %c0_i32_0 : i32, i32
  }
  func.func @transform_5(%arg0: i32) -> (i32, i32, i32) {
    %c0_i32 = arith.constant 0 : i32
    %c0_i32_0 = arith.constant 0 : i32
    %c0_i32_1 = arith.constant 0 : i32
    return %arg0, %c0_i32, %c0_i32_0 : i32, i32, i32
  }
}

module attributes {stable_mosaic.version = 11 : i64} {
  func.func @_fc_stack_kernel(%arg0: i32, %arg1: memref<2x400xf32, #tpu.memory_space<vmem>>, %arg2: memref<400x120xf32, #tpu.memory_space<vmem>>, %arg3: memref<1x120xf32, #tpu.memory_space<vmem>>, %arg4: memref<120x84xf32, #tpu.memory_space<vmem>>, %arg5: memref<1x84xf32, #tpu.memory_space<vmem>>, %arg6: memref<84x10xf32, #tpu.memory_space<vmem>>, %arg7: memref<1x10xf32, #tpu.memory_space<vmem>>, %arg8: memref<2x10xf32, #tpu.memory_space<vmem>>) attributes {dimension_semantics = [#tpu.dimension_semantics<parallel>], iteration_bounds = array<i64: 1>, scalar_prefetch = 0 : i64, scratch_operands = 0 : i64, tpu.core_type = #tpu.core_type<tc>, window_params = [{transform_indices = @transform_0, window_bounds = array<i64: 2, 400>}, {pipeline_mode = #tpu.pipeline_mode<synchronous>, transform_indices = @transform_1, window_bounds = array<i64: 400, 120>}, {pipeline_mode = #tpu.pipeline_mode<synchronous>, transform_indices = @transform_2, window_bounds = array<i64: 1, 120>}, {pipeline_mode = #tpu.pipeline_mode<synchronous>, transform_indices = @transform_3, window_bounds = array<i64: 120, 84>}, {pipeline_mode = #tpu.pipeline_mode<synchronous>, transform_indices = @transform_4, window_bounds = array<i64: 1, 84>}, {pipeline_mode = #tpu.pipeline_mode<synchronous>, transform_indices = @transform_5, window_bounds = array<i64: 84, 10>}, {pipeline_mode = #tpu.pipeline_mode<synchronous>, transform_indices = @transform_6, window_bounds = array<i64: 1, 10>}, {transform_indices = @transform_7, window_bounds = array<i64: 2, 10>}]} {
    %c0 = arith.constant 0 : index
    %c0_0 = arith.constant 0 : index
    %0 = vector.load %arg1[%c0, %c0_0] : memref<2x400xf32, #tpu.memory_space<vmem>>, vector<2x400xf32>
    %c0_1 = arith.constant 0 : index
    %c0_2 = arith.constant 0 : index
    %1 = vector.load %arg2[%c0_1, %c0_2] : memref<400x120xf32, #tpu.memory_space<vmem>>, vector<400x120xf32>
    %cst = arith.constant dense<0.000000e+00> : vector<2x120xf32>
    %2 = tpu.matmul %0, %1, %cst {dimension_numbers = #tpu.dot_dimension_numbers<[1], [0], [0], [1], [0, 0, 1, 1], [], []>} : vector<2x400xf32>, vector<400x120xf32>, vector<2x120xf32> -> vector<2x120xf32>
    %c0_3 = arith.constant 0 : index
    %c0_4 = arith.constant 0 : index
    %3 = vector.load %arg3[%c0_3, %c0_4] : memref<1x120xf32, #tpu.memory_space<vmem>>, vector<1x120xf32>
    %4 = vector.broadcast %3 : vector<1x120xf32> to vector<2x120xf32>
    %5 = arith.addf %2, %4 : vector<2x120xf32>
    %cst_5 = arith.constant 0.000000e+00 : f32
    %6 = vector.broadcast %cst_5 : f32 to vector<2x120xf32>
    %7 = arith.maximumf %5, %6 : vector<2x120xf32>
    %c0_6 = arith.constant 0 : index
    %c0_7 = arith.constant 0 : index
    %8 = vector.load %arg4[%c0_6, %c0_7] : memref<120x84xf32, #tpu.memory_space<vmem>>, vector<120x84xf32>
    %cst_8 = arith.constant dense<0.000000e+00> : vector<2x84xf32>
    %9 = tpu.matmul %7, %8, %cst_8 {dimension_numbers = #tpu.dot_dimension_numbers<[1], [0], [0], [1], [0, 0, 1, 1], [], []>} : vector<2x120xf32>, vector<120x84xf32>, vector<2x84xf32> -> vector<2x84xf32>
    %c0_9 = arith.constant 0 : index
    %c0_10 = arith.constant 0 : index
    %10 = vector.load %arg5[%c0_9, %c0_10] : memref<1x84xf32, #tpu.memory_space<vmem>>, vector<1x84xf32>
    %11 = vector.broadcast %10 : vector<1x84xf32> to vector<2x84xf32>
    %12 = arith.addf %9, %11 : vector<2x84xf32>
    %cst_11 = arith.constant 0.000000e+00 : f32
    %13 = vector.broadcast %cst_11 : f32 to vector<2x84xf32>
    %14 = arith.maximumf %12, %13 : vector<2x84xf32>
    %c0_12 = arith.constant 0 : index
    %c0_13 = arith.constant 0 : index
    %15 = vector.load %arg6[%c0_12, %c0_13] : memref<84x10xf32, #tpu.memory_space<vmem>>, vector<84x10xf32>
    %cst_14 = arith.constant dense<0.000000e+00> : vector<2x10xf32>
    %16 = tpu.matmul %14, %15, %cst_14 {dimension_numbers = #tpu.dot_dimension_numbers<[1], [0], [0], [1], [0, 0, 1, 1], [], []>} : vector<2x84xf32>, vector<84x10xf32>, vector<2x10xf32> -> vector<2x10xf32>
    %c0_15 = arith.constant 0 : index
    %c0_16 = arith.constant 0 : index
    %17 = vector.load %arg7[%c0_15, %c0_16] : memref<1x10xf32, #tpu.memory_space<vmem>>, vector<1x10xf32>
    %18 = vector.broadcast %17 : vector<1x10xf32> to vector<2x10xf32>
    %19 = arith.addf %16, %18 : vector<2x10xf32>
    %cst_17 = arith.constant dense<0xFF800000> : vector<2xf32>
    %20 = vector.multi_reduction <maximumf>, %19, %cst_17 [1] : vector<2x10xf32> to vector<2xf32>
    %21 = vector.shape_cast %20 : vector<2xf32> to vector<2x1xf32>
    %22 = vector.broadcast %21 : vector<2x1xf32> to vector<2x10xf32>
    %23 = arith.subf %19, %22 : vector<2x10xf32>
    %24 = math.exp %23 : vector<2x10xf32>
    %cst_18 = arith.constant dense<0.000000e+00> : vector<2xf32>
    %25 = vector.multi_reduction <add>, %24, %cst_18 [1] : vector<2x10xf32> to vector<2xf32>
    %26 = vector.shape_cast %25 : vector<2xf32> to vector<2x1xf32>
    %27 = math.log %26 : vector<2x1xf32>
    %28 = vector.broadcast %27 : vector<2x1xf32> to vector<2x10xf32>
    %29 = arith.subf %23, %28 : vector<2x10xf32>
    %c0_19 = arith.constant 0 : index
    %c0_20 = arith.constant 0 : index
    %30 = vector.load %arg8[%c0_19, %c0_20] : memref<2x10xf32, #tpu.memory_space<vmem>>, vector<2x10xf32>
    tpu.vector_store %arg8[%c0_19, %c0_20], %29 {strides = array<i32>} : memref<2x10xf32, #tpu.memory_space<vmem>>, vector<2x10xf32>,
    return
  }
  func.func @transform_0(%arg0: i32) -> (i32, i32) {
    %c0_i32 = arith.constant 0 : i32
    %c0_i32_0 = arith.constant 0 : i32
    return %arg0, %c0_i32 : i32, i32
  }
  func.func @transform_1(%arg0: i32) -> (i32, i32) {
    %c0_i32 = arith.constant 0 : i32
    %c0_i32_0 = arith.constant 0 : i32
    %c0_i32_1 = arith.constant 0 : i32
    return %c0_i32, %c0_i32_0 : i32, i32
  }
  func.func @transform_2(%arg0: i32) -> (i32, i32) {
    %c0_i32 = arith.constant 0 : i32
    %c0_i32_0 = arith.constant 0 : i32
    %c0_i32_1 = arith.constant 0 : i32
    return %c0_i32, %c0_i32_0 : i32, i32
  }
  func.func @transform_3(%arg0: i32) -> (i32, i32) {
    %c0_i32 = arith.constant 0 : i32
    %c0_i32_0 = arith.constant 0 : i32
    %c0_i32_1 = arith.constant 0 : i32
    return %c0_i32, %c0_i32_0 : i32, i32
  }
  func.func @transform_4(%arg0: i32) -> (i32, i32) {
    %c0_i32 = arith.constant 0 : i32
    %c0_i32_0 = arith.constant 0 : i32
    %c0_i32_1 = arith.constant 0 : i32
    return %c0_i32, %c0_i32_0 : i32, i32
  }
  func.func @transform_5(%arg0: i32) -> (i32, i32) {
    %c0_i32 = arith.constant 0 : i32
    %c0_i32_0 = arith.constant 0 : i32
    %c0_i32_1 = arith.constant 0 : i32
    return %c0_i32, %c0_i32_0 : i32, i32
  }
  func.func @transform_6(%arg0: i32) -> (i32, i32) {
    %c0_i32 = arith.constant 0 : i32
    %c0_i32_0 = arith.constant 0 : i32
    %c0_i32_1 = arith.constant 0 : i32
    return %c0_i32, %c0_i32_0 : i32, i32
  }
  func.func @transform_7(%arg0: i32) -> (i32, i32) {
    %c0_i32 = arith.constant 0 : i32
    %c0_i32_0 = arith.constant 0 : i32
    return %arg0, %c0_i32 : i32, i32
  }
}

</mosaic_0001>

<llo_original>
// kernel: tile.13
$region0: #{tile.13}
  #allocation0 [shape = 's32[1]{0}', space=sflag, size = 0x4, scoped, tag = 'scoped memory for tile.13']
  %s0 = inlined_call_operand.vmem [shape: f32[6], index: 0, kind: input, shape index: {}]
  %s1 = inlined_call_operand.vmem [shape: f32[14,6], index: 1, kind: output, shape index: {}]
  // Predicated region
  $region2: #{tile.13} parent=0 // pred_check
    _
  $region3: #{tile.13} parent=0 // pred_check_branch
    %3 = sbr.rel (0) target = $region5
  $region4: #{tile.13} parent=0 // pred_region
    _
  $region5: #{tile.13} parent=0 // pred_fallthru
    _
  %v4 = vld [vmem:[%s0] ss:$0 sm:$0xff]
  %5 = vst [vmem:[%s1] sm:$0xff] %v4
  %s6 = scalar_lea.vmem %s1, 8
  %7 = vst [vmem:[%s6] sm:$0xff] %v4

// kernel: tile.14
$region0: #{tile.14}
  %s0 = inlined_call_operand.vmem [shape: f32[14,6], index: 0, kind: input, shape index: {}]
  %s1 = inlined_call_operand.vmem [shape: f32[1,84], index: 1, kind: output, shape index: {}]
  $region1: #{tile.14} parent=0
    #allocation0 [shape = 'u8[4096]{0}', space=vmem, size = 0x1000, scoped, tag = 'scoped mem for output reshape']
    %v2 = vld [vmem:[%s0] sm:$0x1]
    %vm3 = vcmask 48128
    %4 = vst.msk [vmem:[#allocation0] sm:$0x1] %vm3, %v2
    %s5 = scalar_lea.vmem %s0, 13
    %v6 = vld [vmem:[%s5] sm:$0x1]
    %7 = vrot.lane.b32.xlu0 %v6, 78
    %v8 = vpop.permute.xlu0 %7
    %vm9 = vcmask 687728
    %10 = vst.msk [vmem:[#allocation0] sm:$0x1] %vm9, %v8
    %s11 = scalar_lea.vmem %s0, 12
    %v12 = vld [vmem:[%s11] sm:$0x1]
    %13 = vrot.lane.b32.xlu0 %v12, 72
    %v14 = vpop.permute.xlu0 %13
    %vm15 = vcmask 638528
    %16 = vst.msk [vmem:[#allocation0] sm:$0x1] %vm15, %v14
    %s17 = scalar_lea.vmem %s0, 11
    %v18 = vld [vmem:[%s17] sm:$0x1]
    %19 = vrot.lane.b32.xlu0 %v18, 66
    %v20 = vpop.permute.xlu0 %19
    %vm21 = vcmask 589328
    %22 = vst.msk [vmem:[#allocation0] sm:$0x1] %vm21, %v20
    %s23 = scalar_lea.vmem %s0, 10
    %v24 = vld [vmem:[%s23] sm:$0x1]
    %25 = vrot.lane.b32.xlu0 %v24, 60
    %v26 = vpop.permute.xlu0 %25
    %vm27 = vcmask 540128
    %28 = vst.msk [vmem:[#allocation0] sm:$0x1] %vm27, %v26
    %s29 = scalar_lea.vmem %s0, 9
    %v30 = vld [vmem:[%s29] sm:$0x1]
    %31 = vrot.lane.b32.xlu0 %v30, 54
    %v32 = vpop.permute.xlu0 %31
    %vm33 = vcmask 490928
    %34 = vst.msk [vmem:[#allocation0] sm:$0x1] %vm33, %v32
    %s35 = scalar_lea.vmem %s0, 8
    %v36 = vld [vmem:[%s35] sm:$0x1]
    %37 = vrot.lane.b32.xlu0 %v36, 48
    %v38 = vpop.permute.xlu0 %37
    %vm39 = vcmask 441728
    %40 = vst.msk [vmem:[#allocation0] sm:$0x1] %vm39, %v38
    %s41 = scalar_lea.vmem %s0, 7
    %v42 = vld [vmem:[%s41] sm:$0x1]
    %43 = vrot.lane.b32.xlu0 %v42, 42
    %v44 = vpop.permute.xlu0 %43
    %vm45 = vcmask 392528
    %46 = vst.msk [vmem:[#allocation0] sm:$0x1] %vm45, %v44
    %s47 = scalar_lea.vmem %s0, 6
    %v48 = vld [vmem:[%s47] sm:$0x1]
    %49 = vrot.lane.b32.xlu0 %v48, 36
    %v50 = vpop.permute.xlu0 %49
    %vm51 = vcmask 343328
    %52 = vst.msk [vmem:[#allocation0] sm:$0x1] %vm51, %v50
    %s53 = scalar_lea.vmem %s0, 5
    %v54 = vld [vmem:[%s53] sm:$0x1]
    %55 = vrot.lane.b32.xlu0 %v54, 30
    %v56 = vpop.permute.xlu0 %55
    %vm57 = vcmask 294128
    %58 = vst.msk [vmem:[#allocation0] sm:$0x1] %vm57, %v56
    %s59 = scalar_lea.vmem %s0, 4
    %v60 = vld [vmem:[%s59] sm:$0x1]
    %61 = vrot.lane.b32.xlu0 %v60, 24
    %v62 = vpop.permute.xlu0 %61
    %vm63 = vcmask 244928
    %64 = vst.msk [vmem:[#allocation0] sm:$0x1] %vm63, %v62
    %s65 = scalar_lea.vmem %s0, 3
    %v66 = vld [vmem:[%s65] sm:$0x1]
    %67 = vrot.lane.b32.xlu0 %v66, 18
    %v68 = vpop.permute.xlu0 %67
    %vm69 = vcmask 195728
    %70 = vst.msk [vmem:[#allocation0] sm:$0x1] %vm69, %v68
    %s71 = scalar_lea.vmem %s0, 2
    %v72 = vld [vmem:[%s71] sm:$0x1]
    %73 = vrot.lane.b32.xlu0 %v72, 12
    %v74 = vpop.permute.xlu0 %73
    %vm75 = vcmask 146528
    %76 = vst.msk [vmem:[#allocation0] sm:$0x1] %vm75, %v74
    %s77 = scalar_lea.vmem %s0, 1
    %v78 = vld [vmem:[%s77] sm:$0x1]
    %79 = vrot.lane.b32.xlu0 %v78, 6
    %v80 = vpop.permute.xlu0 %79
    %vm81 = vcmask 97328
    %82 = vst.msk [vmem:[#allocation0] sm:$0x1] %vm81, %v80
    %s84 = sshllo.u32 0, 1
    %v86 = vld [vmem:[#allocation0] sm:%s84]
    %s87 = sshllo.u32 0, 1
    %88 = vst [vmem:[%s1] sm:%s87] %v86

// kernel: tile.18
$region0: #{tile.18}
  #allocation0 [shape = 's32[1]{0}', space=sflag, size = 0x4, scoped, tag = 'scoped memory for tile.18']
  %s0 = inlined_call_operand.vmem [shape: f32[16], index: 0, kind: input, shape index: {}]
  %s1 = inlined_call_operand.vmem [shape: f32[5,16], index: 1, kind: output, shape index: {}]
  // Predicated region
  $region2: #{tile.18} parent=0 // pred_check
    _
  $region3: #{tile.18} parent=0 // pred_check_branch
    %3 = sbr.rel (0) target = $region5
  $region4: #{tile.18} parent=0 // pred_region
    _
  $region5: #{tile.18} parent=0 // pred_fallthru
    _
  %v4 = vld [vmem:[%s0] ss:$0 sm:$0xff]
  %5 = vst [vmem:[%s1] sm:$0xff] %v4

// kernel: tile.19
$region0: #{tile.19}
  %s0 = inlined_call_operand.vmem [shape: f32[5,16], index: 0, kind: input, shape index: {}]
  %s1 = inlined_call_operand.vmem [shape: f32[1,80], index: 1, kind: output, shape index: {}]
  $region1: #{tile.19} parent=0
    #allocation0 [shape = 'u8[4096]{0}', space=vmem, size = 0x1000, scoped, tag = 'scoped mem for output reshape']
    %v2 = vld [vmem:[%s0] sm:$0x1]
    %vm3 = vcmask 130048
    %4 = vst.msk [vmem:[#allocation0] sm:$0x1] %vm3, %v2
    %s5 = scalar_lea.vmem %s0, 4
    %v6 = vld [vmem:[%s5] sm:$0x1]
    %7 = vrot.lane.b32.xlu0 %v6, 64
    %v8 = vpop.permute.xlu0 %7
    %vm9 = vcmask 654848
    %10 = vst.msk [vmem:[#allocation0] sm:$0x1] %vm9, %v8
    %s11 = scalar_lea.vmem %s0, 3
    %v12 = vld [vmem:[%s11] sm:$0x1]
    %13 = vrot.lane.b32.xlu0 %v12, 48
    %v14 = vpop.permute.xlu0 %13
    %vm15 = vcmask 523648
    %16 = vst.msk [vmem:[#allocation0] sm:$0x1] %vm15, %v14
    %s17 = scalar_lea.vmem %s0, 2
    %v18 = vld [vmem:[%s17] sm:$0x1]
    %19 = vrot.lane.b32.xlu0 %v18, 32
    %v20 = vpop.permute.xlu0 %19
    %vm21 = vcmask 392448
    %22 = vst.msk [vmem:[#allocation0] sm:$0x1] %vm21, %v20
    %s23 = scalar_lea.vmem %s0, 1
    %v24 = vld [vmem:[%s23] sm:$0x1]
    %25 = vrot.lane.b32.xlu0 %v24, 16
    %v26 = vpop.permute.xlu0 %25
    %vm27 = vcmask 261248
    %28 = vst.msk [vmem:[#allocation0] sm:$0x1] %vm27, %v26
    %s30 = sshllo.u32 0, 1
    %v32 = vld [vmem:[#allocation0] sm:%s30]
    %s33 = sshllo.u32 0, 1
    %34 = vst [vmem:[%s1] sm:%s33] %v32

// kernel: cnn_cifar10_forward.3
$region0: #{cnn_cifar10_forward.3}
  #allocation0 [shape = 'u32[]', space=smem, size = 0x4, offset = 0x4, fixed_abs, tag = 'smem constant byte address 0x4 - core index']
  #allocation1 [shape = 'u32[144,128]{1,0:T(1,128)}', space=vmem, size = 0x12000, scoped, tag = 'internal scratch']
  %s0 = inlined_call_operand.vmem [shape: f32[2,400], index: 0, kind: input, shape index: {}]
  %s1 = inlined_call_operand.vmem [shape: f32[400,120], index: 1, kind: input, shape index: {}]
  %s2 = inlined_call_operand.vmem [shape: f32[1,120], index: 2, kind: input, shape index: {}]
  %s3 = inlined_call_operand.vmem [shape: f32[120,84], index: 3, kind: input, shape index: {}]
  %s4 = inlined_call_operand.vmem [shape: f32[1,84], index: 4, kind: input, shape index: {}]
  %s5 = inlined_call_operand.vmem [shape: f32[84,10], index: 5, kind: input, shape index: {}]
  %s6 = inlined_call_operand.vmem [shape: f32[1,10], index: 6, kind: input, shape index: {}]
  %s7 = inlined_call_operand.hbm [shape: f32[2,10], index: 7, kind: output, shape index: {}]
  %s8 = sld [smem:[#allocation0]]
  $region38: #{cnn_cifar10_forward.3} parent=0
    _
  %s10 = ssub.s32 1, %s8
  %s11 = scalar_select 0, %s10, %s8
  $region1: #{cnn_cifar10_forward.3} parent=0
    #allocation2 [shape = 'u8[1024]{0}', space=vmem, size = 0x400, scoped, tag = 'output window, operand 0, single buffered']
    #allocation3 [shape = 's32[1]{0}', space=sflag, size = 0x4, scoped, tag = 'scoped memory for cnn_cifar10_forward.3']
    %12 = vsyncpa [#allocation3], 0
    // Predicated region
    $region2: #{cnn_cifar10_forward.3} parent=1 // pred_check
      _
    $region3: #{cnn_cifar10_forward.3} parent=1 // pred_check_branch
      %14 = sbr.rel (0) target = $region5
    $region4: #{cnn_cifar10_forward.3} parent=1 // pred_region
      _
    $region5: #{cnn_cifar10_forward.3} parent=1 // pred_fallthru
      _
    // Predicated region
    $region6: #{cnn_cifar10_forward.3} parent=1 // pred_check
      _
    $region7: #{cnn_cifar10_forward.3} parent=1 // pred_check_branch
      %16 = sbr.rel (0) target = $region9
    $region8: #{cnn_cifar10_forward.3} parent=1 // pred_region
      _
    $region9: #{cnn_cifar10_forward.3} parent=1 // pred_fallthru
      _
    // Predicated region
    $region10: #{cnn_cifar10_forward.3} parent=1 // pred_check
      _
    $region11: #{cnn_cifar10_forward.3} parent=1 // pred_check_branch
      %18 = sbr.rel (0) target = $region13
    $region12: #{cnn_cifar10_forward.3} parent=1 // pred_region
      _
    $region13: #{cnn_cifar10_forward.3} parent=1 // pred_fallthru
      _
    // Predicated region
    $region14: #{cnn_cifar10_forward.3} parent=1 // pred_check
      _
    $region15: #{cnn_cifar10_forward.3} parent=1 // pred_check_branch
      %20 = sbr.rel (0) target = $region17
    $region16: #{cnn_cifar10_forward.3} parent=1 // pred_region
      _
    $region17: #{cnn_cifar10_forward.3} parent=1 // pred_fallthru
      _
    // Predicated region
    $region18: #{cnn_cifar10_forward.3} parent=1 // pred_check
      _
    $region19: #{cnn_cifar10_forward.3} parent=1 // pred_check_branch
      %22 = sbr.rel (0) target = $region21
    $region20: #{cnn_cifar10_forward.3} parent=1 // pred_region
      _
    $region21: #{cnn_cifar10_forward.3} parent=1 // pred_fallthru
      _
    // Predicated region
    $region22: #{cnn_cifar10_forward.3} parent=1 // pred_check
      _
    $region23: #{cnn_cifar10_forward.3} parent=1 // pred_check_branch
      %24 = sbr.rel (0) target = $region25
    $region24: #{cnn_cifar10_forward.3} parent=1 // pred_region
      _
    $region25: #{cnn_cifar10_forward.3} parent=1 // pred_fallthru
      _
    // Predicated region
    $region26: #{cnn_cifar10_forward.3} parent=1 // pred_check
      _
    $region27: #{cnn_cifar10_forward.3} parent=1 // pred_check_branch
      %26 = sbr.rel (0) target = $region29
    $region28: #{cnn_cifar10_forward.3} parent=1 // pred_region
      _
    $region29: #{cnn_cifar10_forward.3} parent=1 // pred_fallthru
      _
    %v27 = vld [vmem:[%s0] sm:$0xff]
    %v28 = vld [vmem:[%s1] sm:$0xff]
    %v29 = vld [vmem:[%s1 + $0x8] sm:$0xff]
    %v30 = vld [vmem:[%s1 + $0x10] sm:$0xff]
    %v31 = vld [vmem:[%s1 + $0x18] sm:$0xff]
    %v32 = vld [vmem:[%s1 + $0x20] sm:$0xff]
    %v33 = vld [vmem:[%s1 + $0x28] sm:$0xff]
    %v34 = vld [vmem:[%s1 + $0x30] sm:$0xff]
    %v35 = vld [vmem:[%s1 + $0x38] sm:$0xff]
    %v36 = vld [vmem:[%s1 + $0x40] sm:$0xff]
    %v37 = vld [vmem:[%s1 + $0x48] sm:$0xff]
    %v38 = vld [vmem:[%s1 + $0x50] sm:$0xff]
    %v39 = vld [vmem:[%s1 + $0x58] sm:$0xff]
    %v40 = vld [vmem:[%s1 + $0x60] sm:$0xff]
    %v41 = vld [vmem:[%s1 + $0x68] sm:$0xff]
    %v42 = vld [vmem:[%s1 + $0x70] sm:$0xff]
    %v43 = vld [vmem:[%s1 + $0x78] sm:$0xff]
    %v44 = vld [vmem:[%s1 + $0x80] sm:$0xff]
    %v45 = vld [vmem:[%s1 + $0x88] sm:$0xff]
    %v46 = vld [vmem:[%s1 + $0x90] sm:$0xff]
    %v47 = vld [vmem:[%s1 + $0x98] sm:$0xff]
    %v48 = vld [vmem:[%s1 + $0xa0] sm:$0xff]
    %v49 = vld [vmem:[%s1 + $0xa8] sm:$0xff]
    %v50 = vld [vmem:[%s1 + $0xb0] sm:$0xff]
    %v51 = vld [vmem:[%s1 + $0xb8] sm:$0xff]
    %v52 = vld [vmem:[%s1 + $0xc0] sm:$0xff]
    %v53 = vld [vmem:[%s1 + $0xc8] sm:$0xff]
    %v54 = vld [vmem:[%s1 + $0xd0] sm:$0xff]
    %v55 = vld [vmem:[%s1 + $0xd8] sm:$0xff]
    %v56 = vld [vmem:[%s1 + $0xe0] sm:$0xff]
    %v57 = vld [vmem:[%s1 + $0xe8] sm:$0xff]
    %v58 = vld [vmem:[%s1 + $0xf0] sm:$0xff]
    %v59 = vld [vmem:[%s1 + $0xf8] sm:$0xff]
    %v60 = vld [vmem:[%s1 + $0x100] sm:$0xff]
    %v61 = vld [vmem:[%s1 + $0x108] sm:$0xff]
    %v62 = vld [vmem:[%s1 + $0x110] sm:$0xff]
    %v63 = vld [vmem:[%s1 + $0x118] sm:$0xff]
    %v64 = vld [vmem:[%s1 + $0x120] sm:$0xff]
    %v65 = vld [vmem:[%s1 + $0x128] sm:$0xff]
    %v66 = vld [vmem:[%s1 + $0x130] sm:$0xff]
    %v67 = vld [vmem:[%s1 + $0x138] sm:$0xff]
    %v68 = vld [vmem:[%s1 + $0x140] sm:$0xff]
    %v69 = vld [vmem:[%s1 + $0x148] sm:$0xff]
    %v70 = vld [vmem:[%s1 + $0x150] sm:$0xff]
    %v71 = vld [vmem:[%s1 + $0x158] sm:$0xff]
    %v72 = vld [vmem:[%s1 + $0x160] sm:$0xff]
    %v73 = vld [vmem:[%s1 + $0x168] sm:$0xff]
    %v74 = vld [vmem:[%s1 + $0x170] sm:$0xff]
    %v75 = vld [vmem:[%s1 + $0x178] sm:$0xff]
    %v76 = vld [vmem:[%s1 + $0x180] sm:$0xff]
    %v77 = vld [vmem:[%s1 + $0x188] sm:$0xff]
    %v78 = vld [vmem:[%s2] sm:$0x1]
    %v80 = vlaneseq
    %v81 = vshrl.u32 %v80, 7
    %v82 = vsub.s32 0, %v81
    %v83 = vrot.slane %v78, %v82
    %v86 = vcombine.high %v27, %v27
    %v88 = vunpack.c.l.s4 1983009808
    %v89 = vunpack.c.0.s8 %v88
    %v90 = vlaneseq
    %v91 = vshrl.u32 %v90, 7
    %v92 = vsub.s32 %v89, %v91
    %v93 = vrot.slane %v27, %v92
    %v95 = vunpack.c.l.s4 1983009808
    %v96 = vunpack.c.0.s8 %v95
    %v97 = vlaneseq
    %v98 = vshrl.u32 %v97, 7
    %v99 = vsub.s32 %v96, %v98
    %v100 = vrot.slane %v86, %v99
    %v101 = vcombine.high %v93, %v93
    %v102 = vcombine.high %v100, %v100
    %vm106 = vcmask 130048
    %v107 = vsel %vm106, %v102, 0
    %109 = vmatprep.subr.mxu0 0.0
    %110 = vmatpush1.msra.mxu0 %v28
    %111 = vmatprep.subr.mxu0 0.0
    %112 = vmatpush1.msra.mxu0 %v29
    %113 = vmatprep.subr.mxu0 0.0
    %114 = vmatpush1.msra.mxu0 %v30
    %115 = vmatprep.subr.mxu0 0.0
    %116 = vmatpush1.msra.mxu0 %v31
    %117 = vmatprep.subr.mxu0 0.0
    %118 = vmatpush1.msra.mxu0 %v32
    %119 = vmatprep.subr.mxu0 0.0
    %120 = vmatpush1.msra.mxu0 %v33
    %121 = vmatprep.subr.mxu0 0.0
    %122 = vmatpush1.msra.mxu0 %v34
    %123 = vmatprep.subr.mxu0 0.0
    %124 = vmatpush1.msra.mxu0 %v35
    %125 = vmatprep.subr.mxu0 0.0
    %126 = vmatpush1.msra.mxu0 %v36
    %127 = vmatprep.subr.mxu0 0.0
    %128 = vmatpush1.msra.mxu0 %v37
    %129 = vmatprep.subr.mxu0 0.0
    %130 = vmatpush1.msra.mxu0 %v38
    %131 = vmatprep.subr.mxu0 0.0
    %132 = vmatpush1.msra.mxu0 %v39
    %133 = vmatprep.subr.mxu0 0.0
    %134 = vmatpush1.msra.mxu0 %v40
    %135 = vmatprep.subr.mxu0 0.0
    %136 = vmatpush1.msra.mxu0 %v41
    %137 = vmatprep.subr.mxu0 0.0
    %138 = vmatpush1.msra.mxu0 %v42
    %139 = vmatprep.subr.mxu0 0.0
    %140 = vmatpush1.msra.mxu0 %v43
    %141 = vmatprep.subr.mxu0 0.0
    %142 = vmatpush1.msra.mxu0 %v44
    %143 = vmatprep.subr.mxu0 0.0
    %144 = vmatpush1.msra.mxu0 %v45
    %145 = vmatprep.subr.mxu0 0.0
    %146 = vmatpush1.msra.mxu0 %v46
    %147 = vmatprep.subr.mxu0 0.0
    %148 = vmatpush1.msra.mxu0 %v47
    %149 = vmatprep.subr.mxu0 0.0
    %150 = vmatpush1.msra.mxu0 %v48
    %151 = vmatprep.subr.mxu0 0.0
    %152 = vmatpush1.msra.mxu0 %v49
    %153 = vmatprep.subr.mxu0 0.0
    %154 = vmatpush1.msra.mxu0 %v50
    %155 = vmatprep.subr.mxu0 0.0
    %156 = vmatpush1.msra.mxu0 %v51
    %157 = vmatprep.subr.mxu0 0.0
    %158 = vmatpush1.msra.mxu0 %v52
    %159 = vmatprep.subr.mxu0 0.0
    %160 = vmatpush1.msra.mxu0 %v53
    %161 = vmatprep.subr.mxu0 0.0
    %162 = vmatpush1.msra.mxu0 %v54
    %163 = vmatprep.subr.mxu0 0.0
    %164 = vmatpush1.msra.mxu0 %v55
    %165 = vmatprep.subr.mxu0 0.0
    %166 = vmatpush1.msra.mxu0 %v56
    %167 = vmatprep.subr.mxu0 0.0
    %168 = vmatpush1.msra.mxu0 %v57
    %169 = vmatprep.subr.mxu0 0.0
    %170 = vmatpush1.msra.mxu0 %v58
    %171 = vmatprep.subr.mxu0 0.0
    %172 = vmatpush1.msra.mxu0 %v59
    %173 = vmatprep.mubr.f32.mxu0 %v101
    %174 = vmatmul.mubr.f32.gmra.mrb[0].mxu0 %v93
    %v175 = vpop.f32.mrb[0].mxu0
    %v176 = vadd.f32 %v83, %v175
    %v177 = vpop.f32.mrb[0].mxu0
    %178 = vdwg.mxu0
    %179 = vmatprep.subr.mxu0 0.0
    %180 = vmatpush1.msra.mxu0 %v60
    %181 = vmatprep.subr.mxu0 0.0
    %182 = vmatpush1.msra.mxu0 %v61
    %183 = vmatprep.subr.mxu0 0.0
    %184 = vmatpush1.msra.mxu0 %v62
    %185 = vmatprep.subr.mxu0 0.0
    %186 = vmatpush1.msra.mxu0 %v63
    %187 = vmatprep.subr.mxu0 0.0
    %188 = vmatpush1.msra.mxu0 %v64
    %189 = vmatprep.subr.mxu0 0.0
    %190 = vmatpush1.msra.mxu0 %v65
    %191 = vmatprep.subr.mxu0 0.0
    %192 = vmatpush1.msra.mxu0 %v66
    %193 = vmatprep.subr.mxu0 0.0
    %194 = vmatpush1.msra.mxu0 %v67
    %195 = vmatprep.subr.mxu0 0.0
    %196 = vmatpush1.msra.mxu0 %v68
    %197 = vmatprep.subr.mxu0 0.0
    %198 = vmatpush1.msra.mxu0 %v69
    %199 = vmatprep.subr.mxu0 0.0
    %200 = vmatpush1.msra.mxu0 %v70
    %201 = vmatprep.subr.mxu0 0.0
    %202 = vmatpush1.msra.mxu0 %v71
    %203 = vmatprep.subr.mxu0 0.0
    %204 = vmatpush1.msra.mxu0 %v72
    %205 = vmatprep.subr.mxu0 0.0
    %206 = vmatpush1.msra.mxu0 %v73
    %207 = vmatprep.subr.mxu0 0.0
    %208 = vmatpush1.msra.mxu0 %v74
    %209 = vmatprep.subr.mxu0 0.0
    %210 = vmatpush1.msra.mxu0 %v75
    %211 = vmatprep.subr.mxu0 0.0
    %212 = vmatpush1.msra.mxu0 %v76
    %213 = vmatprep.subr.mxu0 0.0
    %214 = vmatpush1.msra.mxu0 %v77
    %215 = vmatprep.subr.mxu0 0.0
    %216 = vmatpush1.msra.mxu0 0.0
    %217 = vmatprep.subr.mxu0 0.0
    %218 = vmatpush1.msra.mxu0 0.0
    %219 = vmatprep.subr.mxu0 0.0
    %220 = vmatpush1.msra.mxu0 0.0
    %221 = vmatprep.subr.mxu0 0.0
    %222 = vmatpush1.msra.mxu0 0.0
    %223 = vmatprep.subr.mxu0 0.0
    %224 = vmatpush1.msra.mxu0 0.0
    %225 = vmatprep.subr.mxu0 0.0
    %226 = vmatpush1.msra.mxu0 0.0
    %227 = vmatprep.subr.mxu0 0.0
    %228 = vmatpush1.msra.mxu0 0.0
    %229 = vmatprep.subr.mxu0 0.0
    %230 = vmatpush1.msra.mxu0 0.0
    %231 = vmatprep.subr.mxu0 0.0
    %232 = vmatpush1.msra.mxu0 0.0
    %233 = vmatprep.subr.mxu0 0.0
    %234 = vmatpush1.msra.mxu0 0.0
    %235 = vmatprep.subr.mxu0 0.0
    %236 = vmatpush1.msra.mxu0 0.0
    %237 = vmatprep.subr.mxu0 0.0
    %238 = vmatpush1.msra.mxu0 0.0
    %239 = vmatprep.subr.mxu0 0.0
    %240 = vmatpush1.msra.mxu0 0.0
    %241 = vmatprep.subr.mxu0 0.0
    %242 = vmatpush1.msra.mxu0 0.0
    %243 = vmatprep.mubr.f32.mxu0 %v107
    %244 = vmatmul.mubr.f32.gmra.mrb[0].mxu0 %v100
    %v245 = vpop.f32.mrb[0].mxu0
    %v246 = vadd.f32 %v176, %v245
    %v247 = vpop.f32.mrb[0].mxu0
    %248 = vdwg.mxu0
    %v249 = vmax.f32 %v246, 0.0
    %v250 = vld [vmem:[%s3] sm:$0xff]
    %v251 = vld [vmem:[%s3 + $0x8] sm:$0xff]
    %v252 = vld [vmem:[%s3 + $0x10] sm:$0xff]
    %v253 = vld [vmem:[%s3 + $0x18] sm:$0xff]
    %v254 = vld [vmem:[%s3 + $0x20] sm:$0xff]
    %v255 = vld [vmem:[%s3 + $0x28] sm:$0xff]
    %v256 = vld [vmem:[%s3 + $0x30] sm:$0xff]
    %v257 = vld [vmem:[%s3 + $0x38] sm:$0xff]
    %v258 = vld [vmem:[%s3 + $0x40] sm:$0xff]
    %v259 = vld [vmem:[%s3 + $0x48] sm:$0xff]
    %v260 = vld [vmem:[%s3 + $0x50] sm:$0xff]
    %v261 = vld [vmem:[%s3 + $0x58] sm:$0xff]
    %v262 = vld [vmem:[%s3 + $0x60] sm:$0xff]
    %v263 = vld [vmem:[%s3 + $0x68] sm:$0xff]
    %v264 = vld [vmem:[%s3 + $0x70] sm:$0xff]
    %v265 = vld [vmem:[%s4] sm:$0x1]
    %v267 = vlaneseq
    %v268 = vshrl.u32 %v267, 7
    %v269 = vsub.s32 0, %v268
    %v270 = vrot.slane %v265, %v269
    %vm272 = vcmask 982016
    %v274 = vsel %vm272, %v249, 0
    %276 = vmatprep.subr.mxu0 0.0
    %277 = vmatpush1.msra.mxu0 %v250
    %278 = vmatprep.subr.mxu0 0.0
    %279 = vmatpush1.msra.mxu0 %v251
    %280 = vmatprep.subr.mxu0 0.0
    %281 = vmatpush1.msra.mxu0 %v252
    %282 = vmatprep.subr.mxu0 0.0
    %283 = vmatpush1.msra.mxu0 %v253
    %284 = vmatprep.subr.mxu0 0.0
    %285 = vmatpush1.msra.mxu0 %v254
    %286 = vmatprep.subr.mxu0 0.0
    %287 = vmatpush1.msra.mxu0 %v255
    %288 = vmatprep.subr.mxu0 0.0
    %289 = vmatpush1.msra.mxu0 %v256
    %290 = vmatprep.subr.mxu0 0.0
    %291 = vmatpush1.msra.mxu0 %v257
    %292 = vmatprep.subr.mxu0 0.0
    %293 = vmatpush1.msra.mxu0 %v258
    %294 = vmatprep.subr.mxu0 0.0
    %295 = vmatpush1.msra.mxu0 %v259
    %296 = vmatprep.subr.mxu0 0.0
    %297 = vmatpush1.msra.mxu0 %v260
    %298 = vmatprep.subr.mxu0 0.0
    %299 = vmatpush1.msra.mxu0 %v261
    %300 = vmatprep.subr.mxu0 0.0
    %301 = vmatpush1.msra.mxu0 %v262
    %302 = vmatprep.subr.mxu0 0.0
    %303 = vmatpush1.msra.mxu0 %v263
    %304 = vmatprep.subr.mxu0 0.0
    %305 = vmatpush1.msra.mxu0 %v264
    %306 = vmatprep.subr.mxu0 0.0
    %307 = vmatpush1.msra.mxu0 0.0
    %308 = vmatprep.subr.mxu0 0.0
    %309 = vmatpush1.msra.mxu0 0.0
    %310 = vmatprep.subr.mxu0 0.0
    %311 = vmatpush1.msra.mxu0 0.0
    %312 = vmatprep.subr.mxu0 0.0
    %313 = vmatpush1.msra.mxu0 0.0
    %314 = vmatprep.subr.mxu0 0.0
    %315 = vmatpush1.msra.mxu0 0.0
    %316 = vmatprep.subr.mxu0 0.0
    %317 = vmatpush1.msra.mxu0 0.0
    %318 = vmatprep.subr.mxu0 0.0
    %319 = vmatpush1.msra.mxu0 0.0
    %320 = vmatprep.subr.mxu0 0.0
    %321 = vmatpush1.msra.mxu0 0.0
    %322 = vmatprep.subr.mxu0 0.0
    %323 = vmatpush1.msra.mxu0 0.0
    %324 = vmatprep.subr.mxu0 0.0
    %325 = vmatpush1.msra.mxu0 0.0
    %326 = vmatprep.subr.mxu0 0.0
    %327 = vmatpush1.msra.mxu0 0.0
    %328 = vmatprep.subr.mxu0 0.0
    %329 = vmatpush1.msra.mxu0 0.0
    %330 = vmatprep.subr.mxu0 0.0
    %331 = vmatpush1.msra.mxu0 0.0
    %332 = vmatprep.subr.mxu0 0.0
    %333 = vmatpush1.msra.mxu0 0.0
    %334 = vmatprep.subr.mxu0 0.0
    %335 = vmatpush1.msra.mxu0 0.0
    %336 = vmatprep.subr.mxu0 0.0
    %337 = vmatpush1.msra.mxu0 0.0
    %338 = vmatprep.subr.mxu0 0.0
    %339 = vmatpush1.msra.mxu0 0.0
    %340 = vmatprep.mubr.f32.mxu0 0.0
    %341 = vmatmul.mubr.f32.gmra.mrb[0].mxu0 %v274
    %v342 = vpop.f32.mrb[0].mxu0
    %v343 = vadd.f32 %v270, %v342
    %v344 = vpop.f32.mrb[0].mxu0
    %345 = vdwg.mxu0
    %v346 = vmax.f32 %v343, 0.0
    %v347 = vld [vmem:[%s5] sm:$0xff]
    %v348 = vld [vmem:[%s5 + $0x8] sm:$0xff]
    %v349 = vld [vmem:[%s5 + $0x10] sm:$0xff]
    %v350 = vld [vmem:[%s5 + $0x18] sm:$0xff]
    %v351 = vld [vmem:[%s5 + $0x20] sm:$0xff]
    %v352 = vld [vmem:[%s5 + $0x28] sm:$0xff]
    %v353 = vld [vmem:[%s5 + $0x30] sm:$0xff]
    %v354 = vld [vmem:[%s5 + $0x38] sm:$0xff]
    %v355 = vld [vmem:[%s5 + $0x40] sm:$0xff]
    %v356 = vld [vmem:[%s5 + $0x48] sm:$0xff]
    %v357 = vld [vmem:[%s5 + $0x50] sm:$0xf]
    %v358 = vld [vmem:[%s6] sm:$0x1]
    %v360 = vlaneseq
    %v361 = vshrl.u32 %v360, 7
    %v362 = vsub.s32 0, %v361
    %v363 = vrot.slane %v358, %v362
    %vm365 = vcmask 687104
    %v367 = vsel %vm365, %v346, 0
    %vm369 = vcmask 1043456
    %v371 = vsel %vm369, %v357, 0
    %373 = vmatprep.subr.mxu0 0.0
    %374 = vmatpush1.msra.mxu0 %v347
    %375 = vmatprep.subr.mxu0 0.0
    %376 = vmatpush1.msra.mxu0 %v348
    %377 = vmatprep.subr.mxu0 0.0
    %378 = vmatpush1.msra.mxu0 %v349
    %379 = vmatprep.subr.mxu0 0.0
    %380 = vmatpush1.msra.mxu0 %v350
    %381 = vmatprep.subr.mxu0 0.0
    %382 = vmatpush1.msra.mxu0 %v351
    %383 = vmatprep.subr.mxu0 0.0
    %384 = vmatpush1.msra.mxu0 %v352
    %385 = vmatprep.subr.mxu0 0.0
    %386 = vmatpush1.msra.mxu0 %v353
    %387 = vmatprep.subr.mxu0 0.0
    %388 = vmatpush1.msra.mxu0 %v354
    %389 = vmatprep.subr.mxu0 0.0
    %390 = vmatpush1.msra.mxu0 %v355
    %391 = vmatprep.subr.mxu0 0.0
    %392 = vmatpush1.msra.mxu0 %v356
    %393 = vmatprep.subr.mxu0 0.0
    %394 = vmatpush1.msra.mxu0 %v371
    %395 = vmatprep.subr.mxu0 0.0
    %396 = vmatpush1.msra.mxu0 0.0
    %397 = vmatprep.subr.mxu0 0.0
    %398 = vmatpush1.msra.mxu0 0.0
    %399 = vmatprep.subr.mxu0 0.0
    %400 = vmatpush1.msra.mxu0 0.0
    %401 = vmatprep.subr.mxu0 0.0
    %402 = vmatpush1.msra.mxu0 0.0
    %403 = vmatprep.subr.mxu0 0.0
    %404 = vmatpush1.msra.mxu0 0.0
    %405 = vmatprep.subr.mxu0 0.0
    %406 = vmatpush1.msra.mxu0 0.0
    %407 = vmatprep.subr.mxu0 0.0
    %408 = vmatpush1.msra.mxu0 0.0
    %409 = vmatprep.subr.mxu0 0.0
    %410 = vmatpush1.msra.mxu0 0.0
    %411 = vmatprep.subr.mxu0 0.0
    %412 = vmatpush1.msra.mxu0 0.0
    %413 = vmatprep.subr.mxu0 0.0
    %414 = vmatpush1.msra.mxu0 0.0
    %415 = vmatprep.subr.mxu0 0.0
    %416 = vmatpush1.msra.mxu0 0.0
    %417 = vmatprep.subr.mxu0 0.0
    %418 = vmatpush1.msra.mxu0 0.0
    %419 = vmatprep.subr.mxu0 0.0
    %420 = vmatpush1.msra.mxu0 0.0
    %421 = vmatprep.subr.mxu0 0.0
    %422 = vmatpush1.msra.mxu0 0.0
    %423 = vmatprep.subr.mxu0 0.0
    %424 = vmatpush1.msra.mxu0 0.0
    %425 = vmatprep.subr.mxu0 0.0
    %426 = vmatpush1.msra.mxu0 0.0
    %427 = vmatprep.subr.mxu0 0.0
    %428 = vmatpush1.msra.mxu0 0.0
    %429 = vmatprep.subr.mxu0 0.0
    %430 = vmatpush1.msra.mxu0 0.0
    %431 = vmatprep.subr.mxu0 0.0
    %432 = vmatpush1.msra.mxu0 0.0
    %433 = vmatprep.subr.mxu0 0.0
    %434 = vmatpush1.msra.mxu0 0.0
    %435 = vmatprep.subr.mxu0 0.0
    %436 = vmatpush1.msra.mxu0 0.0
    %437 = vmatprep.mubr.f32.mxu0 0.0
    %438 = vmatmul.mubr.f32.gmra.mrb[0].mxu0 %v367
    %v439 = vpop.f32.mrb[0].mxu0
    %v440 = vadd.f32 %v363, %v439
    %v441 = vpop.f32.mrb[0].mxu0
    %442 = vdwg.mxu0
    %vm443 = vcmask 74752
    %v444 = vsel %vm443, %v440, -inf
    %445 = vmax.xlane.f32.xlu0 %v444
    %v446 = vpop.xlane.xlu0 %445
    %v447 = vsub.f32 %v440, %v446
    %v448 = vmul.f32 %v447, 1.442695
    %v449 = vpow.pop %v448
    %v450 = vsel %vm443, %v449, 0.0
    %451 = vadd.xlane.f32.xlu0 %v450
    %v452 = vpop.xlane.xlu0 %451
    %v453 = vlog2.pop %v452
    %v454 = vmul.f32 %v453, 0.6931472
    %v455 = vsub.f32 %v447, %v454
    %456 = vst.msk [vmem:[#allocation2] sm:$0x3] %vm443, %v455
    // Predicated region
    $region30: #{cnn_cifar10_forward.3} parent=1 // pred_check
      _
    $region31: #{cnn_cifar10_forward.3} parent=1 // pred_check_branch
      %458 = sbr.rel (0) target = $region33
    $region32: #{cnn_cifar10_forward.3} parent=1 // pred_region
      %s460 = ssub.s32 32, 32
      %461 = vsyncadd [#allocation3], %s460
      %s463 = sshll.u32 [#allocation2], 4
      %s464 = int_to_ptr.vmem [resolvable:$true] %s463
      %466 = dma.vmem_to_hbm [thread:$0]  %s464, 32, %s7, [#allocation3]
    $region33: #{cnn_cifar10_forward.3} parent=1 // pred_fallthru
      _
    // Predicated region
    $region34: #{cnn_cifar10_forward.3} parent=1 // pred_check
      _
    $region35: #{cnn_cifar10_forward.3} parent=1 // pred_check_branch
      %468 = sbr.rel (0) target = $region37
    $region36: #{cnn_cifar10_forward.3} parent=1 // pred_region
      %469 = dma.done [#allocation3], 32
    $region37: #{cnn_cifar10_forward.3} parent=1 // pred_fallthru
      _
    %470 = vsyncpa [#allocation3], 1

// kernel: cnn_cifar10_forward.2
$region0: #{cnn_cifar10_forward.2}
  #allocation0 [shape = 'u32[]', space=smem, size = 0x4, offset = 0x4, fixed_abs, tag = 'smem constant byte address 0x4 - core index']
  #allocation1 [shape = 'u32[144,128]{1,0:T(1,128)}', space=vmem, size = 0x12000, scoped, tag = 'internal scratch']
  #allocation2 [shape = 'f32[7,84]{1,0:T(8,128)}', space=vmem, size = 0x1000, scoped, tag = 'scratch operand']
  #allocation3 [shape = 'f32[7,84]{1,0:T(8,128)}', space=vmem, size = 0x1000, scoped, tag = 'scratch operand']
  %s0 = inlined_call_operand.vmem [shape: f32[2,4,8,96], index: 0, kind: input, shape index: {}]
  %s1 = inlined_call_operand.vmem [shape: f32[5,2,96,84], index: 1, kind: input, shape index: {}]
  %s2 = inlined_call_operand.vmem [shape: f32[1,84], index: 2, kind: input, shape index: {}]
  %s3 = inlined_call_operand.vmem [shape: f32[5,2,84,80], index: 3, kind: input, shape index: {}]
  %s4 = inlined_call_operand.vmem [shape: f32[1,80], index: 4, kind: input, shape index: {}]
  %s5 = inlined_call_operand.vmem [shape: f32[2,5,80], index: 5, kind: output, shape index: {}]
  %s6 = sld [smem:[#allocation0]]
  $region53: #{cnn_cifar10_forward.2} parent=0
    _
  %s8 = ssub.s32 1, %s6
  %s9 = scalar_select 0, %s8, %s6
  loop: start=0, step=1, limit=4
  $region2: #{cnn_cifar10_forward.2} parent=0 // loop_pre_header
    _
  $region3: #{cnn_cifar10_forward.2} parent=0 // loop_header
    %s11 = sphi 0, %s15
    %p12 = scmp.ge.s32.totalorder %s11, 4
    %s21 = sphi 0, %s23
    %s24 = sphi 0, %s21
    %s25 = sphi 0, %s24
    %s41 = sphi 0, %s25
    %s45 = sphi 0, %s45
    %s47 = sphi 0, %s45
    %s48 = sphi 0, %s47
    %s62 = sphi 0, %s48
    %s66 = sphi 0, %s66
    %s68 = sphi 0, %s66
    %s69 = sphi 0, %s68
    %s83 = sphi 0, %s69
    %s87 = sphi 0, %s87
    %s89 = sphi 0, %s87
    %s90 = sphi 0, %s89
    %s104 = sphi 0, %s90
    %s108 = sphi 0, %s108
    %s110 = sphi 0, %s108
    %s111 = sphi 0, %s110
    %s125 = sphi 0, %s111
    %s131 = sphi 0, %s133
    %s134 = sphi 0, %s131
    %s135 = sphi 0, %s134
    %s151 = sphi 0, %s135
  $region4: #{cnn_cifar10_forward.2} parent=0 // loop_header_branch
    %14 = sbr.rel (%p12) target = $region8
  $region5: #{cnn_cifar10_forward.2} parent=0 // loop_body
    %s16 = ssub.s32 %s11, 1
    %s17 = ssub.s32 %s11, 2
    %s18 = sadd.s32 %s11, 1
    %s19 = ssub.s32 %s11, %s18
    %p20 = scmp.eq.s32.totalorder %s19, 0
    %s22 = sadd.s32 %s21, 1
    %s23 = scalar_select %p20, %s21, %s22
    %p26 = pneg %p20
    %p27 = scmp.eq.s32.totalorder %s11, 1
    %p28 = por %p26, %p27
    %p29 = scmp.ne.s32.totalorder %s21, %s24
    %p30 = scmp.eq.s32.totalorder %s11, 0
    %p31 = por %p29, %p30
    %p32 = scmp.ne.s32.totalorder %s21, %s24
    %p33 = scmp.eq.s32.totalorder %s16, 1
    %p34 = por %p32, %p33
    %p35 = scmp.ne.s32.totalorder %s24, %s25
    %p36 = scmp.eq.s32.totalorder %s16, 0
    %p37 = por %p35, %p36
    %p38 = scmp.ne.s32.totalorder %s24, %s25
    %p39 = scmp.eq.s32.totalorder %s17, 1
    %p40 = por %p38, %p39
    %p42 = scmp.ne.s32.totalorder %s25, %s41
    %p43 = scmp.eq.s32.totalorder %s17, 0
    %p44 = por %p42, %p43
    %s46 = sadd.s32 %s45, 1
    %p49 = scmp.eq.s32.totalorder %s11, 1
    %p50 = scmp.ne.s32.totalorder %s45, %s47
    %p51 = scmp.eq.s32.totalorder %s11, 0
    %p52 = por %p50, %p51
    %p53 = scmp.ne.s32.totalorder %s45, %s47
    %p54 = scmp.eq.s32.totalorder %s16, 1
    %p55 = por %p53, %p54
    %p56 = scmp.ne.s32.totalorder %s47, %s48
    %p57 = scmp.eq.s32.totalorder %s16, 0
    %p58 = por %p56, %p57
    %p59 = scmp.ne.s32.totalorder %s47, %s48
    %p60 = scmp.eq.s32.totalorder %s17, 1
    %p61 = por %p59, %p60
    %p63 = scmp.ne.s32.totalorder %s48, %s62
    %p64 = scmp.eq.s32.totalorder %s17, 0
    %p65 = por %p63, %p64
    %s67 = sadd.s32 %s66, 1
    %p70 = scmp.eq.s32.totalorder %s11, 1
    %p71 = scmp.ne.s32.totalorder %s66, %s68
    %p72 = scmp.eq.s32.totalorder %s11, 0
    %p73 = por %p71, %p72
    %p74 = scmp.ne.s32.totalorder %s66, %s68
    %p75 = scmp.eq.s32.totalorder %s16, 1
    %p76 = por %p74, %p75
    %p77 = scmp.ne.s32.totalorder %s68, %s69
    %p78 = scmp.eq.s32.totalorder %s16, 0
    %p79 = por %p77, %p78
    %p80 = scmp.ne.s32.totalorder %s68, %s69
    %p81 = scmp.eq.s32.totalorder %s17, 1
    %p82 = por %p80, %p81
    %p84 = scmp.ne.s32.totalorder %s69, %s83
    %p85 = scmp.eq.s32.totalorder %s17, 0
    %p86 = por %p84, %p85
    %s88 = sadd.s32 %s87, 1
    %p91 = scmp.eq.s32.totalorder %s11, 1
    %p92 = scmp.ne.s32.totalorder %s87, %s89
    %p93 = scmp.eq.s32.totalorder %s11, 0
    %p94 = por %p92, %p93
    %p95 = scmp.ne.s32.totalorder %s87, %s89
    %p96 = scmp.eq.s32.totalorder %s16, 1
    %p97 = por %p95, %p96
    %p98 = scmp.ne.s32.totalorder %s89, %s90
    %p99 = scmp.eq.s32.totalorder %s16, 0
    %p100 = por %p98, %p99
    %p101 = scmp.ne.s32.totalorder %s89, %s90
    %p102 = scmp.eq.s32.totalorder %s17, 1
    %p103 = por %p101, %p102
    %p105 = scmp.ne.s32.totalorder %s90, %s104
    %p106 = scmp.eq.s32.totalorder %s17, 0
    %p107 = por %p105, %p106
    %s109 = sadd.s32 %s108, 1
    %p112 = scmp.eq.s32.totalorder %s11, 1
    %p113 = scmp.ne.s32.totalorder %s108, %s110
    %p114 = scmp.eq.s32.totalorder %s11, 0
    %p115 = por %p113, %p114
    %p116 = scmp.ne.s32.totalorder %s108, %s110
    %p117 = scmp.eq.s32.totalorder %s16, 1
    %p118 = por %p116, %p117
    %p119 = scmp.ne.s32.totalorder %s110, %s111
    %p120 = scmp.eq.s32.totalorder %s16, 0
    %p121 = por %p119, %p120
    %p122 = scmp.ne.s32.totalorder %s110, %s111
    %p123 = scmp.eq.s32.totalorder %s17, 1
    %p124 = por %p122, %p123
    %p126 = scmp.ne.s32.totalorder %s111, %s125
    %p127 = scmp.eq.s32.totalorder %s17, 0
    %p128 = por %p126, %p127
    %s129 = ssub.s32 %s11, %s18
    %p130 = scmp.eq.s32.totalorder %s129, 0
    %s132 = sadd.s32 %s131, 1
    %s133 = scalar_select %p130, %s131, %s132
    %p136 = pneg %p130
    %p137 = scmp.eq.s32.totalorder %s11, 1
    %p138 = por %p136, %p137
    %p139 = scmp.ne.s32.totalorder %s131, %s134
    %p140 = scmp.eq.s32.totalorder %s11, 0
    %p141 = por %p139, %p140
    %p142 = scmp.ne.s32.totalorder %s131, %s134
    %p143 = scmp.eq.s32.totalorder %s16, 1
    %p144 = por %p142, %p143
    %p145 = scmp.ne.s32.totalorder %s134, %s135
    %p146 = scmp.eq.s32.totalorder %s16, 0
    %p147 = por %p145, %p146
    %p148 = scmp.ne.s32.totalorder %s134, %s135
    %p149 = scmp.eq.s32.totalorder %s17, 1
    %p150 = por %p148, %p149
    %p152 = scmp.ne.s32.totalorder %s135, %s151
    %p153 = scmp.eq.s32.totalorder %s17, 0
    %p154 = por %p152, %p153
    %p155 = scmp.le.s32.totalorder 1, %s11
    %p156 = scmp.lt.s32.totalorder %s11, 3
    %p157 = pnand %p155, %p156
    %p158 = pneg %p157
    // Predicated region
    $region9: #{cnn_cifar10_forward.2} parent=5 // pred_check
      _
    $region10: #{cnn_cifar10_forward.2} parent=5 // pred_check_branch
      %160 = sbr.rel (%p157) target = $region12
    $region11: #{cnn_cifar10_forward.2} parent=5 // pred_region
      %s161 = ssub.s32 %s11, 1
      // Predicated region
      $region13: #{cnn_cifar10_forward.2} parent=11 // pred_check
        %p162 = pneg %p58
      $region14: #{cnn_cifar10_forward.2} parent=11 // pred_check_branch
        %164 = sbr.rel (%p162) target = $region16
      $region15: #{cnn_cifar10_forward.2} parent=11 // pred_region
        _
      $region16: #{cnn_cifar10_forward.2} parent=11 // pred_fallthru
        _
      // Predicated region
      $region17: #{cnn_cifar10_forward.2} parent=11 // pred_check
        %p165 = pneg %p79
      $region18: #{cnn_cifar10_forward.2} parent=11 // pred_check_branch
        %167 = sbr.rel (%p165) target = $region20
      $region19: #{cnn_cifar10_forward.2} parent=11 // pred_region
        _
      $region20: #{cnn_cifar10_forward.2} parent=11 // pred_fallthru
        _
      // Predicated region
      $region21: #{cnn_cifar10_forward.2} parent=11 // pred_check
        %p168 = pneg %p100
      $region22: #{cnn_cifar10_forward.2} parent=11 // pred_check_branch
        %170 = sbr.rel (%p168) target = $region24
      $region23: #{cnn_cifar10_forward.2} parent=11 // pred_region
        _
      $region24: #{cnn_cifar10_forward.2} parent=11 // pred_fallthru
        _
      // Predicated region
      $region25: #{cnn_cifar10_forward.2} parent=11 // pred_check
        %p171 = pneg %p121
      $region26: #{cnn_cifar10_forward.2} parent=11 // pred_check_branch
        %173 = sbr.rel (%p171) target = $region28
      $region27: #{cnn_cifar10_forward.2} parent=11 // pred_region
        _
      $region28: #{cnn_cifar10_forward.2} parent=11 // pred_fallthru
        _
    $region12: #{cnn_cifar10_forward.2} parent=5 // pred_fallthru
      _
    %p174 = scmp.lt.s32.totalorder %s11, 2
    // Predicated region
    $region29: #{cnn_cifar10_forward.2} parent=5 // pred_check
      %p175 = pneg %p174
    $region30: #{cnn_cifar10_forward.2} parent=5 // pred_check_branch
      %177 = sbr.rel (%p175) target = $region32
    $region31: #{cnn_cifar10_forward.2} parent=5 // pred_region
      // Predicated region
      $region33: #{cnn_cifar10_forward.2} parent=31 // pred_check
        %p178 = pneg %p31
      $region34: #{cnn_cifar10_forward.2} parent=31 // pred_check_branch
        %180 = sbr.rel (%p178) target = $region36
      $region35: #{cnn_cifar10_forward.2} parent=31 // pred_region
        %p181 = scmp.lt.s32.totalorder %s11, 1
        %s182 = scalar_select %p181, %s11, 1
        %s183 = smul.addr %s182, 4
        %s184 = smul.addr %s183, 8
        %s185 = scalar_lea.vmem %s0, %s184
      $region36: #{cnn_cifar10_forward.2} parent=31 // pred_fallthru
        _
    $region32: #{cnn_cifar10_forward.2} parent=5 // pred_fallthru
      _
    %p186 = scmp.le.s32.totalorder 1, %s11
    %p187 = scmp.lt.s32.totalorder %s11, 3
    %p188 = pnand %p186, %p187
    %p189 = pneg %p188
    // Predicated region
    $region37: #{cnn_cifar10_forward.2} parent=5 // pred_check
      _
    $region38: #{cnn_cifar10_forward.2} parent=5 // pred_check_branch
      %191 = sbr.rel (%p188) target = $region40
    $region39: #{cnn_cifar10_forward.2} parent=5 // pred_region
      %s192 = ssub.s32 %s11, 1
      %p193 = scmp.lt.s32.totalorder %s16, 1
      %s194 = scalar_select %p193, %s16, 1
      %s195 = smul.addr %s194, 4
      %s196 = smul.addr %s195, 8
      %s197 = scalar_lea.vmem %s0, %s196
      %p198 = pneg %p37
      %p199 = pneg %p34
      %p200 = pneg %p58
      %p201 = pneg %p55
      %p202 = pneg %p79
      %p203 = pneg %p76
      %p204 = pneg %p100
      %p205 = pneg %p97
      %p206 = pneg %p121
      %p207 = pneg %p118
      %p208 = pneg %p147
      %p209 = pneg %p144
      %p210 = scmp.lt.s32.totalorder %s16, 1
      %s211 = scalar_select %p210, %s16, 1
      %s212 = smul.addr %s211, 8
      %s213 = scalar_lea.vmem %s5, %s212
      %p214 = scmp.lt.s32.totalorder %s16, 1
      %s215 = scalar_select %p214, %s16, 1
      %s216 = smul.addr %s215, 4
      %s217 = smul.addr %s216, 8
      %s218 = scalar_lea.vmem %s0, %s217
      %p219 = scmp.lt.s32.totalorder %s16, 1
      %s220 = scalar_select %p219, %s16, 1
      %s221 = smul.addr %s220, 8
      %s222 = scalar_lea.vmem %s5, %s221
      %v223 = vld [vmem:[%s218] sm:$0x7f]
      %v224 = vld [vmem:[%s1] sm:$0xff]
      %v225 = vld [vmem:[%s1 + $0x8] sm:$0xff]
      %v226 = vld [vmem:[%s1 + $0x10] sm:$0xff]
      %v227 = vld [vmem:[%s1 + $0x18] sm:$0xff]
      %v228 = vld [vmem:[%s1 + $0x20] sm:$0xff]
      %v229 = vld [vmem:[%s1 + $0x28] sm:$0xff]
      %v230 = vld [vmem:[%s1 + $0x30] sm:$0xff]
      %v231 = vld [vmem:[%s1 + $0x38] sm:$0xff]
      %v232 = vld [vmem:[%s1 + $0x40] sm:$0xff]
      %v233 = vld [vmem:[%s1 + $0x48] sm:$0xff]
      %v234 = vld [vmem:[%s1 + $0x50] sm:$0xff]
      %v235 = vld [vmem:[%s1 + $0x58] sm:$0xff]
      %s236 = scalar_lea.vmem %s218, 8
      %v237 = vld [vmem:[%s236] sm:$0x7f]
      %s238 = scalar_lea.vmem %s1, 192
      %v239 = vld [vmem:[%s238] sm:$0xff]
      %v240 = vld [vmem:[%s238 + $0x8] sm:$0xff]
      %v241 = vld [vmem:[%s238 + $0x10] sm:$0xff]
      %v242 = vld [vmem:[%s238 + $0x18] sm:$0xff]
      %v243 = vld [vmem:[%s238 + $0x20] sm:$0xff]
      %v244 = vld [vmem:[%s238 + $0x28] sm:$0xff]
      %v245 = vld [vmem:[%s238 + $0x30] sm:$0xff]
      %v246 = vld [vmem:[%s238 + $0x38] sm:$0xff]
      %v247 = vld [vmem:[%s238 + $0x40] sm:$0xff]
      %v248 = vld [vmem:[%s238 + $0x48] sm:$0xff]
      %v249 = vld [vmem:[%s238 + $0x50] sm:$0xff]
      %v250 = vld [vmem:[%s238 + $0x58] sm:$0xff]
      %vm251 = vcmask 785408
      %v253 = vsel %vm251, %v237, 0
      %255 = vmatprep.subr.mxu0 0.0
      %256 = vmatpush1.msra.mxu0 %v239
      %257 = vmatprep.subr.mxu0 0.0
      %258 = vmatpush1.msra.mxu0 %v240
      %259 = vmatprep.subr.mxu0 0.0
      %260 = vmatpush1.msra.mxu0 %v241
      %261 = vmatprep.subr.mxu0 0.0
      %262 = vmatpush1.msra.mxu0 %v242
      %263 = vmatprep.subr.mxu0 0.0
      %264 = vmatpush1.msra.mxu0 %v243
      %265 = vmatprep.subr.mxu0 0.0
      %266 = vmatpush1.msra.mxu0 %v244
      %267 = vmatprep.subr.mxu0 0.0
      %268 = vmatpush1.msra.mxu0 %v245
      %269 = vmatprep.subr.mxu0 0.0
      %270 = vmatpush1.msra.mxu0 %v246
      %271 = vmatprep.subr.mxu0 0.0
      %272 = vmatpush1.msra.mxu0 %v247
      %273 = vmatprep.subr.mxu0 0.0
      %274 = vmatpush1.msra.mxu0 %v248
      %275 = vmatprep.subr.mxu0 0.0
      %276 = vmatpush1.msra.mxu0 %v249
      %277 = vmatprep.subr.mxu0 0.0
      %278 = vmatpush1.msra.mxu0 %v250
      %279 = vmatprep.subr.mxu0 0.0
      %280 = vmatpush1.msra.mxu0 0.0
      %281 = vmatprep.subr.mxu0 0.0
      %282 = vmatpush1.msra.mxu0 0.0
      %283 = vmatprep.subr.mxu0 0.0
      %284 = vmatpush1.msra.mxu0 0.0
      %285 = vmatprep.subr.mxu0 0.0
      %286 = vmatpush1.msra.mxu0 0.0
      %287 = vmatprep.subr.mxu0 0.0
      %288 = vmatpush1.msra.mxu0 0.0
      %289 = vmatprep.subr.mxu0 0.0
      %290 = vmatpush1.msra.mxu0 0.0
      %291 = vmatprep.subr.mxu0 0.0
      %292 = vmatpush1.msra.mxu0 0.0
      %293 = vmatprep.subr.mxu0 0.0
      %294 = vmatpush1.msra.mxu0 0.0
      %295 = vmatprep.subr.mxu0 0.0
      %296 = vmatpush1.msra.mxu0 0.0
      %297 = vmatprep.subr.mxu0 0.0
      %298 = vmatpush1.msra.mxu0 0.0
      %299 = vmatprep.subr.mxu0 0.0
      %300 = vmatpush1.msra.mxu0 0.0
      %301 = vmatprep.subr.mxu0 0.0
      %302 = vmatpush1.msra.mxu0 0.0
      %303 = vmatprep.subr.mxu0 0.0
      %304 = vmatpush1.msra.mxu0 0.0
      %305 = vmatprep.subr.mxu0 0.0
      %306 = vmatpush1.msra.mxu0 0.0
      %307 = vmatprep.subr.mxu0 0.0
      %308 = vmatpush1.msra.mxu0 0.0
      %309 = vmatprep.subr.mxu0 0.0
      %310 = vmatpush1.msra.mxu0 0.0
      %311 = vmatprep.subr.mxu0 0.0
      %312 = vmatpush1.msra.mxu0 0.0
      %313 = vmatprep.subr.mxu0 0.0
      %314 = vmatpush1.msra.mxu0 0.0
      %315 = vmatprep.subr.mxu0 0.0
      %316 = vmatpush1.msra.mxu0 0.0
      %317 = vmatprep.subr.mxu0 0.0
      %318 = vmatpush1.msra.mxu0 0.0
      %319 = vmatprep.mubr.f32.mxu0 0.0
      %320 = vmatmul.mubr.f32.gmra.mrb[0].mxu0 %v253
      %v321 = vpop.f32.mrb[0].mxu0
      %v322 = vadd.f32 0.0, %v321
      %v323 = vpop.f32.mrb[0].mxu0
      %324 = vdwg.mxu0
      %v326 = vsel %vm251, %v223, 0
      %328 = vmatprep.subr.mxu0 0.0
      %329 = vmatpush1.msra.mxu0 %v224
      %330 = vmatprep.subr.mxu0 0.0
      %331 = vmatpush1.msra.mxu0 %v225
      %332 = vmatprep.subr.mxu0 0.0
      %333 = vmatpush1.msra.mxu0 %v226
      %334 = vmatprep.subr.mxu0 0.0
      %335 = vmatpush1.msra.mxu0 %v227
      %336 = vmatprep.subr.mxu0 0.0
      %337 = vmatpush1.msra.mxu0 %v228
      %338 = vmatprep.subr.mxu0 0.0
      %339 = vmatpush1.msra.mxu0 %v229
      %340 = vmatprep.subr.mxu0 0.0
      %341 = vmatpush1.msra.mxu0 %v230
      %342 = vmatprep.subr.mxu0 0.0
      %343 = vmatpush1.msra.mxu0 %v231
      %344 = vmatprep.subr.mxu0 0.0
      %345 = vmatpush1.msra.mxu0 %v232
      %346 = vmatprep.subr.mxu0 0.0
      %347 = vmatpush1.msra.mxu0 %v233
      %348 = vmatprep.subr.mxu0 0.0
      %349 = vmatpush1.msra.mxu0 %v234
      %350 = vmatprep.subr.mxu0 0.0
      %351 = vmatpush1.msra.mxu0 %v235
      %352 = vmatprep.subr.mxu0 0.0
      %353 = vmatpush1.msra.mxu0 0.0
      %354 = vmatprep.subr.mxu0 0.0
      %355 = vmatpush1.msra.mxu0 0.0
      %356 = vmatprep.subr.mxu0 0.0
      %357 = vmatpush1.msra.mxu0 0.0
      %358 = vmatprep.subr.mxu0 0.0
      %359 = vmatpush1.msra.mxu0 0.0
      %360 = vmatprep.subr.mxu0 0.0
      %361 = vmatpush1.msra.mxu0 0.0
      %362 = vmatprep.subr.mxu0 0.0
      %363 = vmatpush1.msra.mxu0 0.0
      %364 = vmatprep.subr.mxu0 0.0
      %365 = vmatpush1.msra.mxu0 0.0
      %366 = vmatprep.subr.mxu0 0.0
      %367 = vmatpush1.msra.mxu0 0.0
      %368 = vmatprep.subr.mxu0 0.0
      %369 = vmatpush1.msra.mxu0 0.0
      %370 = vmatprep.subr.mxu0 0.0
      %371 = vmatpush1.msra.mxu0 0.0
      %372 = vmatprep.subr.mxu0 0.0
      %373 = vmatpush1.msra.mxu0 0.0
      %374 = vmatprep.subr.mxu0 0.0
      %375 = vmatpush1.msra.mxu0 0.0
      %376 = vmatprep.subr.mxu0 0.0
      %377 = vmatpush1.msra.mxu0 0.0
      %378 = vmatprep.subr.mxu0 0.0
      %379 = vmatpush1.msra.mxu0 0.0
      %380 = vmatprep.subr.mxu0 0.0
      %381 = vmatpush1.msra.mxu0 0.0
      %382 = vmatprep.subr.mxu0 0.0
      %383 = vmatpush1.msra.mxu0 0.0
      %384 = vmatprep.subr.mxu0 0.0
      %385 = vmatpush1.msra.mxu0 0.0
      %386 = vmatprep.subr.mxu0 0.0
      %387 = vmatpush1.msra.mxu0 0.0
      %388 = vmatprep.subr.mxu0 0.0
      %389 = vmatpush1.msra.mxu0 0.0
      %390 = vmatprep.subr.mxu0 0.0
      %391 = vmatpush1.msra.mxu0 0.0
      %392 = vmatprep.mubr.f32.mxu0 0.0
      %393 = vmatmul.mubr.f32.gmra.mrb[0].mxu0 %v326
      %v394 = vpop.f32.mrb[0].mxu0
      %v395 = vadd.f32 %v322, %v394
      %v396 = vpop.f32.mrb[0].mxu0
      %397 = vdwg.mxu0
      %s398 = scalar_lea.vmem %s218, 16
      %v399 = vld [vmem:[%s398] sm:$0x7f]
      %s400 = scalar_lea.vmem %s1, 384
      %v401 = vld [vmem:[%s400] sm:$0xff]
      %v402 = vld [vmem:[%s400 + $0x8] sm:$0xff]
      %v403 = vld [vmem:[%s400 + $0x10] sm:$0xff]
      %v404 = vld [vmem:[%s400 + $0x18] sm:$0xff]
      %v405 = vld [vmem:[%s400 + $0x20] sm:$0xff]
      %v406 = vld [vmem:[%s400 + $0x28] sm:$0xff]
      %v407 = vld [vmem:[%s400 + $0x30] sm:$0xff]
      %v408 = vld [vmem:[%s400 + $0x38] sm:$0xff]
      %v409 = vld [vmem:[%s400 + $0x40] sm:$0xff]
      %v410 = vld [vmem:[%s400 + $0x48] sm:$0xff]
      %v411 = vld [vmem:[%s400 + $0x50] sm:$0xff]
      %v412 = vld [vmem:[%s400 + $0x58] sm:$0xff]
      %v414 = vsel %vm251, %v399, 0
      %416 = vmatprep.subr.mxu0 0.0
      %417 = vmatpush1.msra.mxu0 %v401
      %418 = vmatprep.subr.mxu0 0.0
      %419 = vmatpush1.msra.mxu0 %v402
      %420 = vmatprep.subr.mxu0 0.0
      %421 = vmatpush1.msra.mxu0 %v403
      %422 = vmatprep.subr.mxu0 0.0
      %423 = vmatpush1.msra.mxu0 %v404
      %424 = vmatprep.subr.mxu0 0.0
      %425 = vmatpush1.msra.mxu0 %v405
      %426 = vmatprep.subr.mxu0 0.0
      %427 = vmatpush1.msra.mxu0 %v406
      %428 = vmatprep.subr.mxu0 0.0
      %429 = vmatpush1.msra.mxu0 %v407
      %430 = vmatprep.subr.mxu0 0.0
      %431 = vmatpush1.msra.mxu0 %v408
      %432 = vmatprep.subr.mxu0 0.0
      %433 = vmatpush1.msra.mxu0 %v409
      %434 = vmatprep.subr.mxu0 0.0
      %435 = vmatpush1.msra.mxu0 %v410
      %436 = vmatprep.subr.mxu0 0.0
      %437 = vmatpush1.msra.mxu0 %v411
      %438 = vmatprep.subr.mxu0 0.0
      %439 = vmatpush1.msra.mxu0 %v412
      %440 = vmatprep.subr.mxu0 0.0
      %441 = vmatpush1.msra.mxu0 0.0
      %442 = vmatprep.subr.mxu0 0.0
      %443 = vmatpush1.msra.mxu0 0.0
      %444 = vmatprep.subr.mxu0 0.0
      %445 = vmatpush1.msra.mxu0 0.0
      %446 = vmatprep.subr.mxu0 0.0
      %447 = vmatpush1.msra.mxu0 0.0
      %448 = vmatprep.subr.mxu0 0.0
      %449 = vmatpush1.msra.mxu0 0.0
      %450 = vmatprep.subr.mxu0 0.0
      %451 = vmatpush1.msra.mxu0 0.0
      %452 = vmatprep.subr.mxu0 0.0
      %453 = vmatpush1.msra.mxu0 0.0
      %454 = vmatprep.subr.mxu0 0.0
      %455 = vmatpush1.msra.mxu0 0.0
      %456 = vmatprep.subr.mxu0 0.0
      %457 = vmatpush1.msra.mxu0 0.0
      %458 = vmatprep.subr.mxu0 0.0
      %459 = vmatpush1.msra.mxu0 0.0
      %460 = vmatprep.subr.mxu0 0.0
      %461 = vmatpush1.msra.mxu0 0.0
      %462 = vmatprep.subr.mxu0 0.0
      %463 = vmatpush1.msra.mxu0 0.0
      %464 = vmatprep.subr.mxu0 0.0
      %465 = vmatpush1.msra.mxu0 0.0
      %466 = vmatprep.subr.mxu0 0.0
      %467 = vmatpush1.msra.mxu0 0.0
      %468 = vmatprep.subr.mxu0 0.0
      %469 = vmatpush1.msra.mxu0 0.0
      %470 = vmatprep.subr.mxu0 0.0
      %471 = vmatpush1.msra.mxu0 0.0
      %472 = vmatprep.subr.mxu0 0.0
      %473 = vmatpush1.msra.mxu0 0.0
      %474 = vmatprep.subr.mxu0 0.0
      %475 = vmatpush1.msra.mxu0 0.0
      %476 = vmatprep.subr.mxu0 0.0
      %477 = vmatpush1.msra.mxu0 0.0
      %478 = vmatprep.subr.mxu0 0.0
      %479 = vmatpush1.msra.mxu0 0.0
      %480 = vmatprep.mubr.f32.mxu0 0.0
      %481 = vmatmul.mubr.f32.gmra.mrb[0].mxu0 %v414
      %v482 = vpop.f32.mrb[0].mxu0
      %v483 = vadd.f32 0.0, %v482
      %v484 = vpop.f32.mrb[0].mxu0
      %485 = vdwg.mxu0
      %v486 = vadd.f32 %v395, %v483
      %s487 = scalar_lea.vmem %s218, 24
      %v488 = vld [vmem:[%s487] sm:$0x7f]
      %s489 = scalar_lea.vmem %s1, 576
      %v490 = vld [vmem:[%s489] sm:$0xff]
      %v491 = vld [vmem:[%s489 + $0x8] sm:$0xff]
      %v492 = vld [vmem:[%s489 + $0x10] sm:$0xff]
      %v493 = vld [vmem:[%s489 + $0x18] sm:$0xff]
      %v494 = vld [vmem:[%s489 + $0x20] sm:$0xff]
      %v495 = vld [vmem:[%s489 + $0x28] sm:$0xff]
      %v496 = vld [vmem:[%s489 + $0x30] sm:$0xff]
      %v497 = vld [vmem:[%s489 + $0x38] sm:$0xff]
      %v498 = vld [vmem:[%s489 + $0x40] sm:$0xff]
      %v499 = vld [vmem:[%s489 + $0x48] sm:$0xff]
      %v500 = vld [vmem:[%s489 + $0x50] sm:$0xff]
      %v501 = vld [vmem:[%s489 + $0x58] sm:$0xff]
      %v503 = vsel %vm251, %v488, 0
      %505 = vmatprep.subr.mxu0 0.0
      %506 = vmatpush1.msra.mxu0 %v490
      %507 = vmatprep.subr.mxu0 0.0
      %508 = vmatpush1.msra.mxu0 %v491
      %509 = vmatprep.subr.mxu0 0.0
      %510 = vmatpush1.msra.mxu0 %v492
      %511 = vmatprep.subr.mxu0 0.0
      %512 = vmatpush1.msra.mxu0 %v493
      %513 = vmatprep.subr.mxu0 0.0
      %514 = vmatpush1.msra.mxu0 %v494
      %515 = vmatprep.subr.mxu0 0.0
      %516 = vmatpush1.msra.mxu0 %v495
      %517 = vmatprep.subr.mxu0 0.0
      %518 = vmatpush1.msra.mxu0 %v496
      %519 = vmatprep.subr.mxu0 0.0
      %520 = vmatpush1.msra.mxu0 %v497
      %521 = vmatprep.subr.mxu0 0.0
      %522 = vmatpush1.msra.mxu0 %v498
      %523 = vmatprep.subr.mxu0 0.0
      %524 = vmatpush1.msra.mxu0 %v499
      %525 = vmatprep.subr.mxu0 0.0
      %526 = vmatpush1.msra.mxu0 %v500
      %527 = vmatprep.subr.mxu0 0.0
      %528 = vmatpush1.msra.mxu0 %v501
      %529 = vmatprep.subr.mxu0 0.0
      %530 = vmatpush1.msra.mxu0 0.0
      %531 = vmatprep.subr.mxu0 0.0
      %532 = vmatpush1.msra.mxu0 0.0
      %533 = vmatprep.subr.mxu0 0.0
      %534 = vmatpush1.msra.mxu0 0.0
      %535 = vmatprep.subr.mxu0 0.0
      %536 = vmatpush1.msra.mxu0 0.0
      %537 = vmatprep.subr.mxu0 0.0
      %538 = vmatpush1.msra.mxu0 0.0
      %539 = vmatprep.subr.mxu0 0.0
      %540 = vmatpush1.msra.mxu0 0.0
      %541 = vmatprep.subr.mxu0 0.0
      %542 = vmatpush1.msra.mxu0 0.0
      %543 = vmatprep.subr.mxu0 0.0
      %544 = vmatpush1.msra.mxu0 0.0
      %545 = vmatprep.subr.mxu0 0.0
      %546 = vmatpush1.msra.mxu0 0.0
      %547 = vmatprep.subr.mxu0 0.0
      %548 = vmatpush1.msra.mxu0 0.0
      %549 = vmatprep.subr.mxu0 0.0
      %550 = vmatpush1.msra.mxu0 0.0
      %551 = vmatprep.subr.mxu0 0.0
      %552 = vmatpush1.msra.mxu0 0.0
      %553 = vmatprep.subr.mxu0 0.0
      %554 = vmatpush1.msra.mxu0 0.0
      %555 = vmatprep.subr.mxu0 0.0
      %556 = vmatpush1.msra.mxu0 0.0
      %557 = vmatprep.subr.mxu0 0.0
      %558 = vmatpush1.msra.mxu0 0.0
      %559 = vmatprep.subr.mxu0 0.0
      %560 = vmatpush1.msra.mxu0 0.0
      %561 = vmatprep.subr.mxu0 0.0
      %562 = vmatpush1.msra.mxu0 0.0
      %563 = vmatprep.subr.mxu0 0.0
      %564 = vmatpush1.msra.mxu0 0.0
      %565 = vmatprep.subr.mxu0 0.0
      %566 = vmatpush1.msra.mxu0 0.0
      %567 = vmatprep.subr.mxu0 0.0
      %568 = vmatpush1.msra.mxu0 0.0
      %569 = vmatprep.mubr.f32.mxu0 0.0
      %570 = vmatmul.mubr.f32.gmra.mrb[0].mxu0 %v503
      %v571 = vpop.f32.mrb[0].mxu0
      %v572 = vadd.f32 0.0, %v571
      %v573 = vpop.f32.mrb[0].mxu0
      %574 = vdwg.mxu0
      %v575 = vadd.f32 %v486, %v572
      %v576 = vld [vmem:[%s218 + $0x1] sm:$0x7f]
      %s577 = scalar_lea.vmem %s1, 768
      %v578 = vld [vmem:[%s577] sm:$0xff]
      %v579 = vld [vmem:[%s577 + $0x8] sm:$0xff]
      %v580 = vld [vmem:[%s577 + $0x10] sm:$0xff]
      %v581 = vld [vmem:[%s577 + $0x18] sm:$0xff]
      %v582 = vld [vmem:[%s577 + $0x20] sm:$0xff]
      %v583 = vld [vmem:[%s577 + $0x28] sm:$0xff]
      %v584 = vld [vmem:[%s577 + $0x30] sm:$0xff]
      %v585 = vld [vmem:[%s577 + $0x38] sm:$0xff]
      %v586 = vld [vmem:[%s577 + $0x40] sm:$0xff]
      %v587 = vld [vmem:[%s577 + $0x48] sm:$0xff]
      %v588 = vld [vmem:[%s577 + $0x50] sm:$0xff]
      %v589 = vld [vmem:[%s577 + $0x58] sm:$0xff]
      %v591 = vsel %vm251, %v576, 0
      %593 = vmatprep.subr.mxu0 0.0
      %594 = vmatpush1.msra.mxu0 %v578
      %595 = vmatprep.subr.mxu0 0.0
      %596 = vmatpush1.msra.mxu0 %v579
      %597 = vmatprep.subr.mxu0 0.0
      %598 = vmatpush1.msra.mxu0 %v580
      %599 = vmatprep.subr.mxu0 0.0
      %600 = vmatpush1.msra.mxu0 %v581
      %601 = vmatprep.subr.mxu0 0.0
      %602 = vmatpush1.msra.mxu0 %v582
      %603 = vmatprep.subr.mxu0 0.0
      %604 = vmatpush1.msra.mxu0 %v583
      %605 = vmatprep.subr.mxu0 0.0
      %606 = vmatpush1.msra.mxu0 %v584
      %607 = vmatprep.subr.mxu0 0.0
      %608 = vmatpush1.msra.mxu0 %v585
      %609 = vmatprep.subr.mxu0 0.0
      %610 = vmatpush1.msra.mxu0 %v586
      %611 = vmatprep.subr.mxu0 0.0
      %612 = vmatpush1.msra.mxu0 %v587
      %613 = vmatprep.subr.mxu0 0.0
      %614 = vmatpush1.msra.mxu0 %v588
      %615 = vmatprep.subr.mxu0 0.0
      %616 = vmatpush1.msra.mxu0 %v589
      %617 = vmatprep.subr.mxu0 0.0
      %618 = vmatpush1.msra.mxu0 0.0
      %619 = vmatprep.subr.mxu0 0.0
      %620 = vmatpush1.msra.mxu0 0.0
      %621 = vmatprep.subr.mxu0 0.0
      %622 = vmatpush1.msra.mxu0 0.0
      %623 = vmatprep.subr.mxu0 0.0
      %624 = vmatpush1.msra.mxu0 0.0
      %625 = vmatprep.subr.mxu0 0.0
      %626 = vmatpush1.msra.mxu0 0.0
      %627 = vmatprep.subr.mxu0 0.0
      %628 = vmatpush1.msra.mxu0 0.0
      %629 = vmatprep.subr.mxu0 0.0
      %630 = vmatpush1.msra.mxu0 0.0
      %631 = vmatprep.subr.mxu0 0.0
      %632 = vmatpush1.msra.mxu0 0.0
      %633 = vmatprep.subr.mxu0 0.0
      %634 = vmatpush1.msra.mxu0 0.0
      %635 = vmatprep.subr.mxu0 0.0
      %636 = vmatpush1.msra.mxu0 0.0
      %637 = vmatprep.subr.mxu0 0.0
      %638 = vmatpush1.msra.mxu0 0.0
      %639 = vmatprep.subr.mxu0 0.0
      %640 = vmatpush1.msra.mxu0 0.0
      %641 = vmatprep.subr.mxu0 0.0
      %642 = vmatpush1.msra.mxu0 0.0
      %643 = vmatprep.subr.mxu0 0.0
      %644 = vmatpush1.msra.mxu0 0.0
      %645 = vmatprep.subr.mxu0 0.0
      %646 = vmatpush1.msra.mxu0 0.0
      %647 = vmatprep.subr.mxu0 0.0
      %648 = vmatpush1.msra.mxu0 0.0
      %649 = vmatprep.subr.mxu0 0.0
      %650 = vmatpush1.msra.mxu0 0.0
      %651 = vmatprep.subr.mxu0 0.0
      %652 = vmatpush1.msra.mxu0 0.0
      %653 = vmatprep.subr.mxu0 0.0
      %654 = vmatpush1.msra.mxu0 0.0
      %655 = vmatprep.subr.mxu0 0.0
      %656 = vmatpush1.msra.mxu0 0.0
      %657 = vmatprep.mubr.f32.mxu0 0.0
      %658 = vmatmul.mubr.f32.gmra.mrb[0].mxu0 %v591
      %v659 = vpop.f32.mrb[0].mxu0
      %v660 = vadd.f32 0.0, %v659
      %v661 = vpop.f32.mrb[0].mxu0
      %662 = vdwg.mxu0
      %v663 = vadd.f32 %v575, %v660
      %s664 = scalar_lea.vmem %s1, 96
      %v665 = vld [vmem:[%s664] sm:$0xff]
      %v666 = vld [vmem:[%s664 + $0x8] sm:$0xff]
      %v667 = vld [vmem:[%s664 + $0x10] sm:$0xff]
      %v668 = vld [vmem:[%s664 + $0x18] sm:$0xff]
      %v669 = vld [vmem:[%s664 + $0x20] sm:$0xff]
      %v670 = vld [vmem:[%s664 + $0x28] sm:$0xff]
      %v671 = vld [vmem:[%s664 + $0x30] sm:$0xff]
      %v672 = vld [vmem:[%s664 + $0x38] sm:$0xff]
      %v673 = vld [vmem:[%s664 + $0x40] sm:$0xff]
      %v674 = vld [vmem:[%s664 + $0x48] sm:$0xff]
      %v675 = vld [vmem:[%s664 + $0x50] sm:$0xff]
      %v676 = vld [vmem:[%s664 + $0x58] sm:$0xff]
      %s677 = scalar_lea.vmem %s1, 288
      %v678 = vld [vmem:[%s677] sm:$0xff]
      %v679 = vld [vmem:[%s677 + $0x8] sm:$0xff]
      %v680 = vld [vmem:[%s677 + $0x10] sm:$0xff]
      %v681 = vld [vmem:[%s677 + $0x18] sm:$0xff]
      %v682 = vld [vmem:[%s677 + $0x20] sm:$0xff]
      %v683 = vld [vmem:[%s677 + $0x28] sm:$0xff]
      %v684 = vld [vmem:[%s677 + $0x30] sm:$0xff]
      %v685 = vld [vmem:[%s677 + $0x38] sm:$0xff]
      %v686 = vld [vmem:[%s677 + $0x40] sm:$0xff]
      %v687 = vld [vmem:[%s677 + $0x48] sm:$0xff]
      %v688 = vld [vmem:[%s677 + $0x50] sm:$0xff]
      %v689 = vld [vmem:[%s677 + $0x58] sm:$0xff]
      %690 = vmatprep.subr.mxu0 0.0
      %691 = vmatpush1.msra.mxu0 %v678
      %692 = vmatprep.subr.mxu0 0.0
      %693 = vmatpush1.msra.mxu0 %v679
      %694 = vmatprep.subr.mxu0 0.0
      %695 = vmatpush1.msra.mxu0 %v680
      %696 = vmatprep.subr.mxu0 0.0
      %697 = vmatpush1.msra.mxu0 %v681
      %698 = vmatprep.subr.mxu0 0.0
      %699 = vmatpush1.msra.mxu0 %v682
      %700 = vmatprep.subr.mxu0 0.0
      %701 = vmatpush1.msra.mxu0 %v683
      %702 = vmatprep.subr.mxu0 0.0
      %703 = vmatpush1.msra.mxu0 %v684
      %704 = vmatprep.subr.mxu0 0.0
      %705 = vmatpush1.msra.mxu0 %v685
      %706 = vmatprep.subr.mxu0 0.0
      %707 = vmatpush1.msra.mxu0 %v686
      %708 = vmatprep.subr.mxu0 0.0
      %709 = vmatpush1.msra.mxu0 %v687
      %710 = vmatprep.subr.mxu0 0.0
      %711 = vmatpush1.msra.mxu0 %v688
      %712 = vmatprep.subr.mxu0 0.0
      %713 = vmatpush1.msra.mxu0 %v689
      %714 = vmatprep.subr.mxu0 0.0
      %715 = vmatpush1.msra.mxu0 0.0
      %716 = vmatprep.subr.mxu0 0.0
      %717 = vmatpush1.msra.mxu0 0.0
      %718 = vmatprep.subr.mxu0 0.0
      %719 = vmatpush1.msra.mxu0 0.0
      %720 = vmatprep.subr.mxu0 0.0
      %721 = vmatpush1.msra.mxu0 0.0
      %722 = vmatprep.subr.mxu0 0.0
      %723 = vmatpush1.msra.mxu0 0.0
      %724 = vmatprep.subr.mxu0 0.0
      %725 = vmatpush1.msra.mxu0 0.0
      %726 = vmatprep.subr.mxu0 0.0
      %727 = vmatpush1.msra.mxu0 0.0
      %728 = vmatprep.subr.mxu0 0.0
      %729 = vmatpush1.msra.mxu0 0.0
      %730 = vmatprep.subr.mxu0 0.0
      %731 = vmatpush1.msra.mxu0 0.0
      %732 = vmatprep.subr.mxu0 0.0
      %733 = vmatpush1.msra.mxu0 0.0
      %734 = vmatprep.subr.mxu0 0.0
      %735 = vmatpush1.msra.mxu0 0.0
      %736 = vmatprep.subr.mxu0 0.0
      %737 = vmatpush1.msra.mxu0 0.0
      %738 = vmatprep.subr.mxu0 0.0
      %739 = vmatpush1.msra.mxu0 0.0
      %740 = vmatprep.subr.mxu0 0.0
      %741 = vmatpush1.msra.mxu0 0.0
      %742 = vmatprep.subr.mxu0 0.0
      %743 = vmatpush1.msra.mxu0 0.0
      %744 = vmatprep.subr.mxu0 0.0
      %745 = vmatpush1.msra.mxu0 0.0
      %746 = vmatprep.subr.mxu0 0.0
      %747 = vmatpush1.msra.mxu0 0.0
      %748 = vmatprep.subr.mxu0 0.0
      %749 = vmatpush1.msra.mxu0 0.0
      %750 = vmatprep.subr.mxu0 0.0
      %751 = vmatpush1.msra.mxu0 0.0
      %752 = vmatprep.subr.mxu0 0.0
      %753 = vmatpush1.msra.mxu0 0.0
      %754 = vmatprep.mubr.f32.mxu0 0.0
      %755 = vmatmul.mubr.f32.gmra.mrb[0].mxu0 %v253
      %v756 = vpop.f32.mrb[0].mxu0
      %v757 = vadd.f32 0.0, %v756
      %v758 = vpop.f32.mrb[0].mxu0
      %759 = vdwg.mxu0
      %760 = vmatprep.subr.mxu0 0.0
      %761 = vmatpush1.msra.mxu0 %v665
      %762 = vmatprep.subr.mxu0 0.0
      %763 = vmatpush1.msra.mxu0 %v666
      %764 = vmatprep.subr.mxu0 0.0
      %765 = vmatpush1.msra.mxu0 %v667
      %766 = vmatprep.subr.mxu0 0.0
      %767 = vmatpush1.msra.mxu0 %v668
      %768 = vmatprep.subr.mxu0 0.0
      %769 = vmatpush1.msra.mxu0 %v669
      %770 = vmatprep.subr.mxu0 0.0
      %771 = vmatpush1.msra.mxu0 %v670
      %772 = vmatprep.subr.mxu0 0.0
      %773 = vmatpush1.msra.mxu0 %v671
      %774 = vmatprep.subr.mxu0 0.0
      %775 = vmatpush1.msra.mxu0 %v672
      %776 = vmatprep.subr.mxu0 0.0
      %777 = vmatpush1.msra.mxu0 %v673
      %778 = vmatprep.subr.mxu0 0.0
      %779 = vmatpush1.msra.mxu0 %v674
      %780 = vmatprep.subr.mxu0 0.0
      %781 = vmatpush1.msra.mxu0 %v675
      %782 = vmatprep.subr.mxu0 0.0
      %783 = vmatpush1.msra.mxu0 %v676
      %784 = vmatprep.subr.mxu0 0.0
      %785 = vmatpush1.msra.mxu0 0.0
      %786 = vmatprep.subr.mxu0 0.0
      %787 = vmatpush1.msra.mxu0 0.0
      %788 = vmatprep.subr.mxu0 0.0
      %789 = vmatpush1.msra.mxu0 0.0
      %790 = vmatprep.subr.mxu0 0.0
      %791 = vmatpush1.msra.mxu0 0.0
      %792 = vmatprep.subr.mxu0 0.0
      %793 = vmatpush1.msra.mxu0 0.0
      %794 = vmatprep.subr.mxu0 0.0
      %795 = vmatpush1.msra.mxu0 0.0
      %796 = vmatprep.subr.mxu0 0.0
      %797 = vmatpush1.msra.mxu0 0.0
      %798 = vmatprep.subr.mxu0 0.0
      %799 = vmatpush1.msra.mxu0 0.0
      %800 = vmatprep.subr.mxu0 0.0
      %801 = vmatpush1.msra.mxu0 0.0
      %802 = vmatprep.subr.mxu0 0.0
      %803 = vmatpush1.msra.mxu0 0.0
      %804 = vmatprep.subr.mxu0 0.0
      %805 = vmatpush1.msra.mxu0 0.0
      %806 = vmatprep.subr.mxu0 0.0
      %807 = vmatpush1.msra.mxu0 0.0
      %808 = vmatprep.subr.mxu0 0.0
      %809 = vmatpush1.msra.mxu0 0.0
      %810 = vmatprep.subr.mxu0 0.0
      %811 = vmatpush1.msra.mxu0 0.0
      %812 = vmatprep.subr.mxu0 0.0
      %813 = vmatpush1.msra.mxu0 0.0
      %814 = vmatprep.subr.mxu0 0.0
      %815 = vmatpush1.msra.mxu0 0.0
      %816 = vmatprep.subr.mxu0 0.0
      %817 = vmatpush1.msra.mxu0 0.0
      %818 = vmatprep.subr.mxu0 0.0
      %819 = vmatpush1.msra.mxu0 0.0
      %820 = vmatprep.subr.mxu0 0.0
      %821 = vmatpush1.msra.mxu0 0.0
      %822 = vmatprep.subr.mxu0 0.0
      %823 = vmatpush1.msra.mxu0 0.0
      %824 = vmatprep.mubr.f32.mxu0 0.0
      %825 = vmatmul.mubr.f32.gmra.mrb[0].mxu0 %v326
      %v826 = vpop.f32.mrb[0].mxu0
      %v827 = vadd.f32 %v757, %v826
      %v828 = vpop.f32.mrb[0].mxu0
      %829 = vdwg.mxu0
      %s830 = scalar_lea.vmem %s1, 480
      %v831 = vld [vmem:[%s830] sm:$0xff]
      %v832 = vld [vmem:[%s830 + $0x8] sm:$0xff]
      %v833 = vld [vmem:[%s830 + $0x10] sm:$0xff]
      %v834 = vld [vmem:[%s830 + $0x18] sm:$0xff]
      %v835 = vld [vmem:[%s830 + $0x20] sm:$0xff]
      %v836 = vld [vmem:[%s830 + $0x28] sm:$0xff]
      %v837 = vld [vmem:[%s830 + $0x30] sm:$0xff]
      %v838 = vld [vmem:[%s830 + $0x38] sm:$0xff]
      %v839 = vld [vmem:[%s830 + $0x40] sm:$0xff]
      %v840 = vld [vmem:[%s830 + $0x48] sm:$0xff]
      %v841 = vld [vmem:[%s830 + $0x50] sm:$0xff]
      %v842 = vld [vmem:[%s830 + $0x58] sm:$0xff]
      %843 = vmatprep.subr.mxu0 0.0
      %844 = vmatpush1.msra.mxu0 %v831
      %845 = vmatprep.subr.mxu0 0.0
      %846 = vmatpush1.msra.mxu0 %v832
      %847 = vmatprep.subr.mxu0 0.0
      %848 = vmatpush1.msra.mxu0 %v833
      %849 = vmatprep.subr.mxu0 0.0
      %850 = vmatpush1.msra.mxu0 %v834
      %851 = vmatprep.subr.mxu0 0.0
      %852 = vmatpush1.msra.mxu0 %v835
      %853 = vmatprep.subr.mxu0 0.0
      %854 = vmatpush1.msra.mxu0 %v836
      %855 = vmatprep.subr.mxu0 0.0
      %856 = vmatpush1.msra.mxu0 %v837
      %857 = vmatprep.subr.mxu0 0.0
      %858 = vmatpush1.msra.mxu0 %v838
      %859 = vmatprep.subr.mxu0 0.0
      %860 = vmatpush1.msra.mxu0 %v839
      %861 = vmatprep.subr.mxu0 0.0
      %862 = vmatpush1.msra.mxu0 %v840
      %863 = vmatprep.subr.mxu0 0.0
      %864 = vmatpush1.msra.mxu0 %v841
      %865 = vmatprep.subr.mxu0 0.0
      %866 = vmatpush1.msra.mxu0 %v842
      %867 = vmatprep.subr.mxu0 0.0
      %868 = vmatpush1.msra.mxu0 0.0
      %869 = vmatprep.subr.mxu0 0.0
      %870 = vmatpush1.msra.mxu0 0.0
      %871 = vmatprep.subr.mxu0 0.0
      %872 = vmatpush1.msra.mxu0 0.0
      %873 = vmatprep.subr.mxu0 0.0
      %874 = vmatpush1.msra.mxu0 0.0
      %875 = vmatprep.subr.mxu0 0.0
      %876 = vmatpush1.msra.mxu0 0.0
      %877 = vmatprep.subr.mxu0 0.0
      %878 = vmatpush1.msra.mxu0 0.0
      %879 = vmatprep.subr.mxu0 0.0
      %880 = vmatpush1.msra.mxu0 0.0
      %881 = vmatprep.subr.mxu0 0.0
      %882 = vmatpush1.msra.mxu0 0.0
      %883 = vmatprep.subr.mxu0 0.0
      %884 = vmatpush1.msra.mxu0 0.0
      %885 = vmatprep.subr.mxu0 0.0
      %886 = vmatpush1.msra.mxu0 0.0
      %887 = vmatprep.subr.mxu0 0.0
      %888 = vmatpush1.msra.mxu0 0.0
      %889 = vmatprep.subr.mxu0 0.0
      %890 = vmatpush1.msra.mxu0 0.0
      %891 = vmatprep.subr.mxu0 0.0
      %892 = vmatpush1.msra.mxu0 0.0
      %893 = vmatprep.subr.mxu0 0.0
      %894 = vmatpush1.msra.mxu0 0.0
      %895 = vmatprep.subr.mxu0 0.0
      %896 = vmatpush1.msra.mxu0 0.0
      %897 = vmatprep.subr.mxu0 0.0
      %898 = vmatpush1.msra.mxu0 0.0
      %899 = vmatprep.subr.mxu0 0.0
      %900 = vmatpush1.msra.mxu0 0.0
      %901 = vmatprep.subr.mxu0 0.0
      %902 = vmatpush1.msra.mxu0 0.0
      %903 = vmatprep.subr.mxu0 0.0
      %904 = vmatpush1.msra.mxu0 0.0
      %905 = vmatprep.subr.mxu0 0.0
      %906 = vmatpush1.msra.mxu0 0.0
      %907 = vmatprep.mubr.f32.mxu0 0.0
      %908 = vmatmul.mubr.f32.gmra.mrb[0].mxu0 %v414
      %v909 = vpop.f32.mrb[0].mxu0
      %v910 = vadd.f32 0.0, %v909
      %v911 = vpop.f32.mrb[0].mxu0
      %912 = vdwg.mxu0
      %v913 = vadd.f32 %v827, %v910
      %s914 = scalar_lea.vmem %s1, 672
      %v915 = vld [vmem:[%s914] sm:$0xff]
      %v916 = vld [vmem:[%s914 + $0x8] sm:$0xff]
      %v917 = vld [vmem:[%s914 + $0x10] sm:$0xff]
      %v918 = vld [vmem:[%s914 + $0x18] sm:$0xff]
      %v919 = vld [vmem:[%s914 + $0x20] sm:$0xff]
      %v920 = vld [vmem:[%s914 + $0x28] sm:$0xff]
      %v921 = vld [vmem:[%s914 + $0x30] sm:$0xff]
      %v922 = vld [vmem:[%s914 + $0x38] sm:$0xff]
      %v923 = vld [vmem:[%s914 + $0x40] sm:$0xff]
      %v924 = vld [vmem:[%s914 + $0x48] sm:$0xff]
      %v925 = vld [vmem:[%s914 + $0x50] sm:$0xff]
      %v926 = vld [vmem:[%s914 + $0x58] sm:$0xff]
      %927 = vmatprep.subr.mxu0 0.0
      %928 = vmatpush1.msra.mxu0 %v915
      %929 = vmatprep.subr.mxu0 0.0
      %930 = vmatpush1.msra.mxu0 %v916
      %931 = vmatprep.subr.mxu0 0.0
      %932 = vmatpush1.msra.mxu0 %v917
      %933 = vmatprep.subr.mxu0 0.0
      %934 = vmatpush1.msra.mxu0 %v918
      %935 = vmatprep.subr.mxu0 0.0
      %936 = vmatpush1.msra.mxu0 %v919
      %937 = vmatprep.subr.mxu0 0.0
      %938 = vmatpush1.msra.mxu0 %v920
      %939 = vmatprep.subr.mxu0 0.0
      %940 = vmatpush1.msra.mxu0 %v921
      %941 = vmatprep.subr.mxu0 0.0
      %942 = vmatpush1.msra.mxu0 %v922
      %943 = vmatprep.subr.mxu0 0.0
      %944 = vmatpush1.msra.mxu0 %v923
      %945 = vmatprep.subr.mxu0 0.0
      %946 = vmatpush1.msra.mxu0 %v924
      %947 = vmatprep.subr.mxu0 0.0
      %948 = vmatpush1.msra.mxu0 %v925
      %949 = vmatprep.subr.mxu0 0.0
      %950 = vmatpush1.msra.mxu0 %v926
      %951 = vmatprep.subr.mxu0 0.0
      %952 = vmatpush1.msra.mxu0 0.0
      %953 = vmatprep.subr.mxu0 0.0
      %954 = vmatpush1.msra.mxu0 0.0
      %955 = vmatprep.subr.mxu0 0.0
      %956 = vmatpush1.msra.mxu0 0.0
      %957 = vmatprep.subr.mxu0 0.0
      %958 = vmatpush1.msra.mxu0 0.0
      %959 = vmatprep.subr.mxu0 0.0
      %960 = vmatpush1.msra.mxu0 0.0
      %961 = vmatprep.subr.mxu0 0.0
      %962 = vmatpush1.msra.mxu0 0.0
      %963 = vmatprep.subr.mxu0 0.0
      %964 = vmatpush1.msra.mxu0 0.0
      %965 = vmatprep.subr.mxu0 0.0
      %966 = vmatpush1.msra.mxu0 0.0
      %967 = vmatprep.subr.mxu0 0.0
      %968 = vmatpush1.msra.mxu0 0.0
      %969 = vmatprep.subr.mxu0 0.0
      %970 = vmatpush1.msra.mxu0 0.0
      %971 = vmatprep.subr.mxu0 0.0
      %972 = vmatpush1.msra.mxu0 0.0
      %973 = vmatprep.subr.mxu0 0.0
      %974 = vmatpush1.msra.mxu0 0.0
      %975 = vmatprep.subr.mxu0 0.0
      %976 = vmatpush1.msra.mxu0 0.0
      %977 = vmatprep.subr.mxu0 0.0
      %978 = vmatpush1.msra.mxu0 0.0
      %979 = vmatprep.subr.mxu0 0.0
      %980 = vmatpush1.msra.mxu0 0.0
      %981 = vmatprep.subr.mxu0 0.0
      %982 = vmatpush1.msra.mxu0 0.0
      %983 = vmatprep.subr.mxu0 0.0
      %984 = vmatpush1.msra.mxu0 0.0
      %985 = vmatprep.subr.mxu0 0.0
      %986 = vmatpush1.msra.mxu0 0.0
      %987 = vmatprep.subr.mxu0 0.0
      %988 = vmatpush1.msra.mxu0 0.0
      %989 = vmatprep.subr.mxu0 0.0
      %990 = vmatpush1.msra.mxu0 0.0
      %991 = vmatprep.mubr.f32.mxu0 0.0
      %992 = vmatmul.mubr.f32.gmra.mrb[0].mxu0 %v503
      %v993 = vpop.f32.mrb[0].mxu0
      %v994 = vadd.f32 0.0, %v993
      %v995 = vpop.f32.mrb[0].mxu0
      %996 = vdwg.mxu0
      %v997 = vadd.f32 %v913, %v994
      %s998 = scalar_lea.vmem %s1, 864
      %v999 = vld [vmem:[%s998] sm:$0xff]
      %v1000 = vld [vmem:[%s998 + $0x8] sm:$0xff]
      %v1001 = vld [vmem:[%s998 + $0x10] sm:$0xff]
      %v1002 = vld [vmem:[%s998 + $0x18] sm:$0xff]
      %v1003 = vld [vmem:[%s998 + $0x20] sm:$0xff]
      %v1004 = vld [vmem:[%s998 + $0x28] sm:$0xff]
      %v1005 = vld [vmem:[%s998 + $0x30] sm:$0xff]
      %v1006 = vld [vmem:[%s998 + $0x38] sm:$0xff]
      %v1007 = vld [vmem:[%s998 + $0x40] sm:$0xff]
      %v1008 = vld [vmem:[%s998 + $0x48] sm:$0xff]
      %v1009 = vld [vmem:[%s998 + $0x50] sm:$0xff]
      %v1010 = vld [vmem:[%s998 + $0x58] sm:$0xff]
      %1011 = vmatprep.subr.mxu0 0.0
      %1012 = vmatpush1.msra.mxu0 %v999
      %1013 = vmatprep.subr.mxu0 0.0
      %1014 = vmatpush1.msra.mxu0 %v1000
      %1015 = vmatprep.subr.mxu0 0.0
      %1016 = vmatpush1.msra.mxu0 %v1001
      %1017 = vmatprep.subr.mxu0 0.0
      %1018 = vmatpush1.msra.mxu0 %v1002
      %1019 = vmatprep.subr.mxu0 0.0
      %1020 = vmatpush1.msra.mxu0 %v1003
      %1021 = vmatprep.subr.mxu0 0.0
      %1022 = vmatpush1.msra.mxu0 %v1004
      %1023 = vmatprep.subr.mxu0 0.0
      %1024 = vmatpush1.msra.mxu0 %v1005
      %1025 = vmatprep.subr.mxu0 0.0
      %1026 = vmatpush1.msra.mxu0 %v1006
      %1027 = vmatprep.subr.mxu0 0.0
      %1028 = vmatpush1.msra.mxu0 %v1007
      %1029 = vmatprep.subr.mxu0 0.0
      %1030 = vmatpush1.msra.mxu0 %v1008
      %1031 = vmatprep.subr.mxu0 0.0
      %1032 = vmatpush1.msra.mxu0 %v1009
      %1033 = vmatprep.subr.mxu0 0.0
      %1034 = vmatpush1.msra.mxu0 %v1010
      %1035 = vmatprep.subr.mxu0 0.0
      %1036 = vmatpush1.msra.mxu0 0.0
      %1037 = vmatprep.subr.mxu0 0.0
      %1038 = vmatpush1.msra.mxu0 0.0
      %1039 = vmatprep.subr.mxu0 0.0
      %1040 = vmatpush1.msra.mxu0 0.0
      %1041 = vmatprep.subr.mxu0 0.0
      %1042 = vmatpush1.msra.mxu0 0.0
      %1043 = vmatprep.subr.mxu0 0.0
      %1044 = vmatpush1.msra.mxu0 0.0
      %1045 = vmatprep.subr.mxu0 0.0
      %1046 = vmatpush1.msra.mxu0 0.0
      %1047 = vmatprep.subr.mxu0 0.0
      %1048 = vmatpush1.msra.mxu0 0.0
      %1049 = vmatprep.subr.mxu0 0.0
      %1050 = vmatpush1.msra.mxu0 0.0
      %1051 = vmatprep.subr.mxu0 0.0
      %1052 = vmatpush1.msra.mxu0 0.0
      %1053 = vmatprep.subr.mxu0 0.0
      %1054 = vmatpush1.msra.mxu0 0.0
      %1055 = vmatprep.subr.mxu0 0.0
      %1056 = vmatpush1.msra.mxu0 0.0
      %1057 = vmatprep.subr.mxu0 0.0
      %1058 = vmatpush1.msra.mxu0 0.0
      %1059 = vmatprep.subr.mxu0 0.0
      %1060 = vmatpush1.msra.mxu0 0.0
      %1061 = vmatprep.subr.mxu0 0.0
      %1062 = vmatpush1.msra.mxu0 0.0
      %1063 = vmatprep.subr.mxu0 0.0
      %1064 = vmatpush1.msra.mxu0 0.0
      %1065 = vmatprep.subr.mxu0 0.0
      %1066 = vmatpush1.msra.mxu0 0.0
      %1067 = vmatprep.subr.mxu0 0.0
      %1068 = vmatpush1.msra.mxu0 0.0
      %1069 = vmatprep.subr.mxu0 0.0
      %1070 = vmatpush1.msra.mxu0 0.0
      %1071 = vmatprep.subr.mxu0 0.0
      %1072 = vmatpush1.msra.mxu0 0.0
      %1073 = vmatprep.subr.mxu0 0.0
      %1074 = vmatpush1.msra.mxu0 0.0
      %1075 = vmatprep.mubr.f32.mxu0 0.0
      %1076 = vmatmul.mubr.f32.gmra.mrb[0].mxu0 %v591
      %v1077 = vpop.f32.mrb[0].mxu0
      %v1078 = vadd.f32 0.0, %v1077
      %v1079 = vpop.f32.mrb[0].mxu0
      %1080 = vdwg.mxu0
      %v1081 = vadd.f32 %v997, %v1078
      %v1082 = vmax.f32 %v663, %v1081
      %1083 = vmatprep.subr.mxu0 0.0
      %1084 = vmatpush1.msra.mxu0 %v239
      %1085 = vmatprep.subr.mxu0 0.0
      %1086 = vmatpush1.msra.mxu0 %v240
      %1087 = vmatprep.subr.mxu0 0.0
      %1088 = vmatpush1.msra.mxu0 %v241
      %1089 = vmatprep.subr.mxu0 0.0
      %1090 = vmatpush1.msra.mxu0 %v242
      %1091 = vmatprep.subr.mxu0 0.0
      %1092 = vmatpush1.msra.mxu0 %v243
      %1093 = vmatprep.subr.mxu0 0.0
      %1094 = vmatpush1.msra.mxu0 %v244
      %1095 = vmatprep.subr.mxu0 0.0
      %1096 = vmatpush1.msra.mxu0 %v245
      %1097 = vmatprep.subr.mxu0 0.0
      %1098 = vmatpush1.msra.mxu0 %v246
      %1099 = vmatprep.subr.mxu0 0.0
      %1100 = vmatpush1.msra.mxu0 %v247
      %1101 = vmatprep.subr.mxu0 0.0
      %1102 = vmatpush1.msra.mxu0 %v248
      %1103 = vmatprep.subr.mxu0 0.0
      %1104 = vmatpush1.msra.mxu0 %v249
      %1105 = vmatprep.subr.mxu0 0.0
      %1106 = vmatpush1.msra.mxu0 %v250
      %1107 = vmatprep.subr.mxu0 0.0
      %1108 = vmatpush1.msra.mxu0 0.0
      %1109 = vmatprep.subr.mxu0 0.0
      %1110 = vmatpush1.msra.mxu0 0.0
      %1111 = vmatprep.subr.mxu0 0.0
      %1112 = vmatpush1.msra.mxu0 0.0
      %1113 = vmatprep.subr.mxu0 0.0
      %1114 = vmatpush1.msra.mxu0 0.0
      %1115 = vmatprep.subr.mxu0 0.0
      %1116 = vmatpush1.msra.mxu0 0.0
      %1117 = vmatprep.subr.mxu0 0.0
      %1118 = vmatpush1.msra.mxu0 0.0
      %1119 = vmatprep.subr.mxu0 0.0
      %1120 = vmatpush1.msra.mxu0 0.0
      %1121 = vmatprep.subr.mxu0 0.0
      %1122 = vmatpush1.msra.mxu0 0.0
      %1123 = vmatprep.subr.mxu0 0.0
      %1124 = vmatpush1.msra.mxu0 0.0
      %1125 = vmatprep.subr.mxu0 0.0
      %1126 = vmatpush1.msra.mxu0 0.0
      %1127 = vmatprep.subr.mxu0 0.0
      %1128 = vmatpush1.msra.mxu0 0.0
      %1129 = vmatprep.subr.mxu0 0.0
      %1130 = vmatpush1.msra.mxu0 0.0
      %1131 = vmatprep.subr.mxu0 0.0
      %1132 = vmatpush1.msra.mxu0 0.0
      %1133 = vmatprep.subr.mxu0 0.0
      %1134 = vmatpush1.msra.mxu0 0.0
      %1135 = vmatprep.subr.mxu0 0.0
      %1136 = vmatpush1.msra.mxu0 0.0
      %1137 = vmatprep.subr.mxu0 0.0
      %1138 = vmatpush1.msra.mxu0 0.0
      %1139 = vmatprep.subr.mxu0 0.0
      %1140 = vmatpush1.msra.mxu0 0.0
      %1141 = vmatprep.subr.mxu0 0.0
      %1142 = vmatpush1.msra.mxu0 0.0
      %1143 = vmatprep.subr.mxu0 0.0
      %1144 = vmatpush1.msra.mxu0 0.0
      %1145 = vmatprep.subr.mxu0 0.0
      %1146 = vmatpush1.msra.mxu0 0.0
      %1147 = vmatprep.mubr.f32.mxu0 0.0
      %1148 = vmatmul.mubr.f32.gmra.mrb[0].mxu0 %v414
      %v1149 = vpop.f32.mrb[0].mxu0
      %v1150 = vadd.f32 0.0, %v1149
      %v1151 = vpop.f32.mrb[0].mxu0
      %1152 = vdwg.mxu0
      %1153 = vmatprep.subr.mxu0 0.0
      %1154 = vmatpush1.msra.mxu0 %v224
      %1155 = vmatprep.subr.mxu0 0.0
      %1156 = vmatpush1.msra.mxu0 %v225
      %1157 = vmatprep.subr.mxu0 0.0
      %1158 = vmatpush1.msra.mxu0 %v226
      %1159 = vmatprep.subr.mxu0 0.0
      %1160 = vmatpush1.msra.mxu0 %v227
      %1161 = vmatprep.subr.mxu0 0.0
      %1162 = vmatpush1.msra.mxu0 %v228
      %1163 = vmatprep.subr.mxu0 0.0
      %1164 = vmatpush1.msra.mxu0 %v229
      %1165 = vmatprep.subr.mxu0 0.0
      %1166 = vmatpush1.msra.mxu0 %v230
      %1167 = vmatprep.subr.mxu0 0.0
      %1168 = vmatpush1.msra.mxu0 %v231
      %1169 = vmatprep.subr.mxu0 0.0
      %1170 = vmatpush1.msra.mxu0 %v232
      %1171 = vmatprep.subr.mxu0 0.0
      %1172 = vmatpush1.msra.mxu0 %v233
      %1173 = vmatprep.subr.mxu0 0.0
      %1174 = vmatpush1.msra.mxu0 %v234
      %1175 = vmatprep.subr.mxu0 0.0
      %1176 = vmatpush1.msra.mxu0 %v235
      %1177 = vmatprep.subr.mxu0 0.0
      %1178 = vmatpush1.msra.mxu0 0.0
      %1179 = vmatprep.subr.mxu0 0.0
      %1180 = vmatpush1.msra.mxu0 0.0
      %1181 = vmatprep.subr.mxu0 0.0
      %1182 = vmatpush1.msra.mxu0 0.0
      %1183 = vmatprep.subr.mxu0 0.0
      %1184 = vmatpush1.msra.mxu0 0.0
      %1185 = vmatprep.subr.mxu0 0.0
      %1186 = vmatpush1.msra.mxu0 0.0
      %1187 = vmatprep.subr.mxu0 0.0
      %1188 = vmatpush1.msra.mxu0 0.0
      %1189 = vmatprep.subr.mxu0 0.0
      %1190 = vmatpush1.msra.mxu0 0.0
      %1191 = vmatprep.subr.mxu0 0.0
      %1192 = vmatpush1.msra.mxu0 0.0
      %1193 = vmatprep.subr.mxu0 0.0
      %1194 = vmatpush1.msra.mxu0 0.0
      %1195 = vmatprep.subr.mxu0 0.0
      %1196 = vmatpush1.msra.mxu0 0.0
      %1197 = vmatprep.subr.mxu0 0.0
      %1198 = vmatpush1.msra.mxu0 0.0
      %1199 = vmatprep.subr.mxu0 0.0
      %1200 = vmatpush1.msra.mxu0 0.0
      %1201 = vmatprep.subr.mxu0 0.0
      %1202 = vmatpush1.msra.mxu0 0.0
      %1203 = vmatprep.subr.mxu0 0.0
      %1204 = vmatpush1.msra.mxu0 0.0
      %1205 = vmatprep.subr.mxu0 0.0
      %1206 = vmatpush1.msra.mxu0 0.0
      %1207 = vmatprep.subr.mxu0 0.0
      %1208 = vmatpush1.msra.mxu0 0.0
      %1209 = vmatprep.subr.mxu0 0.0
      %1210 = vmatpush1.msra.mxu0 0.0
      %1211 = vmatprep.subr.mxu0 0.0
      %1212 = vmatpush1.msra.mxu0 0.0
      %1213 = vmatprep.subr.mxu0 0.0
      %1214 = vmatpush1.msra.mxu0 0.0
      %1215 = vmatprep.subr.mxu0 0.0
      %1216 = vmatpush1.msra.mxu0 0.0
      %1217 = vmatprep.mubr.f32.mxu0 0.0
      %1218 = vmatmul.mubr.f32.gmra.mrb[0].mxu0 %v253
      %v1219 = vpop.f32.mrb[0].mxu0
      %v1220 = vadd.f32 %v1150, %v1219
      %v1221 = vpop.f32.mrb[0].mxu0
      %1222 = vdwg.mxu0
      %1223 = vmatprep.subr.mxu0 0.0
      %1224 = vmatpush1.msra.mxu0 %v401
      %1225 = vmatprep.subr.mxu0 0.0
      %1226 = vmatpush1.msra.mxu0 %v402
      %1227 = vmatprep.subr.mxu0 0.0
      %1228 = vmatpush1.msra.mxu0 %v403
      %1229 = vmatprep.subr.mxu0 0.0
      %1230 = vmatpush1.msra.mxu0 %v404
      %1231 = vmatprep.subr.mxu0 0.0
      %1232 = vmatpush1.msra.mxu0 %v405
      %1233 = vmatprep.subr.mxu0 0.0
      %1234 = vmatpush1.msra.mxu0 %v406
      %1235 = vmatprep.subr.mxu0 0.0
      %1236 = vmatpush1.msra.mxu0 %v407
      %1237 = vmatprep.subr.mxu0 0.0
      %1238 = vmatpush1.msra.mxu0 %v408
      %1239 = vmatprep.subr.mxu0 0.0
      %1240 = vmatpush1.msra.mxu0 %v409
      %1241 = vmatprep.subr.mxu0 0.0
      %1242 = vmatpush1.msra.mxu0 %v410
      %1243 = vmatprep.subr.mxu0 0.0
      %1244 = vmatpush1.msra.mxu0 %v411
      %1245 = vmatprep.subr.mxu0 0.0
      %1246 = vmatpush1.msra.mxu0 %v412
      %1247 = vmatprep.subr.mxu0 0.0
      %1248 = vmatpush1.msra.mxu0 0.0
      %1249 = vmatprep.subr.mxu0 0.0
      %1250 = vmatpush1.msra.mxu0 0.0
      %1251 = vmatprep.subr.mxu0 0.0
      %1252 = vmatpush1.msra.mxu0 0.0
      %1253 = vmatprep.subr.mxu0 0.0
      %1254 = vmatpush1.msra.mxu0 0.0
      %1255 = vmatprep.subr.mxu0 0.0
      %1256 = vmatpush1.msra.mxu0 0.0
      %1257 = vmatprep.subr.mxu0 0.0
      %1258 = vmatpush1.msra.mxu0 0.0
      %1259 = vmatprep.subr.mxu0 0.0
      %1260 = vmatpush1.msra.mxu0 0.0
      %1261 = vmatprep.subr.mxu0 0.0
      %1262 = vmatpush1.msra.mxu0 0.0
      %1263 = vmatprep.subr.mxu0 0.0
      %1264 = vmatpush1.msra.mxu0 0.0
      %1265 = vmatprep.subr.mxu0 0.0
      %1266 = vmatpush1.msra.mxu0 0.0
      %1267 = vmatprep.subr.mxu0 0.0
      %1268 = vmatpush1.msra.mxu0 0.0
      %1269 = vmatprep.subr.mxu0 0.0
      %1270 = vmatpush1.msra.mxu0 0.0
      %1271 = vmatprep.subr.mxu0 0.0
      %1272 = vmatpush1.msra.mxu0 0.0
      %1273 = vmatprep.subr.mxu0 0.0
      %1274 = vmatpush1.msra.mxu0 0.0
      %1275 = vmatprep.subr.mxu0 0.0
      %1276 = vmatpush1.msra.mxu0 0.0
      %1277 = vmatprep.subr.mxu0 0.0
      %1278 = vmatpush1.msra.mxu0 0.0
      %1279 = vmatprep.subr.mxu0 0.0
      %1280 = vmatpush1.msra.mxu0 0.0
      %1281 = vmatprep.subr.mxu0 0.0
      %1282 = vmatpush1.msra.mxu0 0.0
      %1283 = vmatprep.subr.mxu0 0.0
      %1284 = vmatpush1.msra.mxu0 0.0
      %1285 = vmatprep.subr.mxu0 0.0
      %1286 = vmatpush1.msra.mxu0 0.0
      %1287 = vmatprep.mubr.f32.mxu0 0.0
      %1288 = vmatmul.mubr.f32.gmra.mrb[0].mxu0 %v503
      %v1289 = vpop.f32.mrb[0].mxu0
      %v1290 = vadd.f32 0.0, %v1289
      %v1291 = vpop.f32.mrb[0].mxu0
      %1292 = vdwg.mxu0
      %v1293 = vadd.f32 %v1220, %v1290
      %1294 = vmatprep.subr.mxu0 0.0
      %1295 = vmatpush1.msra.mxu0 %v490
      %1296 = vmatprep.subr.mxu0 0.0
      %1297 = vmatpush1.msra.mxu0 %v491
      %1298 = vmatprep.subr.mxu0 0.0
      %1299 = vmatpush1.msra.mxu0 %v492
      %1300 = vmatprep.subr.mxu0 0.0
      %1301 = vmatpush1.msra.mxu0 %v493
      %1302 = vmatprep.subr.mxu0 0.0
      %1303 = vmatpush1.msra.mxu0 %v494
      %1304 = vmatprep.subr.mxu0 0.0
      %1305 = vmatpush1.msra.mxu0 %v495
      %1306 = vmatprep.subr.mxu0 0.0
      %1307 = vmatpush1.msra.mxu0 %v496
      %1308 = vmatprep.subr.mxu0 0.0
      %1309 = vmatpush1.msra.mxu0 %v497
      %1310 = vmatprep.subr.mxu0 0.0
      %1311 = vmatpush1.msra.mxu0 %v498
      %1312 = vmatprep.subr.mxu0 0.0
      %1313 = vmatpush1.msra.mxu0 %v499
      %1314 = vmatprep.subr.mxu0 0.0
      %1315 = vmatpush1.msra.mxu0 %v500
      %1316 = vmatprep.subr.mxu0 0.0
      %1317 = vmatpush1.msra.mxu0 %v501
      %1318 = vmatprep.subr.mxu0 0.0
      %1319 = vmatpush1.msra.mxu0 0.0
      %1320 = vmatprep.subr.mxu0 0.0
      %1321 = vmatpush1.msra.mxu0 0.0
      %1322 = vmatprep.subr.mxu0 0.0
      %1323 = vmatpush1.msra.mxu0 0.0
      %1324 = vmatprep.subr.mxu0 0.0
      %1325 = vmatpush1.msra.mxu0 0.0
      %1326 = vmatprep.subr.mxu0 0.0
      %1327 = vmatpush1.msra.mxu0 0.0
      %1328 = vmatprep.subr.mxu0 0.0
      %1329 = vmatpush1.msra.mxu0 0.0
      %1330 = vmatprep.subr.mxu0 0.0
      %1331 = vmatpush1.msra.mxu0 0.0
      %1332 = vmatprep.subr.mxu0 0.0
      %1333 = vmatpush1.msra.mxu0 0.0
      %1334 = vmatprep.subr.mxu0 0.0
      %1335 = vmatpush1.msra.mxu0 0.0
      %1336 = vmatprep.subr.mxu0 0.0
      %1337 = vmatpush1.msra.mxu0 0.0
      %1338 = vmatprep.subr.mxu0 0.0
      %1339 = vmatpush1.msra.mxu0 0.0
      %1340 = vmatprep.subr.mxu0 0.0
      %1341 = vmatpush1.msra.mxu0 0.0
      %1342 = vmatprep.subr.mxu0 0.0
      %1343 = vmatpush1.msra.mxu0 0.0
      %1344 = vmatprep.subr.mxu0 0.0
      %1345 = vmatpush1.msra.mxu0 0.0
      %1346 = vmatprep.subr.mxu0 0.0
      %1347 = vmatpush1.msra.mxu0 0.0
      %1348 = vmatprep.subr.mxu0 0.0
      %1349 = vmatpush1.msra.mxu0 0.0
      %1350 = vmatprep.subr.mxu0 0.0
      %1351 = vmatpush1.msra.mxu0 0.0
      %1352 = vmatprep.subr.mxu0 0.0
      %1353 = vmatpush1.msra.mxu0 0.0
      %1354 = vmatprep.subr.mxu0 0.0
      %1355 = vmatpush1.msra.mxu0 0.0
      %1356 = vmatprep.subr.mxu0 0.0
      %1357 = vmatpush1.msra.mxu0 0.0
      %1358 = vmatprep.mubr.f32.mxu0 0.0
      %1359 = vmatmul.mubr.f32.gmra.mrb[0].mxu0 %v591
      %v1360 = vpop.f32.mrb[0].mxu0
      %v1361 = vadd.f32 0.0, %v1360
      %v1362 = vpop.f32.mrb[0].mxu0
      %1363 = vdwg.mxu0
      %v1364 = vadd.f32 %v1293, %v1361
      %v1365 = vld [vmem:[%s236 + $0x1] sm:$0x7f]
      %v1367 = vsel %vm251, %v1365, 0
      %1369 = vmatprep.subr.mxu0 0.0
      %1370 = vmatpush1.msra.mxu0 %v578
      %1371 = vmatprep.subr.mxu0 0.0
      %1372 = vmatpush1.msra.mxu0 %v579
      %1373 = vmatprep.subr.mxu0 0.0
      %1374 = vmatpush1.msra.mxu0 %v580
      %1375 = vmatprep.subr.mxu0 0.0
      %1376 = vmatpush1.msra.mxu0 %v581
      %1377 = vmatprep.subr.mxu0 0.0
      %1378 = vmatpush1.msra.mxu0 %v582
      %1379 = vmatprep.subr.mxu0 0.0
      %1380 = vmatpush1.msra.mxu0 %v583
      %1381 = vmatprep.subr.mxu0 0.0
      %1382 = vmatpush1.msra.mxu0 %v584
      %1383 = vmatprep.subr.mxu0 0.0
      %1384 = vmatpush1.msra.mxu0 %v585
      %1385 = vmatprep.subr.mxu0 0.0
      %1386 = vmatpush1.msra.mxu0 %v586
      %1387 = vmatprep.subr.mxu0 0.0
      %1388 = vmatpush1.msra.mxu0 %v587
      %1389 = vmatprep.subr.mxu0 0.0
      %1390 = vmatpush1.msra.mxu0 %v588
      %1391 = vmatprep.subr.mxu0 0.0
      %1392 = vmatpush1.msra.mxu0 %v589
      %1393 = vmatprep.subr.mxu0 0.0
      %1394 = vmatpush1.msra.mxu0 0.0
      %1395 = vmatprep.subr.mxu0 0.0
      %1396 = vmatpush1.msra.mxu0 0.0
      %1397 = vmatprep.subr.mxu0 0.0
      %1398 = vmatpush1.msra.mxu0 0.0
      %1399 = vmatprep.subr.mxu0 0.0
      %1400 = vmatpush1.msra.mxu0 0.0
      %1401 = vmatprep.subr.mxu0 0.0
      %1402 = vmatpush1.msra.mxu0 0.0
      %1403 = vmatprep.subr.mxu0 0.0
      %1404 = vmatpush1.msra.mxu0 0.0
      %1405 = vmatprep.subr.mxu0 0.0
      %1406 = vmatpush1.msra.mxu0 0.0
      %1407 = vmatprep.subr.mxu0 0.0
      %1408 = vmatpush1.msra.mxu0 0.0
      %1409 = vmatprep.subr.mxu0 0.0
      %1410 = vmatpush1.msra.mxu0 0.0
      %1411 = vmatprep.subr.mxu0 0.0
      %1412 = vmatpush1.msra.mxu0 0.0
      %1413 = vmatprep.subr.mxu0 0.0
      %1414 = vmatpush1.msra.mxu0 0.0
      %1415 = vmatprep.subr.mxu0 0.0
      %1416 = vmatpush1.msra.mxu0 0.0
      %1417 = vmatprep.subr.mxu0 0.0
      %1418 = vmatpush1.msra.mxu0 0.0
      %1419 = vmatprep.subr.mxu0 0.0
      %1420 = vmatpush1.msra.mxu0 0.0
      %1421 = vmatprep.subr.mxu0 0.0
      %1422 = vmatpush1.msra.mxu0 0.0
      %1423 = vmatprep.subr.mxu0 0.0
      %1424 = vmatpush1.msra.mxu0 0.0
      %1425 = vmatprep.subr.mxu0 0.0
      %1426 = vmatpush1.msra.mxu0 0.0
      %1427 = vmatprep.subr.mxu0 0.0
      %1428 = vmatpush1.msra.mxu0 0.0
      %1429 = vmatprep.subr.mxu0 0.0
      %1430 = vmatpush1.msra.mxu0 0.0
      %1431 = vmatprep.subr.mxu0 0.0
      %1432 = vmatpush1.msra.mxu0 0.0
      %1433 = vmatprep.mubr.f32.mxu0 0.0
      %1434 = vmatmul.mubr.f32.gmra.mrb[0].mxu0 %v1367
      %v1435 = vpop.f32.mrb[0].mxu0
      %v1436 = vadd.f32 0.0, %v1435
      %v1437 = vpop.f32.mrb[0].mxu0
      %1438 = vdwg.mxu0
      %v1439 = vadd.f32 %v1364, %v1436
      %v1440 = vmax.f32 %v1082, %v1439
      %1441 = vmatprep.subr.mxu0 0.0
      %1442 = vmatpush1.msra.mxu0 %v678
      %1443 = vmatprep.subr.mxu0 0.0
      %1444 = vmatpush1.msra.mxu0 %v679
      %1445 = vmatprep.subr.mxu0 0.0
      %1446 = vmatpush1.msra.mxu0 %v680
      %1447 = vmatprep.subr.mxu0 0.0
      %1448 = vmatpush1.msra.mxu0 %v681
      %1449 = vmatprep.subr.mxu0 0.0
      %1450 = vmatpush1.msra.mxu0 %v682
      %1451 = vmatprep.subr.mxu0 0.0
      %1452 = vmatpush1.msra.mxu0 %v683
      %1453 = vmatprep.subr.mxu0 0.0
      %1454 = vmatpush1.msra.mxu0 %v684
      %1455 = vmatprep.subr.mxu0 0.0
      %1456 = vmatpush1.msra.mxu0 %v685
      %1457 = vmatprep.subr.mxu0 0.0
      %1458 = vmatpush1.msra.mxu0 %v686
      %1459 = vmatprep.subr.mxu0 0.0
      %1460 = vmatpush1.msra.mxu0 %v687
      %1461 = vmatprep.subr.mxu0 0.0
      %1462 = vmatpush1.msra.mxu0 %v688
      %1463 = vmatprep.subr.mxu0 0.0
      %1464 = vmatpush1.msra.mxu0 %v689
      %1465 = vmatprep.subr.mxu0 0.0
      %1466 = vmatpush1.msra.mxu0 0.0
      %1467 = vmatprep.subr.mxu0 0.0
      %1468 = vmatpush1.msra.mxu0 0.0
      %1469 = vmatprep.subr.mxu0 0.0
      %1470 = vmatpush1.msra.mxu0 0.0
      %1471 = vmatprep.subr.mxu0 0.0
      %1472 = vmatpush1.msra.mxu0 0.0
      %1473 = vmatprep.subr.mxu0 0.0
      %1474 = vmatpush1.msra.mxu0 0.0
      %1475 = vmatprep.subr.mxu0 0.0
      %1476 = vmatpush1.msra.mxu0 0.0
      %1477 = vmatprep.subr.mxu0 0.0
      %1478 = vmatpush1.msra.mxu0 0.0
      %1479 = vmatprep.subr.mxu0 0.0
      %1480 = vmatpush1.msra.mxu0 0.0
      %1481 = vmatprep.subr.mxu0 0.0
      %1482 = vmatpush1.msra.mxu0 0.0
      %1483 = vmatprep.subr.mxu0 0.0
      %1484 = vmatpush1.msra.mxu0 0.0
      %1485 = vmatprep.subr.mxu0 0.0
      %1486 = vmatpush1.msra.mxu0 0.0
      %1487 = vmatprep.subr.mxu0 0.0
      %1488 = vmatpush1.msra.mxu0 0.0
      %1489 = vmatprep.subr.mxu0 0.0
      %1490 = vmatpush1.msra.mxu0 0.0
      %1491 = vmatprep.subr.mxu0 0.0
      %1492 = vmatpush1.msra.mxu0 0.0
      %1493 = vmatprep.subr.mxu0 0.0
      %1494 = vmatpush1.msra.mxu0 0.0
      %1495 = vmatprep.subr.mxu0 0.0
      %1496 = vmatpush1.msra.mxu0 0.0
      %1497 = vmatprep.subr.mxu0 0.0
      %1498 = vmatpush1.msra.mxu0 0.0
      %1499 = vmatprep.subr.mxu0 0.0
      %1500 = vmatpush1.msra.mxu0 0.0
      %1501 = vmatprep.subr.mxu0 0.0
      %1502 = vmatpush1.msra.mxu0 0.0
      %1503 = vmatprep.subr.mxu0 0.0
      %1504 = vmatpush1.msra.mxu0 0.0
      %1505 = vmatprep.mubr.f32.mxu0 0.0
      %1506 = vmatmul.mubr.f32.gmra.mrb[0].mxu0 %v414
      %v1507 = vpop.f32.mrb[0].mxu0
      %v1508 = vadd.f32 0.0, %v1507
      %v1509 = vpop.f32.mrb[0].mxu0
      %1510 = vdwg.mxu0
      %1511 = vmatprep.subr.mxu0 0.0
      %1512 = vmatpush1.msra.mxu0 %v665
      %1513 = vmatprep.subr.mxu0 0.0
      %1514 = vmatpush1.msra.mxu0 %v666
      %1515 = vmatprep.subr.mxu0 0.0
      %1516 = vmatpush1.msra.mxu0 %v667
      %1517 = vmatprep.subr.mxu0 0.0
      %1518 = vmatpush1.msra.mxu0 %v668
      %1519 = vmatprep.subr.mxu0 0.0
      %1520 = vmatpush1.msra.mxu0 %v669
      %1521 = vmatprep.subr.mxu0 0.0
      %1522 = vmatpush1.msra.mxu0 %v670
      %1523 = vmatprep.subr.mxu0 0.0
      %1524 = vmatpush1.msra.mxu0 %v671
      %1525 = vmatprep.subr.mxu0 0.0
      %1526 = vmatpush1.msra.mxu0 %v672
      %1527 = vmatprep.subr.mxu0 0.0
      %1528 = vmatpush1.msra.mxu0 %v673
      %1529 = vmatprep.subr.mxu0 0.0
      %1530 = vmatpush1.msra.mxu0 %v674
      %1531 = vmatprep.subr.mxu0 0.0
      %1532 = vmatpush1.msra.mxu0 %v675
      %1533 = vmatprep.subr.mxu0 0.0
      %1534 = vmatpush1.msra.mxu0 %v676
      %1535 = vmatprep.subr.mxu0 0.0
      %1536 = vmatpush1.msra.mxu0 0.0
      %1537 = vmatprep.subr.mxu0 0.0
      %1538 = vmatpush1.msra.mxu0 0.0
      %1539 = vmatprep.subr.mxu0 0.0
      %1540 = vmatpush1.msra.mxu0 0.0
      %1541 = vmatprep.subr.mxu0 0.0
      %1542 = vmatpush1.msra.mxu0 0.0
      %1543 = vmatprep.subr.mxu0 0.0
      %1544 = vmatpush1.msra.mxu0 0.0
      %1545 = vmatprep.subr.mxu0 0.0
      %1546 = vmatpush1.msra.mxu0 0.0
      %1547 = vmatprep.subr.mxu0 0.0
      %1548 = vmatpush1.msra.mxu0 0.0
      %1549 = vmatprep.subr.mxu0 0.0
      %1550 = vmatpush1.msra.mxu0 0.0
      %1551 = vmatprep.subr.mxu0 0.0
      %1552 = vmatpush1.msra.mxu0 0.0
      %1553 = vmatprep.subr.mxu0 0.0
      %1554 = vmatpush1.msra.mxu0 0.0
      %1555 = vmatprep.subr.mxu0 0.0
      %1556 = vmatpush1.msra.mxu0 0.0
      %1557 = vmatprep.subr.mxu0 0.0
      %1558 = vmatpush1.msra.mxu0 0.0
      %1559 = vmatprep.subr.mxu0 0.0
      %1560 = vmatpush1.msra.mxu0 0.0
      %1561 = vmatprep.subr.mxu0 0.0
      %1562 = vmatpush1.msra.mxu0 0.0
      %1563 = vmatprep.subr.mxu0 0.0
      %1564 = vmatpush1.msra.mxu0 0.0
      %1565 = vmatprep.subr.mxu0 0.0
      %1566 = vmatpush1.msra.mxu0 0.0
      %1567 = vmatprep.subr.mxu0 0.0
      %1568 = vmatpush1.msra.mxu0 0.0
      %1569 = vmatprep.subr.mxu0 0.0
      %1570 = vmatpush1.msra.mxu0 0.0
      %1571 = vmatprep.subr.mxu0 0.0
      %1572 = vmatpush1.msra.mxu0 0.0
      %1573 = vmatprep.subr.mxu0 0.0
      %1574 = vmatpush1.msra.mxu0 0.0
      %1575 = vmatprep.mubr.f32.mxu0 0.0
      %1576 = vmatmul.mubr.f32.gmra.mrb[0].mxu0 %v253
      %v1577 = vpop.f32.mrb[0].mxu0
      %v1578 = vadd.f32 %v1508, %v1577
      %v1579 = vpop.f32.mrb[0].mxu0
      %1580 = vdwg.mxu0
      %1581 = vmatprep.subr.mxu0 0.0
      %1582 = vmatpush1.msra.mxu0 %v831
      %1583 = vmatprep.subr.mxu0 0.0
      %1584 = vmatpush1.msra.mxu0 %v832
      %1585 = vmatprep.subr.mxu0 0.0
      %1586 = vmatpush1.msra.mxu0 %v833
      %1587 = vmatprep.subr.mxu0 0.0
      %1588 = vmatpush1.msra.mxu0 %v834
      %1589 = vmatprep.subr.mxu0 0.0
      %1590 = vmatpush1.msra.mxu0 %v835
      %1591 = vmatprep.subr.mxu0 0.0
      %1592 = vmatpush1.msra.mxu0 %v836
      %1593 = vmatprep.subr.mxu0 0.0
      %1594 = vmatpush1.msra.mxu0 %v837
      %1595 = vmatprep.subr.mxu0 0.0
      %1596 = vmatpush1.msra.mxu0 %v838
      %1597 = vmatprep.subr.mxu0 0.0
      %1598 = vmatpush1.msra.mxu0 %v839
      %1599 = vmatprep.subr.mxu0 0.0
      %1600 = vmatpush1.msra.mxu0 %v840
      %1601 = vmatprep.subr.mxu0 0.0
      %1602 = vmatpush1.msra.mxu0 %v841
      %1603 = vmatprep.subr.mxu0 0.0
      %1604 = vmatpush1.msra.mxu0 %v842
      %1605 = vmatprep.subr.mxu0 0.0
      %1606 = vmatpush1.msra.mxu0 0.0
      %1607 = vmatprep.subr.mxu0 0.0
      %1608 = vmatpush1.msra.mxu0 0.0
      %1609 = vmatprep.subr.mxu0 0.0
      %1610 = vmatpush1.msra.mxu0 0.0
      %1611 = vmatprep.subr.mxu0 0.0
      %1612 = vmatpush1.msra.mxu0 0.0
      %1613 = vmatprep.subr.mxu0 0.0
      %1614 = vmatpush1.msra.mxu0 0.0
      %1615 = vmatprep.subr.mxu0 0.0
      %1616 = vmatpush1.msra.mxu0 0.0
      %1617 = vmatprep.subr.mxu0 0.0
      %1618 = vmatpush1.msra.mxu0 0.0
      %1619 = vmatprep.subr.mxu0 0.0
      %1620 = vmatpush1.msra.mxu0 0.0
      %1621 = vmatprep.subr.mxu0 0.0
      %1622 = vmatpush1.msra.mxu0 0.0
      %1623 = vmatprep.subr.mxu0 0.0
      %1624 = vmatpush1.msra.mxu0 0.0
      %1625 = vmatprep.subr.mxu0 0.0
      %1626 = vmatpush1.msra.mxu0 0.0
      %1627 = vmatprep.subr.mxu0 0.0
      %1628 = vmatpush1.msra.mxu0 0.0
      %1629 = vmatprep.subr.mxu0 0.0
      %1630 = vmatpush1.msra.mxu0 0.0
      %1631 = vmatprep.subr.mxu0 0.0
      %1632 = vmatpush1.msra.mxu0 0.0
      %1633 = vmatprep.subr.mxu0 0.0
      %1634 = vmatpush1.msra.mxu0 0.0
      %1635 = vmatprep.subr.mxu0 0.0
      %1636 = vmatpush1.msra.mxu0 0.0
      %1637 = vmatprep.subr.mxu0 0.0
      %1638 = vmatpush1.msra.mxu0 0.0
      %1639 = vmatprep.subr.mxu0 0.0
      %1640 = vmatpush1.msra.mxu0 0.0
      %1641 = vmatprep.subr.mxu0 0.0
      %1642 = vmatpush1.msra.mxu0 0.0
      %1643 = vmatprep.subr.mxu0 0.0
      %1644 = vmatpush1.msra.mxu0 0.0
      %1645 = vmatprep.mubr.f32.mxu0 0.0
      %1646 = vmatmul.mubr.f32.gmra.mrb[0].mxu0 %v503
      %v1647 = vpop.f32.mrb[0].mxu0
      %v1648 = vadd.f32 0.0, %v1647
      %v1649 = vpop.f32.mrb[0].mxu0
      %1650 = vdwg.mxu0
      %v1651 = vadd.f32 %v1578, %v1648
      %1652 = vmatprep.subr.mxu0 0.0
      %1653 = vmatpush1.msra.mxu0 %v915
      %1654 = vmatprep.subr.mxu0 0.0
      %1655 = vmatpush1.msra.mxu0 %v916
      %1656 = vmatprep.subr.mxu0 0.0
      %1657 = vmatpush1.msra.mxu0 %v917
      %1658 = vmatprep.subr.mxu0 0.0
      %1659 = vmatpush1.msra.mxu0 %v918
      %1660 = vmatprep.subr.mxu0 0.0
      %1661 = vmatpush1.msra.mxu0 %v919
      %1662 = vmatprep.subr.mxu0 0.0
      %1663 = vmatpush1.msra.mxu0 %v920
      %1664 = vmatprep.subr.mxu0 0.0
      %1665 = vmatpush1.msra.mxu0 %v921
      %1666 = vmatprep.subr.mxu0 0.0
      %1667 = vmatpush1.msra.mxu0 %v922
      %1668 = vmatprep.subr.mxu0 0.0
      %1669 = vmatpush1.msra.mxu0 %v923
      %1670 = vmatprep.subr.mxu0 0.0
      %1671 = vmatpush1.msra.mxu0 %v924
      %1672 = vmatprep.subr.mxu0 0.0
      %1673 = vmatpush1.msra.mxu0 %v925
      %1674 = vmatprep.subr.mxu0 0.0
      %1675 = vmatpush1.msra.mxu0 %v926
      %1676 = vmatprep.subr.mxu0 0.0
      %1677 = vmatpush1.msra.mxu0 0.0
      %1678 = vmatprep.subr.mxu0 0.0
      %1679 = vmatpush1.msra.mxu0 0.0
      %1680 = vmatprep.subr.mxu0 0.0
      %1681 = vmatpush1.msra.mxu0 0.0
      %1682 = vmatprep.subr.mxu0 0.0
      %1683 = vmatpush1.msra.mxu0 0.0
      %1684 = vmatprep.subr.mxu0 0.0
      %1685 = vmatpush1.msra.mxu0 0.0
      %1686 = vmatprep.subr.mxu0 0.0
      %1687 = vmatpush1.msra.mxu0 0.0
      %1688 = vmatprep.subr.mxu0 0.0
      %1689 = vmatpush1.msra.mxu0 0.0
      %1690 = vmatprep.subr.mxu0 0.0
      %1691 = vmatpush1.msra.mxu0 0.0
      %1692 = vmatprep.subr.mxu0 0.0
      %1693 = vmatpush1.msra.mxu0 0.0
      %1694 = vmatprep.subr.mxu0 0.0
      %1695 = vmatpush1.msra.mxu0 0.0
      %1696 = vmatprep.subr.mxu0 0.0
      %1697 = vmatpush1.msra.mxu0 0.0
      %1698 = vmatprep.subr.mxu0 0.0
      %1699 = vmatpush1.msra.mxu0 0.0
      %1700 = vmatprep.subr.mxu0 0.0
      %1701 = vmatpush1.msra.mxu0 0.0
      %1702 = vmatprep.subr.mxu0 0.0
      %1703 = vmatpush1.msra.mxu0 0.0
      %1704 = vmatprep.subr.mxu0 0.0
      %1705 = vmatpush1.msra.mxu0 0.0
      %1706 = vmatprep.subr.mxu0 0.0
      %1707 = vmatpush1.msra.mxu0 0.0
      %1708 = vmatprep.subr.mxu0 0.0
      %1709 = vmatpush1.msra.mxu0 0.0
      %1710 = vmatprep.subr.mxu0 0.0
      %1711 = vmatpush1.msra.mxu0 0.0
      %1712 = vmatprep.subr.mxu0 0.0
      %1713 = vmatpush1.msra.mxu0 0.0
      %1714 = vmatprep.subr.mxu0 0.0
      %1715 = vmatpush1.msra.mxu0 0.0
      %1716 = vmatprep.mubr.f32.mxu0 0.0
      %1717 = vmatmul.mubr.f32.gmra.mrb[0].mxu0 %v591
      %v1718 = vpop.f32.mrb[0].mxu0
      %v1719 = vadd.f32 0.0, %v1718
      %v1720 = vpop.f32.mrb[0].mxu0
      %1721 = vdwg.mxu0
      %v1722 = vadd.f32 %v1651, %v1719
      %1723 = vmatprep.subr.mxu0 0.0
      %1724 = vmatpush1.msra.mxu0 %v999
      %1725 = vmatprep.subr.mxu0 0.0
      %1726 = vmatpush1.msra.mxu0 %v1000
      %1727 = vmatprep.subr.mxu0 0.0
      %1728 = vmatpush1.msra.mxu0 %v1001
      %1729 = vmatprep.subr.mxu0 0.0
      %1730 = vmatpush1.msra.mxu0 %v1002
      %1731 = vmatprep.subr.mxu0 0.0
      %1732 = vmatpush1.msra.mxu0 %v1003
      %1733 = vmatprep.subr.mxu0 0.0
      %1734 = vmatpush1.msra.mxu0 %v1004
      %1735 = vmatprep.subr.mxu0 0.0
      %1736 = vmatpush1.msra.mxu0 %v1005
      %1737 = vmatprep.subr.mxu0 0.0
      %1738 = vmatpush1.msra.mxu0 %v1006
      %1739 = vmatprep.subr.mxu0 0.0
      %1740 = vmatpush1.msra.mxu0 %v1007
      %1741 = vmatprep.subr.mxu0 0.0
      %1742 = vmatpush1.msra.mxu0 %v1008
      %1743 = vmatprep.subr.mxu0 0.0
      %1744 = vmatpush1.msra.mxu0 %v1009
      %1745 = vmatprep.subr.mxu0 0.0
      %1746 = vmatpush1.msra.mxu0 %v1010
      %1747 = vmatprep.subr.mxu0 0.0
      %1748 = vmatpush1.msra.mxu0 0.0
      %1749 = vmatprep.subr.mxu0 0.0
      %1750 = vmatpush1.msra.mxu0 0.0
      %1751 = vmatprep.subr.mxu0 0.0
      %1752 = vmatpush1.msra.mxu0 0.0
      %1753 = vmatprep.subr.mxu0 0.0
      %1754 = vmatpush1.msra.mxu0 0.0
      %1755 = vmatprep.subr.mxu0 0.0
      %1756 = vmatpush1.msra.mxu0 0.0
      %1757 = vmatprep.subr.mxu0 0.0
      %1758 = vmatpush1.msra.mxu0 0.0
      %1759 = vmatprep.subr.mxu0 0.0
      %1760 = vmatpush1.msra.mxu0 0.0
      %1761 = vmatprep.subr.mxu0 0.0
      %1762 = vmatpush1.msra.mxu0 0.0
      %1763 = vmatprep.subr.mxu0 0.0
      %1764 = vmatpush1.msra.mxu0 0.0
      %1765 = vmatprep.subr.mxu0 0.0
      %1766 = vmatpush1.msra.mxu0 0.0
      %1767 = vmatprep.subr.mxu0 0.0
      %1768 = vmatpush1.msra.mxu0 0.0
      %1769 = vmatprep.subr.mxu0 0.0
      %1770 = vmatpush1.msra.mxu0 0.0
      %1771 = vmatprep.subr.mxu0 0.0
      %1772 = vmatpush1.msra.mxu0 0.0
      %1773 = vmatprep.subr.mxu0 0.0
      %1774 = vmatpush1.msra.mxu0 0.0
      %1775 = vmatprep.subr.mxu0 0.0
      %1776 = vmatpush1.msra.mxu0 0.0
      %1777 = vmatprep.subr.mxu0 0.0
      %1778 = vmatpush1.msra.mxu0 0.0
      %1779 = vmatprep.subr.mxu0 0.0
      %1780 = vmatpush1.msra.mxu0 0.0
      %1781 = vmatprep.subr.mxu0 0.0
      %1782 = vmatpush1.msra.mxu0 0.0
      %1783 = vmatprep.subr.mxu0 0.0
      %1784 = vmatpush1.msra.mxu0 0.0
      %1785 = vmatprep.subr.mxu0 0.0
      %1786 = vmatpush1.msra.mxu0 0.0
      %1787 = vmatprep.mubr.f32.mxu0 0.0
      %1788 = vmatmul.mubr.f32.gmra.mrb[0].mxu0 %v1367
      %v1789 = vpop.f32.mrb[0].mxu0
      %v1790 = vadd.f32 0.0, %v1789
      %v1791 = vpop.f32.mrb[0].mxu0
      %1792 = vdwg.mxu0
      %v1793 = vadd.f32 %v1722, %v1790
      %v1794 = vmax.f32 %v1440, %v1793
      %v1795 = vld [vmem:[%s2] sm:$0x1]
      %v1797 = vlaneseq
      %v1798 = vshrl.u32 %v1797, 7
      %v1799 = vsub.s32 0, %v1798
      %v1800 = vrot.slane %v1795, %v1799
      %v1802 = vadd.f32 %v1794, %v1800
      %v1803 = vmax.f32 %v1802, 0.0
      %vm1804 = vcmask 686080
      %1805 = vst.msk [vmem:[#allocation2] sm:$0x7f] %vm1804, %v1803
      %v1806 = vld [vmem:[%s398] sm:$0x7f]
      %v1807 = vld [vmem:[%s1] sm:$0xff]
      %v1808 = vld [vmem:[%s1 + $0x8] sm:$0xff]
      %v1809 = vld [vmem:[%s1 + $0x10] sm:$0xff]
      %v1810 = vld [vmem:[%s1 + $0x18] sm:$0xff]
      %v1811 = vld [vmem:[%s1 + $0x20] sm:$0xff]
      %v1812 = vld [vmem:[%s1 + $0x28] sm:$0xff]
      %v1813 = vld [vmem:[%s1 + $0x30] sm:$0xff]
      %v1814 = vld [vmem:[%s1 + $0x38] sm:$0xff]
      %v1815 = vld [vmem:[%s1 + $0x40] sm:$0xff]
      %v1816 = vld [vmem:[%s1 + $0x48] sm:$0xff]
      %v1817 = vld [vmem:[%s1 + $0x50] sm:$0xff]
      %v1818 = vld [vmem:[%s1 + $0x58] sm:$0xff]
      %v1819 = vld [vmem:[%s487] sm:$0x7f]
      %v1820 = vld [vmem:[%s238] sm:$0xff]
      %v1821 = vld [vmem:[%s238 + $0x8] sm:$0xff]
      %v1822 = vld [vmem:[%s238 + $0x10] sm:$0xff]
      %v1823 = vld [vmem:[%s238 + $0x18] sm:$0xff]
      %v1824 = vld [vmem:[%s238 + $0x20] sm:$0xff]
      %v1825 = vld [vmem:[%s238 + $0x28] sm:$0xff]
      %v1826 = vld [vmem:[%s238 + $0x30] sm:$0xff]
      %v1827 = vld [vmem:[%s238 + $0x38] sm:$0xff]
      %v1828 = vld [vmem:[%s238 + $0x40] sm:$0xff]
      %v1829 = vld [vmem:[%s238 + $0x48] sm:$0xff]
      %v1830 = vld [vmem:[%s238 + $0x50] sm:$0xff]
      %v1831 = vld [vmem:[%s238 + $0x58] sm:$0xff]
      %v1833 = vsel %vm251, %v1819, 0
      %1835 = vmatprep.subr.mxu0 0.0
      %1836 = vmatpush1.msra.mxu0 %v1820
      %1837 = vmatprep.subr.mxu0 0.0
      %1838 = vmatpush1.msra.mxu0 %v1821
      %1839 = vmatprep.subr.mxu0 0.0
      %1840 = vmatpush1.msra.mxu0 %v1822
      %1841 = vmatprep.subr.mxu0 0.0
      %1842 = vmatpush1.msra.mxu0 %v1823
      %1843 = vmatprep.subr.mxu0 0.0
      %1844 = vmatpush1.msra.mxu0 %v1824
      %1845 = vmatprep.subr.mxu0 0.0
      %1846 = vmatpush1.msra.mxu0 %v1825
      %1847 = vmatprep.subr.mxu0 0.0
      %1848 = vmatpush1.msra.mxu0 %v1826
      %1849 = vmatprep.subr.mxu0 0.0
      %1850 = vmatpush1.msra.mxu0 %v1827
      %1851 = vmatprep.subr.mxu0 0.0
      %1852 = vmatpush1.msra.mxu0 %v1828
      %1853 = vmatprep.subr.mxu0 0.0
      %1854 = vmatpush1.msra.mxu0 %v1829
      %1855 = vmatprep.subr.mxu0 0.0
      %1856 = vmatpush1.msra.mxu0 %v1830
      %1857 = vmatprep.subr.mxu0 0.0
      %1858 = vmatpush1.msra.mxu0 %v1831
      %1859 = vmatprep.subr.mxu0 0.0
      %1860 = vmatpush1.msra.mxu0 0.0
      %1861 = vmatprep.subr.mxu0 0.0
      %1862 = vmatpush1.msra.mxu0 0.0
      %1863 = vmatprep.subr.mxu0 0.0
      %1864 = vmatpush1.msra.mxu0 0.0
      %1865 = vmatprep.subr.mxu0 0.0
      %1866 = vmatpush1.msra.mxu0 0.0
      %1867 = vmatprep.subr.mxu0 0.0
      %1868 = vmatpush1.msra.mxu0 0.0
      %1869 = vmatprep.subr.mxu0 0.0
      %1870 = vmatpush1.msra.mxu0 0.0
      %1871 = vmatprep.subr.mxu0 0.0
      %1872 = vmatpush1.msra.mxu0 0.0
      %1873 = vmatprep.subr.mxu0 0.0
      %1874 = vmatpush1.msra.mxu0 0.0
      %1875 = vmatprep.subr.mxu0 0.0
      %1876 = vmatpush1.msra.mxu0 0.0
      %1877 = vmatprep.subr.mxu0 0.0
      %1878 = vmatpush1.msra.mxu0 0.0
      %1879 = vmatprep.subr.mxu0 0.0
      %1880 = vmatpush1.msra.mxu0 0.0
      %1881 = vmatprep.subr.mxu0 0.0
      %1882 = vmatpush1.msra.mxu0 0.0
      %1883 = vmatprep.subr.mxu0 0.0
      %1884 = vmatpush1.msra.mxu0 0.0
      %1885 = vmatprep.subr.mxu0 0.0
      %1886 = vmatpush1.msra.mxu0 0.0
      %1887 = vmatprep.subr.mxu0 0.0
      %1888 = vmatpush1.msra.mxu0 0.0
      %1889 = vmatprep.subr.mxu0 0.0
      %1890 = vmatpush1.msra.mxu0 0.0
      %1891 = vmatprep.subr.mxu0 0.0
      %1892 = vmatpush1.msra.mxu0 0.0
      %1893 = vmatprep.subr.mxu0 0.0
      %1894 = vmatpush1.msra.mxu0 0.0
      %1895 = vmatprep.subr.mxu0 0.0
      %1896 = vmatpush1.msra.mxu0 0.0
      %1897 = vmatprep.subr.mxu0 0.0
      %1898 = vmatpush1.msra.mxu0 0.0
      %1899 = vmatprep.mubr.f32.mxu0 0.0
      %1900 = vmatmul.mubr.f32.gmra.mrb[0].mxu0 %v1833
      %v1901 = vpop.f32.mrb[0].mxu0
      %v1902 = vadd.f32 0.0, %v1901
      %v1903 = vpop.f32.mrb[0].mxu0
      %1904 = vdwg.mxu0
      %v1906 = vsel %vm251, %v1806, 0
      %1908 = vmatprep.subr.mxu0 0.0
      %1909 = vmatpush1.msra.mxu0 %v1807
      %1910 = vmatprep.subr.mxu0 0.0
      %1911 = vmatpush1.msra.mxu0 %v1808
      %1912 = vmatprep.subr.mxu0 0.0
      %1913 = vmatpush1.msra.mxu0 %v1809
      %1914 = vmatprep.subr.mxu0 0.0
      %1915 = vmatpush1.msra.mxu0 %v1810
      %1916 = vmatprep.subr.mxu0 0.0
      %1917 = vmatpush1.msra.mxu0 %v1811
      %1918 = vmatprep.subr.mxu0 0.0
      %1919 = vmatpush1.msra.mxu0 %v1812
      %1920 = vmatprep.subr.mxu0 0.0
      %1921 = vmatpush1.msra.mxu0 %v1813
      %1922 = vmatprep.subr.mxu0 0.0
      %1923 = vmatpush1.msra.mxu0 %v1814
      %1924 = vmatprep.subr.mxu0 0.0
      %1925 = vmatpush1.msra.mxu0 %v1815
      %1926 = vmatprep.subr.mxu0 0.0
      %1927 = vmatpush1.msra.mxu0 %v1816
      %1928 = vmatprep.subr.mxu0 0.0
      %1929 = vmatpush1.msra.mxu0 %v1817
      %1930 = vmatprep.subr.mxu0 0.0
      %1931 = vmatpush1.msra.mxu0 %v1818
      %1932 = vmatprep.subr.mxu0 0.0
      %1933 = vmatpush1.msra.mxu0 0.0
      %1934 = vmatprep.subr.mxu0 0.0
      %1935 = vmatpush1.msra.mxu0 0.0
      %1936 = vmatprep.subr.mxu0 0.0
      %1937 = vmatpush1.msra.mxu0 0.0
      %1938 = vmatprep.subr.mxu0 0.0
      %1939 = vmatpush1.msra.mxu0 0.0
      %1940 = vmatprep.subr.mxu0 0.0
      %1941 = vmatpush1.msra.mxu0 0.0
      %1942 = vmatprep.subr.mxu0 0.0
      %1943 = vmatpush1.msra.mxu0 0.0
      %1944 = vmatprep.subr.mxu0 0.0
      %1945 = vmatpush1.msra.mxu0 0.0
      %1946 = vmatprep.subr.mxu0 0.0
      %1947 = vmatpush1.msra.mxu0 0.0
      %1948 = vmatprep.subr.mxu0 0.0
      %1949 = vmatpush1.msra.mxu0 0.0
      %1950 = vmatprep.subr.mxu0 0.0
      %1951 = vmatpush1.msra.mxu0 0.0
      %1952 = vmatprep.subr.mxu0 0.0
      %1953 = vmatpush1.msra.mxu0 0.0
      %1954 = vmatprep.subr.mxu0 0.0
      %1955 = vmatpush1.msra.mxu0 0.0
      %1956 = vmatprep.subr.mxu0 0.0
      %1957 = vmatpush1.msra.mxu0 0.0
      %1958 = vmatprep.subr.mxu0 0.0
      %1959 = vmatpush1.msra.mxu0 0.0
      %1960 = vmatprep.subr.mxu0 0.0
      %1961 = vmatpush1.msra.mxu0 0.0
      %1962 = vmatprep.subr.mxu0 0.0
      %1963 = vmatpush1.msra.mxu0 0.0
      %1964 = vmatprep.subr.mxu0 0.0
      %1965 = vmatpush1.msra.mxu0 0.0
      %1966 = vmatprep.subr.mxu0 0.0
      %1967 = vmatpush1.msra.mxu0 0.0
      %1968 = vmatprep.subr.mxu0 0.0
      %1969 = vmatpush1.msra.mxu0 0.0
      %1970 = vmatprep.subr.mxu0 0.0
      %1971 = vmatpush1.msra.mxu0 0.0
      %1972 = vmatprep.mubr.f32.mxu0 0.0
      %1973 = vmatmul.mubr.f32.gmra.mrb[0].mxu0 %v1906
      %v1974 = vpop.f32.mrb[0].mxu0
      %v1975 = vadd.f32 %v1902, %v1974
      %v1976 = vpop.f32.mrb[0].mxu0
      %1977 = vdwg.mxu0
      %v1978 = vld [vmem:[%s218 + $0x1] sm:$0x7f]
      %v1979 = vld [vmem:[%s400] sm:$0xff]
      %v1980 = vld [vmem:[%s400 + $0x8] sm:$0xff]
      %v1981 = vld [vmem:[%s400 + $0x10] sm:$0xff]
      %v1982 = vld [vmem:[%s400 + $0x18] sm:$0xff]
      %v1983 = vld [vmem:[%s400 + $0x20] sm:$0xff]
      %v1984 = vld [vmem:[%s400 + $0x28] sm:$0xff]
      %v1985 = vld [vmem:[%s400 + $0x30] sm:$0xff]
      %v1986 = vld [vmem:[%s400 + $0x38] sm:$0xff]
      %v1987 = vld [vmem:[%s400 + $0x40] sm:$0xff]
      %v1988 = vld [vmem:[%s400 + $0x48] sm:$0xff]
      %v1989 = vld [vmem:[%s400 + $0x50] sm:$0xff]
      %v1990 = vld [vmem:[%s400 + $0x58] sm:$0xff]
      %v1992 = vsel %vm251, %v1978, 0
      %1994 = vmatprep.subr.mxu0 0.0
      %1995 = vmatpush1.msra.mxu0 %v1979
      %1996 = vmatprep.subr.mxu0 0.0
      %1997 = vmatpush1.msra.mxu0 %v1980
      %1998 = vmatprep.subr.mxu0 0.0
      %1999 = vmatpush1.msra.mxu0 %v1981
      %2000 = vmatprep.subr.mxu0 0.0
      %2001 = vmatpush1.msra.mxu0 %v1982
      %2002 = vmatprep.subr.mxu0 0.0
      %2003 = vmatpush1.msra.mxu0 %v1983
      %2004 = vmatprep.subr.mxu0 0.0
      %2005 = vmatpush1.msra.mxu0 %v1984
      %2006 = vmatprep.subr.mxu0 0.0
      %2007 = vmatpush1.msra.mxu0 %v1985
      %2008 = vmatprep.subr.mxu0 0.0
      %2009 = vmatpush1.msra.mxu0 %v1986
      %2010 = vmatprep.subr.mxu0 0.0
      %2011 = vmatpush1.msra.mxu0 %v1987
      %2012 = vmatprep.subr.mxu0 0.0
      %2013 = vmatpush1.msra.mxu0 %v1988
      %2014 = vmatprep.subr.mxu0 0.0
      %2015 = vmatpush1.msra.mxu0 %v1989
      %2016 = vmatprep.subr.mxu0 0.0
      %2017 = vmatpush1.msra.mxu0 %v1990
      %2018 = vmatprep.subr.mxu0 0.0
      %2019 = vmatpush1.msra.mxu0 0.0
      %2020 = vmatprep.subr.mxu0 0.0
      %2021 = vmatpush1.msra.mxu0 0.0
      %2022 = vmatprep.subr.mxu0 0.0
      %2023 = vmatpush1.msra.mxu0 0.0
      %2024 = vmatprep.subr.mxu0 0.0
      %2025 = vmatpush1.msra.mxu0 0.0
      %2026 = vmatprep.subr.mxu0 0.0
      %2027 = vmatpush1.msra.mxu0 0.0
      %2028 = vmatprep.subr.mxu0 0.0
      %2029 = vmatpush1.msra.mxu0 0.0
      %2030 = vmatprep.subr.mxu0 0.0
      %2031 = vmatpush1.msra.mxu0 0.0
      %2032 = vmatprep.subr.mxu0 0.0
      %2033 = vmatpush1.msra.mxu0 0.0
      %2034 = vmatprep.subr.mxu0 0.0
      %2035 = vmatpush1.msra.mxu0 0.0
      %2036 = vmatprep.subr.mxu0 0.0
      %2037 = vmatpush1.msra.mxu0 0.0
      %2038 = vmatprep.subr.mxu0 0.0
      %2039 = vmatpush1.msra.mxu0 0.0
      %2040 = vmatprep.subr.mxu0 0.0
      %2041 = vmatpush1.msra.mxu0 0.0
      %2042 = vmatprep.subr.mxu0 0.0
      %2043 = vmatpush1.msra.mxu0 0.0
      %2044 = vmatprep.subr.mxu0 0.0
      %2045 = vmatpush1.msra.mxu0 0.0
      %2046 = vmatprep.subr.mxu0 0.0
      %2047 = vmatpush1.msra.mxu0 0.0
      %2048 = vmatprep.subr.mxu0 0.0
      %2049 = vmatpush1.msra.mxu0 0.0
      %2050 = vmatprep.subr.mxu0 0.0
      %2051 = vmatpush1.msra.mxu0 0.0
      %2052 = vmatprep.subr.mxu0 0.0
      %2053 = vmatpush1.msra.mxu0 0.0
      %2054 = vmatprep.subr.mxu0 0.0
      %2055 = vmatpush1.msra.mxu0 0.0
      %2056 = vmatprep.subr.mxu0 0.0
      %2057 = vmatpush1.msra.mxu0 0.0
      %2058 = vmatprep.mubr.f32.mxu0 0.0
      %2059 = vmatmul.mubr.f32.gmra.mrb[0].mxu0 %v1992
      %v2060 = vpop.f32.mrb[0].mxu0
      %v2061 = vadd.f32 0.0, %v2060
      %v2062 = vpop.f32.mrb[0].mxu0
      %2063 = vdwg.mxu0
      %v2064 = vadd.f32 %v1975, %v2061
      %v2065 = vld [vmem:[%s236 + $0x1] sm:$0x7f]
      %v2066 = vld [vmem:[%s489] sm:$0xff]
      %v2067 = vld [vmem:[%s489 + $0x8] sm:$0xff]
      %v2068 = vld [vmem:[%s489 + $0x10] sm:$0xff]
      %v2069 = vld [vmem:[%s489 + $0x18] sm:$0xff]
      %v2070 = vld [vmem:[%s489 + $0x20] sm:$0xff]
      %v2071 = vld [vmem:[%s489 + $0x28] sm:$0xff]
      %v2072 = vld [vmem:[%s489 + $0x30] sm:$0xff]
      %v2073 = vld [vmem:[%s489 + $0x38] sm:$0xff]
      %v2074 = vld [vmem:[%s489 + $0x40] sm:$0xff]
      %v2075 = vld [vmem:[%s489 + $0x48] sm:$0xff]
      %v2076 = vld [vmem:[%s489 + $0x50] sm:$0xff]
      %v2077 = vld [vmem:[%s489 + $0x58] sm:$0xff]
      %v2079 = vsel %vm251, %v2065, 0
      %2081 = vmatprep.subr.mxu0 0.0
      %2082 = vmatpush1.msra.mxu0 %v2066
      %2083 = vmatprep.subr.mxu0 0.0
      %2084 = vmatpush1.msra.mxu0 %v2067
      %2085 = vmatprep.subr.mxu0 0.0
      %2086 = vmatpush1.msra.mxu0 %v2068
      %2087 = vmatprep.subr.mxu0 0.0
      %2088 = vmatpush1.msra.mxu0 %v2069
      %2089 = vmatprep.subr.mxu0 0.0
      %2090 = vmatpush1.msra.mxu0 %v2070
      %2091 = vmatprep.subr.mxu0 0.0
      %2092 = vmatpush1.msra.mxu0 %v2071
      %2093 = vmatprep.subr.mxu0 0.0
      %2094 = vmatpush1.msra.mxu0 %v2072
      %2095 = vmatprep.subr.mxu0 0.0
      %2096 = vmatpush1.msra.mxu0 %v2073
      %2097 = vmatprep.subr.mxu0 0.0
      %2098 = vmatpush1.msra.mxu0 %v2074
      %2099 = vmatprep.subr.mxu0 0.0
      %2100 = vmatpush1.msra.mxu0 %v2075
      %2101 = vmatprep.subr.mxu0 0.0
      %2102 = vmatpush1.msra.mxu0 %v2076
      %2103 = vmatprep.subr.mxu0 0.0
      %2104 = vmatpush1.msra.mxu0 %v2077
      %2105 = vmatprep.subr.mxu0 0.0
      %2106 = vmatpush1.msra.mxu0 0.0
      %2107 = vmatprep.subr.mxu0 0.0
      %2108 = vmatpush1.msra.mxu0 0.0
      %2109 = vmatprep.subr.mxu0 0.0
      %2110 = vmatpush1.msra.mxu0 0.0
      %2111 = vmatprep.subr.mxu0 0.0
      %2112 = vmatpush1.msra.mxu0 0.0
      %2113 = vmatprep.subr.mxu0 0.0
      %2114 = vmatpush1.msra.mxu0 0.0
      %2115 = vmatprep.subr.mxu0 0.0
      %2116 = vmatpush1.msra.mxu0 0.0
      %2117 = vmatprep.subr.mxu0 0.0
      %2118 = vmatpush1.msra.mxu0 0.0
      %2119 = vmatprep.subr.mxu0 0.0
      %2120 = vmatpush1.msra.mxu0 0.0
      %2121 = vmatprep.subr.mxu0 0.0
      %2122 = vmatpush1.msra.mxu0 0.0
      %2123 = vmatprep.subr.mxu0 0.0
      %2124 = vmatpush1.msra.mxu0 0.0
      %2125 = vmatprep.subr.mxu0 0.0
      %2126 = vmatpush1.msra.mxu0 0.0
      %2127 = vmatprep.subr.mxu0 0.0
      %2128 = vmatpush1.msra.mxu0 0.0
      %2129 = vmatprep.subr.mxu0 0.0
      %2130 = vmatpush1.msra.mxu0 0.0
      %2131 = vmatprep.subr.mxu0 0.0
      %2132 = vmatpush1.msra.mxu0 0.0
      %2133 = vmatprep.subr.mxu0 0.0
      %2134 = vmatpush1.msra.mxu0 0.0
      %2135 = vmatprep.subr.mxu0 0.0
      %2136 = vmatpush1.msra.mxu0 0.0
      %2137 = vmatprep.subr.mxu0 0.0
      %2138 = vmatpush1.msra.mxu0 0.0
      %2139 = vmatprep.subr.mxu0 0.0
      %2140 = vmatpush1.msra.mxu0 0.0
      %2141 = vmatprep.subr.mxu0 0.0
      %2142 = vmatpush1.msra.mxu0 0.0
      %2143 = vmatprep.subr.mxu0 0.0
      %2144 = vmatpush1.msra.mxu0 0.0
      %2145 = vmatprep.mubr.f32.mxu0 0.0
      %2146 = vmatmul.mubr.f32.gmra.mrb[0].mxu0 %v2079
      %v2147 = vpop.f32.mrb[0].mxu0
      %v2148 = vadd.f32 0.0, %v2147
      %v2149 = vpop.f32.mrb[0].mxu0
      %2150 = vdwg.mxu0
      %v2151 = vadd.f32 %v2064, %v2148
      %v2152 = vld [vmem:[%s398 + $0x1] sm:$0x7f]
      %v2153 = vld [vmem:[%s577] sm:$0xff]
      %v2154 = vld [vmem:[%s577 + $0x8] sm:$0xff]
      %v2155 = vld [vmem:[%s577 + $0x10] sm:$0xff]
      %v2156 = vld [vmem:[%s577 + $0x18] sm:$0xff]
      %v2157 = vld [vmem:[%s577 + $0x20] sm:$0xff]
      %v2158 = vld [vmem:[%s577 + $0x28] sm:$0xff]
      %v2159 = vld [vmem:[%s577 + $0x30] sm:$0xff]
      %v2160 = vld [vmem:[%s577 + $0x38] sm:$0xff]
      %v2161 = vld [vmem:[%s577 + $0x40] sm:$0xff]
      %v2162 = vld [vmem:[%s577 + $0x48] sm:$0xff]
      %v2163 = vld [vmem:[%s577 + $0x50] sm:$0xff]
      %v2164 = vld [vmem:[%s577 + $0x58] sm:$0xff]
      %v2166 = vsel %vm251, %v2152, 0
      %2168 = vmatprep.subr.mxu0 0.0
      %2169 = vmatpush1.msra.mxu0 %v2153
      %2170 = vmatprep.subr.mxu0 0.0
      %2171 = vmatpush1.msra.mxu0 %v2154
      %2172 = vmatprep.subr.mxu0 0.0
      %2173 = vmatpush1.msra.mxu0 %v2155
      %2174 = vmatprep.subr.mxu0 0.0
      %2175 = vmatpush1.msra.mxu0 %v2156
      %2176 = vmatprep.subr.mxu0 0.0
      %2177 = vmatpush1.msra.mxu0 %v2157
      %2178 = vmatprep.subr.mxu0 0.0
      %2179 = vmatpush1.msra.mxu0 %v2158
      %2180 = vmatprep.subr.mxu0 0.0
      %2181 = vmatpush1.msra.mxu0 %v2159
      %2182 = vmatprep.subr.mxu0 0.0
      %2183 = vmatpush1.msra.mxu0 %v2160
      %2184 = vmatprep.subr.mxu0 0.0
      %2185 = vmatpush1.msra.mxu0 %v2161
      %2186 = vmatprep.subr.mxu0 0.0
      %2187 = vmatpush1.msra.mxu0 %v2162
      %2188 = vmatprep.subr.mxu0 0.0
      %2189 = vmatpush1.msra.mxu0 %v2163
      %2190 = vmatprep.subr.mxu0 0.0
      %2191 = vmatpush1.msra.mxu0 %v2164
      %2192 = vmatprep.subr.mxu0 0.0
      %2193 = vmatpush1.msra.mxu0 0.0
      %2194 = vmatprep.subr.mxu0 0.0
      %2195 = vmatpush1.msra.mxu0 0.0
      %2196 = vmatprep.subr.mxu0 0.0
      %2197 = vmatpush1.msra.mxu0 0.0
      %2198 = vmatprep.subr.mxu0 0.0
      %2199 = vmatpush1.msra.mxu0 0.0
      %2200 = vmatprep.subr.mxu0 0.0
      %2201 = vmatpush1.msra.mxu0 0.0
      %2202 = vmatprep.subr.mxu0 0.0
      %2203 = vmatpush1.msra.mxu0 0.0
      %2204 = vmatprep.subr.mxu0 0.0
      %2205 = vmatpush1.msra.mxu0 0.0
      %2206 = vmatprep.subr.mxu0 0.0
      %2207 = vmatpush1.msra.mxu0 0.0
      %2208 = vmatprep.subr.mxu0 0.0
      %2209 = vmatpush1.msra.mxu0 0.0
      %2210 = vmatprep.subr.mxu0 0.0
      %2211 = vmatpush1.msra.mxu0 0.0
      %2212 = vmatprep.subr.mxu0 0.0
      %2213 = vmatpush1.msra.mxu0 0.0
      %2214 = vmatprep.subr.mxu0 0.0
      %2215 = vmatpush1.msra.mxu0 0.0
      %2216 = vmatprep.subr.mxu0 0.0
      %2217 = vmatpush1.msra.mxu0 0.0
      %2218 = vmatprep.subr.mxu0 0.0
      %2219 = vmatpush1.msra.mxu0 0.0
      %2220 = vmatprep.subr.mxu0 0.0
      %2221 = vmatpush1.msra.mxu0 0.0
      %2222 = vmatprep.subr.mxu0 0.0
      %2223 = vmatpush1.msra.mxu0 0.0
      %2224 = vmatprep.subr.mxu0 0.0
      %2225 = vmatpush1.msra.mxu0 0.0
      %2226 = vmatprep.subr.mxu0 0.0
      %2227 = vmatpush1.msra.mxu0 0.0
      %2228 = vmatprep.subr.mxu0 0.0
      %2229 = vmatpush1.msra.mxu0 0.0
      %2230 = vmatprep.subr.mxu0 0.0
      %2231 = vmatpush1.msra.mxu0 0.0
      %2232 = vmatprep.mubr.f32.mxu0 0.0
      %2233 = vmatmul.mubr.f32.gmra.mrb[0].mxu0 %v2166
      %v2234 = vpop.f32.mrb[0].mxu0
      %v2235 = vadd.f32 0.0, %v2234
      %v2236 = vpop.f32.mrb[0].mxu0
      %2237 = vdwg.mxu0
      %v2238 = vadd.f32 %v2151, %v2235
      %v2239 = vld [vmem:[%s664] sm:$0xff]
      %v2240 = vld [vmem:[%s664 + $0x8] sm:$0xff]
      %v2241 = vld [vmem:[%s664 + $0x10] sm:$0xff]
      %v2242 = vld [vmem:[%s664 + $0x18] sm:$0xff]
      %v2243 = vld [vmem:[%s664 + $0x20] sm:$0xff]
      %v2244 = vld [vmem:[%s664 + $0x28] sm:$0xff]
      %v2245 = vld [vmem:[%s664 + $0x30] sm:$0xff]
      %v2246 = vld [vmem:[%s664 + $0x38] sm:$0xff]
      %v2247 = vld [vmem:[%s664 + $0x40] sm:$0xff]
      %v2248 = vld [vmem:[%s664 + $0x48] sm:$0xff]
      %v2249 = vld [vmem:[%s664 + $0x50] sm:$0xff]
      %v2250 = vld [vmem:[%s664 + $0x58] sm:$0xff]
      %v2251 = vld [vmem:[%s677] sm:$0xff]
      %v2252 = vld [vmem:[%s677 + $0x8] sm:$0xff]
      %v2253 = vld [vmem:[%s677 + $0x10] sm:$0xff]
      %v2254 = vld [vmem:[%s677 + $0x18] sm:$0xff]
      %v2255 = vld [vmem:[%s677 + $0x20] sm:$0xff]
      %v2256 = vld [vmem:[%s677 + $0x28] sm:$0xff]
      %v2257 = vld [vmem:[%s677 + $0x30] sm:$0xff]
      %v2258 = vld [vmem:[%s677 + $0x38] sm:$0xff]
      %v2259 = vld [vmem:[%s677 + $0x40] sm:$0xff]
      %v2260 = vld [vmem:[%s677 + $0x48] sm:$0xff]
      %v2261 = vld [vmem:[%s677 + $0x50] sm:$0xff]
      %v2262 = vld [vmem:[%s677 + $0x58] sm:$0xff]
      %2263 = vmatprep.subr.mxu0 0.0
      %2264 = vmatpush1.msra.mxu0 %v2251
      %2265 = vmatprep.subr.mxu0 0.0
      %2266 = vmatpush1.msra.mxu0 %v2252
      %2267 = vmatprep.subr.mxu0 0.0
      %2268 = vmatpush1.msra.mxu0 %v2253
      %2269 = vmatprep.subr.mxu0 0.0
      %2270 = vmatpush1.msra.mxu0 %v2254
      %2271 = vmatprep.subr.mxu0 0.0
      %2272 = vmatpush1.msra.mxu0 %v2255
      %2273 = vmatprep.subr.mxu0 0.0
      %2274 = vmatpush1.msra.mxu0 %v2256
      %2275 = vmatprep.subr.mxu0 0.0
      %2276 = vmatpush1.msra.mxu0 %v2257
      %2277 = vmatprep.subr.mxu0 0.0
      %2278 = vmatpush1.msra.mxu0 %v2258
      %2279 = vmatprep.subr.mxu0 0.0
      %2280 = vmatpush1.msra.mxu0 %v2259
      %2281 = vmatprep.subr.mxu0 0.0
      %2282 = vmatpush1.msra.mxu0 %v2260
      %2283 = vmatprep.subr.mxu0 0.0
      %2284 = vmatpush1.msra.mxu0 %v2261
      %2285 = vmatprep.subr.mxu0 0.0
      %2286 = vmatpush1.msra.mxu0 %v2262
      %2287 = vmatprep.subr.mxu0 0.0
      %2288 = vmatpush1.msra.mxu0 0.0
      %2289 = vmatprep.subr.mxu0 0.0
      %2290 = vmatpush1.msra.mxu0 0.0
      %2291 = vmatprep.subr.mxu0 0.0
      %2292 = vmatpush1.msra.mxu0 0.0
      %2293 = vmatprep.subr.mxu0 0.0
      %2294 = vmatpush1.msra.mxu0 0.0
      %2295 = vmatprep.subr.mxu0 0.0
      %2296 = vmatpush1.msra.mxu0 0.0
      %2297 = vmatprep.subr.mxu0 0.0
      %2298 = vmatpush1.msra.mxu0 0.0
      %2299 = vmatprep.subr.mxu0 0.0
      %2300 = vmatpush1.msra.mxu0 0.0
      %2301 = vmatprep.subr.mxu0 0.0
      %2302 = vmatpush1.msra.mxu0 0.0
      %2303 = vmatprep.subr.mxu0 0.0
      %2304 = vmatpush1.msra.mxu0 0.0
      %2305 = vmatprep.subr.mxu0 0.0
      %2306 = vmatpush1.msra.mxu0 0.0
      %2307 = vmatprep.subr.mxu0 0.0
      %2308 = vmatpush1.msra.mxu0 0.0
      %2309 = vmatprep.subr.mxu0 0.0
      %2310 = vmatpush1.msra.mxu0 0.0
      %2311 = vmatprep.subr.mxu0 0.0
      %2312 = vmatpush1.msra.mxu0 0.0
      %2313 = vmatprep.subr.mxu0 0.0
      %2314 = vmatpush1.msra.mxu0 0.0
      %2315 = vmatprep.subr.mxu0 0.0
      %2316 = vmatpush1.msra.mxu0 0.0
      %2317 = vmatprep.subr.mxu0 0.0
      %2318 = vmatpush1.msra.mxu0 0.0
      %2319 = vmatprep.subr.mxu0 0.0
      %2320 = vmatpush1.msra.mxu0 0.0
      %2321 = vmatprep.subr.mxu0 0.0
      %2322 = vmatpush1.msra.mxu0 0.0
      %2323 = vmatprep.subr.mxu0 0.0
      %2324 = vmatpush1.msra.mxu0 0.0
      %2325 = vmatprep.subr.mxu0 0.0
      %2326 = vmatpush1.msra.mxu0 0.0
      %2327 = vmatprep.mubr.f32.mxu0 0.0
      %2328 = vmatmul.mubr.f32.gmra.mrb[0].mxu0 %v1833
      %v2329 = vpop.f32.mrb[0].mxu0
      %v2330 = vadd.f32 0.0, %v2329
      %v2331 = vpop.f32.mrb[0].mxu0
      %2332 = vdwg.mxu0
      %2333 = vmatprep.subr.mxu0 0.0
      %2334 = vmatpush1.msra.mxu0 %v2239
      %2335 = vmatprep.subr.mxu0 0.0
      %2336 = vmatpush1.msra.mxu0 %v2240
      %2337 = vmatprep.subr.mxu0 0.0
      %2338 = vmatpush1.msra.mxu0 %v2241
      %2339 = vmatprep.subr.mxu0 0.0
      %2340 = vmatpush1.msra.mxu0 %v2242
      %2341 = vmatprep.subr.mxu0 0.0
      %2342 = vmatpush1.msra.mxu0 %v2243
      %2343 = vmatprep.subr.mxu0 0.0
      %2344 = vmatpush1.msra.mxu0 %v2244
      %2345 = vmatprep.subr.mxu0 0.0
      %2346 = vmatpush1.msra.mxu0 %v2245
      %2347 = vmatprep.subr.mxu0 0.0
      %2348 = vmatpush1.msra.mxu0 %v2246
      %2349 = vmatprep.subr.mxu0 0.0
      %2350 = vmatpush1.msra.mxu0 %v2247
      %2351 = vmatprep.subr.mxu0 0.0
      %2352 = vmatpush1.msra.mxu0 %v2248
      %2353 = vmatprep.subr.mxu0 0.0
      %2354 = vmatpush1.msra.mxu0 %v2249
      %2355 = vmatprep.subr.mxu0 0.0
      %2356 = vmatpush1.msra.mxu0 %v2250
      %2357 = vmatprep.subr.mxu0 0.0
      %2358 = vmatpush1.msra.mxu0 0.0
      %2359 = vmatprep.subr.mxu0 0.0
      %2360 = vmatpush1.msra.mxu0 0.0
      %2361 = vmatprep.subr.mxu0 0.0
      %2362 = vmatpush1.msra.mxu0 0.0
      %2363 = vmatprep.subr.mxu0 0.0
      %2364 = vmatpush1.msra.mxu0 0.0
      %2365 = vmatprep.subr.mxu0 0.0
      %2366 = vmatpush1.msra.mxu0 0.0
      %2367 = vmatprep.subr.mxu0 0.0
      %2368 = vmatpush1.msra.mxu0 0.0
      %2369 = vmatprep.subr.mxu0 0.0
      %2370 = vmatpush1.msra.mxu0 0.0
      %2371 = vmatprep.subr.mxu0 0.0
      %2372 = vmatpush1.msra.mxu0 0.0
      %2373 = vmatprep.subr.mxu0 0.0
      %2374 = vmatpush1.msra.mxu0 0.0
      %2375 = vmatprep.subr.mxu0 0.0
      %2376 = vmatpush1.msra.mxu0 0.0
      %2377 = vmatprep.subr.mxu0 0.0
      %2378 = vmatpush1.msra.mxu0 0.0
      %2379 = vmatprep.subr.mxu0 0.0
      %2380 = vmatpush1.msra.mxu0 0.0
      %2381 = vmatprep.subr.mxu0 0.0
      %2382 = vmatpush1.msra.mxu0 0.0
      %2383 = vmatprep.subr.mxu0 0.0
      %2384 = vmatpush1.msra.mxu0 0.0
      %2385 = vmatprep.subr.mxu0 0.0
      %2386 = vmatpush1.msra.mxu0 0.0
      %2387 = vmatprep.subr.mxu0 0.0
      %2388 = vmatpush1.msra.mxu0 0.0
      %2389 = vmatprep.subr.mxu0 0.0
      %2390 = vmatpush1.msra.mxu0 0.0
      %2391 = vmatprep.subr.mxu0 0.0
      %2392 = vmatpush1.msra.mxu0 0.0
      %2393 = vmatprep.subr.mxu0 0.0
      %2394 = vmatpush1.msra.mxu0 0.0
      %2395 = vmatprep.subr.mxu0 0.0
      %2396 = vmatpush1.msra.mxu0 0.0
      %2397 = vmatprep.mubr.f32.mxu0 0.0
      %2398 = vmatmul.mubr.f32.gmra.mrb[0].mxu0 %v1906
      %v2399 = vpop.f32.mrb[0].mxu0
      %v2400 = vadd.f32 %v2330, %v2399
      %v2401 = vpop.f32.mrb[0].mxu0
      %2402 = vdwg.mxu0
      %v2403 = vld [vmem:[%s830] sm:$0xff]
      %v2404 = vld [vmem:[%s830 + $0x8] sm:$0xff]
      %v2405 = vld [vmem:[%s830 + $0x10] sm:$0xff]
      %v2406 = vld [vmem:[%s830 + $0x18] sm:$0xff]
      %v2407 = vld [vmem:[%s830 + $0x20] sm:$0xff]
      %v2408 = vld [vmem:[%s830 + $0x28] sm:$0xff]
      %v2409 = vld [vmem:[%s830 + $0x30] sm:$0xff]
      %v2410 = vld [vmem:[%s830 + $0x38] sm:$0xff]
      %v2411 = vld [vmem:[%s830 + $0x40] sm:$0xff]
      %v2412 = vld [vmem:[%s830 + $0x48] sm:$0xff]
      %v2413 = vld [vmem:[%s830 + $0x50] sm:$0xff]
      %v2414 = vld [vmem:[%s830 + $0x58] sm:$0xff]
      %2415 = vmatprep.subr.mxu0 0.0
      %2416 = vmatpush1.msra.mxu0 %v2403
      %2417 = vmatprep.subr.mxu0 0.0
      %2418 = vmatpush1.msra.mxu0 %v2404
      %2419 = vmatprep.subr.mxu0 0.0
      %2420 = vmatpush1.msra.mxu0 %v2405
      %2421 = vmatprep.subr.mxu0 0.0
      %2422 = vmatpush1.msra.mxu0 %v2406
      %2423 = vmatprep.subr.mxu0 0.0
      %2424 = vmatpush1.msra.mxu0 %v2407
      %2425 = vmatprep.subr.mxu0 0.0
      %2426 = vmatpush1.msra.mxu0 %v2408
      %2427 = vmatprep.subr.mxu0 0.0
      %2428 = vmatpush1.msra.mxu0 %v2409
      %2429 = vmatprep.subr.mxu0 0.0
      %2430 = vmatpush1.msra.mxu0 %v2410
      %2431 = vmatprep.subr.mxu0 0.0
      %2432 = vmatpush1.msra.mxu0 %v2411
      %2433 = vmatprep.subr.mxu0 0.0
      %2434 = vmatpush1.msra.mxu0 %v2412
      %2435 = vmatprep.subr.mxu0 0.0
      %2436 = vmatpush1.msra.mxu0 %v2413
      %2437 = vmatprep.subr.mxu0 0.0
      %2438 = vmatpush1.msra.mxu0 %v2414
      %2439 = vmatprep.subr.mxu0 0.0
      %2440 = vmatpush1.msra.mxu0 0.0
      %2441 = vmatprep.subr.mxu0 0.0
      %2442 = vmatpush1.msra.mxu0 0.0
      %2443 = vmatprep.subr.mxu0 0.0
      %2444 = vmatpush1.msra.mxu0 0.0
      %2445 = vmatprep.subr.mxu0 0.0
      %2446 = vmatpush1.msra.mxu0 0.0
      %2447 = vmatprep.subr.mxu0 0.0
      %2448 = vmatpush1.msra.mxu0 0.0
      %2449 = vmatprep.subr.mxu0 0.0
      %2450 = vmatpush1.msra.mxu0 0.0
      %2451 = vmatprep.subr.mxu0 0.0
      %2452 = vmatpush1.msra.mxu0 0.0
      %2453 = vmatprep.subr.mxu0 0.0
      %2454 = vmatpush1.msra.mxu0 0.0
      %2455 = vmatprep.subr.mxu0 0.0
      %2456 = vmatpush1.msra.mxu0 0.0
      %2457 = vmatprep.subr.mxu0 0.0
      %2458 = vmatpush1.msra.mxu0 0.0
      %2459 = vmatprep.subr.mxu0 0.0
      %2460 = vmatpush1.msra.mxu0 0.0
      %2461 = vmatprep.subr.mxu0 0.0
      %2462 = vmatpush1.msra.mxu0 0.0
      %2463 = vmatprep.subr.mxu0 0.0
      %2464 = vmatpush1.msra.mxu0 0.0
      %2465 = vmatprep.subr.mxu0 0.0
      %2466 = vmatpush1.msra.mxu0 0.0
      %2467 = vmatprep.subr.mxu0 0.0
      %2468 = vmatpush1.msra.mxu0 0.0
      %2469 = vmatprep.subr.mxu0 0.0
      %2470 = vmatpush1.msra.mxu0 0.0
      %2471 = vmatprep.subr.mxu0 0.0
      %2472 = vmatpush1.msra.mxu0 0.0
      %2473 = vmatprep.subr.mxu0 0.0
      %2474 = vmatpush1.msra.mxu0 0.0
      %2475 = vmatprep.subr.mxu0 0.0
      %2476 = vmatpush1.msra.mxu0 0.0
      %2477 = vmatprep.subr.mxu0 0.0
      %2478 = vmatpush1.msra.mxu0 0.0
      %2479 = vmatprep.mubr.f32.mxu0 0.0
      %2480 = vmatmul.mubr.f32.gmra.mrb[0].mxu0 %v1992
      %v2481 = vpop.f32.mrb[0].mxu0
      %v2482 = vadd.f32 0.0, %v2481
      %v2483 = vpop.f32.mrb[0].mxu0
      %2484 = vdwg.mxu0
      %v2485 = vadd.f32 %v2400, %v2482
      %v2486 = vld [vmem:[%s914] sm:$0xff]
      %v2487 = vld [vmem:[%s914 + $0x8] sm:$0xff]
      %v2488 = vld [vmem:[%s914 + $0x10] sm:$0xff]
      %v2489 = vld [vmem:[%s914 + $0x18] sm:$0xff]
      %v2490 = vld [vmem:[%s914 + $0x20] sm:$0xff]
      %v2491 = vld [vmem:[%s914 + $0x28] sm:$0xff]
      %v2492 = vld [vmem:[%s914 + $0x30] sm:$0xff]
      %v2493 = vld [vmem:[%s914 + $0x38] sm:$0xff]
      %v2494 = vld [vmem:[%s914 + $0x40] sm:$0xff]
      %v2495 = vld [vmem:[%s914 + $0x48] sm:$0xff]
      %v2496 = vld [vmem:[%s914 + $0x50] sm:$0xff]
      %v2497 = vld [vmem:[%s914 + $0x58] sm:$0xff]
      %2498 = vmatprep.subr.mxu0 0.0
      %2499 = vmatpush1.msra.mxu0 %v2486
      %2500 = vmatprep.subr.mxu0 0.0
      %2501 = vmatpush1.msra.mxu0 %v2487
      %2502 = vmatprep.subr.mxu0 0.0
      %2503 = vmatpush1.msra.mxu0 %v2488
      %2504 = vmatprep.subr.mxu0 0.0
      %2505 = vmatpush1.msra.mxu0 %v2489
      %2506 = vmatprep.subr.mxu0 0.0
      %2507 = vmatpush1.msra.mxu0 %v2490
      %2508 = vmatprep.subr.mxu0 0.0
      %2509 = vmatpush1.msra.mxu0 %v2491
      %2510 = vmatprep.subr.mxu0 0.0
      %2511 = vmatpush1.msra.mxu0 %v2492
      %2512 = vmatprep.subr.mxu0 0.0
      %2513 = vmatpush1.msra.mxu0 %v2493
      %2514 = vmatprep.subr.mxu0 0.0
      %2515 = vmatpush1.msra.mxu0 %v2494
      %2516 = vmatprep.subr.mxu0 0.0
      %2517 = vmatpush1.msra.mxu0 %v2495
      %2518 = vmatprep.subr.mxu0 0.0
      %2519 = vmatpush1.msra.mxu0 %v2496
      %2520 = vmatprep.subr.mxu0 0.0
      %2521 = vmatpush1.msra.mxu0 %v2497
      %2522 = vmatprep.subr.mxu0 0.0
      %2523 = vmatpush1.msra.mxu0 0.0
      %2524 = vmatprep.subr.mxu0 0.0
      %2525 = vmatpush1.msra.mxu0 0.0
      %2526 = vmatprep.subr.mxu0 0.0
      %2527 = vmatpush1.msra.mxu0 0.0
      %2528 = vmatprep.subr.mxu0 0.0
      %2529 = vmatpush1.msra.mxu0 0.0
      %2530 = vmatprep.subr.mxu0 0.0
      %2531 = vmatpush1.msra.mxu0 0.0
      %2532 = vmatprep.subr.mxu0 0.0
      %2533 = vmatpush1.msra.mxu0 0.0
      %2534 = vmatprep.subr.mxu0 0.0
      %2535 = vmatpush1.msra.mxu0 0.0
      %2536 = vmatprep.subr.mxu0 0.0
      %2537 = vmatpush1.msra.mxu0 0.0
      %2538 = vmatprep.subr.mxu0 0.0
      %2539 = vmatpush1.msra.mxu0 0.0
      %2540 = vmatprep.subr.mxu0 0.0
      %2541 = vmatpush1.msra.mxu0 0.0
      %2542 = vmatprep.subr.mxu0 0.0
      %2543 = vmatpush1.msra.mxu0 0.0
      %2544 = vmatprep.subr.mxu0 0.0
      %2545 = vmatpush1.msra.mxu0 0.0
      %2546 = vmatprep.subr.mxu0 0.0
      %2547 = vmatpush1.msra.mxu0 0.0
      %2548 = vmatprep.subr.mxu0 0.0
      %2549 = vmatpush1.msra.mxu0 0.0
      %2550 = vmatprep.subr.mxu0 0.0
      %2551 = vmatpush1.msra.mxu0 0.0
      %2552 = vmatprep.subr.mxu0 0.0
      %2553 = vmatpush1.msra.mxu0 0.0
      %2554 = vmatprep.subr.mxu0 0.0
      %2555 = vmatpush1.msra.mxu0 0.0
      %2556 = vmatprep.subr.mxu0 0.0
      %2557 = vmatpush1.msra.mxu0 0.0
      %2558 = vmatprep.subr.mxu0 0.0
      %2559 = vmatpush1.msra.mxu0 0.0
      %2560 = vmatprep.subr.mxu0 0.0
      %2561 = vmatpush1.msra.mxu0 0.0
      %2562 = vmatprep.mubr.f32.mxu0 0.0
      %2563 = vmatmul.mubr.f32.gmra.mrb[0].mxu0 %v2079
      %v2564 = vpop.f32.mrb[0].mxu0
      %v2565 = vadd.f32 0.0, %v2564
      %v2566 = vpop.f32.mrb[0].mxu0
      %2567 = vdwg.mxu0
      %v2568 = vadd.f32 %v2485, %v2565
      %v2569 = vld [vmem:[%s998] sm:$0xff]
      %v2570 = vld [vmem:[%s998 + $0x8] sm:$0xff]
      %v2571 = vld [vmem:[%s998 + $0x10] sm:$0xff]
      %v2572 = vld [vmem:[%s998 + $0x18] sm:$0xff]
      %v2573 = vld [vmem:[%s998 + $0x20] sm:$0xff]
      %v2574 = vld [vmem:[%s998 + $0x28] sm:$0xff]
      %v2575 = vld [vmem:[%s998 + $0x30] sm:$0xff]
      %v2576 = vld [vmem:[%s998 + $0x38] sm:$0xff]
      %v2577 = vld [vmem:[%s998 + $0x40] sm:$0xff]
      %v2578 = vld [vmem:[%s998 + $0x48] sm:$0xff]
      %v2579 = vld [vmem:[%s998 + $0x50] sm:$0xff]
      %v2580 = vld [vmem:[%s998 + $0x58] sm:$0xff]
      %2581 = vmatprep.subr.mxu0 0.0
      %2582 = vmatpush1.msra.mxu0 %v2569
      %2583 = vmatprep.subr.mxu0 0.0
      %2584 = vmatpush1.msra.mxu0 %v2570
      %2585 = vmatprep.subr.mxu0 0.0
      %2586 = vmatpush1.msra.mxu0 %v2571
      %2587 = vmatprep.subr.mxu0 0.0
      %2588 = vmatpush1.msra.mxu0 %v2572
      %2589 = vmatprep.subr.mxu0 0.0
      %2590 = vmatpush1.msra.mxu0 %v2573
      %2591 = vmatprep.subr.mxu0 0.0
      %2592 = vmatpush1.msra.mxu0 %v2574
      %2593 = vmatprep.subr.mxu0 0.0
      %2594 = vmatpush1.msra.mxu0 %v2575
      %2595 = vmatprep.subr.mxu0 0.0
      %2596 = vmatpush1.msra.mxu0 %v2576
      %2597 = vmatprep.subr.mxu0 0.0
      %2598 = vmatpush1.msra.mxu0 %v2577
      %2599 = vmatprep.subr.mxu0 0.0
      %2600 = vmatpush1.msra.mxu0 %v2578
      %2601 = vmatprep.subr.mxu0 0.0
      %2602 = vmatpush1.msra.mxu0 %v2579
      %2603 = vmatprep.subr.mxu0 0.0
      %2604 = vmatpush1.msra.mxu0 %v2580
      %2605 = vmatprep.subr.mxu0 0.0
      %2606 = vmatpush1.msra.mxu0 0.0
      %2607 = vmatprep.subr.mxu0 0.0
      %2608 = vmatpush1.msra.mxu0 0.0
      %2609 = vmatprep.subr.mxu0 0.0
      %2610 = vmatpush1.msra.mxu0 0.0
      %2611 = vmatprep.subr.mxu0 0.0
      %2612 = vmatpush1.msra.mxu0 0.0
      %2613 = vmatprep.subr.mxu0 0.0
      %2614 = vmatpush1.msra.mxu0 0.0
      %2615 = vmatprep.subr.mxu0 0.0
      %2616 = vmatpush1.msra.mxu0 0.0
      %2617 = vmatprep.subr.mxu0 0.0
      %2618 = vmatpush1.msra.mxu0 0.0
      %2619 = vmatprep.subr.mxu0 0.0
      %2620 = vmatpush1.msra.mxu0 0.0
      %2621 = vmatprep.subr.mxu0 0.0
      %2622 = vmatpush1.msra.mxu0 0.0
      %2623 = vmatprep.subr.mxu0 0.0
      %2624 = vmatpush1.msra.mxu0 0.0
      %2625 = vmatprep.subr.mxu0 0.0
      %2626 = vmatpush1.msra.mxu0 0.0
      %2627 = vmatprep.subr.mxu0 0.0
      %2628 = vmatpush1.msra.mxu0 0.0
      %2629 = vmatprep.subr.mxu0 0.0
      %2630 = vmatpush1.msra.mxu0 0.0
      %2631 = vmatprep.subr.mxu0 0.0
      %2632 = vmatpush1.msra.mxu0 0.0
      %2633 = vmatprep.subr.mxu0 0.0
      %2634 = vmatpush1.msra.mxu0 0.0
      %2635 = vmatprep.subr.mxu0 0.0
      %2636 = vmatpush1.msra.mxu0 0.0
      %2637 = vmatprep.subr.mxu0 0.0
      %2638 = vmatpush1.msra.mxu0 0.0
      %2639 = vmatprep.subr.mxu0 0.0
      %2640 = vmatpush1.msra.mxu0 0.0
      %2641 = vmatprep.subr.mxu0 0.0
      %2642 = vmatpush1.msra.mxu0 0.0
      %2643 = vmatprep.subr.mxu0 0.0
      %2644 = vmatpush1.msra.mxu0 0.0
      %2645 = vmatprep.mubr.f32.mxu0 0.0
      %2646 = vmatmul.mubr.f32.gmra.mrb[0].mxu0 %v2166
      %v2647 = vpop.f32.mrb[0].mxu0
      %v2648 = vadd.f32 0.0, %v2647
      %v2649 = vpop.f32.mrb[0].mxu0
      %2650 = vdwg.mxu0
      %v2651 = vadd.f32 %v2568, %v2648
      %v2652 = vmax.f32 %v2238, %v2651
      %2653 = vmatprep.subr.mxu0 0.0
      %2654 = vmatpush1.msra.mxu0 %v1820
      %2655 = vmatprep.subr.mxu0 0.0
      %2656 = vmatpush1.msra.mxu0 %v1821
      %2657 = vmatprep.subr.mxu0 0.0
      %2658 = vmatpush1.msra.mxu0 %v1822
      %2659 = vmatprep.subr.mxu0 0.0
      %2660 = vmatpush1.msra.mxu0 %v1823
      %2661 = vmatprep.subr.mxu0 0.0
      %2662 = vmatpush1.msra.mxu0 %v1824
      %2663 = vmatprep.subr.mxu0 0.0
      %2664 = vmatpush1.msra.mxu0 %v1825
      %2665 = vmatprep.subr.mxu0 0.0
      %2666 = vmatpush1.msra.mxu0 %v1826
      %2667 = vmatprep.subr.mxu0 0.0
      %2668 = vmatpush1.msra.mxu0 %v1827
      %2669 = vmatprep.subr.mxu0 0.0
      %2670 = vmatpush1.msra.mxu0 %v1828
      %2671 = vmatprep.subr.mxu0 0.0
      %2672 = vmatpush1.msra.mxu0 %v1829
      %2673 = vmatprep.subr.mxu0 0.0
      %2674 = vmatpush1.msra.mxu0 %v1830
      %2675 = vmatprep.subr.mxu0 0.0
      %2676 = vmatpush1.msra.mxu0 %v1831
      %2677 = vmatprep.subr.mxu0 0.0
      %2678 = vmatpush1.msra.mxu0 0.0
      %2679 = vmatprep.subr.mxu0 0.0
      %2680 = vmatpush1.msra.mxu0 0.0
      %2681 = vmatprep.subr.mxu0 0.0
      %2682 = vmatpush1.msra.mxu0 0.0
      %2683 = vmatprep.subr.mxu0 0.0
      %2684 = vmatpush1.msra.mxu0 0.0
      %2685 = vmatprep.subr.mxu0 0.0
      %2686 = vmatpush1.msra.mxu0 0.0
      %2687 = vmatprep.subr.mxu0 0.0
      %2688 = vmatpush1.msra.mxu0 0.0
      %2689 = vmatprep.subr.mxu0 0.0
      %2690 = vmatpush1.msra.mxu0 0.0
      %2691 = vmatprep.subr.mxu0 0.0
      %2692 = vmatpush1.msra.mxu0 0.0
      %2693 = vmatprep.subr.mxu0 0.0
      %2694 = vmatpush1.msra.mxu0 0.0
      %2695 = vmatprep.subr.mxu0 0.0
      %2696 = vmatpush1.msra.mxu0 0.0
      %2697 = vmatprep.subr.mxu0 0.0
      %2698 = vmatpush1.msra.mxu0 0.0
      %2699 = vmatprep.subr.mxu0 0.0
      %2700 = vmatpush1.msra.mxu0 0.0
      %2701 = vmatprep.subr.mxu0 0.0
      %2702 = vmatpush1.msra.mxu0 0.0
      %2703 = vmatprep.subr.mxu0 0.0
      %2704 = vmatpush1.msra.mxu0 0.0
      %2705 = vmatprep.subr.mxu0 0.0
      %2706 = vmatpush1.msra.mxu0 0.0
      %2707 = vmatprep.subr.mxu0 0.0
      %2708 = vmatpush1.msra.mxu0 0.0
      %2709 = vmatprep.subr.mxu0 0.0
      %2710 = vmatpush1.msra.mxu0 0.0
      %2711 = vmatprep.subr.mxu0 0.0
      %2712 = vmatpush1.msra.mxu0 0.0
      %2713 = vmatprep.subr.mxu0 0.0
      %2714 = vmatpush1.msra.mxu0 0.0
      %2715 = vmatprep.subr.mxu0 0.0
      %2716 = vmatpush1.msra.mxu0 0.0
      %2717 = vmatprep.mubr.f32.mxu0 0.0
      %2718 = vmatmul.mubr.f32.gmra.mrb[0].mxu0 %v1992
      %v2719 = vpop.f32.mrb[0].mxu0
      %v2720 = vadd.f32 0.0, %v2719
      %v2721 = vpop.f32.mrb[0].mxu0
      %2722 = vdwg.mxu0
      %2723 = vmatprep.subr.mxu0 0.0
      %2724 = vmatpush1.msra.mxu0 %v1807
      %2725 = vmatprep.subr.mxu0 0.0
      %2726 = vmatpush1.msra.mxu0 %v1808
      %2727 = vmatprep.subr.mxu0 0.0
      %2728 = vmatpush1.msra.mxu0 %v1809
      %2729 = vmatprep.subr.mxu0 0.0
      %2730 = vmatpush1.msra.mxu0 %v1810
      %2731 = vmatprep.subr.mxu0 0.0
      %2732 = vmatpush1.msra.mxu0 %v1811
      %2733 = vmatprep.subr.mxu0 0.0
      %2734 = vmatpush1.msra.mxu0 %v1812
      %2735 = vmatprep.subr.mxu0 0.0
      %2736 = vmatpush1.msra.mxu0 %v1813
      %2737 = vmatprep.subr.mxu0 0.0
      %2738 = vmatpush1.msra.mxu0 %v1814
      %2739 = vmatprep.subr.mxu0 0.0
      %2740 = vmatpush1.msra.mxu0 %v1815
      %2741 = vmatprep.subr.mxu0 0.0
      %2742 = vmatpush1.msra.mxu0 %v1816
      %2743 = vmatprep.subr.mxu0 0.0
      %2744 = vmatpush1.msra.mxu0 %v1817
      %2745 = vmatprep.subr.mxu0 0.0
      %2746 = vmatpush1.msra.mxu0 %v1818
      %2747 = vmatprep.subr.mxu0 0.0
      %2748 = vmatpush1.msra.mxu0 0.0
      %2749 = vmatprep.subr.mxu0 0.0
      %2750 = vmatpush1.msra.mxu0 0.0
      %2751 = vmatprep.subr.mxu0 0.0
      %2752 = vmatpush1.msra.mxu0 0.0
      %2753 = vmatprep.subr.mxu0 0.0
      %2754 = vmatpush1.msra.mxu0 0.0
      %2755 = vmatprep.subr.mxu0 0.0
      %2756 = vmatpush1.msra.mxu0 0.0
      %2757 = vmatprep.subr.mxu0 0.0
      %2758 = vmatpush1.msra.mxu0 0.0
      %2759 = vmatprep.subr.mxu0 0.0
      %2760 = vmatpush1.msra.mxu0 0.0
      %2761 = vmatprep.subr.mxu0 0.0
      %2762 = vmatpush1.msra.mxu0 0.0
      %2763 = vmatprep.subr.mxu0 0.0
      %2764 = vmatpush1.msra.mxu0 0.0
      %2765 = vmatprep.subr.mxu0 0.0
      %2766 = vmatpush1.msra.mxu0 0.0
      %2767 = vmatprep.subr.mxu0 0.0
      %2768 = vmatpush1.msra.mxu0 0.0
      %2769 = vmatprep.subr.mxu0 0.0
      %2770 = vmatpush1.msra.mxu0 0.0
      %2771 = vmatprep.subr.mxu0 0.0
      %2772 = vmatpush1.msra.mxu0 0.0
      %2773 = vmatprep.subr.mxu0 0.0
      %2774 = vmatpush1.msra.mxu0 0.0
      %2775 = vmatprep.subr.mxu0 0.0
      %2776 = vmatpush1.msra.mxu0 0.0
      %2777 = vmatprep.subr.mxu0 0.0
      %2778 = vmatpush1.msra.mxu0 0.0
      %2779 = vmatprep.subr.mxu0 0.0
      %2780 = vmatpush1.msra.mxu0 0.0
      %2781 = vmatprep.subr.mxu0 0.0
      %2782 = vmatpush1.msra.mxu0 0.0
      %2783 = vmatprep.subr.mxu0 0.0
      %2784 = vmatpush1.msra.mxu0 0.0
      %2785 = vmatprep.subr.mxu0 0.0
      %2786 = vmatpush1.msra.mxu0 0.0
      %2787 = vmatprep.mubr.f32.mxu0 0.0
      %2788 = vmatmul.mubr.f32.gmra.mrb[0].mxu0 %v1833
      %v2789 = vpop.f32.mrb[0].mxu0
      %v2790 = vadd.f32 %v2720, %v2789
      %v2791 = vpop.f32.mrb[0].mxu0
      %2792 = vdwg.mxu0
      %2793 = vmatprep.subr.mxu0 0.0
      %2794 = vmatpush1.msra.mxu0 %v1979
      %2795 = vmatprep.subr.mxu0 0.0
      %2796 = vmatpush1.msra.mxu0 %v1980
      %2797 = vmatprep.subr.mxu0 0.0
      %2798 = vmatpush1.msra.mxu0 %v1981
      %2799 = vmatprep.subr.mxu0 0.0
      %2800 = vmatpush1.msra.mxu0 %v1982
      %2801 = vmatprep.subr.mxu0 0.0
      %2802 = vmatpush1.msra.mxu0 %v1983
      %2803 = vmatprep.subr.mxu0 0.0
      %2804 = vmatpush1.msra.mxu0 %v1984
      %2805 = vmatprep.subr.mxu0 0.0
      %2806 = vmatpush1.msra.mxu0 %v1985
      %2807 = vmatprep.subr.mxu0 0.0
      %2808 = vmatpush1.msra.mxu0 %v1986
      %2809 = vmatprep.subr.mxu0 0.0
      %2810 = vmatpush1.msra.mxu0 %v1987
      %2811 = vmatprep.subr.mxu0 0.0
      %2812 = vmatpush1.msra.mxu0 %v1988
      %2813 = vmatprep.subr.mxu0 0.0
      %2814 = vmatpush1.msra.mxu0 %v1989
      %2815 = vmatprep.subr.mxu0 0.0
      %2816 = vmatpush1.msra.mxu0 %v1990
      %2817 = vmatprep.subr.mxu0 0.0
      %2818 = vmatpush1.msra.mxu0 0.0
      %2819 = vmatprep.subr.mxu0 0.0
      %2820 = vmatpush1.msra.mxu0 0.0
      %2821 = vmatprep.subr.mxu0 0.0
      %2822 = vmatpush1.msra.mxu0 0.0
      %2823 = vmatprep.subr.mxu0 0.0
      %2824 = vmatpush1.msra.mxu0 0.0
      %2825 = vmatprep.subr.mxu0 0.0
      %2826 = vmatpush1.msra.mxu0 0.0
      %2827 = vmatprep.subr.mxu0 0.0
      %2828 = vmatpush1.msra.mxu0 0.0
      %2829 = vmatprep.subr.mxu0 0.0
      %2830 = vmatpush1.msra.mxu0 0.0
      %2831 = vmatprep.subr.mxu0 0.0
      %2832 = vmatpush1.msra.mxu0 0.0
      %2833 = vmatprep.subr.mxu0 0.0
      %2834 = vmatpush1.msra.mxu0 0.0
      %2835 = vmatprep.subr.mxu0 0.0
      %2836 = vmatpush1.msra.mxu0 0.0
      %2837 = vmatprep.subr.mxu0 0.0
      %2838 = vmatpush1.msra.mxu0 0.0
      %2839 = vmatprep.subr.mxu0 0.0
      %2840 = vmatpush1.msra.mxu0 0.0
      %2841 = vmatprep.subr.mxu0 0.0
      %2842 = vmatpush1.msra.mxu0 0.0
      %2843 = vmatprep.subr.mxu0 0.0
      %2844 = vmatpush1.msra.mxu0 0.0
      %2845 = vmatprep.subr.mxu0 0.0
      %2846 = vmatpush1.msra.mxu0 0.0
      %2847 = vmatprep.subr.mxu0 0.0
      %2848 = vmatpush1.msra.mxu0 0.0
      %2849 = vmatprep.subr.mxu0 0.0
      %2850 = vmatpush1.msra.mxu0 0.0
      %2851 = vmatprep.subr.mxu0 0.0
      %2852 = vmatpush1.msra.mxu0 0.0
      %2853 = vmatprep.subr.mxu0 0.0
      %2854 = vmatpush1.msra.mxu0 0.0
      %2855 = vmatprep.subr.mxu0 0.0
      %2856 = vmatpush1.msra.mxu0 0.0
      %2857 = vmatprep.mubr.f32.mxu0 0.0
      %2858 = vmatmul.mubr.f32.gmra.mrb[0].mxu0 %v2079
      %v2859 = vpop.f32.mrb[0].mxu0
      %v2860 = vadd.f32 0.0, %v2859
      %v2861 = vpop.f32.mrb[0].mxu0
      %2862 = vdwg.mxu0
      %v2863 = vadd.f32 %v2790, %v2860
      %2864 = vmatprep.subr.mxu0 0.0
      %2865 = vmatpush1.msra.mxu0 %v2066
      %2866 = vmatprep.subr.mxu0 0.0
      %2867 = vmatpush1.msra.mxu0 %v2067
      %2868 = vmatprep.subr.mxu0 0.0
      %2869 = vmatpush1.msra.mxu0 %v2068
      %2870 = vmatprep.subr.mxu0 0.0
      %2871 = vmatpush1.msra.mxu0 %v2069
      %2872 = vmatprep.subr.mxu0 0.0
      %2873 = vmatpush1.msra.mxu0 %v2070
      %2874 = vmatprep.subr.mxu0 0.0
      %2875 = vmatpush1.msra.mxu0 %v2071
      %2876 = vmatprep.subr.mxu0 0.0
      %2877 = vmatpush1.msra.mxu0 %v2072
      %2878 = vmatprep.subr.mxu0 0.0
      %2879 = vmatpush1.msra.mxu0 %v2073
      %2880 = vmatprep.subr.mxu0 0.0
      %2881 = vmatpush1.msra.mxu0 %v2074
      %2882 = vmatprep.subr.mxu0 0.0
      %2883 = vmatpush1.msra.mxu0 %v2075
      %2884 = vmatprep.subr.mxu0 0.0
      %2885 = vmatpush1.msra.mxu0 %v2076
      %2886 = vmatprep.subr.mxu0 0.0
      %2887 = vmatpush1.msra.mxu0 %v2077
      %2888 = vmatprep.subr.mxu0 0.0
      %2889 = vmatpush1.msra.mxu0 0.0
      %2890 = vmatprep.subr.mxu0 0.0
      %2891 = vmatpush1.msra.mxu0 0.0
      %2892 = vmatprep.subr.mxu0 0.0
      %2893 = vmatpush1.msra.mxu0 0.0
      %2894 = vmatprep.subr.mxu0 0.0
      %2895 = vmatpush1.msra.mxu0 0.0
      %2896 = vmatprep.subr.mxu0 0.0
      %2897 = vmatpush1.msra.mxu0 0.0
      %2898 = vmatprep.subr.mxu0 0.0
      %2899 = vmatpush1.msra.mxu0 0.0
      %2900 = vmatprep.subr.mxu0 0.0
      %2901 = vmatpush1.msra.mxu0 0.0
      %2902 = vmatprep.subr.mxu0 0.0
      %2903 = vmatpush1.msra.mxu0 0.0
      %2904 = vmatprep.subr.mxu0 0.0
      %2905 = vmatpush1.msra.mxu0 0.0
      %2906 = vmatprep.subr.mxu0 0.0
      %2907 = vmatpush1.msra.mxu0 0.0
      %2908 = vmatprep.subr.mxu0 0.0
      %2909 = vmatpush1.msra.mxu0 0.0
      %2910 = vmatprep.subr.mxu0 0.0
      %2911 = vmatpush1.msra.mxu0 0.0
      %2912 = vmatprep.subr.mxu0 0.0
      %2913 = vmatpush1.msra.mxu0 0.0
      %2914 = vmatprep.subr.mxu0 0.0
      %2915 = vmatpush1.msra.mxu0 0.0
      %2916 = vmatprep.subr.mxu0 0.0
      %2917 = vmatpush1.msra.mxu0 0.0
      %2918 = vmatprep.subr.mxu0 0.0
      %2919 = vmatpush1.msra.mxu0 0.0
      %2920 = vmatprep.subr.mxu0 0.0
      %2921 = vmatpush1.msra.mxu0 0.0
      %2922 = vmatprep.subr.mxu0 0.0
      %2923 = vmatpush1.msra.mxu0 0.0
      %2924 = vmatprep.subr.mxu0 0.0
      %2925 = vmatpush1.msra.mxu0 0.0
      %2926 = vmatprep.subr.mxu0 0.0
      %2927 = vmatpush1.msra.mxu0 0.0
      %2928 = vmatprep.mubr.f32.mxu0 0.0
      %2929 = vmatmul.mubr.f32.gmra.mrb[0].mxu0 %v2166
      %v2930 = vpop.f32.mrb[0].mxu0
      %v2931 = vadd.f32 0.0, %v2930
      %v2932 = vpop.f32.mrb[0].mxu0
      %2933 = vdwg.mxu0
      %v2934 = vadd.f32 %v2863, %v2931
      %v2935 = vld [vmem:[%s487 + $0x1] sm:$0x7f]
      %v2937 = vsel %vm251, %v2935, 0
      %2939 = vmatprep.subr.mxu0 0.0
      %2940 = vmatpush1.msra.mxu0 %v2153
      %2941 = vmatprep.subr.mxu0 0.0
      %2942 = vmatpush1.msra.mxu0 %v2154
      %2943 = vmatprep.subr.mxu0 0.0
      %2944 = vmatpush1.msra.mxu0 %v2155
      %2945 = vmatprep.subr.mxu0 0.0
      %2946 = vmatpush1.msra.mxu0 %v2156
      %2947 = vmatprep.subr.mxu0 0.0
      %2948 = vmatpush1.msra.mxu0 %v2157
      %2949 = vmatprep.subr.mxu0 0.0
      %2950 = vmatpush1.msra.mxu0 %v2158
      %2951 = vmatprep.subr.mxu0 0.0
      %2952 = vmatpush1.msra.mxu0 %v2159
      %2953 = vmatprep.subr.mxu0 0.0
      %2954 = vmatpush1.msra.mxu0 %v2160
      %2955 = vmatprep.subr.mxu0 0.0
      %2956 = vmatpush1.msra.mxu0 %v2161
      %2957 = vmatprep.subr.mxu0 0.0
      %2958 = vmatpush1.msra.mxu0 %v2162
      %2959 = vmatprep.subr.mxu0 0.0
      %2960 = vmatpush1.msra.mxu0 %v2163
      %2961 = vmatprep.subr.mxu0 0.0
      %2962 = vmatpush1.msra.mxu0 %v2164
      %2963 = vmatprep.subr.mxu0 0.0
      %2964 = vmatpush1.msra.mxu0 0.0
      %2965 = vmatprep.subr.mxu0 0.0
      %2966 = vmatpush1.msra.mxu0 0.0
      %2967 = vmatprep.subr.mxu0 0.0
      %2968 = vmatpush1.msra.mxu0 0.0
      %2969 = vmatprep.subr.mxu0 0.0
      %2970 = vmatpush1.msra.mxu0 0.0
      %2971 = vmatprep.subr.mxu0 0.0
      %2972 = vmatpush1.msra.mxu0 0.0
      %2973 = vmatprep.subr.mxu0 0.0
      %2974 = vmatpush1.msra.mxu0 0.0
      %2975 = vmatprep.subr.mxu0 0.0
      %2976 = vmatpush1.msra.mxu0 0.0
      %2977 = vmatprep.subr.mxu0 0.0
      %2978 = vmatpush1.msra.mxu0 0.0
      %2979 = vmatprep.subr.mxu0 0.0
      %2980 = vmatpush1.msra.mxu0 0.0
      %2981 = vmatprep.subr.mxu0 0.0
      %2982 = vmatpush1.msra.mxu0 0.0
      %2983 = vmatprep.subr.mxu0 0.0
      %2984 = vmatpush1.msra.mxu0 0.0
      %2985 = vmatprep.subr.mxu0 0.0
      %2986 = vmatpush1.msra.mxu0 0.0
      %2987 = vmatprep.subr.mxu0 0.0
      %2988 = vmatpush1.msra.mxu0 0.0
      %2989 = vmatprep.subr.mxu0 0.0
      %2990 = vmatpush1.msra.mxu0 0.0
      %2991 = vmatprep.subr.mxu0 0.0
      %2992 = vmatpush1.msra.mxu0 0.0
      %2993 = vmatprep.subr.mxu0 0.0
      %2994 = vmatpush1.msra.mxu0 0.0
      %2995 = vmatprep.subr.mxu0 0.0
      %2996 = vmatpush1.msra.mxu0 0.0
      %2997 = vmatprep.subr.mxu0 0.0
      %2998 = vmatpush1.msra.mxu0 0.0
      %2999 = vmatprep.subr.mxu0 0.0
      %3000 = vmatpush1.msra.mxu0 0.0
      %3001 = vmatprep.subr.mxu0 0.0
      %3002 = vmatpush1.msra.mxu0 0.0
      %3003 = vmatprep.mubr.f32.mxu0 0.0
      %3004 = vmatmul.mubr.f32.gmra.mrb[0].mxu0 %v2937
      %v3005 = vpop.f32.mrb[0].mxu0
      %v3006 = vadd.f32 0.0, %v3005
      %v3007 = vpop.f32.mrb[0].mxu0
      %3008 = vdwg.mxu0
      %v3009 = vadd.f32 %v2934, %v3006
      %v3010 = vmax.f32 %v2652, %v3009
      %3011 = vmatprep.subr.mxu0 0.0
      %3012 = vmatpush1.msra.mxu0 %v2251
      %3013 = vmatprep.subr.mxu0 0.0
      %3014 = vmatpush1.msra.mxu0 %v2252
      %3015 = vmatprep.subr.mxu0 0.0
      %3016 = vmatpush1.msra.mxu0 %v2253
      %3017 = vmatprep.subr.mxu0 0.0
      %3018 = vmatpush1.msra.mxu0 %v2254
      %3019 = vmatprep.subr.mxu0 0.0
      %3020 = vmatpush1.msra.mxu0 %v2255
      %3021 = vmatprep.subr.mxu0 0.0
      %3022 = vmatpush1.msra.mxu0 %v2256
      %3023 = vmatprep.subr.mxu0 0.0
      %3024 = vmatpush1.msra.mxu0 %v2257
      %3025 = vmatprep.subr.mxu0 0.0
      %3026 = vmatpush1.msra.mxu0 %v2258
      %3027 = vmatprep.subr.mxu0 0.0
      %3028 = vmatpush1.msra.mxu0 %v2259
      %3029 = vmatprep.subr.mxu0 0.0
      %3030 = vmatpush1.msra.mxu0 %v2260
      %3031 = vmatprep.subr.mxu0 0.0
      %3032 = vmatpush1.msra.mxu0 %v2261
      %3033 = vmatprep.subr.mxu0 0.0
      %3034 = vmatpush1.msra.mxu0 %v2262
      %3035 = vmatprep.subr.mxu0 0.0
      %3036 = vmatpush1.msra.mxu0 0.0
      %3037 = vmatprep.subr.mxu0 0.0
      %3038 = vmatpush1.msra.mxu0 0.0
      %3039 = vmatprep.subr.mxu0 0.0
      %3040 = vmatpush1.msra.mxu0 0.0
      %3041 = vmatprep.subr.mxu0 0.0
      %3042 = vmatpush1.msra.mxu0 0.0
      %3043 = vmatprep.subr.mxu0 0.0
      %3044 = vmatpush1.msra.mxu0 0.0
      %3045 = vmatprep.subr.mxu0 0.0
      %3046 = vmatpush1.msra.mxu0 0.0
      %3047 = vmatprep.subr.mxu0 0.0
      %3048 = vmatpush1.msra.mxu0 0.0
      %3049 = vmatprep.subr.mxu0 0.0
      %3050 = vmatpush1.msra.mxu0 0.0
      %3051 = vmatprep.subr.mxu0 0.0
      %3052 = vmatpush1.msra.mxu0 0.0
      %3053 = vmatprep.subr.mxu0 0.0
      %3054 = vmatpush1.msra.mxu0 0.0
      %3055 = vmatprep.subr.mxu0 0.0
      %3056 = vmatpush1.msra.mxu0 0.0
      %3057 = vmatprep.subr.mxu0 0.0
      %3058 = vmatpush1.msra.mxu0 0.0
      %3059 = vmatprep.subr.mxu0 0.0
      %3060 = vmatpush1.msra.mxu0 0.0
      %3061 = vmatprep.subr.mxu0 0.0
      %3062 = vmatpush1.msra.mxu0 0.0
      %3063 = vmatprep.subr.mxu0 0.0
      %3064 = vmatpush1.msra.mxu0 0.0
      %3065 = vmatprep.subr.mxu0 0.0
      %3066 = vmatpush1.msra.mxu0 0.0
      %3067 = vmatprep.subr.mxu0 0.0
      %3068 = vmatpush1.msra.mxu0 0.0
      %3069 = vmatprep.subr.mxu0 0.0
      %3070 = vmatpush1.msra.mxu0 0.0
      %3071 = vmatprep.subr.mxu0 0.0
      %3072 = vmatpush1.msra.mxu0 0.0
      %3073 = vmatprep.subr.mxu0 0.0
      %3074 = vmatpush1.msra.mxu0 0.0
      %3075 = vmatprep.mubr.f32.mxu0 0.0
      %3076 = vmatmul.mubr.f32.gmra.mrb[0].mxu0 %v1992
      %v3077 = vpop.f32.mrb[0].mxu0
      %v3078 = vadd.f32 0.0, %v3077
      %v3079 = vpop.f32.mrb[0].mxu0
      %3080 = vdwg.mxu0
      %3081 = vmatprep.subr.mxu0 0.0
      %3082 = vmatpush1.msra.mxu0 %v2239
      %3083 = vmatprep.subr.mxu0 0.0
      %3084 = vmatpush1.msra.mxu0 %v2240
      %3085 = vmatprep.subr.mxu0 0.0
      %3086 = vmatpush1.msra.mxu0 %v2241
      %3087 = vmatprep.subr.mxu0 0.0
      %3088 = vmatpush1.msra.mxu0 %v2242
      %3089 = vmatprep.subr.mxu0 0.0
      %3090 = vmatpush1.msra.mxu0 %v2243
      %3091 = vmatprep.subr.mxu0 0.0
      %3092 = vmatpush1.msra.mxu0 %v2244
      %3093 = vmatprep.subr.mxu0 0.0
      %3094 = vmatpush1.msra.mxu0 %v2245
      %3095 = vmatprep.subr.mxu0 0.0
      %3096 = vmatpush1.msra.mxu0 %v2246
      %3097 = vmatprep.subr.mxu0 0.0
      %3098 = vmatpush1.msra.mxu0 %v2247
      %3099 = vmatprep.subr.mxu0 0.0
      %3100 = vmatpush1.msra.mxu0 %v2248
      %3101 = vmatprep.subr.mxu0 0.0
      %3102 = vmatpush1.msra.mxu0 %v2249
      %3103 = vmatprep.subr.mxu0 0.0
      %3104 = vmatpush1.msra.mxu0 %v2250
      %3105 = vmatprep.subr.mxu0 0.0
      %3106 = vmatpush1.msra.mxu0 0.0
      %3107 = vmatprep.subr.mxu0 0.0
      %3108 = vmatpush1.msra.mxu0 0.0
      %3109 = vmatprep.subr.mxu0 0.0
      %3110 = vmatpush1.msra.mxu0 0.0
      %3111 = vmatprep.subr.mxu0 0.0
      %3112 = vmatpush1.msra.mxu0 0.0
      %3113 = vmatprep.subr.mxu0 0.0
      %3114 = vmatpush1.msra.mxu0 0.0
      %3115 = vmatprep.subr.mxu0 0.0
      %3116 = vmatpush1.msra.mxu0 0.0
      %3117 = vmatprep.subr.mxu0 0.0
      %3118 = vmatpush1.msra.mxu0 0.0
      %3119 = vmatprep.subr.mxu0 0.0
      %3120 = vmatpush1.msra.mxu0 0.0
      %3121 = vmatprep.subr.mxu0 0.0
      %3122 = vmatpush1.msra.mxu0 0.0
      %3123 = vmatprep.subr.mxu0 0.0
      %3124 = vmatpush1.msra.mxu0 0.0
      %3125 = vmatprep.subr.mxu0 0.0
      %3126 = vmatpush1.msra.mxu0 0.0
      %3127 = vmatprep.subr.mxu0 0.0
      %3128 = vmatpush1.msra.mxu0 0.0
      %3129 = vmatprep.subr.mxu0 0.0
      %3130 = vmatpush1.msra.mxu0 0.0
      %3131 = vmatprep.subr.mxu0 0.0
      %3132 = vmatpush1.msra.mxu0 0.0
      %3133 = vmatprep.subr.mxu0 0.0
      %3134 = vmatpush1.msra.mxu0 0.0
      %3135 = vmatprep.subr.mxu0 0.0
      %3136 = vmatpush1.msra.mxu0 0.0
      %3137 = vmatprep.subr.mxu0 0.0
      %3138 = vmatpush1.msra.mxu0 0.0
      %3139 = vmatprep.subr.mxu0 0.0
      %3140 = vmatpush1.msra.mxu0 0.0
      %3141 = vmatprep.subr.mxu0 0.0
      %3142 = vmatpush1.msra.mxu0 0.0
      %3143 = vmatprep.subr.mxu0 0.0
      %3144 = vmatpush1.msra.mxu0 0.0
      %3145 = vmatprep.mubr.f32.mxu0 0.0
      %3146 = vmatmul.mubr.f32.gmra.mrb[0].mxu0 %v1833
      %v3147 = vpop.f32.mrb[0].mxu0
      %v3148 = vadd.f32 %v3078, %v3147
      %v3149 = vpop.f32.mrb[0].mxu0
      %3150 = vdwg.mxu0
      %3151 = vmatprep.subr.mxu0 0.0
      %3152 = vmatpush1.msra.mxu0 %v2403
      %3153 = vmatprep.subr.mxu0 0.0
      %3154 = vmatpush1.msra.mxu0 %v2404
      %3155 = vmatprep.subr.mxu0 0.0
      %3156 = vmatpush1.msra.mxu0 %v2405
      %3157 = vmatprep.subr.mxu0 0.0
      %3158 = vmatpush1.msra.mxu0 %v2406
      %3159 = vmatprep.subr.mxu0 0.0
      %3160 = vmatpush1.msra.mxu0 %v2407
      %3161 = vmatprep.subr.mxu0 0.0
      %3162 = vmatpush1.msra.mxu0 %v2408
      %3163 = vmatprep.subr.mxu0 0.0
      %3164 = vmatpush1.msra.mxu0 %v2409
      %3165 = vmatprep.subr.mxu0 0.0
      %3166 = vmatpush1.msra.mxu0 %v2410
      %3167 = vmatprep.subr.mxu0 0.0
      %3168 = vmatpush1.msra.mxu0 %v2411
      %3169 = vmatprep.subr.mxu0 0.0
      %3170 = vmatpush1.msra.mxu0 %v2412
      %3171 = vmatprep.subr.mxu0 0.0
      %3172 = vmatpush1.msra.mxu0 %v2413
      %3173 = vmatprep.subr.mxu0 0.0
      %3174 = vmatpush1.msra.mxu0 %v2414
      %3175 = vmatprep.subr.mxu0 0.0
      %3176 = vmatpush1.msra.mxu0 0.0
      %3177 = vmatprep.subr.mxu0 0.0
      %3178 = vmatpush1.msra.mxu0 0.0
      %3179 = vmatprep.subr.mxu0 0.0
      %3180 = vmatpush1.msra.mxu0 0.0
      %3181 = vmatprep.subr.mxu0 0.0
      %3182 = vmatpush1.msra.mxu0 0.0
      %3183 = vmatprep.subr.mxu0 0.0
      %3184 = vmatpush1.msra.mxu0 0.0
      %3185 = vmatprep.subr.mxu0 0.0
      %3186 = vmatpush1.msra.mxu0 0.0
      %3187 = vmatprep.subr.mxu0 0.0
      %3188 = vmatpush1.msra.mxu0 0.0
      %3189 = vmatprep.subr.mxu0 0.0
      %3190 = vmatpush1.msra.mxu0 0.0
      %3191 = vmatprep.subr.mxu0 0.0
      %3192 = vmatpush1.msra.mxu0 0.0
      %3193 = vmatprep.subr.mxu0 0.0
      %3194 = vmatpush1.msra.mxu0 0.0
      %3195 = vmatprep.subr.mxu0 0.0
      %3196 = vmatpush1.msra.mxu0 0.0
      %3197 = vmatprep.subr.mxu0 0.0
      %3198 = vmatpush1.msra.mxu0 0.0
      %3199 = vmatprep.subr.mxu0 0.0
      %3200 = vmatpush1.msra.mxu0 0.0
      %3201 = vmatprep.subr.mxu0 0.0
      %3202 = vmatpush1.msra.mxu0 0.0
      %3203 = vmatprep.subr.mxu0 0.0
      %3204 = vmatpush1.msra.mxu0 0.0
      %3205 = vmatprep.subr.mxu0 0.0
      %3206 = vmatpush1.msra.mxu0 0.0
      %3207 = vmatprep.subr.mxu0 0.0
      %3208 = vmatpush1.msra.mxu0 0.0
      %3209 = vmatprep.subr.mxu0 0.0
      %3210 = vmatpush1.msra.mxu0 0.0
      %3211 = vmatprep.subr.mxu0 0.0
      %3212 = vmatpush1.msra.mxu0 0.0
      %3213 = vmatprep.subr.mxu0 0.0
      %3214 = vmatpush1.msra.mxu0 0.0
      %3215 = vmatprep.mubr.f32.mxu0 0.0
      %3216 = vmatmul.mubr.f32.gmra.mrb[0].mxu0 %v2079
      %v3217 = vpop.f32.mrb[0].mxu0
      %v3218 = vadd.f32 0.0, %v3217
      %v3219 = vpop.f32.mrb[0].mxu0
      %3220 = vdwg.mxu0
      %v3221 = vadd.f32 %v3148, %v3218
      %3222 = vmatprep.subr.mxu0 0.0
      %3223 = vmatpush1.msra.mxu0 %v2486
      %3224 = vmatprep.subr.mxu0 0.0
      %3225 = vmatpush1.msra.mxu0 %v2487
      %3226 = vmatprep.subr.mxu0 0.0
      %3227 = vmatpush1.msra.mxu0 %v2488
      %3228 = vmatprep.subr.mxu0 0.0
      %3229 = vmatpush1.msra.mxu0 %v2489
      %3230 = vmatprep.subr.mxu0 0.0
      %3231 = vmatpush1.msra.mxu0 %v2490
      %3232 = vmatprep.subr.mxu0 0.0
      %3233 = vmatpush1.msra.mxu0 %v2491
      %3234 = vmatprep.subr.mxu0 0.0
      %3235 = vmatpush1.msra.mxu0 %v2492
      %3236 = vmatprep.subr.mxu0 0.0
      %3237 = vmatpush1.msra.mxu0 %v2493
      %3238 = vmatprep.subr.mxu0 0.0
      %3239 = vmatpush1.msra.mxu0 %v2494
      %3240 = vmatprep.subr.mxu0 0.0
      %3241 = vmatpush1.msra.mxu0 %v2495
      %3242 = vmatprep.subr.mxu0 0.0
      %3243 = vmatpush1.msra.mxu0 %v2496
      %3244 = vmatprep.subr.mxu0 0.0
      %3245 = vmatpush1.msra.mxu0 %v2497
      %3246 = vmatprep.subr.mxu0 0.0
      %3247 = vmatpush1.msra.mxu0 0.0
      %3248 = vmatprep.subr.mxu0 0.0
      %3249 = vmatpush1.msra.mxu0 0.0
      %3250 = vmatprep.subr.mxu0 0.0
      %3251 = vmatpush1.msra.mxu0 0.0
      %3252 = vmatprep.subr.mxu0 0.0
      %3253 = vmatpush1.msra.mxu0 0.0
      %3254 = vmatprep.subr.mxu0 0.0
      %3255 = vmatpush1.msra.mxu0 0.0
      %3256 = vmatprep.subr.mxu0 0.0
      %3257 = vmatpush1.msra.mxu0 0.0
      %3258 = vmatprep.subr.mxu0 0.0
      %3259 = vmatpush1.msra.mxu0 0.0
      %3260 = vmatprep.subr.mxu0 0.0
      %3261 = vmatpush1.msra.mxu0 0.0
      %3262 = vmatprep.subr.mxu0 0.0
      %3263 = vmatpush1.msra.mxu0 0.0
      %3264 = vmatprep.subr.mxu0 0.0
      %3265 = vmatpush1.msra.mxu0 0.0
      %3266 = vmatprep.subr.mxu0 0.0
      %3267 = vmatpush1.msra.mxu0 0.0
      %3268 = vmatprep.subr.mxu0 0.0
      %3269 = vmatpush1.msra.mxu0 0.0
      %3270 = vmatprep.subr.mxu0 0.0
      %3271 = vmatpush1.msra.mxu0 0.0
      %3272 = vmatprep.subr.mxu0 0.0
      %3273 = vmatpush1.msra.mxu0 0.0
      %3274 = vmatprep.subr.mxu0 0.0
      %3275 = vmatpush1.msra.mxu0 0.0
      %3276 = vmatprep.subr.mxu0 0.0
      %3277 = vmatpush1.msra.mxu0 0.0
      %3278 = vmatprep.subr.mxu0 0.0
      %3279 = vmatpush1.msra.mxu0 0.0
      %3280 = vmatprep.subr.mxu0 0.0
      %3281 = vmatpush1.msra.mxu0 0.0
      %3282 = vmatprep.subr.mxu0 0.0
      %3283 = vmatpush1.msra.mxu0 0.0
      %3284 = vmatprep.subr.mxu0 0.0
      %3285 = vmatpush1.msra.mxu0 0.0
      %3286 = vmatprep.mubr.f32.mxu0 0.0
      %3287 = vmatmul.mubr.f32.gmra.mrb[0].mxu0 %v2166
      %v3288 = vpop.f32.mrb[0].mxu0
      %v3289 = vadd.f32 0.0, %v3288
      %v3290 = vpop.f32.mrb[0].mxu0
      %3291 = vdwg.mxu0
      %v3292 = vadd.f32 %v3221, %v3289
      %3293 = vmatprep.subr.mxu0 0.0
      %3294 = vmatpush1.msra.mxu0 %v2569
      %3295 = vmatprep.subr.mxu0 0.0
      %3296 = vmatpush1.msra.mxu0 %v2570
      %3297 = vmatprep.subr.mxu0 0.0
      %3298 = vmatpush1.msra.mxu0 %v2571
      %3299 = vmatprep.subr.mxu0 0.0
      %3300 = vmatpush1.msra.mxu0 %v2572
      %3301 = vmatprep.subr.mxu0 0.0
      %3302 = vmatpush1.msra.mxu0 %v2573
      %3303 = vmatprep.subr.mxu0 0.0
      %3304 = vmatpush1.msra.mxu0 %v2574
      %3305 = vmatprep.subr.mxu0 0.0
      %3306 = vmatpush1.msra.mxu0 %v2575
      %3307 = vmatprep.subr.mxu0 0.0
      %3308 = vmatpush1.msra.mxu0 %v2576
      %3309 = vmatprep.subr.mxu0 0.0
      %3310 = vmatpush1.msra.mxu0 %v2577
      %3311 = vmatprep.subr.mxu0 0.0
      %3312 = vmatpush1.msra.mxu0 %v2578
      %3313 = vmatprep.subr.mxu0 0.0
      %3314 = vmatpush1.msra.mxu0 %v2579
      %3315 = vmatprep.subr.mxu0 0.0
      %3316 = vmatpush1.msra.mxu0 %v2580
      %3317 = vmatprep.subr.mxu0 0.0
      %3318 = vmatpush1.msra.mxu0 0.0
      %3319 = vmatprep.subr.mxu0 0.0
      %3320 = vmatpush1.msra.mxu0 0.0
      %3321 = vmatprep.subr.mxu0 0.0
      %3322 = vmatpush1.msra.mxu0 0.0
      %3323 = vmatprep.subr.mxu0 0.0
      %3324 = vmatpush1.msra.mxu0 0.0
      %3325 = vmatprep.subr.mxu0 0.0
      %3326 = vmatpush1.msra.mxu0 0.0
      %3327 = vmatprep.subr.mxu0 0.0
      %3328 = vmatpush1.msra.mxu0 0.0
      %3329 = vmatprep.subr.mxu0 0.0
      %3330 = vmatpush1.msra.mxu0 0.0
      %3331 = vmatprep.subr.mxu0 0.0
      %3332 = vmatpush1.msra.mxu0 0.0
      %3333 = vmatprep.subr.mxu0 0.0
      %3334 = vmatpush1.msra.mxu0 0.0
      %3335 = vmatprep.subr.mxu0 0.0
      %3336 = vmatpush1.msra.mxu0 0.0
      %3337 = vmatprep.subr.mxu0 0.0
      %3338 = vmatpush1.msra.mxu0 0.0
      %3339 = vmatprep.subr.mxu0 0.0
      %3340 = vmatpush1.msra.mxu0 0.0
      %3341 = vmatprep.subr.mxu0 0.0
      %3342 = vmatpush1.msra.mxu0 0.0
      %3343 = vmatprep.subr.mxu0 0.0
      %3344 = vmatpush1.msra.mxu0 0.0
      %3345 = vmatprep.subr.mxu0 0.0
      %3346 = vmatpush1.msra.mxu0 0.0
      %3347 = vmatprep.subr.mxu0 0.0
      %3348 = vmatpush1.msra.mxu0 0.0
      %3349 = vmatprep.subr.mxu0 0.0
      %3350 = vmatpush1.msra.mxu0 0.0
      %3351 = vmatprep.subr.mxu0 0.0
      %3352 = vmatpush1.msra.mxu0 0.0
      %3353 = vmatprep.subr.mxu0 0.0
      %3354 = vmatpush1.msra.mxu0 0.0
      %3355 = vmatprep.subr.mxu0 0.0
      %3356 = vmatpush1.msra.mxu0 0.0
      %3357 = vmatprep.mubr.f32.mxu0 0.0
      %3358 = vmatmul.mubr.f32.gmra.mrb[0].mxu0 %v2937
      %v3359 = vpop.f32.mrb[0].mxu0
      %v3360 = vadd.f32 0.0, %v3359
      %v3361 = vpop.f32.mrb[0].mxu0
      %3362 = vdwg.mxu0
      %v3363 = vadd.f32 %v3292, %v3360
      %v3364 = vmax.f32 %v3010, %v3363
      %v3365 = vld [vmem:[%s2] sm:$0x1]
      %v3367 = vlaneseq
      %v3368 = vshrl.u32 %v3367, 7
      %v3369 = vsub.s32 0, %v3368
      %v3370 = vrot.slane %v3365, %v3369
      %v3372 = vadd.f32 %v3364, %v3370
      %v3373 = vmax.f32 %v3372, 0.0
      %3374 = vst.msk [vmem:[#allocation3] sm:$0x7f] %vm1804, %v3373
      %v3375 = vld [vmem:[#allocation2] sm:$0x1f]
      %v3376 = vld [vmem:[%s3] sm:$0xff]
      %v3377 = vld [vmem:[%s3 + $0x8] sm:$0xff]
      %v3378 = vld [vmem:[%s3 + $0x10] sm:$0xff]
      %v3379 = vld [vmem:[%s3 + $0x18] sm:$0xff]
      %v3380 = vld [vmem:[%s3 + $0x20] sm:$0xff]
      %v3381 = vld [vmem:[%s3 + $0x28] sm:$0xff]
      %v3382 = vld [vmem:[%s3 + $0x30] sm:$0xff]
      %v3383 = vld [vmem:[%s3 + $0x38] sm:$0xff]
      %v3384 = vld [vmem:[%s3 + $0x40] sm:$0xff]
      %v3385 = vld [vmem:[%s3 + $0x48] sm:$0xff]
      %v3386 = vld [vmem:[%s3 + $0x50] sm:$0xf]
      %v3387 = vld [vmem:[#allocation3] sm:$0x1f]
      %s3388 = scalar_lea.vmem %s3, 176
      %v3389 = vld [vmem:[%s3388] sm:$0xff]
      %v3390 = vld [vmem:[%s3388 + $0x8] sm:$0xff]
      %v3391 = vld [vmem:[%s3388 + $0x10] sm:$0xff]
      %v3392 = vld [vmem:[%s3388 + $0x18] sm:$0xff]
      %v3393 = vld [vmem:[%s3388 + $0x20] sm:$0xff]
      %v3394 = vld [vmem:[%s3388 + $0x28] sm:$0xff]
      %v3395 = vld [vmem:[%s3388 + $0x30] sm:$0xff]
      %v3396 = vld [vmem:[%s3388 + $0x38] sm:$0xff]
      %v3397 = vld [vmem:[%s3388 + $0x40] sm:$0xff]
      %v3398 = vld [vmem:[%s3388 + $0x48] sm:$0xff]
      %v3399 = vld [vmem:[%s3388 + $0x50] sm:$0xf]
      %vm3400 = vcmask 687104
      %v3402 = vsel %vm3400, %v3387, 0
      %vm3404 = vcmask 1043456
      %v3406 = vsel %vm3404, %v3399, 0
      %3408 = vmatprep.subr.mxu0 0.0
      %3409 = vmatpush1.msra.mxu0 %v3389
      %3410 = vmatprep.subr.mxu0 0.0
      %3411 = vmatpush1.msra.mxu0 %v3390
      %3412 = vmatprep.subr.mxu0 0.0
      %3413 = vmatpush1.msra.mxu0 %v3391
      %3414 = vmatprep.subr.mxu0 0.0
      %3415 = vmatpush1.msra.mxu0 %v3392
      %3416 = vmatprep.subr.mxu0 0.0
      %3417 = vmatpush1.msra.mxu0 %v3393
      %3418 = vmatprep.subr.mxu0 0.0
      %3419 = vmatpush1.msra.mxu0 %v3394
      %3420 = vmatprep.subr.mxu0 0.0
      %3421 = vmatpush1.msra.mxu0 %v3395
      %3422 = vmatprep.subr.mxu0 0.0
      %3423 = vmatpush1.msra.mxu0 %v3396
      %3424 = vmatprep.subr.mxu0 0.0
      %3425 = vmatpush1.msra.mxu0 %v3397
      %3426 = vmatprep.subr.mxu0 0.0
      %3427 = vmatpush1.msra.mxu0 %v3398
      %3428 = vmatprep.subr.mxu0 0.0
      %3429 = vmatpush1.msra.mxu0 %v3406
      %3430 = vmatprep.subr.mxu0 0.0
      %3431 = vmatpush1.msra.mxu0 0.0
      %3432 = vmatprep.subr.mxu0 0.0
      %3433 = vmatpush1.msra.mxu0 0.0
      %3434 = vmatprep.subr.mxu0 0.0
      %3435 = vmatpush1.msra.mxu0 0.0
      %3436 = vmatprep.subr.mxu0 0.0
      %3437 = vmatpush1.msra.mxu0 0.0
      %3438 = vmatprep.subr.mxu0 0.0
      %3439 = vmatpush1.msra.mxu0 0.0
      %3440 = vmatprep.subr.mxu0 0.0
      %3441 = vmatpush1.msra.mxu0 0.0
      %3442 = vmatprep.subr.mxu0 0.0
      %3443 = vmatpush1.msra.mxu0 0.0
      %3444 = vmatprep.subr.mxu0 0.0
      %3445 = vmatpush1.msra.mxu0 0.0
      %3446 = vmatprep.subr.mxu0 0.0
      %3447 = vmatpush1.msra.mxu0 0.0
      %3448 = vmatprep.subr.mxu0 0.0
      %3449 = vmatpush1.msra.mxu0 0.0
      %3450 = vmatprep.subr.mxu0 0.0
      %3451 = vmatpush1.msra.mxu0 0.0
      %3452 = vmatprep.subr.mxu0 0.0
      %3453 = vmatpush1.msra.mxu0 0.0
      %3454 = vmatprep.subr.mxu0 0.0
      %3455 = vmatpush1.msra.mxu0 0.0
      %3456 = vmatprep.subr.mxu0 0.0
      %3457 = vmatpush1.msra.mxu0 0.0
      %3458 = vmatprep.subr.mxu0 0.0
      %3459 = vmatpush1.msra.mxu0 0.0
      %3460 = vmatprep.subr.mxu0 0.0
      %3461 = vmatpush1.msra.mxu0 0.0
      %3462 = vmatprep.subr.mxu0 0.0
      %3463 = vmatpush1.msra.mxu0 0.0
      %3464 = vmatprep.subr.mxu0 0.0
      %3465 = vmatpush1.msra.mxu0 0.0
      %3466 = vmatprep.subr.mxu0 0.0
      %3467 = vmatpush1.msra.mxu0 0.0
      %3468 = vmatprep.subr.mxu0 0.0
      %3469 = vmatpush1.msra.mxu0 0.0
      %3470 = vmatprep.subr.mxu0 0.0
      %3471 = vmatpush1.msra.mxu0 0.0
      %3472 = vmatprep.mubr.f32.mxu0 0.0
      %3473 = vmatmul.mubr.f32.gmra.mrb[0].mxu0 %v3402
      %v3474 = vpop.f32.mrb[0].mxu0
      %v3475 = vadd.f32 0.0, %v3474
      %v3476 = vpop.f32.mrb[0].mxu0
      %3477 = vdwg.mxu0
      %v3479 = vsel %vm3400, %v3375, 0
      %v3482 = vsel %vm3404, %v3386, 0
      %3484 = vmatprep.subr.mxu0 0.0
      %3485 = vmatpush1.msra.mxu0 %v3376
      %3486 = vmatprep.subr.mxu0 0.0
      %3487 = vmatpush1.msra.mxu0 %v3377
      %3488 = vmatprep.subr.mxu0 0.0
      %3489 = vmatpush1.msra.mxu0 %v3378
      %3490 = vmatprep.subr.mxu0 0.0
      %3491 = vmatpush1.msra.mxu0 %v3379
      %3492 = vmatprep.subr.mxu0 0.0
      %3493 = vmatpush1.msra.mxu0 %v3380
      %3494 = vmatprep.subr.mxu0 0.0
      %3495 = vmatpush1.msra.mxu0 %v3381
      %3496 = vmatprep.subr.mxu0 0.0
      %3497 = vmatpush1.msra.mxu0 %v3382
      %3498 = vmatprep.subr.mxu0 0.0
      %3499 = vmatpush1.msra.mxu0 %v3383
      %3500 = vmatprep.subr.mxu0 0.0
      %3501 = vmatpush1.msra.mxu0 %v3384
      %3502 = vmatprep.subr.mxu0 0.0
      %3503 = vmatpush1.msra.mxu0 %v3385
      %3504 = vmatprep.subr.mxu0 0.0
      %3505 = vmatpush1.msra.mxu0 %v3482
      %3506 = vmatprep.subr.mxu0 0.0
      %3507 = vmatpush1.msra.mxu0 0.0
      %3508 = vmatprep.subr.mxu0 0.0
      %3509 = vmatpush1.msra.mxu0 0.0
      %3510 = vmatprep.subr.mxu0 0.0
      %3511 = vmatpush1.msra.mxu0 0.0
      %3512 = vmatprep.subr.mxu0 0.0
      %3513 = vmatpush1.msra.mxu0 0.0
      %3514 = vmatprep.subr.mxu0 0.0
      %3515 = vmatpush1.msra.mxu0 0.0
      %3516 = vmatprep.subr.mxu0 0.0
      %3517 = vmatpush1.msra.mxu0 0.0
      %3518 = vmatprep.subr.mxu0 0.0
      %3519 = vmatpush1.msra.mxu0 0.0
      %3520 = vmatprep.subr.mxu0 0.0
      %3521 = vmatpush1.msra.mxu0 0.0
      %3522 = vmatprep.subr.mxu0 0.0
      %3523 = vmatpush1.msra.mxu0 0.0
      %3524 = vmatprep.subr.mxu0 0.0
      %3525 = vmatpush1.msra.mxu0 0.0
      %3526 = vmatprep.subr.mxu0 0.0
      %3527 = vmatpush1.msra.mxu0 0.0
      %3528 = vmatprep.subr.mxu0 0.0
      %3529 = vmatpush1.msra.mxu0 0.0
      %3530 = vmatprep.subr.mxu0 0.0
      %3531 = vmatpush1.msra.mxu0 0.0
      %3532 = vmatprep.subr.mxu0 0.0
      %3533 = vmatpush1.msra.mxu0 0.0
      %3534 = vmatprep.subr.mxu0 0.0
      %3535 = vmatpush1.msra.mxu0 0.0
      %3536 = vmatprep.subr.mxu0 0.0
      %3537 = vmatpush1.msra.mxu0 0.0
      %3538 = vmatprep.subr.mxu0 0.0
      %3539 = vmatpush1.msra.mxu0 0.0
      %3540 = vmatprep.subr.mxu0 0.0
      %3541 = vmatpush1.msra.mxu0 0.0
      %3542 = vmatprep.subr.mxu0 0.0
      %3543 = vmatpush1.msra.mxu0 0.0
      %3544 = vmatprep.subr.mxu0 0.0
      %3545 = vmatpush1.msra.mxu0 0.0
      %3546 = vmatprep.subr.mxu0 0.0
      %3547 = vmatpush1.msra.mxu0 0.0
      %3548 = vmatprep.mubr.f32.mxu0 0.0
      %3549 = vmatmul.mubr.f32.gmra.mrb[0].mxu0 %v3479
      %v3550 = vpop.f32.mrb[0].mxu0
      %v3551 = vadd.f32 %v3475, %v3550
      %v3552 = vpop.f32.mrb[0].mxu0
      %3553 = vdwg.mxu0
      %v3554 = vld [vmem:[#allocation2 + $0x1] sm:$0x1f]
      %s3555 = scalar_lea.vmem %s3, 352
      %v3556 = vld [vmem:[%s3555] sm:$0xff]
      %v3557 = vld [vmem:[%s3555 + $0x8] sm:$0xff]
      %v3558 = vld [vmem:[%s3555 + $0x10] sm:$0xff]
      %v3559 = vld [vmem:[%s3555 + $0x18] sm:$0xff]
      %v3560 = vld [vmem:[%s3555 + $0x20] sm:$0xff]
      %v3561 = vld [vmem:[%s3555 + $0x28] sm:$0xff]
      %v3562 = vld [vmem:[%s3555 + $0x30] sm:$0xff]
      %v3563 = vld [vmem:[%s3555 + $0x38] sm:$0xff]
      %v3564 = vld [vmem:[%s3555 + $0x40] sm:$0xff]
      %v3565 = vld [vmem:[%s3555 + $0x48] sm:$0xff]
      %v3566 = vld [vmem:[%s3555 + $0x50] sm:$0xf]
      %v3568 = vsel %vm3400, %v3554, 0
      %v3571 = vsel %vm3404, %v3566, 0
      %3573 = vmatprep.subr.mxu0 0.0
      %3574 = vmatpush1.msra.mxu0 %v3556
      %3575 = vmatprep.subr.mxu0 0.0
      %3576 = vmatpush1.msra.mxu0 %v3557
      %3577 = vmatprep.subr.mxu0 0.0
      %3578 = vmatpush1.msra.mxu0 %v3558
      %3579 = vmatprep.subr.mxu0 0.0
      %3580 = vmatpush1.msra.mxu0 %v3559
      %3581 = vmatprep.subr.mxu0 0.0
      %3582 = vmatpush1.msra.mxu0 %v3560
      %3583 = vmatprep.subr.mxu0 0.0
      %3584 = vmatpush1.msra.mxu0 %v3561
      %3585 = vmatprep.subr.mxu0 0.0
      %3586 = vmatpush1.msra.mxu0 %v3562
      %3587 = vmatprep.subr.mxu0 0.0
      %3588 = vmatpush1.msra.mxu0 %v3563
      %3589 = vmatprep.subr.mxu0 0.0
      %3590 = vmatpush1.msra.mxu0 %v3564
      %3591 = vmatprep.subr.mxu0 0.0
      %3592 = vmatpush1.msra.mxu0 %v3565
      %3593 = vmatprep.subr.mxu0 0.0
      %3594 = vmatpush1.msra.mxu0 %v3571
      %3595 = vmatprep.subr.mxu0 0.0
      %3596 = vmatpush1.msra.mxu0 0.0
      %3597 = vmatprep.subr.mxu0 0.0
      %3598 = vmatpush1.msra.mxu0 0.0
      %3599 = vmatprep.subr.mxu0 0.0
      %3600 = vmatpush1.msra.mxu0 0.0
      %3601 = vmatprep.subr.mxu0 0.0
      %3602 = vmatpush1.msra.mxu0 0.0
      %3603 = vmatprep.subr.mxu0 0.0
      %3604 = vmatpush1.msra.mxu0 0.0
      %3605 = vmatprep.subr.mxu0 0.0
      %3606 = vmatpush1.msra.mxu0 0.0
      %3607 = vmatprep.subr.mxu0 0.0
      %3608 = vmatpush1.msra.mxu0 0.0
      %3609 = vmatprep.subr.mxu0 0.0
      %3610 = vmatpush1.msra.mxu0 0.0
      %3611 = vmatprep.subr.mxu0 0.0
      %3612 = vmatpush1.msra.mxu0 0.0
      %3613 = vmatprep.subr.mxu0 0.0
      %3614 = vmatpush1.msra.mxu0 0.0
      %3615 = vmatprep.subr.mxu0 0.0
      %3616 = vmatpush1.msra.mxu0 0.0
      %3617 = vmatprep.subr.mxu0 0.0
      %3618 = vmatpush1.msra.mxu0 0.0
      %3619 = vmatprep.subr.mxu0 0.0
      %3620 = vmatpush1.msra.mxu0 0.0
      %3621 = vmatprep.subr.mxu0 0.0
      %3622 = vmatpush1.msra.mxu0 0.0
      %3623 = vmatprep.subr.mxu0 0.0
      %3624 = vmatpush1.msra.mxu0 0.0
      %3625 = vmatprep.subr.mxu0 0.0
      %3626 = vmatpush1.msra.mxu0 0.0
      %3627 = vmatprep.subr.mxu0 0.0
      %3628 = vmatpush1.msra.mxu0 0.0
      %3629 = vmatprep.subr.mxu0 0.0
      %3630 = vmatpush1.msra.mxu0 0.0
      %3631 = vmatprep.subr.mxu0 0.0
      %3632 = vmatpush1.msra.mxu0 0.0
      %3633 = vmatprep.subr.mxu0 0.0
      %3634 = vmatpush1.msra.mxu0 0.0
      %3635 = vmatprep.subr.mxu0 0.0
      %3636 = vmatpush1.msra.mxu0 0.0
      %3637 = vmatprep.mubr.f32.mxu0 0.0
      %3638 = vmatmul.mubr.f32.gmra.mrb[0].mxu0 %v3568
      %v3639 = vpop.f32.mrb[0].mxu0
      %v3640 = vadd.f32 0.0, %v3639
      %v3641 = vpop.f32.mrb[0].mxu0
      %3642 = vdwg.mxu0
      %v3643 = vadd.f32 %v3551, %v3640
      %v3644 = vld [vmem:[#allocation3 + $0x1] sm:$0x1f]
      %s3645 = scalar_lea.vmem %s3, 528
      %v3646 = vld [vmem:[%s3645] sm:$0xff]
      %v3647 = vld [vmem:[%s3645 + $0x8] sm:$0xff]
      %v3648 = vld [vmem:[%s3645 + $0x10] sm:$0xff]
      %v3649 = vld [vmem:[%s3645 + $0x18] sm:$0xff]
      %v3650 = vld [vmem:[%s3645 + $0x20] sm:$0xff]
      %v3651 = vld [vmem:[%s3645 + $0x28] sm:$0xff]
      %v3652 = vld [vmem:[%s3645 + $0x30] sm:$0xff]
      %v3653 = vld [vmem:[%s3645 + $0x38] sm:$0xff]
      %v3654 = vld [vmem:[%s3645 + $0x40] sm:$0xff]
      %v3655 = vld [vmem:[%s3645 + $0x48] sm:$0xff]
      %v3656 = vld [vmem:[%s3645 + $0x50] sm:$0xf]
      %v3658 = vsel %vm3400, %v3644, 0
      %v3661 = vsel %vm3404, %v3656, 0
      %3663 = vmatprep.subr.mxu0 0.0
      %3664 = vmatpush1.msra.mxu0 %v3646
      %3665 = vmatprep.subr.mxu0 0.0
      %3666 = vmatpush1.msra.mxu0 %v3647
      %3667 = vmatprep.subr.mxu0 0.0
      %3668 = vmatpush1.msra.mxu0 %v3648
      %3669 = vmatprep.subr.mxu0 0.0
      %3670 = vmatpush1.msra.mxu0 %v3649
      %3671 = vmatprep.subr.mxu0 0.0
      %3672 = vmatpush1.msra.mxu0 %v3650
      %3673 = vmatprep.subr.mxu0 0.0
      %3674 = vmatpush1.msra.mxu0 %v3651
      %3675 = vmatprep.subr.mxu0 0.0
      %3676 = vmatpush1.msra.mxu0 %v3652
      %3677 = vmatprep.subr.mxu0 0.0
      %3678 = vmatpush1.msra.mxu0 %v3653
      %3679 = vmatprep.subr.mxu0 0.0
      %3680 = vmatpush1.msra.mxu0 %v3654
      %3681 = vmatprep.subr.mxu0 0.0
      %3682 = vmatpush1.msra.mxu0 %v3655
      %3683 = vmatprep.subr.mxu0 0.0
      %3684 = vmatpush1.msra.mxu0 %v3661
      %3685 = vmatprep.subr.mxu0 0.0
      %3686 = vmatpush1.msra.mxu0 0.0
      %3687 = vmatprep.subr.mxu0 0.0
      %3688 = vmatpush1.msra.mxu0 0.0
      %3689 = vmatprep.subr.mxu0 0.0
      %3690 = vmatpush1.msra.mxu0 0.0
      %3691 = vmatprep.subr.mxu0 0.0
      %3692 = vmatpush1.msra.mxu0 0.0
      %3693 = vmatprep.subr.mxu0 0.0
      %3694 = vmatpush1.msra.mxu0 0.0
      %3695 = vmatprep.subr.mxu0 0.0
      %3696 = vmatpush1.msra.mxu0 0.0
      %3697 = vmatprep.subr.mxu0 0.0
      %3698 = vmatpush1.msra.mxu0 0.0
      %3699 = vmatprep.subr.mxu0 0.0
      %3700 = vmatpush1.msra.mxu0 0.0
      %3701 = vmatprep.subr.mxu0 0.0
      %3702 = vmatpush1.msra.mxu0 0.0
      %3703 = vmatprep.subr.mxu0 0.0
      %3704 = vmatpush1.msra.mxu0 0.0
      %3705 = vmatprep.subr.mxu0 0.0
      %3706 = vmatpush1.msra.mxu0 0.0
      %3707 = vmatprep.subr.mxu0 0.0
      %3708 = vmatpush1.msra.mxu0 0.0
      %3709 = vmatprep.subr.mxu0 0.0
      %3710 = vmatpush1.msra.mxu0 0.0
      %3711 = vmatprep.subr.mxu0 0.0
      %3712 = vmatpush1.msra.mxu0 0.0
      %3713 = vmatprep.subr.mxu0 0.0
      %3714 = vmatpush1.msra.mxu0 0.0
      %3715 = vmatprep.subr.mxu0 0.0
      %3716 = vmatpush1.msra.mxu0 0.0
      %3717 = vmatprep.subr.mxu0 0.0
      %3718 = vmatpush1.msra.mxu0 0.0
      %3719 = vmatprep.subr.mxu0 0.0
      %3720 = vmatpush1.msra.mxu0 0.0
      %3721 = vmatprep.subr.mxu0 0.0
      %3722 = vmatpush1.msra.mxu0 0.0
      %3723 = vmatprep.subr.mxu0 0.0
      %3724 = vmatpush1.msra.mxu0 0.0
      %3725 = vmatprep.subr.mxu0 0.0
      %3726 = vmatpush1.msra.mxu0 0.0
      %3727 = vmatprep.mubr.f32.mxu0 0.0
      %3728 = vmatmul.mubr.f32.gmra.mrb[0].mxu0 %v3658
      %v3729 = vpop.f32.mrb[0].mxu0
      %v3730 = vadd.f32 0.0, %v3729
      %v3731 = vpop.f32.mrb[0].mxu0
      %3732 = vdwg.mxu0
      %v3733 = vadd.f32 %v3643, %v3730
      %v3734 = vld [vmem:[#allocation2 + $0x2] sm:$0x1f]
      %s3735 = scalar_lea.vmem %s3, 704
      %v3736 = vld [vmem:[%s3735] sm:$0xff]
      %v3737 = vld [vmem:[%s3735 + $0x8] sm:$0xff]
      %v3738 = vld [vmem:[%s3735 + $0x10] sm:$0xff]
      %v3739 = vld [vmem:[%s3735 + $0x18] sm:$0xff]
      %v3740 = vld [vmem:[%s3735 + $0x20] sm:$0xff]
      %v3741 = vld [vmem:[%s3735 + $0x28] sm:$0xff]
      %v3742 = vld [vmem:[%s3735 + $0x30] sm:$0xff]
      %v3743 = vld [vmem:[%s3735 + $0x38] sm:$0xff]
      %v3744 = vld [vmem:[%s3735 + $0x40] sm:$0xff]
      %v3745 = vld [vmem:[%s3735 + $0x48] sm:$0xff]
      %v3746 = vld [vmem:[%s3735 + $0x50] sm:$0xf]
      %v3748 = vsel %vm3400, %v3734, 0
      %v3751 = vsel %vm3404, %v3746, 0
      %3753 = vmatprep.subr.mxu0 0.0
      %3754 = vmatpush1.msra.mxu0 %v3736
      %3755 = vmatprep.subr.mxu0 0.0
      %3756 = vmatpush1.msra.mxu0 %v3737
      %3757 = vmatprep.subr.mxu0 0.0
      %3758 = vmatpush1.msra.mxu0 %v3738
      %3759 = vmatprep.subr.mxu0 0.0
      %3760 = vmatpush1.msra.mxu0 %v3739
      %3761 = vmatprep.subr.mxu0 0.0
      %3762 = vmatpush1.msra.mxu0 %v3740
      %3763 = vmatprep.subr.mxu0 0.0
      %3764 = vmatpush1.msra.mxu0 %v3741
      %3765 = vmatprep.subr.mxu0 0.0
      %3766 = vmatpush1.msra.mxu0 %v3742
      %3767 = vmatprep.subr.mxu0 0.0
      %3768 = vmatpush1.msra.mxu0 %v3743
      %3769 = vmatprep.subr.mxu0 0.0
      %3770 = vmatpush1.msra.mxu0 %v3744
      %3771 = vmatprep.subr.mxu0 0.0
      %3772 = vmatpush1.msra.mxu0 %v3745
      %3773 = vmatprep.subr.mxu0 0.0
      %3774 = vmatpush1.msra.mxu0 %v3751
      %3775 = vmatprep.subr.mxu0 0.0
      %3776 = vmatpush1.msra.mxu0 0.0
      %3777 = vmatprep.subr.mxu0 0.0
      %3778 = vmatpush1.msra.mxu0 0.0
      %3779 = vmatprep.subr.mxu0 0.0
      %3780 = vmatpush1.msra.mxu0 0.0
      %3781 = vmatprep.subr.mxu0 0.0
      %3782 = vmatpush1.msra.mxu0 0.0
      %3783 = vmatprep.subr.mxu0 0.0
      %3784 = vmatpush1.msra.mxu0 0.0
      %3785 = vmatprep.subr.mxu0 0.0
      %3786 = vmatpush1.msra.mxu0 0.0
      %3787 = vmatprep.subr.mxu0 0.0
      %3788 = vmatpush1.msra.mxu0 0.0
      %3789 = vmatprep.subr.mxu0 0.0
      %3790 = vmatpush1.msra.mxu0 0.0
      %3791 = vmatprep.subr.mxu0 0.0
      %3792 = vmatpush1.msra.mxu0 0.0
      %3793 = vmatprep.subr.mxu0 0.0
      %3794 = vmatpush1.msra.mxu0 0.0
      %3795 = vmatprep.subr.mxu0 0.0
      %3796 = vmatpush1.msra.mxu0 0.0
      %3797 = vmatprep.subr.mxu0 0.0
      %3798 = vmatpush1.msra.mxu0 0.0
      %3799 = vmatprep.subr.mxu0 0.0
      %3800 = vmatpush1.msra.mxu0 0.0
      %3801 = vmatprep.subr.mxu0 0.0
      %3802 = vmatpush1.msra.mxu0 0.0
      %3803 = vmatprep.subr.mxu0 0.0
      %3804 = vmatpush1.msra.mxu0 0.0
      %3805 = vmatprep.subr.mxu0 0.0
      %3806 = vmatpush1.msra.mxu0 0.0
      %3807 = vmatprep.subr.mxu0 0.0
      %3808 = vmatpush1.msra.mxu0 0.0
      %3809 = vmatprep.subr.mxu0 0.0
      %3810 = vmatpush1.msra.mxu0 0.0
      %3811 = vmatprep.subr.mxu0 0.0
      %3812 = vmatpush1.msra.mxu0 0.0
      %3813 = vmatprep.subr.mxu0 0.0
      %3814 = vmatpush1.msra.mxu0 0.0
      %3815 = vmatprep.subr.mxu0 0.0
      %3816 = vmatpush1.msra.mxu0 0.0
      %3817 = vmatprep.mubr.f32.mxu0 0.0
      %3818 = vmatmul.mubr.f32.gmra.mrb[0].mxu0 %v3748
      %v3819 = vpop.f32.mrb[0].mxu0
      %v3820 = vadd.f32 0.0, %v3819
      %v3821 = vpop.f32.mrb[0].mxu0
      %3822 = vdwg.mxu0
      %v3823 = vadd.f32 %v3733, %v3820
      %s3824 = scalar_lea.vmem %s3, 88
      %v3825 = vld [vmem:[%s3824] sm:$0xff]
      %v3826 = vld [vmem:[%s3824 + $0x8] sm:$0xff]
      %v3827 = vld [vmem:[%s3824 + $0x10] sm:$0xff]
      %v3828 = vld [vmem:[%s3824 + $0x18] sm:$0xff]
      %v3829 = vld [vmem:[%s3824 + $0x20] sm:$0xff]
      %v3830 = vld [vmem:[%s3824 + $0x28] sm:$0xff]
      %v3831 = vld [vmem:[%s3824 + $0x30] sm:$0xff]
      %v3832 = vld [vmem:[%s3824 + $0x38] sm:$0xff]
      %v3833 = vld [vmem:[%s3824 + $0x40] sm:$0xff]
      %v3834 = vld [vmem:[%s3824 + $0x48] sm:$0xff]
      %v3835 = vld [vmem:[%s3824 + $0x50] sm:$0xf]
      %s3836 = scalar_lea.vmem %s3, 264
      %v3837 = vld [vmem:[%s3836] sm:$0xff]
      %v3838 = vld [vmem:[%s3836 + $0x8] sm:$0xff]
      %v3839 = vld [vmem:[%s3836 + $0x10] sm:$0xff]
      %v3840 = vld [vmem:[%s3836 + $0x18] sm:$0xff]
      %v3841 = vld [vmem:[%s3836 + $0x20] sm:$0xff]
      %v3842 = vld [vmem:[%s3836 + $0x28] sm:$0xff]
      %v3843 = vld [vmem:[%s3836 + $0x30] sm:$0xff]
      %v3844 = vld [vmem:[%s3836 + $0x38] sm:$0xff]
      %v3845 = vld [vmem:[%s3836 + $0x40] sm:$0xff]
      %v3846 = vld [vmem:[%s3836 + $0x48] sm:$0xff]
      %v3847 = vld [vmem:[%s3836 + $0x50] sm:$0xf]
      %v3849 = vsel %vm3404, %v3847, 0
      %3851 = vmatprep.subr.mxu0 0.0
      %3852 = vmatpush1.msra.mxu0 %v3837
      %3853 = vmatprep.subr.mxu0 0.0
      %3854 = vmatpush1.msra.mxu0 %v3838
      %3855 = vmatprep.subr.mxu0 0.0
      %3856 = vmatpush1.msra.mxu0 %v3839
      %3857 = vmatprep.subr.mxu0 0.0
      %3858 = vmatpush1.msra.mxu0 %v3840
      %3859 = vmatprep.subr.mxu0 0.0
      %3860 = vmatpush1.msra.mxu0 %v3841
      %3861 = vmatprep.subr.mxu0 0.0
      %3862 = vmatpush1.msra.mxu0 %v3842
      %3863 = vmatprep.subr.mxu0 0.0
      %3864 = vmatpush1.msra.mxu0 %v3843
      %3865 = vmatprep.subr.mxu0 0.0
      %3866 = vmatpush1.msra.mxu0 %v3844
      %3867 = vmatprep.subr.mxu0 0.0
      %3868 = vmatpush1.msra.mxu0 %v3845
      %3869 = vmatprep.subr.mxu0 0.0
      %3870 = vmatpush1.msra.mxu0 %v3846
      %3871 = vmatprep.subr.mxu0 0.0
      %3872 = vmatpush1.msra.mxu0 %v3849
      %3873 = vmatprep.subr.mxu0 0.0
      %3874 = vmatpush1.msra.mxu0 0.0
      %3875 = vmatprep.subr.mxu0 0.0
      %3876 = vmatpush1.msra.mxu0 0.0
      %3877 = vmatprep.subr.mxu0 0.0
      %3878 = vmatpush1.msra.mxu0 0.0
      %3879 = vmatprep.subr.mxu0 0.0
      %3880 = vmatpush1.msra.mxu0 0.0
      %3881 = vmatprep.subr.mxu0 0.0
      %3882 = vmatpush1.msra.mxu0 0.0
      %3883 = vmatprep.subr.mxu0 0.0
      %3884 = vmatpush1.msra.mxu0 0.0
      %3885 = vmatprep.subr.mxu0 0.0
      %3886 = vmatpush1.msra.mxu0 0.0
      %3887 = vmatprep.subr.mxu0 0.0
      %3888 = vmatpush1.msra.mxu0 0.0
      %3889 = vmatprep.subr.mxu0 0.0
      %3890 = vmatpush1.msra.mxu0 0.0
      %3891 = vmatprep.subr.mxu0 0.0
      %3892 = vmatpush1.msra.mxu0 0.0
      %3893 = vmatprep.subr.mxu0 0.0
      %3894 = vmatpush1.msra.mxu0 0.0
      %3895 = vmatprep.subr.mxu0 0.0
      %3896 = vmatpush1.msra.mxu0 0.0
      %3897 = vmatprep.subr.mxu0 0.0
      %3898 = vmatpush1.msra.mxu0 0.0
      %3899 = vmatprep.subr.mxu0 0.0
      %3900 = vmatpush1.msra.mxu0 0.0
      %3901 = vmatprep.subr.mxu0 0.0
      %3902 = vmatpush1.msra.mxu0 0.0
      %3903 = vmatprep.subr.mxu0 0.0
      %3904 = vmatpush1.msra.mxu0 0.0
      %3905 = vmatprep.subr.mxu0 0.0
      %3906 = vmatpush1.msra.mxu0 0.0
      %3907 = vmatprep.subr.mxu0 0.0
      %3908 = vmatpush1.msra.mxu0 0.0
      %3909 = vmatprep.subr.mxu0 0.0
      %3910 = vmatpush1.msra.mxu0 0.0
      %3911 = vmatprep.subr.mxu0 0.0
      %3912 = vmatpush1.msra.mxu0 0.0
      %3913 = vmatprep.subr.mxu0 0.0
      %3914 = vmatpush1.msra.mxu0 0.0
      %3915 = vmatprep.mubr.f32.mxu0 0.0
      %3916 = vmatmul.mubr.f32.gmra.mrb[0].mxu0 %v3402
      %v3917 = vpop.f32.mrb[0].mxu0
      %v3918 = vadd.f32 0.0, %v3917
      %v3919 = vpop.f32.mrb[0].mxu0
      %3920 = vdwg.mxu0
      %v3922 = vsel %vm3404, %v3835, 0
      %3924 = vmatprep.subr.mxu0 0.0
      %3925 = vmatpush1.msra.mxu0 %v3825
      %3926 = vmatprep.subr.mxu0 0.0
      %3927 = vmatpush1.msra.mxu0 %v3826
      %3928 = vmatprep.subr.mxu0 0.0
      %3929 = vmatpush1.msra.mxu0 %v3827
      %3930 = vmatprep.subr.mxu0 0.0
      %3931 = vmatpush1.msra.mxu0 %v3828
      %3932 = vmatprep.subr.mxu0 0.0
      %3933 = vmatpush1.msra.mxu0 %v3829
      %3934 = vmatprep.subr.mxu0 0.0
      %3935 = vmatpush1.msra.mxu0 %v3830
      %3936 = vmatprep.subr.mxu0 0.0
      %3937 = vmatpush1.msra.mxu0 %v3831
      %3938 = vmatprep.subr.mxu0 0.0
      %3939 = vmatpush1.msra.mxu0 %v3832
      %3940 = vmatprep.subr.mxu0 0.0
      %3941 = vmatpush1.msra.mxu0 %v3833
      %3942 = vmatprep.subr.mxu0 0.0
      %3943 = vmatpush1.msra.mxu0 %v3834
      %3944 = vmatprep.subr.mxu0 0.0
      %3945 = vmatpush1.msra.mxu0 %v3922
      %3946 = vmatprep.subr.mxu0 0.0
      %3947 = vmatpush1.msra.mxu0 0.0
      %3948 = vmatprep.subr.mxu0 0.0
      %3949 = vmatpush1.msra.mxu0 0.0
      %3950 = vmatprep.subr.mxu0 0.0
      %3951 = vmatpush1.msra.mxu0 0.0
      %3952 = vmatprep.subr.mxu0 0.0
      %3953 = vmatpush1.msra.mxu0 0.0
      %3954 = vmatprep.subr.mxu0 0.0
      %3955 = vmatpush1.msra.mxu0 0.0
      %3956 = vmatprep.subr.mxu0 0.0
      %3957 = vmatpush1.msra.mxu0 0.0
      %3958 = vmatprep.subr.mxu0 0.0
      %3959 = vmatpush1.msra.mxu0 0.0
      %3960 = vmatprep.subr.mxu0 0.0
      %3961 = vmatpush1.msra.mxu0 0.0
      %3962 = vmatprep.subr.mxu0 0.0
      %3963 = vmatpush1.msra.mxu0 0.0
      %3964 = vmatprep.subr.mxu0 0.0
      %3965 = vmatpush1.msra.mxu0 0.0
      %3966 = vmatprep.subr.mxu0 0.0
      %3967 = vmatpush1.msra.mxu0 0.0
      %3968 = vmatprep.subr.mxu0 0.0
      %3969 = vmatpush1.msra.mxu0 0.0
      %3970 = vmatprep.subr.mxu0 0.0
      %3971 = vmatpush1.msra.mxu0 0.0
      %3972 = vmatprep.subr.mxu0 0.0
      %3973 = vmatpush1.msra.mxu0 0.0
      %3974 = vmatprep.subr.mxu0 0.0
      %3975 = vmatpush1.msra.mxu0 0.0
      %3976 = vmatprep.subr.mxu0 0.0
      %3977 = vmatpush1.msra.mxu0 0.0
      %3978 = vmatprep.subr.mxu0 0.0
      %3979 = vmatpush1.msra.mxu0 0.0
      %3980 = vmatprep.subr.mxu0 0.0
      %3981 = vmatpush1.msra.mxu0 0.0
      %3982 = vmatprep.subr.mxu0 0.0
      %3983 = vmatpush1.msra.mxu0 0.0
      %3984 = vmatprep.subr.mxu0 0.0
      %3985 = vmatpush1.msra.mxu0 0.0
      %3986 = vmatprep.subr.mxu0 0.0
      %3987 = vmatpush1.msra.mxu0 0.0
      %3988 = vmatprep.mubr.f32.mxu0 0.0
      %3989 = vmatmul.mubr.f32.gmra.mrb[0].mxu0 %v3479
      %v3990 = vpop.f32.mrb[0].mxu0
      %v3991 = vadd.f32 %v3918, %v3990
      %v3992 = vpop.f32.mrb[0].mxu0
      %3993 = vdwg.mxu0
      %s3994 = scalar_lea.vmem %s3, 440
      %v3995 = vld [vmem:[%s3994] sm:$0xff]
      %v3996 = vld [vmem:[%s3994 + $0x8] sm:$0xff]
      %v3997 = vld [vmem:[%s3994 + $0x10] sm:$0xff]
      %v3998 = vld [vmem:[%s3994 + $0x18] sm:$0xff]
      %v3999 = vld [vmem:[%s3994 + $0x20] sm:$0xff]
      %v4000 = vld [vmem:[%s3994 + $0x28] sm:$0xff]
      %v4001 = vld [vmem:[%s3994 + $0x30] sm:$0xff]
      %v4002 = vld [vmem:[%s3994 + $0x38] sm:$0xff]
      %v4003 = vld [vmem:[%s3994 + $0x40] sm:$0xff]
      %v4004 = vld [vmem:[%s3994 + $0x48] sm:$0xff]
      %v4005 = vld [vmem:[%s3994 + $0x50] sm:$0xf]
      %v4007 = vsel %vm3404, %v4005, 0
      %4009 = vmatprep.subr.mxu0 0.0
      %4010 = vmatpush1.msra.mxu0 %v3995
      %4011 = vmatprep.subr.mxu0 0.0
      %4012 = vmatpush1.msra.mxu0 %v3996
      %4013 = vmatprep.subr.mxu0 0.0
      %4014 = vmatpush1.msra.mxu0 %v3997
      %4015 = vmatprep.subr.mxu0 0.0
      %4016 = vmatpush1.msra.mxu0 %v3998
      %4017 = vmatprep.subr.mxu0 0.0
      %4018 = vmatpush1.msra.mxu0 %v3999
      %4019 = vmatprep.subr.mxu0 0.0
      %4020 = vmatpush1.msra.mxu0 %v4000
      %4021 = vmatprep.subr.mxu0 0.0
      %4022 = vmatpush1.msra.mxu0 %v4001
      %4023 = vmatprep.subr.mxu0 0.0
      %4024 = vmatpush1.msra.mxu0 %v4002
      %4025 = vmatprep.subr.mxu0 0.0
      %4026 = vmatpush1.msra.mxu0 %v4003
      %4027 = vmatprep.subr.mxu0 0.0
      %4028 = vmatpush1.msra.mxu0 %v4004
      %4029 = vmatprep.subr.mxu0 0.0
      %4030 = vmatpush1.msra.mxu0 %v4007
      %4031 = vmatprep.subr.mxu0 0.0
      %4032 = vmatpush1.msra.mxu0 0.0
      %4033 = vmatprep.subr.mxu0 0.0
      %4034 = vmatpush1.msra.mxu0 0.0
      %4035 = vmatprep.subr.mxu0 0.0
      %4036 = vmatpush1.msra.mxu0 0.0
      %4037 = vmatprep.subr.mxu0 0.0
      %4038 = vmatpush1.msra.mxu0 0.0
      %4039 = vmatprep.subr.mxu0 0.0
      %4040 = vmatpush1.msra.mxu0 0.0
      %4041 = vmatprep.subr.mxu0 0.0
      %4042 = vmatpush1.msra.mxu0 0.0
      %4043 = vmatprep.subr.mxu0 0.0
      %4044 = vmatpush1.msra.mxu0 0.0
      %4045 = vmatprep.subr.mxu0 0.0
      %4046 = vmatpush1.msra.mxu0 0.0
      %4047 = vmatprep.subr.mxu0 0.0
      %4048 = vmatpush1.msra.mxu0 0.0
      %4049 = vmatprep.subr.mxu0 0.0
      %4050 = vmatpush1.msra.mxu0 0.0
      %4051 = vmatprep.subr.mxu0 0.0
      %4052 = vmatpush1.msra.mxu0 0.0
      %4053 = vmatprep.subr.mxu0 0.0
      %4054 = vmatpush1.msra.mxu0 0.0
      %4055 = vmatprep.subr.mxu0 0.0
      %4056 = vmatpush1.msra.mxu0 0.0
      %4057 = vmatprep.subr.mxu0 0.0
      %4058 = vmatpush1.msra.mxu0 0.0
      %4059 = vmatprep.subr.mxu0 0.0
      %4060 = vmatpush1.msra.mxu0 0.0
      %4061 = vmatprep.subr.mxu0 0.0
      %4062 = vmatpush1.msra.mxu0 0.0
      %4063 = vmatprep.subr.mxu0 0.0
      %4064 = vmatpush1.msra.mxu0 0.0
      %4065 = vmatprep.subr.mxu0 0.0
      %4066 = vmatpush1.msra.mxu0 0.0
      %4067 = vmatprep.subr.mxu0 0.0
      %4068 = vmatpush1.msra.mxu0 0.0
      %4069 = vmatprep.subr.mxu0 0.0
      %4070 = vmatpush1.msra.mxu0 0.0
      %4071 = vmatprep.subr.mxu0 0.0
      %4072 = vmatpush1.msra.mxu0 0.0
      %4073 = vmatprep.mubr.f32.mxu0 0.0
      %4074 = vmatmul.mubr.f32.gmra.mrb[0].mxu0 %v3568
      %v4075 = vpop.f32.mrb[0].mxu0
      %v4076 = vadd.f32 0.0, %v4075
      %v4077 = vpop.f32.mrb[0].mxu0
      %4078 = vdwg.mxu0
      %v4079 = vadd.f32 %v3991, %v4076
      %s4080 = scalar_lea.vmem %s3, 616
      %v4081 = vld [vmem:[%s4080] sm:$0xff]
      %v4082 = vld [vmem:[%s4080 + $0x8] sm:$0xff]
      %v4083 = vld [vmem:[%s4080 + $0x10] sm:$0xff]
      %v4084 = vld [vmem:[%s4080 + $0x18] sm:$0xff]
      %v4085 = vld [vmem:[%s4080 + $0x20] sm:$0xff]
      %v4086 = vld [vmem:[%s4080 + $0x28] sm:$0xff]
      %v4087 = vld [vmem:[%s4080 + $0x30] sm:$0xff]
      %v4088 = vld [vmem:[%s4080 + $0x38] sm:$0xff]
      %v4089 = vld [vmem:[%s4080 + $0x40] sm:$0xff]
      %v4090 = vld [vmem:[%s4080 + $0x48] sm:$0xff]
      %v4091 = vld [vmem:[%s4080 + $0x50] sm:$0xf]
      %v4093 = vsel %vm3404, %v4091, 0
      %4095 = vmatprep.subr.mxu0 0.0
      %4096 = vmatpush1.msra.mxu0 %v4081
      %4097 = vmatprep.subr.mxu0 0.0
      %4098 = vmatpush1.msra.mxu0 %v4082
      %4099 = vmatprep.subr.mxu0 0.0
      %4100 = vmatpush1.msra.mxu0 %v4083
      %4101 = vmatprep.subr.mxu0 0.0
      %4102 = vmatpush1.msra.mxu0 %v4084
      %4103 = vmatprep.subr.mxu0 0.0
      %4104 = vmatpush1.msra.mxu0 %v4085
      %4105 = vmatprep.subr.mxu0 0.0
      %4106 = vmatpush1.msra.mxu0 %v4086
      %4107 = vmatprep.subr.mxu0 0.0
      %4108 = vmatpush1.msra.mxu0 %v4087
      %4109 = vmatprep.subr.mxu0 0.0
      %4110 = vmatpush1.msra.mxu0 %v4088
      %4111 = vmatprep.subr.mxu0 0.0
      %4112 = vmatpush1.msra.mxu0 %v4089
      %4113 = vmatprep.subr.mxu0 0.0
      %4114 = vmatpush1.msra.mxu0 %v4090
      %4115 = vmatprep.subr.mxu0 0.0
      %4116 = vmatpush1.msra.mxu0 %v4093
      %4117 = vmatprep.subr.mxu0 0.0
      %4118 = vmatpush1.msra.mxu0 0.0
      %4119 = vmatprep.subr.mxu0 0.0
      %4120 = vmatpush1.msra.mxu0 0.0
      %4121 = vmatprep.subr.mxu0 0.0
      %4122 = vmatpush1.msra.mxu0 0.0
      %4123 = vmatprep.subr.mxu0 0.0
      %4124 = vmatpush1.msra.mxu0 0.0
      %4125 = vmatprep.subr.mxu0 0.0
      %4126 = vmatpush1.msra.mxu0 0.0
      %4127 = vmatprep.subr.mxu0 0.0
      %4128 = vmatpush1.msra.mxu0 0.0
      %4129 = vmatprep.subr.mxu0 0.0
      %4130 = vmatpush1.msra.mxu0 0.0
      %4131 = vmatprep.subr.mxu0 0.0
      %4132 = vmatpush1.msra.mxu0 0.0
      %4133 = vmatprep.subr.mxu0 0.0
      %4134 = vmatpush1.msra.mxu0 0.0
      %4135 = vmatprep.subr.mxu0 0.0
      %4136 = vmatpush1.msra.mxu0 0.0
      %4137 = vmatprep.subr.mxu0 0.0
      %4138 = vmatpush1.msra.mxu0 0.0
      %4139 = vmatprep.subr.mxu0 0.0
      %4140 = vmatpush1.msra.mxu0 0.0
      %4141 = vmatprep.subr.mxu0 0.0
      %4142 = vmatpush1.msra.mxu0 0.0
      %4143 = vmatprep.subr.mxu0 0.0
      %4144 = vmatpush1.msra.mxu0 0.0
      %4145 = vmatprep.subr.mxu0 0.0
      %4146 = vmatpush1.msra.mxu0 0.0
      %4147 = vmatprep.subr.mxu0 0.0
      %4148 = vmatpush1.msra.mxu0 0.0
      %4149 = vmatprep.subr.mxu0 0.0
      %4150 = vmatpush1.msra.mxu0 0.0
      %4151 = vmatprep.subr.mxu0 0.0
      %4152 = vmatpush1.msra.mxu0 0.0
      %4153 = vmatprep.subr.mxu0 0.0
      %4154 = vmatpush1.msra.mxu0 0.0
      %4155 = vmatprep.subr.mxu0 0.0
      %4156 = vmatpush1.msra.mxu0 0.0
      %4157 = vmatprep.subr.mxu0 0.0
      %4158 = vmatpush1.msra.mxu0 0.0
      %4159 = vmatprep.mubr.f32.mxu0 0.0
      %4160 = vmatmul.mubr.f32.gmra.mrb[0].mxu0 %v3658
      %v4161 = vpop.f32.mrb[0].mxu0
      %v4162 = vadd.f32 0.0, %v4161
      %v4163 = vpop.f32.mrb[0].mxu0
      %4164 = vdwg.mxu0
      %v4165 = vadd.f32 %v4079, %v4162
      %s4166 = scalar_lea.vmem %s3, 792
      %v4167 = vld [vmem:[%s4166] sm:$0xff]
      %v4168 = vld [vmem:[%s4166 + $0x8] sm:$0xff]
      %v4169 = vld [vmem:[%s4166 + $0x10] sm:$0xff]
      %v4170 = vld [vmem:[%s4166 + $0x18] sm:$0xff]
      %v4171 = vld [vmem:[%s4166 + $0x20] sm:$0xff]
      %v4172 = vld [vmem:[%s4166 + $0x28] sm:$0xff]
      %v4173 = vld [vmem:[%s4166 + $0x30] sm:$0xff]
      %v4174 = vld [vmem:[%s4166 + $0x38] sm:$0xff]
      %v4175 = vld [vmem:[%s4166 + $0x40] sm:$0xff]
      %v4176 = vld [vmem:[%s4166 + $0x48] sm:$0xff]
      %v4177 = vld [vmem:[%s4166 + $0x50] sm:$0xf]
      %v4179 = vsel %vm3404, %v4177, 0
      %4181 = vmatprep.subr.mxu0 0.0
      %4182 = vmatpush1.msra.mxu0 %v4167
      %4183 = vmatprep.subr.mxu0 0.0
      %4184 = vmatpush1.msra.mxu0 %v4168
      %4185 = vmatprep.subr.mxu0 0.0
      %4186 = vmatpush1.msra.mxu0 %v4169
      %4187 = vmatprep.subr.mxu0 0.0
      %4188 = vmatpush1.msra.mxu0 %v4170
      %4189 = vmatprep.subr.mxu0 0.0
      %4190 = vmatpush1.msra.mxu0 %v4171
      %4191 = vmatprep.subr.mxu0 0.0
      %4192 = vmatpush1.msra.mxu0 %v4172
      %4193 = vmatprep.subr.mxu0 0.0
      %4194 = vmatpush1.msra.mxu0 %v4173
      %4195 = vmatprep.subr.mxu0 0.0
      %4196 = vmatpush1.msra.mxu0 %v4174
      %4197 = vmatprep.subr.mxu0 0.0
      %4198 = vmatpush1.msra.mxu0 %v4175
      %4199 = vmatprep.subr.mxu0 0.0
      %4200 = vmatpush1.msra.mxu0 %v4176
      %4201 = vmatprep.subr.mxu0 0.0
      %4202 = vmatpush1.msra.mxu0 %v4179
      %4203 = vmatprep.subr.mxu0 0.0
      %4204 = vmatpush1.msra.mxu0 0.0
      %4205 = vmatprep.subr.mxu0 0.0
      %4206 = vmatpush1.msra.mxu0 0.0
      %4207 = vmatprep.subr.mxu0 0.0
      %4208 = vmatpush1.msra.mxu0 0.0
      %4209 = vmatprep.subr.mxu0 0.0
      %4210 = vmatpush1.msra.mxu0 0.0
      %4211 = vmatprep.subr.mxu0 0.0
      %4212 = vmatpush1.msra.mxu0 0.0
      %4213 = vmatprep.subr.mxu0 0.0
      %4214 = vmatpush1.msra.mxu0 0.0
      %4215 = vmatprep.subr.mxu0 0.0
      %4216 = vmatpush1.msra.mxu0 0.0
      %4217 = vmatprep.subr.mxu0 0.0
      %4218 = vmatpush1.msra.mxu0 0.0
      %4219 = vmatprep.subr.mxu0 0.0
      %4220 = vmatpush1.msra.mxu0 0.0
      %4221 = vmatprep.subr.mxu0 0.0
      %4222 = vmatpush1.msra.mxu0 0.0
      %4223 = vmatprep.subr.mxu0 0.0
      %4224 = vmatpush1.msra.mxu0 0.0
      %4225 = vmatprep.subr.mxu0 0.0
      %4226 = vmatpush1.msra.mxu0 0.0
      %4227 = vmatprep.subr.mxu0 0.0
      %4228 = vmatpush1.msra.mxu0 0.0
      %4229 = vmatprep.subr.mxu0 0.0
      %4230 = vmatpush1.msra.mxu0 0.0
      %4231 = vmatprep.subr.mxu0 0.0
      %4232 = vmatpush1.msra.mxu0 0.0
      %4233 = vmatprep.subr.mxu0 0.0
      %4234 = vmatpush1.msra.mxu0 0.0
      %4235 = vmatprep.subr.mxu0 0.0
      %4236 = vmatpush1.msra.mxu0 0.0
      %4237 = vmatprep.subr.mxu0 0.0
      %4238 = vmatpush1.msra.mxu0 0.0
      %4239 = vmatprep.subr.mxu0 0.0
      %4240 = vmatpush1.msra.mxu0 0.0
      %4241 = vmatprep.subr.mxu0 0.0
      %4242 = vmatpush1.msra.mxu0 0.0
      %4243 = vmatprep.subr.mxu0 0.0
      %4244 = vmatpush1.msra.mxu0 0.0
      %4245 = vmatprep.mubr.f32.mxu0 0.0
      %4246 = vmatmul.mubr.f32.gmra.mrb[0].mxu0 %v3748
      %v4247 = vpop.f32.mrb[0].mxu0
      %v4248 = vadd.f32 0.0, %v4247
      %v4249 = vpop.f32.mrb[0].mxu0
      %4250 = vdwg.mxu0
      %v4251 = vadd.f32 %v4165, %v4248
      %v4252 = vmax.f32 %v3823, %v4251
      %4253 = vmatprep.subr.mxu0 0.0
      %4254 = vmatpush1.msra.mxu0 %v3389
      %4255 = vmatprep.subr.mxu0 0.0
      %4256 = vmatpush1.msra.mxu0 %v3390
      %4257 = vmatprep.subr.mxu0 0.0
      %4258 = vmatpush1.msra.mxu0 %v3391
      %4259 = vmatprep.subr.mxu0 0.0
      %4260 = vmatpush1.msra.mxu0 %v3392
      %4261 = vmatprep.subr.mxu0 0.0
      %4262 = vmatpush1.msra.mxu0 %v3393
      %4263 = vmatprep.subr.mxu0 0.0
      %4264 = vmatpush1.msra.mxu0 %v3394
      %4265 = vmatprep.subr.mxu0 0.0
      %4266 = vmatpush1.msra.mxu0 %v3395
      %4267 = vmatprep.subr.mxu0 0.0
      %4268 = vmatpush1.msra.mxu0 %v3396
      %4269 = vmatprep.subr.mxu0 0.0
      %4270 = vmatpush1.msra.mxu0 %v3397
      %4271 = vmatprep.subr.mxu0 0.0
      %4272 = vmatpush1.msra.mxu0 %v3398
      %4273 = vmatprep.subr.mxu0 0.0
      %4274 = vmatpush1.msra.mxu0 %v3406
      %4275 = vmatprep.subr.mxu0 0.0
      %4276 = vmatpush1.msra.mxu0 0.0
      %4277 = vmatprep.subr.mxu0 0.0
      %4278 = vmatpush1.msra.mxu0 0.0
      %4279 = vmatprep.subr.mxu0 0.0
      %4280 = vmatpush1.msra.mxu0 0.0
      %4281 = vmatprep.subr.mxu0 0.0
      %4282 = vmatpush1.msra.mxu0 0.0
      %4283 = vmatprep.subr.mxu0 0.0
      %4284 = vmatpush1.msra.mxu0 0.0
      %4285 = vmatprep.subr.mxu0 0.0
      %4286 = vmatpush1.msra.mxu0 0.0
      %4287 = vmatprep.subr.mxu0 0.0
      %4288 = vmatpush1.msra.mxu0 0.0
      %4289 = vmatprep.subr.mxu0 0.0
      %4290 = vmatpush1.msra.mxu0 0.0
      %4291 = vmatprep.subr.mxu0 0.0
      %4292 = vmatpush1.msra.mxu0 0.0
      %4293 = vmatprep.subr.mxu0 0.0
      %4294 = vmatpush1.msra.mxu0 0.0
      %4295 = vmatprep.subr.mxu0 0.0
      %4296 = vmatpush1.msra.mxu0 0.0
      %4297 = vmatprep.subr.mxu0 0.0
      %4298 = vmatpush1.msra.mxu0 0.0
      %4299 = vmatprep.subr.mxu0 0.0
      %4300 = vmatpush1.msra.mxu0 0.0
      %4301 = vmatprep.subr.mxu0 0.0
      %4302 = vmatpush1.msra.mxu0 0.0
      %4303 = vmatprep.subr.mxu0 0.0
      %4304 = vmatpush1.msra.mxu0 0.0
      %4305 = vmatprep.subr.mxu0 0.0
      %4306 = vmatpush1.msra.mxu0 0.0
      %4307 = vmatprep.subr.mxu0 0.0
      %4308 = vmatpush1.msra.mxu0 0.0
      %4309 = vmatprep.subr.mxu0 0.0
      %4310 = vmatpush1.msra.mxu0 0.0
      %4311 = vmatprep.subr.mxu0 0.0
      %4312 = vmatpush1.msra.mxu0 0.0
      %4313 = vmatprep.subr.mxu0 0.0
      %4314 = vmatpush1.msra.mxu0 0.0
      %4315 = vmatprep.subr.mxu0 0.0
      %4316 = vmatpush1.msra.mxu0 0.0
      %4317 = vmatprep.mubr.f32.mxu0 0.0
      %4318 = vmatmul.mubr.f32.gmra.mrb[0].mxu0 %v3568
      %v4319 = vpop.f32.mrb[0].mxu0
      %v4320 = vadd.f32 0.0, %v4319
      %v4321 = vpop.f32.mrb[0].mxu0
      %4322 = vdwg.mxu0
      %4323 = vmatprep.subr.mxu0 0.0
      %4324 = vmatpush1.msra.mxu0 %v3376
      %4325 = vmatprep.subr.mxu0 0.0
      %4326 = vmatpush1.msra.mxu0 %v3377
      %4327 = vmatprep.subr.mxu0 0.0
      %4328 = vmatpush1.msra.mxu0 %v3378
      %4329 = vmatprep.subr.mxu0 0.0
      %4330 = vmatpush1.msra.mxu0 %v3379
      %4331 = vmatprep.subr.mxu0 0.0
      %4332 = vmatpush1.msra.mxu0 %v3380
      %4333 = vmatprep.subr.mxu0 0.0
      %4334 = vmatpush1.msra.mxu0 %v3381
      %4335 = vmatprep.subr.mxu0 0.0
      %4336 = vmatpush1.msra.mxu0 %v3382
      %4337 = vmatprep.subr.mxu0 0.0
      %4338 = vmatpush1.msra.mxu0 %v3383
      %4339 = vmatprep.subr.mxu0 0.0
      %4340 = vmatpush1.msra.mxu0 %v3384
      %4341 = vmatprep.subr.mxu0 0.0
      %4342 = vmatpush1.msra.mxu0 %v3385
      %4343 = vmatprep.subr.mxu0 0.0
      %4344 = vmatpush1.msra.mxu0 %v3482
      %4345 = vmatprep.subr.mxu0 0.0
      %4346 = vmatpush1.msra.mxu0 0.0
      %4347 = vmatprep.subr.mxu0 0.0
      %4348 = vmatpush1.msra.mxu0 0.0
      %4349 = vmatprep.subr.mxu0 0.0
      %4350 = vmatpush1.msra.mxu0 0.0
      %4351 = vmatprep.subr.mxu0 0.0
      %4352 = vmatpush1.msra.mxu0 0.0
      %4353 = vmatprep.subr.mxu0 0.0
      %4354 = vmatpush1.msra.mxu0 0.0
      %4355 = vmatprep.subr.mxu0 0.0
      %4356 = vmatpush1.msra.mxu0 0.0
      %4357 = vmatprep.subr.mxu0 0.0
      %4358 = vmatpush1.msra.mxu0 0.0
      %4359 = vmatprep.subr.mxu0 0.0
      %4360 = vmatpush1.msra.mxu0 0.0
      %4361 = vmatprep.subr.mxu0 0.0
      %4362 = vmatpush1.msra.mxu0 0.0
      %4363 = vmatprep.subr.mxu0 0.0
      %4364 = vmatpush1.msra.mxu0 0.0
      %4365 = vmatprep.subr.mxu0 0.0
      %4366 = vmatpush1.msra.mxu0 0.0
      %4367 = vmatprep.subr.mxu0 0.0
      %4368 = vmatpush1.msra.mxu0 0.0
      %4369 = vmatprep.subr.mxu0 0.0
      %4370 = vmatpush1.msra.mxu0 0.0
      %4371 = vmatprep.subr.mxu0 0.0
      %4372 = vmatpush1.msra.mxu0 0.0
      %4373 = vmatprep.subr.mxu0 0.0
      %4374 = vmatpush1.msra.mxu0 0.0
      %4375 = vmatprep.subr.mxu0 0.0
      %4376 = vmatpush1.msra.mxu0 0.0
      %4377 = vmatprep.subr.mxu0 0.0
      %4378 = vmatpush1.msra.mxu0 0.0
      %4379 = vmatprep.subr.mxu0 0.0
      %4380 = vmatpush1.msra.mxu0 0.0
      %4381 = vmatprep.subr.mxu0 0.0
      %4382 = vmatpush1.msra.mxu0 0.0
      %4383 = vmatprep.subr.mxu0 0.0
      %4384 = vmatpush1.msra.mxu0 0.0
      %4385 = vmatprep.subr.mxu0 0.0
      %4386 = vmatpush1.msra.mxu0 0.0
      %4387 = vmatprep.mubr.f32.mxu0 0.0
      %4388 = vmatmul.mubr.f32.gmra.mrb[0].mxu0 %v3402
      %v4389 = vpop.f32.mrb[0].mxu0
      %v4390 = vadd.f32 %v4320, %v4389
      %v4391 = vpop.f32.mrb[0].mxu0
      %4392 = vdwg.mxu0
      %4393 = vmatprep.subr.mxu0 0.0
      %4394 = vmatpush1.msra.mxu0 %v3556
      %4395 = vmatprep.subr.mxu0 0.0
      %4396 = vmatpush1.msra.mxu0 %v3557
      %4397 = vmatprep.subr.mxu0 0.0
      %4398 = vmatpush1.msra.mxu0 %v3558
      %4399 = vmatprep.subr.mxu0 0.0
      %4400 = vmatpush1.msra.mxu0 %v3559
      %4401 = vmatprep.subr.mxu0 0.0
      %4402 = vmatpush1.msra.mxu0 %v3560
      %4403 = vmatprep.subr.mxu0 0.0
      %4404 = vmatpush1.msra.mxu0 %v3561
      %4405 = vmatprep.subr.mxu0 0.0
      %4406 = vmatpush1.msra.mxu0 %v3562
      %4407 = vmatprep.subr.mxu0 0.0
      %4408 = vmatpush1.msra.mxu0 %v3563
      %4409 = vmatprep.subr.mxu0 0.0
      %4410 = vmatpush1.msra.mxu0 %v3564
      %4411 = vmatprep.subr.mxu0 0.0
      %4412 = vmatpush1.msra.mxu0 %v3565
      %4413 = vmatprep.subr.mxu0 0.0
      %4414 = vmatpush1.msra.mxu0 %v3571
      %4415 = vmatprep.subr.mxu0 0.0
      %4416 = vmatpush1.msra.mxu0 0.0
      %4417 = vmatprep.subr.mxu0 0.0
      %4418 = vmatpush1.msra.mxu0 0.0
      %4419 = vmatprep.subr.mxu0 0.0
      %4420 = vmatpush1.msra.mxu0 0.0
      %4421 = vmatprep.subr.mxu0 0.0
      %4422 = vmatpush1.msra.mxu0 0.0
      %4423 = vmatprep.subr.mxu0 0.0
      %4424 = vmatpush1.msra.mxu0 0.0
      %4425 = vmatprep.subr.mxu0 0.0
      %4426 = vmatpush1.msra.mxu0 0.0
      %4427 = vmatprep.subr.mxu0 0.0
      %4428 = vmatpush1.msra.mxu0 0.0
      %4429 = vmatprep.subr.mxu0 0.0
      %4430 = vmatpush1.msra.mxu0 0.0
      %4431 = vmatprep.subr.mxu0 0.0
      %4432 = vmatpush1.msra.mxu0 0.0
      %4433 = vmatprep.subr.mxu0 0.0
      %4434 = vmatpush1.msra.mxu0 0.0
      %4435 = vmatprep.subr.mxu0 0.0
      %4436 = vmatpush1.msra.mxu0 0.0
      %4437 = vmatprep.subr.mxu0 0.0
      %4438 = vmatpush1.msra.mxu0 0.0
      %4439 = vmatprep.subr.mxu0 0.0
      %4440 = vmatpush1.msra.mxu0 0.0
      %4441 = vmatprep.subr.mxu0 0.0
      %4442 = vmatpush1.msra.mxu0 0.0
      %4443 = vmatprep.subr.mxu0 0.0
      %4444 = vmatpush1.msra.mxu0 0.0
      %4445 = vmatprep.subr.mxu0 0.0
      %4446 = vmatpush1.msra.mxu0 0.0
      %4447 = vmatprep.subr.mxu0 0.0
      %4448 = vmatpush1.msra.mxu0 0.0
      %4449 = vmatprep.subr.mxu0 0.0
      %4450 = vmatpush1.msra.mxu0 0.0
      %4451 = vmatprep.subr.mxu0 0.0
      %4452 = vmatpush1.msra.mxu0 0.0
      %4453 = vmatprep.subr.mxu0 0.0
      %4454 = vmatpush1.msra.mxu0 0.0
      %4455 = vmatprep.subr.mxu0 0.0
      %4456 = vmatpush1.msra.mxu0 0.0
      %4457 = vmatprep.mubr.f32.mxu0 0.0
      %4458 = vmatmul.mubr.f32.gmra.mrb[0].mxu0 %v3658
      %v4459 = vpop.f32.mrb[0].mxu0
      %v4460 = vadd.f32 0.0, %v4459
      %v4461 = vpop.f32.mrb[0].mxu0
      %4462 = vdwg.mxu0
      %v4463 = vadd.f32 %v4390, %v4460
      %4464 = vmatprep.subr.mxu0 0.0
      %4465 = vmatpush1.msra.mxu0 %v3646
      %4466 = vmatprep.subr.mxu0 0.0
      %4467 = vmatpush1.msra.mxu0 %v3647
      %4468 = vmatprep.subr.mxu0 0.0
      %4469 = vmatpush1.msra.mxu0 %v3648
      %4470 = vmatprep.subr.mxu0 0.0
      %4471 = vmatpush1.msra.mxu0 %v3649
      %4472 = vmatprep.subr.mxu0 0.0
      %4473 = vmatpush1.msra.mxu0 %v3650
      %4474 = vmatprep.subr.mxu0 0.0
      %4475 = vmatpush1.msra.mxu0 %v3651
      %4476 = vmatprep.subr.mxu0 0.0
      %4477 = vmatpush1.msra.mxu0 %v3652
      %4478 = vmatprep.subr.mxu0 0.0
      %4479 = vmatpush1.msra.mxu0 %v3653
      %4480 = vmatprep.subr.mxu0 0.0
      %4481 = vmatpush1.msra.mxu0 %v3654
      %4482 = vmatprep.subr.mxu0 0.0
      %4483 = vmatpush1.msra.mxu0 %v3655
      %4484 = vmatprep.subr.mxu0 0.0
      %4485 = vmatpush1.msra.mxu0 %v3661
      %4486 = vmatprep.subr.mxu0 0.0
      %4487 = vmatpush1.msra.mxu0 0.0
      %4488 = vmatprep.subr.mxu0 0.0
      %4489 = vmatpush1.msra.mxu0 0.0
      %4490 = vmatprep.subr.mxu0 0.0
      %4491 = vmatpush1.msra.mxu0 0.0
      %4492 = vmatprep.subr.mxu0 0.0
      %4493 = vmatpush1.msra.mxu0 0.0
      %4494 = vmatprep.subr.mxu0 0.0
      %4495 = vmatpush1.msra.mxu0 0.0
      %4496 = vmatprep.subr.mxu0 0.0
      %4497 = vmatpush1.msra.mxu0 0.0
      %4498 = vmatprep.subr.mxu0 0.0
      %4499 = vmatpush1.msra.mxu0 0.0
      %4500 = vmatprep.subr.mxu0 0.0
      %4501 = vmatpush1.msra.mxu0 0.0
      %4502 = vmatprep.subr.mxu0 0.0
      %4503 = vmatpush1.msra.mxu0 0.0
      %4504 = vmatprep.subr.mxu0 0.0
      %4505 = vmatpush1.msra.mxu0 0.0
      %4506 = vmatprep.subr.mxu0 0.0
      %4507 = vmatpush1.msra.mxu0 0.0
      %4508 = vmatprep.subr.mxu0 0.0
      %4509 = vmatpush1.msra.mxu0 0.0
      %4510 = vmatprep.subr.mxu0 0.0
      %4511 = vmatpush1.msra.mxu0 0.0
      %4512 = vmatprep.subr.mxu0 0.0
      %4513 = vmatpush1.msra.mxu0 0.0
      %4514 = vmatprep.subr.mxu0 0.0
      %4515 = vmatpush1.msra.mxu0 0.0
      %4516 = vmatprep.subr.mxu0 0.0
      %4517 = vmatpush1.msra.mxu0 0.0
      %4518 = vmatprep.subr.mxu0 0.0
      %4519 = vmatpush1.msra.mxu0 0.0
      %4520 = vmatprep.subr.mxu0 0.0
      %4521 = vmatpush1.msra.mxu0 0.0
      %4522 = vmatprep.subr.mxu0 0.0
      %4523 = vmatpush1.msra.mxu0 0.0
      %4524 = vmatprep.subr.mxu0 0.0
      %4525 = vmatpush1.msra.mxu0 0.0
      %4526 = vmatprep.subr.mxu0 0.0
      %4527 = vmatpush1.msra.mxu0 0.0
      %4528 = vmatprep.mubr.f32.mxu0 0.0
      %4529 = vmatmul.mubr.f32.gmra.mrb[0].mxu0 %v3748
      %v4530 = vpop.f32.mrb[0].mxu0
      %v4531 = vadd.f32 0.0, %v4530
      %v4532 = vpop.f32.mrb[0].mxu0
      %4533 = vdwg.mxu0
      %v4534 = vadd.f32 %v4463, %v4531
      %v4535 = vld [vmem:[#allocation3 + $0x2] sm:$0x1f]
      %v4537 = vsel %vm3400, %v4535, 0
      %4539 = vmatprep.subr.mxu0 0.0
      %4540 = vmatpush1.msra.mxu0 %v3736
      %4541 = vmatprep.subr.mxu0 0.0
      %4542 = vmatpush1.msra.mxu0 %v3737
      %4543 = vmatprep.subr.mxu0 0.0
      %4544 = vmatpush1.msra.mxu0 %v3738
      %4545 = vmatprep.subr.mxu0 0.0
      %4546 = vmatpush1.msra.mxu0 %v3739
      %4547 = vmatprep.subr.mxu0 0.0
      %4548 = vmatpush1.msra.mxu0 %v3740
      %4549 = vmatprep.subr.mxu0 0.0
      %4550 = vmatpush1.msra.mxu0 %v3741
      %4551 = vmatprep.subr.mxu0 0.0
      %4552 = vmatpush1.msra.mxu0 %v3742
      %4553 = vmatprep.subr.mxu0 0.0
      %4554 = vmatpush1.msra.mxu0 %v3743
      %4555 = vmatprep.subr.mxu0 0.0
      %4556 = vmatpush1.msra.mxu0 %v3744
      %4557 = vmatprep.subr.mxu0 0.0
      %4558 = vmatpush1.msra.mxu0 %v3745
      %4559 = vmatprep.subr.mxu0 0.0
      %4560 = vmatpush1.msra.mxu0 %v3751
      %4561 = vmatprep.subr.mxu0 0.0
      %4562 = vmatpush1.msra.mxu0 0.0
      %4563 = vmatprep.subr.mxu0 0.0
      %4564 = vmatpush1.msra.mxu0 0.0
      %4565 = vmatprep.subr.mxu0 0.0
      %4566 = vmatpush1.msra.mxu0 0.0
      %4567 = vmatprep.subr.mxu0 0.0
      %4568 = vmatpush1.msra.mxu0 0.0
      %4569 = vmatprep.subr.mxu0 0.0
      %4570 = vmatpush1.msra.mxu0 0.0
      %4571 = vmatprep.subr.mxu0 0.0
      %4572 = vmatpush1.msra.mxu0 0.0
      %4573 = vmatprep.subr.mxu0 0.0
      %4574 = vmatpush1.msra.mxu0 0.0
      %4575 = vmatprep.subr.mxu0 0.0
      %4576 = vmatpush1.msra.mxu0 0.0
      %4577 = vmatprep.subr.mxu0 0.0
      %4578 = vmatpush1.msra.mxu0 0.0
      %4579 = vmatprep.subr.mxu0 0.0
      %4580 = vmatpush1.msra.mxu0 0.0
      %4581 = vmatprep.subr.mxu0 0.0
      %4582 = vmatpush1.msra.mxu0 0.0
      %4583 = vmatprep.subr.mxu0 0.0
      %4584 = vmatpush1.msra.mxu0 0.0
      %4585 = vmatprep.subr.mxu0 0.0
      %4586 = vmatpush1.msra.mxu0 0.0
      %4587 = vmatprep.subr.mxu0 0.0
      %4588 = vmatpush1.msra.mxu0 0.0
      %4589 = vmatprep.subr.mxu0 0.0
      %4590 = vmatpush1.msra.mxu0 0.0
      %4591 = vmatprep.subr.mxu0 0.0
      %4592 = vmatpush1.msra.mxu0 0.0
      %4593 = vmatprep.subr.mxu0 0.0
      %4594 = vmatpush1.msra.mxu0 0.0
      %4595 = vmatprep.subr.mxu0 0.0
      %4596 = vmatpush1.msra.mxu0 0.0
      %4597 = vmatprep.subr.mxu0 0.0
      %4598 = vmatpush1.msra.mxu0 0.0
      %4599 = vmatprep.subr.mxu0 0.0
      %4600 = vmatpush1.msra.mxu0 0.0
      %4601 = vmatprep.subr.mxu0 0.0
      %4602 = vmatpush1.msra.mxu0 0.0
      %4603 = vmatprep.mubr.f32.mxu0 0.0
      %4604 = vmatmul.mubr.f32.gmra.mrb[0].mxu0 %v4537
      %v4605 = vpop.f32.mrb[0].mxu0
      %v4606 = vadd.f32 0.0, %v4605
      %v4607 = vpop.f32.mrb[0].mxu0
      %4608 = vdwg.mxu0
      %v4609 = vadd.f32 %v4534, %v4606
      %v4610 = vmax.f32 %v4252, %v4609
      %4611 = vmatprep.subr.mxu0 0.0
      %4612 = vmatpush1.msra.mxu0 %v3837
      %4613 = vmatprep.subr.mxu0 0.0
      %4614 = vmatpush1.msra.mxu0 %v3838
      %4615 = vmatprep.subr.mxu0 0.0
      %4616 = vmatpush1.msra.mxu0 %v3839
      %4617 = vmatprep.subr.mxu0 0.0
      %4618 = vmatpush1.msra.mxu0 %v3840
      %4619 = vmatprep.subr.mxu0 0.0
      %4620 = vmatpush1.msra.mxu0 %v3841
      %4621 = vmatprep.subr.mxu0 0.0
      %4622 = vmatpush1.msra.mxu0 %v3842
      %4623 = vmatprep.subr.mxu0 0.0
      %4624 = vmatpush1.msra.mxu0 %v3843
      %4625 = vmatprep.subr.mxu0 0.0
      %4626 = vmatpush1.msra.mxu0 %v3844
      %4627 = vmatprep.subr.mxu0 0.0
      %4628 = vmatpush1.msra.mxu0 %v3845
      %4629 = vmatprep.subr.mxu0 0.0
      %4630 = vmatpush1.msra.mxu0 %v3846
      %4631 = vmatprep.subr.mxu0 0.0
      %4632 = vmatpush1.msra.mxu0 %v3849
      %4633 = vmatprep.subr.mxu0 0.0
      %4634 = vmatpush1.msra.mxu0 0.0
      %4635 = vmatprep.subr.mxu0 0.0
      %4636 = vmatpush1.msra.mxu0 0.0
      %4637 = vmatprep.subr.mxu0 0.0
      %4638 = vmatpush1.msra.mxu0 0.0
      %4639 = vmatprep.subr.mxu0 0.0
      %4640 = vmatpush1.msra.mxu0 0.0
      %4641 = vmatprep.subr.mxu0 0.0
      %4642 = vmatpush1.msra.mxu0 0.0
      %4643 = vmatprep.subr.mxu0 0.0
      %4644 = vmatpush1.msra.mxu0 0.0
      %4645 = vmatprep.subr.mxu0 0.0
      %4646 = vmatpush1.msra.mxu0 0.0
      %4647 = vmatprep.subr.mxu0 0.0
      %4648 = vmatpush1.msra.mxu0 0.0
      %4649 = vmatprep.subr.mxu0 0.0
      %4650 = vmatpush1.msra.mxu0 0.0
      %4651 = vmatprep.subr.mxu0 0.0
      %4652 = vmatpush1.msra.mxu0 0.0
      %4653 = vmatprep.subr.mxu0 0.0
      %4654 = vmatpush1.msra.mxu0 0.0
      %4655 = vmatprep.subr.mxu0 0.0
      %4656 = vmatpush1.msra.mxu0 0.0
      %4657 = vmatprep.subr.mxu0 0.0
      %4658 = vmatpush1.msra.mxu0 0.0
      %4659 = vmatprep.subr.mxu0 0.0
      %4660 = vmatpush1.msra.mxu0 0.0
      %4661 = vmatprep.subr.mxu0 0.0
      %4662 = vmatpush1.msra.mxu0 0.0
      %4663 = vmatprep.subr.mxu0 0.0
      %4664 = vmatpush1.msra.mxu0 0.0
      %4665 = vmatprep.subr.mxu0 0.0
      %4666 = vmatpush1.msra.mxu0 0.0
      %4667 = vmatprep.subr.mxu0 0.0
      %4668 = vmatpush1.msra.mxu0 0.0
      %4669 = vmatprep.subr.mxu0 0.0
      %4670 = vmatpush1.msra.mxu0 0.0
      %4671 = vmatprep.subr.mxu0 0.0
      %4672 = vmatpush1.msra.mxu0 0.0
      %4673 = vmatprep.subr.mxu0 0.0
      %4674 = vmatpush1.msra.mxu0 0.0
      %4675 = vmatprep.mubr.f32.mxu0 0.0
      %4676 = vmatmul.mubr.f32.gmra.mrb[0].mxu0 %v3568
      %v4677 = vpop.f32.mrb[0].mxu0
      %v4678 = vadd.f32 0.0, %v4677
      %v4679 = vpop.f32.mrb[0].mxu0
      %4680 = vdwg.mxu0
      %4681 = vmatprep.subr.mxu0 0.0
      %4682 = vmatpush1.msra.mxu0 %v3825
      %4683 = vmatprep.subr.mxu0 0.0
      %4684 = vmatpush1.msra.mxu0 %v3826
      %4685 = vmatprep.subr.mxu0 0.0
      %4686 = vmatpush1.msra.mxu0 %v3827
      %4687 = vmatprep.subr.mxu0 0.0
      %4688 = vmatpush1.msra.mxu0 %v3828
      %4689 = vmatprep.subr.mxu0 0.0
      %4690 = vmatpush1.msra.mxu0 %v3829
      %4691 = vmatprep.subr.mxu0 0.0
      %4692 = vmatpush1.msra.mxu0 %v3830
      %4693 = vmatprep.subr.mxu0 0.0
      %4694 = vmatpush1.msra.mxu0 %v3831
      %4695 = vmatprep.subr.mxu0 0.0
      %4696 = vmatpush1.msra.mxu0 %v3832
      %4697 = vmatprep.subr.mxu0 0.0
      %4698 = vmatpush1.msra.mxu0 %v3833
      %4699 = vmatprep.subr.mxu0 0.0
      %4700 = vmatpush1.msra.mxu0 %v3834
      %4701 = vmatprep.subr.mxu0 0.0
      %4702 = vmatpush1.msra.mxu0 %v3922
      %4703 = vmatprep.subr.mxu0 0.0
      %4704 = vmatpush1.msra.mxu0 0.0
      %4705 = vmatprep.subr.mxu0 0.0
      %4706 = vmatpush1.msra.mxu0 0.0
      %4707 = vmatprep.subr.mxu0 0.0
      %4708 = vmatpush1.msra.mxu0 0.0
      %4709 = vmatprep.subr.mxu0 0.0
      %4710 = vmatpush1.msra.mxu0 0.0
      %4711 = vmatprep.subr.mxu0 0.0
      %4712 = vmatpush1.msra.mxu0 0.0
      %4713 = vmatprep.subr.mxu0 0.0
      %4714 = vmatpush1.msra.mxu0 0.0
      %4715 = vmatprep.subr.mxu0 0.0
      %4716 = vmatpush1.msra.mxu0 0.0
      %4717 = vmatprep.subr.mxu0 0.0
      %4718 = vmatpush1.msra.mxu0 0.0
      %4719 = vmatprep.subr.mxu0 0.0
      %4720 = vmatpush1.msra.mxu0 0.0
      %4721 = vmatprep.subr.mxu0 0.0
      %4722 = vmatpush1.msra.mxu0 0.0
      %4723 = vmatprep.subr.mxu0 0.0
      %4724 = vmatpush1.msra.mxu0 0.0
      %4725 = vmatprep.subr.mxu0 0.0
      %4726 = vmatpush1.msra.mxu0 0.0
      %4727 = vmatprep.subr.mxu0 0.0
      %4728 = vmatpush1.msra.mxu0 0.0
      %4729 = vmatprep.subr.mxu0 0.0
      %4730 = vmatpush1.msra.mxu0 0.0
      %4731 = vmatprep.subr.mxu0 0.0
      %4732 = vmatpush1.msra.mxu0 0.0
      %4733 = vmatprep.subr.mxu0 0.0
      %4734 = vmatpush1.msra.mxu0 0.0
      %4735 = vmatprep.subr.mxu0 0.0
      %4736 = vmatpush1.msra.mxu0 0.0
      %4737 = vmatprep.subr.mxu0 0.0
      %4738 = vmatpush1.msra.mxu0 0.0
      %4739 = vmatprep.subr.mxu0 0.0
      %4740 = vmatpush1.msra.mxu0 0.0
      %4741 = vmatprep.subr.mxu0 0.0
      %4742 = vmatpush1.msra.mxu0 0.0
      %4743 = vmatprep.subr.mxu0 0.0
      %4744 = vmatpush1.msra.mxu0 0.0
      %4745 = vmatprep.mubr.f32.mxu0 0.0
      %4746 = vmatmul.mubr.f32.gmra.mrb[0].mxu0 %v3402
      %v4747 = vpop.f32.mrb[0].mxu0
      %v4748 = vadd.f32 %v4678, %v4747
      %v4749 = vpop.f32.mrb[0].mxu0
      %4750 = vdwg.mxu0
      %4751 = vmatprep.subr.mxu0 0.0
      %4752 = vmatpush1.msra.mxu0 %v3995
      %4753 = vmatprep.subr.mxu0 0.0
      %4754 = vmatpush1.msra.mxu0 %v3996
      %4755 = vmatprep.subr.mxu0 0.0
      %4756 = vmatpush1.msra.mxu0 %v3997
      %4757 = vmatprep.subr.mxu0 0.0
      %4758 = vmatpush1.msra.mxu0 %v3998
      %4759 = vmatprep.subr.mxu0 0.0
      %4760 = vmatpush1.msra.mxu0 %v3999
      %4761 = vmatprep.subr.mxu0 0.0
      %4762 = vmatpush1.msra.mxu0 %v4000
      %4763 = vmatprep.subr.mxu0 0.0
      %4764 = vmatpush1.msra.mxu0 %v4001
      %4765 = vmatprep.subr.mxu0 0.0
      %4766 = vmatpush1.msra.mxu0 %v4002
      %4767 = vmatprep.subr.mxu0 0.0
      %4768 = vmatpush1.msra.mxu0 %v4003
      %4769 = vmatprep.subr.mxu0 0.0
      %4770 = vmatpush1.msra.mxu0 %v4004
      %4771 = vmatprep.subr.mxu0 0.0
      %4772 = vmatpush1.msra.mxu0 %v4007
      %4773 = vmatprep.subr.mxu0 0.0
      %4774 = vmatpush1.msra.mxu0 0.0
      %4775 = vmatprep.subr.mxu0 0.0
      %4776 = vmatpush1.msra.mxu0 0.0
      %4777 = vmatprep.subr.mxu0 0.0
      %4778 = vmatpush1.msra.mxu0 0.0
      %4779 = vmatprep.subr.mxu0 0.0
      %4780 = vmatpush1.msra.mxu0 0.0
      %4781 = vmatprep.subr.mxu0 0.0
      %4782 = vmatpush1.msra.mxu0 0.0
      %4783 = vmatprep.subr.mxu0 0.0
      %4784 = vmatpush1.msra.mxu0 0.0
      %4785 = vmatprep.subr.mxu0 0.0
      %4786 = vmatpush1.msra.mxu0 0.0
      %4787 = vmatprep.subr.mxu0 0.0
      %4788 = vmatpush1.msra.mxu0 0.0
      %4789 = vmatprep.subr.mxu0 0.0
      %4790 = vmatpush1.msra.mxu0 0.0
      %4791 = vmatprep.subr.mxu0 0.0
      %4792 = vmatpush1.msra.mxu0 0.0
      %4793 = vmatprep.subr.mxu0 0.0
      %4794 = vmatpush1.msra.mxu0 0.0
      %4795 = vmatprep.subr.mxu0 0.0
      %4796 = vmatpush1.msra.mxu0 0.0
      %4797 = vmatprep.subr.mxu0 0.0
      %4798 = vmatpush1.msra.mxu0 0.0
      %4799 = vmatprep.subr.mxu0 0.0
      %4800 = vmatpush1.msra.mxu0 0.0
      %4801 = vmatprep.subr.mxu0 0.0
      %4802 = vmatpush1.msra.mxu0 0.0
      %4803 = vmatprep.subr.mxu0 0.0
      %4804 = vmatpush1.msra.mxu0 0.0
      %4805 = vmatprep.subr.mxu0 0.0
      %4806 = vmatpush1.msra.mxu0 0.0
      %4807 = vmatprep.subr.mxu0 0.0
      %4808 = vmatpush1.msra.mxu0 0.0
      %4809 = vmatprep.subr.mxu0 0.0
      %4810 = vmatpush1.msra.mxu0 0.0
      %4811 = vmatprep.subr.mxu0 0.0
      %4812 = vmatpush1.msra.mxu0 0.0
      %4813 = vmatprep.subr.mxu0 0.0
      %4814 = vmatpush1.msra.mxu0 0.0
      %4815 = vmatprep.mubr.f32.mxu0 0.0
      %4816 = vmatmul.mubr.f32.gmra.mrb[0].mxu0 %v3658
      %v4817 = vpop.f32.mrb[0].mxu0
      %v4818 = vadd.f32 0.0, %v4817
      %v4819 = vpop.f32.mrb[0].mxu0
      %4820 = vdwg.mxu0
      %v4821 = vadd.f32 %v4748, %v4818
      %4822 = vmatprep.subr.mxu0 0.0
      %4823 = vmatpush1.msra.mxu0 %v4081
      %4824 = vmatprep.subr.mxu0 0.0
      %4825 = vmatpush1.msra.mxu0 %v4082
      %4826 = vmatprep.subr.mxu0 0.0
      %4827 = vmatpush1.msra.mxu0 %v4083
      %4828 = vmatprep.subr.mxu0 0.0
      %4829 = vmatpush1.msra.mxu0 %v4084
      %4830 = vmatprep.subr.mxu0 0.0
      %4831 = vmatpush1.msra.mxu0 %v4085
      %4832 = vmatprep.subr.mxu0 0.0
      %4833 = vmatpush1.msra.mxu0 %v4086
      %4834 = vmatprep.subr.mxu0 0.0
      %4835 = vmatpush1.msra.mxu0 %v4087
      %4836 = vmatprep.subr.mxu0 0.0
      %4837 = vmatpush1.msra.mxu0 %v4088
      %4838 = vmatprep.subr.mxu0 0.0
      %4839 = vmatpush1.msra.mxu0 %v4089
      %4840 = vmatprep.subr.mxu0 0.0
      %4841 = vmatpush1.msra.mxu0 %v4090
      %4842 = vmatprep.subr.mxu0 0.0
      %4843 = vmatpush1.msra.mxu0 %v4093
      %4844 = vmatprep.subr.mxu0 0.0
      %4845 = vmatpush1.msra.mxu0 0.0
      %4846 = vmatprep.subr.mxu0 0.0
      %4847 = vmatpush1.msra.mxu0 0.0
      %4848 = vmatprep.subr.mxu0 0.0
      %4849 = vmatpush1.msra.mxu0 0.0
      %4850 = vmatprep.subr.mxu0 0.0
      %4851 = vmatpush1.msra.mxu0 0.0
      %4852 = vmatprep.subr.mxu0 0.0
      %4853 = vmatpush1.msra.mxu0 0.0
      %4854 = vmatprep.subr.mxu0 0.0
      %4855 = vmatpush1.msra.mxu0 0.0
      %4856 = vmatprep.subr.mxu0 0.0
      %4857 = vmatpush1.msra.mxu0 0.0
      %4858 = vmatprep.subr.mxu0 0.0
      %4859 = vmatpush1.msra.mxu0 0.0
      %4860 = vmatprep.subr.mxu0 0.0
      %4861 = vmatpush1.msra.mxu0 0.0
      %4862 = vmatprep.subr.mxu0 0.0
      %4863 = vmatpush1.msra.mxu0 0.0
      %4864 = vmatprep.subr.mxu0 0.0
      %4865 = vmatpush1.msra.mxu0 0.0
      %4866 = vmatprep.subr.mxu0 0.0
      %4867 = vmatpush1.msra.mxu0 0.0
      %4868 = vmatprep.subr.mxu0 0.0
      %4869 = vmatpush1.msra.mxu0 0.0
      %4870 = vmatprep.subr.mxu0 0.0
      %4871 = vmatpush1.msra.mxu0 0.0
      %4872 = vmatprep.subr.mxu0 0.0
      %4873 = vmatpush1.msra.mxu0 0.0
      %4874 = vmatprep.subr.mxu0 0.0
      %4875 = vmatpush1.msra.mxu0 0.0
      %4876 = vmatprep.subr.mxu0 0.0
      %4877 = vmatpush1.msra.mxu0 0.0
      %4878 = vmatprep.subr.mxu0 0.0
      %4879 = vmatpush1.msra.mxu0 0.0
      %4880 = vmatprep.subr.mxu0 0.0
      %4881 = vmatpush1.msra.mxu0 0.0
      %4882 = vmatprep.subr.mxu0 0.0
      %4883 = vmatpush1.msra.mxu0 0.0
      %4884 = vmatprep.subr.mxu0 0.0
      %4885 = vmatpush1.msra.mxu0 0.0
      %4886 = vmatprep.mubr.f32.mxu0 0.0
      %4887 = vmatmul.mubr.f32.gmra.mrb[0].mxu0 %v3748
      %v4888 = vpop.f32.mrb[0].mxu0
      %v4889 = vadd.f32 0.0, %v4888
      %v4890 = vpop.f32.mrb[0].mxu0
      %4891 = vdwg.mxu0
      %v4892 = vadd.f32 %v4821, %v4889
      %4893 = vmatprep.subr.mxu0 0.0
      %4894 = vmatpush1.msra.mxu0 %v4167
      %4895 = vmatprep.subr.mxu0 0.0
      %4896 = vmatpush1.msra.mxu0 %v4168
      %4897 = vmatprep.subr.mxu0 0.0
      %4898 = vmatpush1.msra.mxu0 %v4169
      %4899 = vmatprep.subr.mxu0 0.0
      %4900 = vmatpush1.msra.mxu0 %v4170
      %4901 = vmatprep.subr.mxu0 0.0
      %4902 = vmatpush1.msra.mxu0 %v4171
      %4903 = vmatprep.subr.mxu0 0.0
      %4904 = vmatpush1.msra.mxu0 %v4172
      %4905 = vmatprep.subr.mxu0 0.0
      %4906 = vmatpush1.msra.mxu0 %v4173
      %4907 = vmatprep.subr.mxu0 0.0
      %4908 = vmatpush1.msra.mxu0 %v4174
      %4909 = vmatprep.subr.mxu0 0.0
      %4910 = vmatpush1.msra.mxu0 %v4175
      %4911 = vmatprep.subr.mxu0 0.0
      %4912 = vmatpush1.msra.mxu0 %v4176
      %4913 = vmatprep.subr.mxu0 0.0
      %4914 = vmatpush1.msra.mxu0 %v4179
      %4915 = vmatprep.subr.mxu0 0.0
      %4916 = vmatpush1.msra.mxu0 0.0
      %4917 = vmatprep.subr.mxu0 0.0
      %4918 = vmatpush1.msra.mxu0 0.0
      %4919 = vmatprep.subr.mxu0 0.0
      %4920 = vmatpush1.msra.mxu0 0.0
      %4921 = vmatprep.subr.mxu0 0.0
      %4922 = vmatpush1.msra.mxu0 0.0
      %4923 = vmatprep.subr.mxu0 0.0
      %4924 = vmatpush1.msra.mxu0 0.0
      %4925 = vmatprep.subr.mxu0 0.0
      %4926 = vmatpush1.msra.mxu0 0.0
      %4927 = vmatprep.subr.mxu0 0.0
      %4928 = vmatpush1.msra.mxu0 0.0
      %4929 = vmatprep.subr.mxu0 0.0
      %4930 = vmatpush1.msra.mxu0 0.0
      %4931 = vmatprep.subr.mxu0 0.0
      %4932 = vmatpush1.msra.mxu0 0.0
      %4933 = vmatprep.subr.mxu0 0.0
      %4934 = vmatpush1.msra.mxu0 0.0
      %4935 = vmatprep.subr.mxu0 0.0
      %4936 = vmatpush1.msra.mxu0 0.0
      %4937 = vmatprep.subr.mxu0 0.0
      %4938 = vmatpush1.msra.mxu0 0.0
      %4939 = vmatprep.subr.mxu0 0.0
      %4940 = vmatpush1.msra.mxu0 0.0
      %4941 = vmatprep.subr.mxu0 0.0
      %4942 = vmatpush1.msra.mxu0 0.0
      %4943 = vmatprep.subr.mxu0 0.0
      %4944 = vmatpush1.msra.mxu0 0.0
      %4945 = vmatprep.subr.mxu0 0.0
      %4946 = vmatpush1.msra.mxu0 0.0
      %4947 = vmatprep.subr.mxu0 0.0
      %4948 = vmatpush1.msra.mxu0 0.0
      %4949 = vmatprep.subr.mxu0 0.0
      %4950 = vmatpush1.msra.mxu0 0.0
      %4951 = vmatprep.subr.mxu0 0.0
      %4952 = vmatpush1.msra.mxu0 0.0
      %4953 = vmatprep.subr.mxu0 0.0
      %4954 = vmatpush1.msra.mxu0 0.0
      %4955 = vmatprep.subr.mxu0 0.0
      %4956 = vmatpush1.msra.mxu0 0.0
      %4957 = vmatprep.mubr.f32.mxu0 0.0
      %4958 = vmatmul.mubr.f32.gmra.mrb[0].mxu0 %v4537
      %v4959 = vpop.f32.mrb[0].mxu0
      %v4960 = vadd.f32 0.0, %v4959
      %v4961 = vpop.f32.mrb[0].mxu0
      %4962 = vdwg.mxu0
      %v4963 = vadd.f32 %v4892, %v4960
      %v4964 = vmax.f32 %v4610, %v4963
      %v4965 = vld [vmem:[%s4] sm:$0x1]
      %v4967 = vlaneseq
      %v4968 = vshrl.u32 %v4967, 7
      %v4969 = vsub.s32 0, %v4968
      %v4970 = vrot.slane %v4965, %v4969
      %v4972 = vadd.f32 %v4964, %v4970
      %v4973 = vmax.f32 %v4972, 0.0
      %vm4974 = vcmask 651264
      %4975 = vst.msk [vmem:[%s222] sm:$0x1f] %vm4974, %v4973
      %p4976 = scmp.lt.s32.totalorder %s16, 1
      %s4977 = scalar_select %p4976, %s16, 1
      %s4978 = smul.addr %s4977, 8
      %s4979 = scalar_lea.vmem %s5, %s4978
      // Predicated region
      $region41: #{cnn_cifar10_forward.2} parent=39 // pred_check
        %p4980 = pneg %p144
      $region42: #{cnn_cifar10_forward.2} parent=39 // pred_check_branch
        %4982 = sbr.rel (%p4980) target = $region44
      $region43: #{cnn_cifar10_forward.2} parent=39 // pred_region
        _
      $region44: #{cnn_cifar10_forward.2} parent=39 // pred_fallthru
        _
    $region40: #{cnn_cifar10_forward.2} parent=5 // pred_fallthru
      _
    %p4983 = scmp.le.s32.totalorder 2, %s11
    // Predicated region
    $region45: #{cnn_cifar10_forward.2} parent=5 // pred_check
      %p4984 = pneg %p4983
    $region46: #{cnn_cifar10_forward.2} parent=5 // pred_check_branch
      %4986 = sbr.rel (%p4984) target = $region48
    $region47: #{cnn_cifar10_forward.2} parent=5 // pred_region
      %s4987 = ssub.s32 %s11, 2
      // Predicated region
      $region49: #{cnn_cifar10_forward.2} parent=47 // pred_check
        %p4988 = pneg %p150
      $region50: #{cnn_cifar10_forward.2} parent=47 // pred_check_branch
        %4990 = sbr.rel (%p4988) target = $region52
      $region51: #{cnn_cifar10_forward.2} parent=47 // pred_region
        %p4991 = scmp.lt.s32.totalorder %s17, 1
        %s4992 = scalar_select %p4991, %s17, 1
        %s4993 = smul.addr %s4992, 8
        %s4994 = scalar_lea.vmem %s5, %s4993
      $region52: #{cnn_cifar10_forward.2} parent=47 // pred_fallthru
        _
    $region48: #{cnn_cifar10_forward.2} parent=5 // pred_fallthru
      _
  $region6: #{cnn_cifar10_forward.2} parent=0 // loop_footer
    %s15 = sadd.s32 1, %s11
  $region7: #{cnn_cifar10_forward.2} parent=0 // loop_footer_branch
    %10 = sbr.rel target = $region3
  $region8: #{cnn_cifar10_forward.2} parent=0 // loop_exit
    _

</llo_original>
